<compile_context>
chip_gen: v7x
topology: tpu7x:2x2x1
jax: 0.10.0
libtpu: 0.0.40
codegen_flags: <defaults>
</compile_context>

<pallas_src>
import functools

import jax
import jax.numpy as jnp
from jax import lax
from jax.experimental import pallas as pl
from jax.experimental.pallas import tpu as pltpu


def _round_up(x, m):
    return (x + m - 1) // m * m


def _pick_rt(H, W, target_rows=256):
    """Largest divisor of H such that RT*(W+2) flat rows ~ fit in vregs."""
    rt_max = max(1, target_rows // (W + 2))
    for rt in range(min(rt_max, H), 0, -1):
        if H % rt == 0:
            return rt
    return 1


def _basic_block_kernel(x_ref, w1_ref, w2_ref, b1_ref, b2_ref, o_ref,
                        xpad_ref, ypad_ref, *, H, W, Cp, RT):
    """Fused BasicBlock (stride=1, identity shortcut), one image per grid step.

    x_ref  : (1, H, W, Cp) f32   input (channels zero-padded to Cp lanes)
    w?_ref : (9, Cp, Cp)   bf16  conv weights, tap-major, BN scale folded in
    b?_ref : (1, Cp)       f32   folded BatchNorm bias
    o_ref  : (1, H, W, Cp) f32   output
    xpad_ref, ypad_ref : VMEM (R_alloc, Cp) bf16  FLAT zero-padded activations,
        flat index = padded_row * (W+2) + padded_col.
    """
    Wp = W + 2
    TM = RT * Wp                 # flat accumulator rows per M-tile
    n_tiles = H // RT

    # ---- one-time zeroing of the padded buffers (halo + alloc padding). ----
    # Scratch persists across grid steps and the grid axis is sequential
    # ("arbitrary"), so iteration 0 is guaranteed to run first on this core.
    @pl.when(pl.program_id(0) == 0)
    def _init():
        xpad_ref[...] = jnp.zeros_like(xpad_ref)
        ypad_ref[...] = jnp.zeros_like(ypad_ref)

    # ---- scatter x into the interior of the flat padded buffer (bf16). ----
    # Only cols 1..W of padded rows 1..H are written; halos stay zero.
    for y in range(H):
        xpad_ref[pl.ds((y + 1) * Wp + 1, W), :] = (
            x_ref[0, y, :, :].astype(xpad_ref.dtype))

    # Column-validity mask over one M-tile: junk cols are x == W, W+1 of every
    # image row (they map exactly onto halo positions of the next conv input,
    # so writing zeros there keeps the halo correct every step).
    col = jax.lax.broadcasted_iota(jnp.int32, (TM, Cp), 0) % Wp
    valid = col < W

    b1 = b1_ref[...]             # (1, Cp) f32, hoisted
    b2 = b2_ref[...]

    def conv3x3(src_ref, w_ref, t):
        """9 contiguous-slice MXU matmuls, f32 accumulation in vregs."""
        m0 = t * TM
        acc = None
        for dy in range(3):
            for dx in range(3):
                patch = src_ref[pl.ds(m0 + dy * Wp + dx, TM), :]   # contiguous
                part = jnp.dot(patch, w_ref[dy * 3 + dx],
                               preferred_element_type=jnp.float32)
                acc = part if acc is None else acc + part
        return acc               # (TM, Cp) f32, junk cols included

    # ---- conv1 (BN scale folded) + bias + relu -> ypad interior ----------
    for t in range(n_tiles):
        h = jnp.maximum(conv3x3(xpad_ref, w1_ref, t) + b1, 0.0)
        h = jnp.where(valid, h, 0.0)            # zero junk -> re-zeroes halos
        # Contiguous store: flat output row p lands at padded position p+W+3.
        ypad_ref[pl.ds(t * TM + Wp + 1, TM), :] = h.astype(ypad_ref.dtype)

    # ---- conv2 (BN scale folded) + bias + residual + relu -> output -------
    for t in range(n_tiles):
        acc = conv3x3(ypad_ref, w2_ref, t) + b2
        for r in range(RT):
            y = t * RT + r
            row = acc[r * Wp: r * Wp + W, :]                    # drop junk cols
            row = row + x_ref[0, y, :, :].astype(jnp.float32)   # residual (f32)
            o_ref[0, y, :, :] = jnp.maximum(row, 0.0).astype(o_ref.dtype)


def _fold_bn(gamma, beta, mean, var, eps=1e-5):
    scale = gamma / jnp.sqrt(var + eps)
    bias = beta - mean * scale
    return scale.astype(jnp.float32), bias.astype(jnp.float32)


def prepare_block_params(params, Cp, eps=1e-5):
    """Fold inference BatchNorm into the conv weights (scale) and a bias."""
    def prep_w(w_oihw, scale):
        w = jnp.transpose(w_oihw, (2, 3, 1, 0)).astype(jnp.float32)   # HWIO
        w = w * scale[None, None, None, :]                            # fold BN scale
        w = jnp.pad(w, ((0, 0), (0, 0),
                        (0, Cp - w.shape[2]), (0, Cp - w.shape[3])))
        return w.reshape(9, Cp, Cp).astype(jnp.bfloat16)

    def prep_b(bias):
        return jnp.pad(bias, (0, Cp - bias.shape[0]))[None, :].astype(jnp.float32)

    s1, b1 = _fold_bn(params["bn1_gamma"], params["bn1_beta"],
                      params["bn1_mean"], params["bn1_var"], eps)
    s2, b2 = _fold_bn(params["bn2_gamma"], params["bn2_beta"],
                      params["bn2_mean"], params["bn2_var"], eps)
    return (prep_w(params["conv1_w"], s1), prep_w(params["conv2_w"], s2),
            prep_b(b1), prep_b(b2))


def basic_block_nhwc(x_nhwc, w1, w2, b1, b2):
    """NHWC, Cp-lane-padded entry point (what a full network should chain)."""
    N, H, W, Cp = x_nhwc.shape
    Wp = W + 2
    RT = _pick_rt(H, W)
    # Flat padded buffer: legit region is (H+2)*Wp rows; +2 covers tap reads
    # from the junk columns of the last rows; round to a sublane multiple.
    R_alloc = _round_up((H + 2) * Wp + 2, 8)

    kern = functools.partial(_basic_block_kernel, H=H, W=W, Cp=Cp, RT=RT)
    return pl.pallas_call(
        kern,
        out_shape=jax.ShapeDtypeStruct((N, H, W, Cp), x_nhwc.dtype),
        grid_spec=pltpu.PrefetchScalarGridSpec(
            num_scalar_prefetch=0,
            grid=(N,),
            in_specs=[
                pl.BlockSpec((1, H, W, Cp), lambda n: (n, 0, 0, 0)),   # x
                pl.BlockSpec((9, Cp, Cp), lambda n: (0, 0, 0)),        # w1 (BN folded)
                pl.BlockSpec((9, Cp, Cp), lambda n: (0, 0, 0)),        # w2 (BN folded)
                pl.BlockSpec((1, Cp), lambda n: (0, 0)),               # b1
                pl.BlockSpec((1, Cp), lambda n: (0, 0)),               # b2
            ],
            out_specs=pl.BlockSpec((1, H, W, Cp), lambda n: (n, 0, 0, 0)),
            scratch_shapes=[
                pltpu.VMEM((R_alloc, Cp), jnp.bfloat16),   # flat padded x
                pltpu.VMEM((R_alloc, Cp), jnp.bfloat16),   # flat padded conv1 out
            ],
        ),
        compiler_params=pltpu.CompilerParams(
            # "arbitrary": the init-once (program_id==0) scratch zeroing needs
            # a sequential grid; measured parallel-vs-arbitrary delta is ~0 on
            # single-TC chips.  TODO(synk): per-core-safe init + "parallel".
            dimension_semantics=("arbitrary",),
            vmem_limit_bytes=32 * 1024 * 1024),
    )(x_nhwc, w1, w2, b1, b2)


def basic_block_forward(x_nchw, params, *, eps=1e-5):
    """BasicBlock forward (stride=1, downsample=None), inference-mode BN.

    NCHW interface for parity with the PyTorch module.  The transpose /
    channel-pad / slice below are demo-only glue: in a full network keep
    activations in NHWC Cp-padded layout and call basic_block_nhwc directly.
    """
    N, C, H, W = x_nchw.shape
    planes = params["conv1_w"].shape[0]
    assert planes == C, "no downsample => inplanes == planes"
    Cp = _round_up(C, 128)   # lane-dense channels (TODO(synk): C=64 packing)

    x = jnp.transpose(x_nchw, (0, 2, 3, 1))
    x = jnp.pad(x, ((0, 0), (0, 0), (0, 0), (0, Cp - C)))
    w1, w2, b1, b2 = prepare_block_params(params, Cp, eps)

    out = basic_block_nhwc(x, w1, w2, b1, b2)
    out = out[..., :C]
    return jnp.transpose(out, (0, 3, 1, 2))


def _reference_forward(x_nchw, params, *, eps=1e-5):
    """Pure-JAX reference with the same mixed-precision recipe as the kernel
    (BN scale folded into bf16 weights, bf16 matmul operands, f32 accum)."""
    x = jnp.transpose(x_nchw, (0, 2, 3, 1))
    s1, b1 = _fold_bn(params["bn1_gamma"], params["bn1_beta"],
                      params["bn1_mean"], params["bn1_var"], eps)
    s2, b2 = _fold_bn(params["bn2_gamma"], params["bn2_beta"],
                      params["bn2_mean"], params["bn2_var"], eps)
    w1 = (jnp.transpose(params["conv1_w"], (2, 3, 1, 0)) * s1).astype(jnp.bfloat16)
    w2 = (jnp.transpose(params["conv2_w"], (2, 3, 1, 0)) * s2).astype(jnp.bfloat16)

    def conv(inp, w):
        return lax.conv_general_dilated(
            inp.astype(jnp.bfloat16), w, window_strides=(1, 1),
            padding=((1, 1), (1, 1)),
            dimension_numbers=("NHWC", "HWIO", "NHWC"),
            preferred_element_type=jnp.float32)

    h = jnp.maximum(conv(x, w1) + b1, 0.0)
    out = jnp.maximum(conv(h, w2) + b2 + x, 0.0)
    return jnp.transpose(out, (0, 3, 1, 2))


if __name__ == "__main__":
    # small shapes consistent with BasicBlock(inplanes=4, planes=4, stride=1)
    N, C, H, W = 2, 4, 16, 16
    planes = 4

    key = jax.random.PRNGKey(0)
    keys = jax.random.split(key, 8)
    x = jax.random.normal(keys[0], (N, C, H, W), jnp.float32)

    params = {
        "conv1_w": jax.random.normal(keys[1], (planes, C, 3, 3), jnp.float32) * 0.1,
        "conv2_w": jax.random.normal(keys[2], (planes, planes, 3, 3), jnp.float32) * 0.1,
        "bn1_gamma": jax.random.normal(keys[3], (planes,), jnp.float32) * 0.1 + 1.0,
        "bn1_beta": jax.random.normal(keys[4], (planes,), jnp.float32) * 0.1,
        "bn1_mean": jnp.zeros((planes,), jnp.float32),
        "bn1_var": jnp.ones((planes,), jnp.float32),
        "bn2_gamma": jax.random.normal(keys[5], (planes,), jnp.float32) * 0.1 + 1.0,
        "bn2_beta": jax.random.normal(keys[6], (planes,), jnp.float32) * 0.1,
        "bn2_mean": jnp.zeros((planes,), jnp.float32),
        "bn2_var": jnp.ones((planes,), jnp.float32),
    }

    out = jax.block_until_ready(basic_block_forward(x, params))
    ref = jax.block_until_ready(_reference_forward(x, params))

    assert out.shape == (N, planes, H, W), out.shape
    max_err = float(jnp.max(jnp.abs(out - ref)))
    assert jnp.allclose(out, ref, atol=2e-3, rtol=2e-3), max_err

    print("KERNEL_OK")
</pallas_src>

<mosaic_0001>
module attributes {stable_mosaic.version = 11 : i64} {
  func.func @_basic_block_kernel(%arg0: i32, %arg1: memref<1x16x16x128xf32, #tpu.memory_space<vmem>>, %arg2: memref<9x128x128xbf16, #tpu.memory_space<vmem>>, %arg3: memref<9x128x128xbf16, #tpu.memory_space<vmem>>, %arg4: memref<1x128xf32, #tpu.memory_space<vmem>>, %arg5: memref<1x128xf32, #tpu.memory_space<vmem>>, %arg6: memref<1x16x16x128xf32, #tpu.memory_space<vmem>>, %arg7: memref<328x128xbf16, #tpu.memory_space<vmem>>, %arg8: memref<328x128xbf16, #tpu.memory_space<vmem>>) attributes {dimension_semantics = [#tpu.dimension_semantics<arbitrary>], iteration_bounds = array<i64: 2>, scalar_prefetch = 0 : i64, scratch_operands = 2 : i64, tpu.core_type = #tpu.core_type<tc>, window_params = [{transform_indices = @transform_0, window_bounds = array<i64: 1, 16, 16, 128>}, {pipeline_mode = #tpu.pipeline_mode<synchronous>, transform_indices = @transform_1, window_bounds = array<i64: 9, 128, 128>}, {pipeline_mode = #tpu.pipeline_mode<synchronous>, transform_indices = @transform_2, window_bounds = array<i64: 9, 128, 128>}, {pipeline_mode = #tpu.pipeline_mode<synchronous>, transform_indices = @transform_3, window_bounds = array<i64: 1, 128>}, {pipeline_mode = #tpu.pipeline_mode<synchronous>, transform_indices = @transform_4, window_bounds = array<i64: 1, 128>}, {transform_indices = @transform_5, window_bounds = array<i64: 1, 16, 16, 128>}]} {
    %c0_i32 = arith.constant 0 : i32
    %0 = arith.cmpi eq, %arg0, %c0_i32 : i32
    %1 = arith.extui %0 : i1 to i32
    %c0_i32_0 = arith.constant 0 : i32
    %2 = arith.cmpi ne, %1, %c0_i32_0 : i32
    scf.if %2 {
      %cst_430 = arith.constant 0.000000e+00 : bf16
      %428 = vector.broadcast %cst_430 : bf16 to vector<328x128xbf16>
      %c0_431 = arith.constant 0 : index
      %c0_432 = arith.constant 0 : index
      %429 = vector.load %arg7[%c0_431, %c0_432] : memref<328x128xbf16, #tpu.memory_space<vmem>>, vector<328x128xbf16>
      tpu.vector_store %arg7[%c0_431, %c0_432], %428 {strides = array<i32>} : memref<328x128xbf16, #tpu.memory_space<vmem>>, vector<328x128xbf16>,
      %cst_433 = arith.constant 0.000000e+00 : bf16
      %430 = vector.broadcast %cst_433 : bf16 to vector<328x128xbf16>
      %c0_434 = arith.constant 0 : index
      %c0_435 = arith.constant 0 : index
      %431 = vector.load %arg8[%c0_434, %c0_435] : memref<328x128xbf16, #tpu.memory_space<vmem>>, vector<328x128xbf16>
      tpu.vector_store %arg8[%c0_434, %c0_435], %430 {strides = array<i32>} : memref<328x128xbf16, #tpu.memory_space<vmem>>, vector<328x128xbf16>,
    } else {
    }
    %c0 = arith.constant 0 : index
    %c0_1 = arith.constant 0 : index
    %c0_2 = arith.constant 0 : index
    %c0_3 = arith.constant 0 : index
    %3 = vector.load %arg1[%c0, %c0_1, %c0_2, %c0_3] : memref<1x16x16x128xf32, #tpu.memory_space<vmem>>, vector<1x1x16x128xf32>
    %4 = vector.shape_cast %3 : vector<1x1x16x128xf32> to vector<16x128xf32>
    %5 = arith.truncf %4 : vector<16x128xf32> to vector<16x128xbf16>
    %c19 = arith.constant 19 : index
    %c0_4 = arith.constant 0 : index
    %6 = vector.load %arg7[%c19, %c0_4] : memref<328x128xbf16, #tpu.memory_space<vmem>>, vector<16x128xbf16>
    tpu.vector_store %arg7[%c19, %c0_4], %5 {strides = array<i32>} : memref<328x128xbf16, #tpu.memory_space<vmem>>, vector<16x128xbf16>,
    %c0_5 = arith.constant 0 : index
    %c1 = arith.constant 1 : index
    %c0_6 = arith.constant 0 : index
    %c0_7 = arith.constant 0 : index
    %7 = vector.load %arg1[%c0_5, %c1, %c0_6, %c0_7] : memref<1x16x16x128xf32, #tpu.memory_space<vmem>>, vector<1x1x16x128xf32>
    %8 = vector.shape_cast %7 : vector<1x1x16x128xf32> to vector<16x128xf32>
    %9 = arith.truncf %8 : vector<16x128xf32> to vector<16x128xbf16>
    %c37 = arith.constant 37 : index
    %c0_8 = arith.constant 0 : index
    %10 = vector.load %arg7[%c37, %c0_8] : memref<328x128xbf16, #tpu.memory_space<vmem>>, vector<16x128xbf16>
    tpu.vector_store %arg7[%c37, %c0_8], %9 {strides = array<i32>} : memref<328x128xbf16, #tpu.memory_space<vmem>>, vector<16x128xbf16>,
    %c0_9 = arith.constant 0 : index
    %c2 = arith.constant 2 : index
    %c0_10 = arith.constant 0 : index
    %c0_11 = arith.constant 0 : index
    %11 = vector.load %arg1[%c0_9, %c2, %c0_10, %c0_11] : memref<1x16x16x128xf32, #tpu.memory_space<vmem>>, vector<1x1x16x128xf32>
    %12 = vector.shape_cast %11 : vector<1x1x16x128xf32> to vector<16x128xf32>
    %13 = arith.truncf %12 : vector<16x128xf32> to vector<16x128xbf16>
    %c55 = arith.constant 55 : index
    %c0_12 = arith.constant 0 : index
    %14 = vector.load %arg7[%c55, %c0_12] : memref<328x128xbf16, #tpu.memory_space<vmem>>, vector<16x128xbf16>
    tpu.vector_store %arg7[%c55, %c0_12], %13 {strides = array<i32>} : memref<328x128xbf16, #tpu.memory_space<vmem>>, vector<16x128xbf16>,
    %c0_13 = arith.constant 0 : index
    %c3 = arith.constant 3 : index
    %c0_14 = arith.constant 0 : index
    %c0_15 = arith.constant 0 : index
    %15 = vector.load %arg1[%c0_13, %c3, %c0_14, %c0_15] : memref<1x16x16x128xf32, #tpu.memory_space<vmem>>, vector<1x1x16x128xf32>
    %16 = vector.shape_cast %15 : vector<1x1x16x128xf32> to vector<16x128xf32>
    %17 = arith.truncf %16 : vector<16x128xf32> to vector<16x128xbf16>
    %c73 = arith.constant 73 : index
    %c0_16 = arith.constant 0 : index
    %18 = vector.load %arg7[%c73, %c0_16] : memref<328x128xbf16, #tpu.memory_space<vmem>>, vector<16x128xbf16>
    tpu.vector_store %arg7[%c73, %c0_16], %17 {strides = array<i32>} : memref<328x128xbf16, #tpu.memory_space<vmem>>, vector<16x128xbf16>,
    %c0_17 = arith.constant 0 : index
    %c4 = arith.constant 4 : index
    %c0_18 = arith.constant 0 : index
    %c0_19 = arith.constant 0 : index
    %19 = vector.load %arg1[%c0_17, %c4, %c0_18, %c0_19] : memref<1x16x16x128xf32, #tpu.memory_space<vmem>>, vector<1x1x16x128xf32>
    %20 = vector.shape_cast %19 : vector<1x1x16x128xf32> to vector<16x128xf32>
    %21 = arith.truncf %20 : vector<16x128xf32> to vector<16x128xbf16>
    %c91 = arith.constant 91 : index
    %c0_20 = arith.constant 0 : index
    %22 = vector.load %arg7[%c91, %c0_20] : memref<328x128xbf16, #tpu.memory_space<vmem>>, vector<16x128xbf16>
    tpu.vector_store %arg7[%c91, %c0_20], %21 {strides = array<i32>} : memref<328x128xbf16, #tpu.memory_space<vmem>>, vector<16x128xbf16>,
    %c0_21 = arith.constant 0 : index
    %c5 = arith.constant 5 : index
    %c0_22 = arith.constant 0 : index
    %c0_23 = arith.constant 0 : index
    %23 = vector.load %arg1[%c0_21, %c5, %c0_22, %c0_23] : memref<1x16x16x128xf32, #tpu.memory_space<vmem>>, vector<1x1x16x128xf32>
    %24 = vector.shape_cast %23 : vector<1x1x16x128xf32> to vector<16x128xf32>
    %25 = arith.truncf %24 : vector<16x128xf32> to vector<16x128xbf16>
    %c109 = arith.constant 109 : index
    %c0_24 = arith.constant 0 : index
    %26 = vector.load %arg7[%c109, %c0_24] : memref<328x128xbf16, #tpu.memory_space<vmem>>, vector<16x128xbf16>
    tpu.vector_store %arg7[%c109, %c0_24], %25 {strides = array<i32>} : memref<328x128xbf16, #tpu.memory_space<vmem>>, vector<16x128xbf16>,
    %c0_25 = arith.constant 0 : index
    %c6 = arith.constant 6 : index
    %c0_26 = arith.constant 0 : index
    %c0_27 = arith.constant 0 : index
    %27 = vector.load %arg1[%c0_25, %c6, %c0_26, %c0_27] : memref<1x16x16x128xf32, #tpu.memory_space<vmem>>, vector<1x1x16x128xf32>
    %28 = vector.shape_cast %27 : vector<1x1x16x128xf32> to vector<16x128xf32>
    %29 = arith.truncf %28 : vector<16x128xf32> to vector<16x128xbf16>
    %c127 = arith.constant 127 : index
    %c0_28 = arith.constant 0 : index
    %30 = vector.load %arg7[%c127, %c0_28] : memref<328x128xbf16, #tpu.memory_space<vmem>>, vector<16x128xbf16>
    tpu.vector_store %arg7[%c127, %c0_28], %29 {strides = array<i32>} : memref<328x128xbf16, #tpu.memory_space<vmem>>, vector<16x128xbf16>,
    %c0_29 = arith.constant 0 : index
    %c7 = arith.constant 7 : index
    %c0_30 = arith.constant 0 : index
    %c0_31 = arith.constant 0 : index
    %31 = vector.load %arg1[%c0_29, %c7, %c0_30, %c0_31] : memref<1x16x16x128xf32, #tpu.memory_space<vmem>>, vector<1x1x16x128xf32>
    %32 = vector.shape_cast %31 : vector<1x1x16x128xf32> to vector<16x128xf32>
    %33 = arith.truncf %32 : vector<16x128xf32> to vector<16x128xbf16>
    %c145 = arith.constant 145 : index
    %c0_32 = arith.constant 0 : index
    %34 = vector.load %arg7[%c145, %c0_32] : memref<328x128xbf16, #tpu.memory_space<vmem>>, vector<16x128xbf16>
    tpu.vector_store %arg7[%c145, %c0_32], %33 {strides = array<i32>} : memref<328x128xbf16, #tpu.memory_space<vmem>>, vector<16x128xbf16>,
    %c0_33 = arith.constant 0 : index
    %c8 = arith.constant 8 : index
    %c0_34 = arith.constant 0 : index
    %c0_35 = arith.constant 0 : index
    %35 = vector.load %arg1[%c0_33, %c8, %c0_34, %c0_35] : memref<1x16x16x128xf32, #tpu.memory_space<vmem>>, vector<1x1x16x128xf32>
    %36 = vector.shape_cast %35 : vector<1x1x16x128xf32> to vector<16x128xf32>
    %37 = arith.truncf %36 : vector<16x128xf32> to vector<16x128xbf16>
    %c163 = arith.constant 163 : index
    %c0_36 = arith.constant 0 : index
    %38 = vector.load %arg7[%c163, %c0_36] : memref<328x128xbf16, #tpu.memory_space<vmem>>, vector<16x128xbf16>
    tpu.vector_store %arg7[%c163, %c0_36], %37 {strides = array<i32>} : memref<328x128xbf16, #tpu.memory_space<vmem>>, vector<16x128xbf16>,
    %c0_37 = arith.constant 0 : index
    %c9 = arith.constant 9 : index
    %c0_38 = arith.constant 0 : index
    %c0_39 = arith.constant 0 : index
    %39 = vector.load %arg1[%c0_37, %c9, %c0_38, %c0_39] : memref<1x16x16x128xf32, #tpu.memory_space<vmem>>, vector<1x1x16x128xf32>
    %40 = vector.shape_cast %39 : vector<1x1x16x128xf32> to vector<16x128xf32>
    %41 = arith.truncf %40 : vector<16x128xf32> to vector<16x128xbf16>
    %c181 = arith.constant 181 : index
    %c0_40 = arith.constant 0 : index
    %42 = vector.load %arg7[%c181, %c0_40] : memref<328x128xbf16, #tpu.memory_space<vmem>>, vector<16x128xbf16>
    tpu.vector_store %arg7[%c181, %c0_40], %41 {strides = array<i32>} : memref<328x128xbf16, #tpu.memory_space<vmem>>, vector<16x128xbf16>,
    %c0_41 = arith.constant 0 : index
    %c10 = arith.constant 10 : index
    %c0_42 = arith.constant 0 : index
    %c0_43 = arith.constant 0 : index
    %43 = vector.load %arg1[%c0_41, %c10, %c0_42, %c0_43] : memref<1x16x16x128xf32, #tpu.memory_space<vmem>>, vector<1x1x16x128xf32>
    %44 = vector.shape_cast %43 : vector<1x1x16x128xf32> to vector<16x128xf32>
    %45 = arith.truncf %44 : vector<16x128xf32> to vector<16x128xbf16>
    %c199 = arith.constant 199 : index
    %c0_44 = arith.constant 0 : index
    %46 = vector.load %arg7[%c199, %c0_44] : memref<328x128xbf16, #tpu.memory_space<vmem>>, vector<16x128xbf16>
    tpu.vector_store %arg7[%c199, %c0_44], %45 {strides = array<i32>} : memref<328x128xbf16, #tpu.memory_space<vmem>>, vector<16x128xbf16>,
    %c0_45 = arith.constant 0 : index
    %c11 = arith.constant 11 : index
    %c0_46 = arith.constant 0 : index
    %c0_47 = arith.constant 0 : index
    %47 = vector.load %arg1[%c0_45, %c11, %c0_46, %c0_47] : memref<1x16x16x128xf32, #tpu.memory_space<vmem>>, vector<1x1x16x128xf32>
    %48 = vector.shape_cast %47 : vector<1x1x16x128xf32> to vector<16x128xf32>
    %49 = arith.truncf %48 : vector<16x128xf32> to vector<16x128xbf16>
    %c217 = arith.constant 217 : index
    %c0_48 = arith.constant 0 : index
    %50 = vector.load %arg7[%c217, %c0_48] : memref<328x128xbf16, #tpu.memory_space<vmem>>, vector<16x128xbf16>
    tpu.vector_store %arg7[%c217, %c0_48], %49 {strides = array<i32>} : memref<328x128xbf16, #tpu.memory_space<vmem>>, vector<16x128xbf16>,
    %c0_49 = arith.constant 0 : index
    %c12 = arith.constant 12 : index
    %c0_50 = arith.constant 0 : index
    %c0_51 = arith.constant 0 : index
    %51 = vector.load %arg1[%c0_49, %c12, %c0_50, %c0_51] : memref<1x16x16x128xf32, #tpu.memory_space<vmem>>, vector<1x1x16x128xf32>
    %52 = vector.shape_cast %51 : vector<1x1x16x128xf32> to vector<16x128xf32>
    %53 = arith.truncf %52 : vector<16x128xf32> to vector<16x128xbf16>
    %c235 = arith.constant 235 : index
    %c0_52 = arith.constant 0 : index
    %54 = vector.load %arg7[%c235, %c0_52] : memref<328x128xbf16, #tpu.memory_space<vmem>>, vector<16x128xbf16>
    tpu.vector_store %arg7[%c235, %c0_52], %53 {strides = array<i32>} : memref<328x128xbf16, #tpu.memory_space<vmem>>, vector<16x128xbf16>,
    %c0_53 = arith.constant 0 : index
    %c13 = arith.constant 13 : index
    %c0_54 = arith.constant 0 : index
    %c0_55 = arith.constant 0 : index
    %55 = vector.load %arg1[%c0_53, %c13, %c0_54, %c0_55] : memref<1x16x16x128xf32, #tpu.memory_space<vmem>>, vector<1x1x16x128xf32>
    %56 = vector.shape_cast %55 : vector<1x1x16x128xf32> to vector<16x128xf32>
    %57 = arith.truncf %56 : vector<16x128xf32> to vector<16x128xbf16>
    %c253 = arith.constant 253 : index
    %c0_56 = arith.constant 0 : index
    %58 = vector.load %arg7[%c253, %c0_56] : memref<328x128xbf16, #tpu.memory_space<vmem>>, vector<16x128xbf16>
    tpu.vector_store %arg7[%c253, %c0_56], %57 {strides = array<i32>} : memref<328x128xbf16, #tpu.memory_space<vmem>>, vector<16x128xbf16>,
    %c0_57 = arith.constant 0 : index
    %c14 = arith.constant 14 : index
    %c0_58 = arith.constant 0 : index
    %c0_59 = arith.constant 0 : index
    %59 = vector.load %arg1[%c0_57, %c14, %c0_58, %c0_59] : memref<1x16x16x128xf32, #tpu.memory_space<vmem>>, vector<1x1x16x128xf32>
    %60 = vector.shape_cast %59 : vector<1x1x16x128xf32> to vector<16x128xf32>
    %61 = arith.truncf %60 : vector<16x128xf32> to vector<16x128xbf16>
    %c271 = arith.constant 271 : index
    %c0_60 = arith.constant 0 : index
    %62 = vector.load %arg7[%c271, %c0_60] : memref<328x128xbf16, #tpu.memory_space<vmem>>, vector<16x128xbf16>
    tpu.vector_store %arg7[%c271, %c0_60], %61 {strides = array<i32>} : memref<328x128xbf16, #tpu.memory_space<vmem>>, vector<16x128xbf16>,
    %c0_61 = arith.constant 0 : index
    %c15 = arith.constant 15 : index
    %c0_62 = arith.constant 0 : index
    %c0_63 = arith.constant 0 : index
    %63 = vector.load %arg1[%c0_61, %c15, %c0_62, %c0_63] : memref<1x16x16x128xf32, #tpu.memory_space<vmem>>, vector<1x1x16x128xf32>
    %64 = vector.shape_cast %63 : vector<1x1x16x128xf32> to vector<16x128xf32>
    %65 = arith.truncf %64 : vector<16x128xf32> to vector<16x128xbf16>
    %c289 = arith.constant 289 : index
    %c0_64 = arith.constant 0 : index
    %66 = vector.load %arg7[%c289, %c0_64] : memref<328x128xbf16, #tpu.memory_space<vmem>>, vector<16x128xbf16>
    tpu.vector_store %arg7[%c289, %c0_64], %65 {strides = array<i32>} : memref<328x128xbf16, #tpu.memory_space<vmem>>, vector<16x128xbf16>,
    %67 = tpu.iota {dimensions = array<i32: 0>} : vector<144x128xi32>
    %c18_i32 = arith.constant 18 : i32
    %c0_i32_65 = arith.constant 0 : i32
    %68 = arith.cmpi eq, %c18_i32, %c0_i32_65 : i32
    %c1_i32 = arith.constant 1 : i32
    %69 = arith.select %68, %c1_i32, %c18_i32 : i32
    %70 = vector.broadcast %69 : i32 to vector<144x128xi32>
    %71 = arith.remsi %67, %70 : vector<144x128xi32>
    %c0_i32_66 = arith.constant 0 : i32
    %72 = vector.broadcast %c0_i32_66 : i32 to vector<144x128xi32>
    %73 = arith.cmpi ne, %71, %72 : vector<144x128xi32>
    %c0_i32_67 = arith.constant 0 : i32
    %74 = vector.broadcast %c0_i32_67 : i32 to vector<144x128xi32>
    %75 = arith.cmpi slt, %71, %74 : vector<144x128xi32>
    %c0_i32_68 = arith.constant 0 : i32
    %76 = arith.cmpi slt, %69, %c0_i32_68 : i32
    %77 = vector.broadcast %76 : i1 to vector<144x128xi1>
    %78 = vector.broadcast %77 : vector<144x128xi1> to vector<144x128xi1>
    %79 = arith.xori %75, %78 : vector<144x128xi1>
    %80 = arith.andi %79, %73 : vector<144x128xi1>
    %81 = vector.broadcast %69 : i32 to vector<144x128xi32>
    %82 = arith.addi %71, %81 : vector<144x128xi32>
    %83 = arith.select %80, %82, %71 : vector<144x128xi1>, vector<144x128xi32>
    %c16_i32 = arith.constant 16 : i32
    %84 = vector.broadcast %c16_i32 : i32 to vector<144x128xi32>
    %85 = arith.cmpi slt, %83, %84 : vector<144x128xi32>
    %c0_69 = arith.constant 0 : index
    %c0_70 = arith.constant 0 : index
    %86 = vector.load %arg4[%c0_69, %c0_70] : memref<1x128xf32, #tpu.memory_space<vmem>>, vector<1x128xf32>
    %c0_71 = arith.constant 0 : index
    %c0_72 = arith.constant 0 : index
    %87 = vector.load %arg5[%c0_71, %c0_72] : memref<1x128xf32, #tpu.memory_space<vmem>>, vector<1x128xf32>
    %c0_73 = arith.constant 0 : index
    %c0_74 = arith.constant 0 : index
    %88 = vector.load %arg7[%c0_73, %c0_74] : memref<328x128xbf16, #tpu.memory_space<vmem>>, vector<144x128xbf16>
    %c0_75 = arith.constant 0 : index
    %c0_76 = arith.constant 0 : index
    %c0_77 = arith.constant 0 : index
    %89 = vector.load %arg2[%c0_75, %c0_76, %c0_77] : memref<9x128x128xbf16, #tpu.memory_space<vmem>>, vector<1x128x128xbf16>
    %90 = vector.shape_cast %89 : vector<1x128x128xbf16> to vector<128x128xbf16>
    %cst = arith.constant dense<0.000000e+00> : vector<144x128xf32>
    %91 = tpu.matmul %88, %90, %cst {dimension_numbers = #tpu.dot_dimension_numbers<[1], [0], [0], [1], [0, 0, 1, 1], [], []>} : vector<144x128xbf16>, vector<128x128xbf16>, vector<144x128xf32> -> vector<144x128xf32>
    %c1_78 = arith.constant 1 : index
    %c0_79 = arith.constant 0 : index
    %92 = vector.load %arg7[%c1_78, %c0_79] : memref<328x128xbf16, #tpu.memory_space<vmem>>, vector<144x128xbf16>
    %c1_80 = arith.constant 1 : index
    %c0_81 = arith.constant 0 : index
    %c0_82 = arith.constant 0 : index
    %93 = vector.load %arg2[%c1_80, %c0_81, %c0_82] : memref<9x128x128xbf16, #tpu.memory_space<vmem>>, vector<1x128x128xbf16>
    %94 = vector.shape_cast %93 : vector<1x128x128xbf16> to vector<128x128xbf16>
    %cst_83 = arith.constant dense<0.000000e+00> : vector<144x128xf32>
    %95 = tpu.matmul %92, %94, %cst_83 {dimension_numbers = #tpu.dot_dimension_numbers<[1], [0], [0], [1], [0, 0, 1, 1], [], []>} : vector<144x128xbf16>, vector<128x128xbf16>, vector<144x128xf32> -> vector<144x128xf32>
    %96 = arith.addf %91, %95 : vector<144x128xf32>
    %c2_84 = arith.constant 2 : index
    %c0_85 = arith.constant 0 : index
    %97 = vector.load %arg7[%c2_84, %c0_85] : memref<328x128xbf16, #tpu.memory_space<vmem>>, vector<144x128xbf16>
    %c2_86 = arith.constant 2 : index
    %c0_87 = arith.constant 0 : index
    %c0_88 = arith.constant 0 : index
    %98 = vector.load %arg2[%c2_86, %c0_87, %c0_88] : memref<9x128x128xbf16, #tpu.memory_space<vmem>>, vector<1x128x128xbf16>
    %99 = vector.shape_cast %98 : vector<1x128x128xbf16> to vector<128x128xbf16>
    %cst_89 = arith.constant dense<0.000000e+00> : vector<144x128xf32>
    %100 = tpu.matmul %97, %99, %cst_89 {dimension_numbers = #tpu.dot_dimension_numbers<[1], [0], [0], [1], [0, 0, 1, 1], [], []>} : vector<144x128xbf16>, vector<128x128xbf16>, vector<144x128xf32> -> vector<144x128xf32>
    %101 = arith.addf %96, %100 : vector<144x128xf32>
    %c18 = arith.constant 18 : index
    %c0_90 = arith.constant 0 : index
    %102 = vector.load %arg7[%c18, %c0_90] : memref<328x128xbf16, #tpu.memory_space<vmem>>, vector<144x128xbf16>
    %c3_91 = arith.constant 3 : index
    %c0_92 = arith.constant 0 : index
    %c0_93 = arith.constant 0 : index
    %103 = vector.load %arg2[%c3_91, %c0_92, %c0_93] : memref<9x128x128xbf16, #tpu.memory_space<vmem>>, vector<1x128x128xbf16>
    %104 = vector.shape_cast %103 : vector<1x128x128xbf16> to vector<128x128xbf16>
    %cst_94 = arith.constant dense<0.000000e+00> : vector<144x128xf32>
    %105 = tpu.matmul %102, %104, %cst_94 {dimension_numbers = #tpu.dot_dimension_numbers<[1], [0], [0], [1], [0, 0, 1, 1], [], []>} : vector<144x128xbf16>, vector<128x128xbf16>, vector<144x128xf32> -> vector<144x128xf32>
    %106 = arith.addf %101, %105 : vector<144x128xf32>
    %c19_95 = arith.constant 19 : index
    %c0_96 = arith.constant 0 : index
    %107 = vector.load %arg7[%c19_95, %c0_96] : memref<328x128xbf16, #tpu.memory_space<vmem>>, vector<144x128xbf16>
    %c4_97 = arith.constant 4 : index
    %c0_98 = arith.constant 0 : index
    %c0_99 = arith.constant 0 : index
    %108 = vector.load %arg2[%c4_97, %c0_98, %c0_99] : memref<9x128x128xbf16, #tpu.memory_space<vmem>>, vector<1x128x128xbf16>
    %109 = vector.shape_cast %108 : vector<1x128x128xbf16> to vector<128x128xbf16>
    %cst_100 = arith.constant dense<0.000000e+00> : vector<144x128xf32>
    %110 = tpu.matmul %107, %109, %cst_100 {dimension_numbers = #tpu.dot_dimension_numbers<[1], [0], [0], [1], [0, 0, 1, 1], [], []>} : vector<144x128xbf16>, vector<128x128xbf16>, vector<144x128xf32> -> vector<144x128xf32>
    %111 = arith.addf %106, %110 : vector<144x128xf32>
    %c20 = arith.constant 20 : index
    %c0_101 = arith.constant 0 : index
    %112 = vector.load %arg7[%c20, %c0_101] : memref<328x128xbf16, #tpu.memory_space<vmem>>, vector<144x128xbf16>
    %c5_102 = arith.constant 5 : index
    %c0_103 = arith.constant 0 : index
    %c0_104 = arith.constant 0 : index
    %113 = vector.load %arg2[%c5_102, %c0_103, %c0_104] : memref<9x128x128xbf16, #tpu.memory_space<vmem>>, vector<1x128x128xbf16>
    %114 = vector.shape_cast %113 : vector<1x128x128xbf16> to vector<128x128xbf16>
    %cst_105 = arith.constant dense<0.000000e+00> : vector<144x128xf32>
    %115 = tpu.matmul %112, %114, %cst_105 {dimension_numbers = #tpu.dot_dimension_numbers<[1], [0], [0], [1], [0, 0, 1, 1], [], []>} : vector<144x128xbf16>, vector<128x128xbf16>, vector<144x128xf32> -> vector<144x128xf32>
    %116 = arith.addf %111, %115 : vector<144x128xf32>
    %c36 = arith.constant 36 : index
    %c0_106 = arith.constant 0 : index
    %117 = vector.load %arg7[%c36, %c0_106] : memref<328x128xbf16, #tpu.memory_space<vmem>>, vector<144x128xbf16>
    %c6_107 = arith.constant 6 : index
    %c0_108 = arith.constant 0 : index
    %c0_109 = arith.constant 0 : index
    %118 = vector.load %arg2[%c6_107, %c0_108, %c0_109] : memref<9x128x128xbf16, #tpu.memory_space<vmem>>, vector<1x128x128xbf16>
    %119 = vector.shape_cast %118 : vector<1x128x128xbf16> to vector<128x128xbf16>
    %cst_110 = arith.constant dense<0.000000e+00> : vector<144x128xf32>
    %120 = tpu.matmul %117, %119, %cst_110 {dimension_numbers = #tpu.dot_dimension_numbers<[1], [0], [0], [1], [0, 0, 1, 1], [], []>} : vector<144x128xbf16>, vector<128x128xbf16>, vector<144x128xf32> -> vector<144x128xf32>
    %121 = arith.addf %116, %120 : vector<144x128xf32>
    %c37_111 = arith.constant 37 : index
    %c0_112 = arith.constant 0 : index
    %122 = vector.load %arg7[%c37_111, %c0_112] : memref<328x128xbf16, #tpu.memory_space<vmem>>, vector<144x128xbf16>
    %c7_113 = arith.constant 7 : index
    %c0_114 = arith.constant 0 : index
    %c0_115 = arith.constant 0 : index
    %123 = vector.load %arg2[%c7_113, %c0_114, %c0_115] : memref<9x128x128xbf16, #tpu.memory_space<vmem>>, vector<1x128x128xbf16>
    %124 = vector.shape_cast %123 : vector<1x128x128xbf16> to vector<128x128xbf16>
    %cst_116 = arith.constant dense<0.000000e+00> : vector<144x128xf32>
    %125 = tpu.matmul %122, %124, %cst_116 {dimension_numbers = #tpu.dot_dimension_numbers<[1], [0], [0], [1], [0, 0, 1, 1], [], []>} : vector<144x128xbf16>, vector<128x128xbf16>, vector<144x128xf32> -> vector<144x128xf32>
    %126 = arith.addf %121, %125 : vector<144x128xf32>
    %c38 = arith.constant 38 : index
    %c0_117 = arith.constant 0 : index
    %127 = vector.load %arg7[%c38, %c0_117] : memref<328x128xbf16, #tpu.memory_space<vmem>>, vector<144x128xbf16>
    %c8_118 = arith.constant 8 : index
    %c0_119 = arith.constant 0 : index
    %c0_120 = arith.constant 0 : index
    %128 = vector.load %arg2[%c8_118, %c0_119, %c0_120] : memref<9x128x128xbf16, #tpu.memory_space<vmem>>, vector<1x128x128xbf16>
    %129 = vector.shape_cast %128 : vector<1x128x128xbf16> to vector<128x128xbf16>
    %cst_121 = arith.constant dense<0.000000e+00> : vector<144x128xf32>
    %130 = tpu.matmul %127, %129, %cst_121 {dimension_numbers = #tpu.dot_dimension_numbers<[1], [0], [0], [1], [0, 0, 1, 1], [], []>} : vector<144x128xbf16>, vector<128x128xbf16>, vector<144x128xf32> -> vector<144x128xf32>
    %131 = arith.addf %126, %130 : vector<144x128xf32>
    %132 = vector.broadcast %86 : vector<1x128xf32> to vector<144x128xf32>
    %133 = arith.addf %131, %132 : vector<144x128xf32>
    %cst_122 = arith.constant 0.000000e+00 : f32
    %134 = vector.broadcast %cst_122 : f32 to vector<144x128xf32>
    %135 = arith.maximumf %133, %134 : vector<144x128xf32>
    %cst_123 = arith.constant 0.000000e+00 : f32
    %136 = vector.broadcast %cst_123 : f32 to vector<144x128xf32>
    %137 = arith.select %85, %135, %136 : vector<144x128xi1>, vector<144x128xf32>
    %138 = arith.truncf %137 : vector<144x128xf32> to vector<144x128xbf16>
    %c19_124 = arith.constant 19 : index
    %c0_125 = arith.constant 0 : index
    %139 = vector.load %arg8[%c19_124, %c0_125] : memref<328x128xbf16, #tpu.memory_space<vmem>>, vector<144x128xbf16>
    tpu.vector_store %arg8[%c19_124, %c0_125], %138 {strides = array<i32>} : memref<328x128xbf16, #tpu.memory_space<vmem>>, vector<144x128xbf16>,
    %c144 = arith.constant 144 : index
    %c0_126 = arith.constant 0 : index
    %140 = vector.load %arg7[%c144, %c0_126] : memref<328x128xbf16, #tpu.memory_space<vmem>>, vector<144x128xbf16>
    %c0_127 = arith.constant 0 : index
    %c0_128 = arith.constant 0 : index
    %c0_129 = arith.constant 0 : index
    %141 = vector.load %arg2[%c0_127, %c0_128, %c0_129] : memref<9x128x128xbf16, #tpu.memory_space<vmem>>, vector<1x128x128xbf16>
    %142 = vector.shape_cast %141 : vector<1x128x128xbf16> to vector<128x128xbf16>
    %cst_130 = arith.constant dense<0.000000e+00> : vector<144x128xf32>
    %143 = tpu.matmul %140, %142, %cst_130 {dimension_numbers = #tpu.dot_dimension_numbers<[1], [0], [0], [1], [0, 0, 1, 1], [], []>} : vector<144x128xbf16>, vector<128x128xbf16>, vector<144x128xf32> -> vector<144x128xf32>
    %c145_131 = arith.constant 145 : index
    %c0_132 = arith.constant 0 : index
    %144 = vector.load %arg7[%c145_131, %c0_132] : memref<328x128xbf16, #tpu.memory_space<vmem>>, vector<144x128xbf16>
    %c1_133 = arith.constant 1 : index
    %c0_134 = arith.constant 0 : index
    %c0_135 = arith.constant 0 : index
    %145 = vector.load %arg2[%c1_133, %c0_134, %c0_135] : memref<9x128x128xbf16, #tpu.memory_space<vmem>>, vector<1x128x128xbf16>
    %146 = vector.shape_cast %145 : vector<1x128x128xbf16> to vector<128x128xbf16>
    %cst_136 = arith.constant dense<0.000000e+00> : vector<144x128xf32>
    %147 = tpu.matmul %144, %146, %cst_136 {dimension_numbers = #tpu.dot_dimension_numbers<[1], [0], [0], [1], [0, 0, 1, 1], [], []>} : vector<144x128xbf16>, vector<128x128xbf16>, vector<144x128xf32> -> vector<144x128xf32>
    %148 = arith.addf %143, %147 : vector<144x128xf32>
    %c146 = arith.constant 146 : index
    %c0_137 = arith.constant 0 : index
    %149 = vector.load %arg7[%c146, %c0_137] : memref<328x128xbf16, #tpu.memory_space<vmem>>, vector<144x128xbf16>
    %c2_138 = arith.constant 2 : index
    %c0_139 = arith.constant 0 : index
    %c0_140 = arith.constant 0 : index
    %150 = vector.load %arg2[%c2_138, %c0_139, %c0_140] : memref<9x128x128xbf16, #tpu.memory_space<vmem>>, vector<1x128x128xbf16>
    %151 = vector.shape_cast %150 : vector<1x128x128xbf16> to vector<128x128xbf16>
    %cst_141 = arith.constant dense<0.000000e+00> : vector<144x128xf32>
    %152 = tpu.matmul %149, %151, %cst_141 {dimension_numbers = #tpu.dot_dimension_numbers<[1], [0], [0], [1], [0, 0, 1, 1], [], []>} : vector<144x128xbf16>, vector<128x128xbf16>, vector<144x128xf32> -> vector<144x128xf32>
    %153 = arith.addf %148, %152 : vector<144x128xf32>
    %c162 = arith.constant 162 : index
    %c0_142 = arith.constant 0 : index
    %154 = vector.load %arg7[%c162, %c0_142] : memref<328x128xbf16, #tpu.memory_space<vmem>>, vector<144x128xbf16>
    %c3_143 = arith.constant 3 : index
    %c0_144 = arith.constant 0 : index
    %c0_145 = arith.constant 0 : index
    %155 = vector.load %arg2[%c3_143, %c0_144, %c0_145] : memref<9x128x128xbf16, #tpu.memory_space<vmem>>, vector<1x128x128xbf16>
    %156 = vector.shape_cast %155 : vector<1x128x128xbf16> to vector<128x128xbf16>
    %cst_146 = arith.constant dense<0.000000e+00> : vector<144x128xf32>
    %157 = tpu.matmul %154, %156, %cst_146 {dimension_numbers = #tpu.dot_dimension_numbers<[1], [0], [0], [1], [0, 0, 1, 1], [], []>} : vector<144x128xbf16>, vector<128x128xbf16>, vector<144x128xf32> -> vector<144x128xf32>
    %158 = arith.addf %153, %157 : vector<144x128xf32>
    %c163_147 = arith.constant 163 : index
    %c0_148 = arith.constant 0 : index
    %159 = vector.load %arg7[%c163_147, %c0_148] : memref<328x128xbf16, #tpu.memory_space<vmem>>, vector<144x128xbf16>
    %c4_149 = arith.constant 4 : index
    %c0_150 = arith.constant 0 : index
    %c0_151 = arith.constant 0 : index
    %160 = vector.load %arg2[%c4_149, %c0_150, %c0_151] : memref<9x128x128xbf16, #tpu.memory_space<vmem>>, vector<1x128x128xbf16>
    %161 = vector.shape_cast %160 : vector<1x128x128xbf16> to vector<128x128xbf16>
    %cst_152 = arith.constant dense<0.000000e+00> : vector<144x128xf32>
    %162 = tpu.matmul %159, %161, %cst_152 {dimension_numbers = #tpu.dot_dimension_numbers<[1], [0], [0], [1], [0, 0, 1, 1], [], []>} : vector<144x128xbf16>, vector<128x128xbf16>, vector<144x128xf32> -> vector<144x128xf32>
    %163 = arith.addf %158, %162 : vector<144x128xf32>
    %c164 = arith.constant 164 : index
    %c0_153 = arith.constant 0 : index
    %164 = vector.load %arg7[%c164, %c0_153] : memref<328x128xbf16, #tpu.memory_space<vmem>>, vector<144x128xbf16>
    %c5_154 = arith.constant 5 : index
    %c0_155 = arith.constant 0 : index
    %c0_156 = arith.constant 0 : index
    %165 = vector.load %arg2[%c5_154, %c0_155, %c0_156] : memref<9x128x128xbf16, #tpu.memory_space<vmem>>, vector<1x128x128xbf16>
    %166 = vector.shape_cast %165 : vector<1x128x128xbf16> to vector<128x128xbf16>
    %cst_157 = arith.constant dense<0.000000e+00> : vector<144x128xf32>
    %167 = tpu.matmul %164, %166, %cst_157 {dimension_numbers = #tpu.dot_dimension_numbers<[1], [0], [0], [1], [0, 0, 1, 1], [], []>} : vector<144x128xbf16>, vector<128x128xbf16>, vector<144x128xf32> -> vector<144x128xf32>
    %168 = arith.addf %163, %167 : vector<144x128xf32>
    %c180 = arith.constant 180 : index
    %c0_158 = arith.constant 0 : index
    %169 = vector.load %arg7[%c180, %c0_158] : memref<328x128xbf16, #tpu.memory_space<vmem>>, vector<144x128xbf16>
    %c6_159 = arith.constant 6 : index
    %c0_160 = arith.constant 0 : index
    %c0_161 = arith.constant 0 : index
    %170 = vector.load %arg2[%c6_159, %c0_160, %c0_161] : memref<9x128x128xbf16, #tpu.memory_space<vmem>>, vector<1x128x128xbf16>
    %171 = vector.shape_cast %170 : vector<1x128x128xbf16> to vector<128x128xbf16>
    %cst_162 = arith.constant dense<0.000000e+00> : vector<144x128xf32>
    %172 = tpu.matmul %169, %171, %cst_162 {dimension_numbers = #tpu.dot_dimension_numbers<[1], [0], [0], [1], [0, 0, 1, 1], [], []>} : vector<144x128xbf16>, vector<128x128xbf16>, vector<144x128xf32> -> vector<144x128xf32>
    %173 = arith.addf %168, %172 : vector<144x128xf32>
    %c181_163 = arith.constant 181 : index
    %c0_164 = arith.constant 0 : index
    %174 = vector.load %arg7[%c181_163, %c0_164] : memref<328x128xbf16, #tpu.memory_space<vmem>>, vector<144x128xbf16>
    %c7_165 = arith.constant 7 : index
    %c0_166 = arith.constant 0 : index
    %c0_167 = arith.constant 0 : index
    %175 = vector.load %arg2[%c7_165, %c0_166, %c0_167] : memref<9x128x128xbf16, #tpu.memory_space<vmem>>, vector<1x128x128xbf16>
    %176 = vector.shape_cast %175 : vector<1x128x128xbf16> to vector<128x128xbf16>
    %cst_168 = arith.constant dense<0.000000e+00> : vector<144x128xf32>
    %177 = tpu.matmul %174, %176, %cst_168 {dimension_numbers = #tpu.dot_dimension_numbers<[1], [0], [0], [1], [0, 0, 1, 1], [], []>} : vector<144x128xbf16>, vector<128x128xbf16>, vector<144x128xf32> -> vector<144x128xf32>
    %178 = arith.addf %173, %177 : vector<144x128xf32>
    %c182 = arith.constant 182 : index
    %c0_169 = arith.constant 0 : index
    %179 = vector.load %arg7[%c182, %c0_169] : memref<328x128xbf16, #tpu.memory_space<vmem>>, vector<144x128xbf16>
    %c8_170 = arith.constant 8 : index
    %c0_171 = arith.constant 0 : index
    %c0_172 = arith.constant 0 : index
    %180 = vector.load %arg2[%c8_170, %c0_171, %c0_172] : memref<9x128x128xbf16, #tpu.memory_space<vmem>>, vector<1x128x128xbf16>
    %181 = vector.shape_cast %180 : vector<1x128x128xbf16> to vector<128x128xbf16>
    %cst_173 = arith.constant dense<0.000000e+00> : vector<144x128xf32>
    %182 = tpu.matmul %179, %181, %cst_173 {dimension_numbers = #tpu.dot_dimension_numbers<[1], [0], [0], [1], [0, 0, 1, 1], [], []>} : vector<144x128xbf16>, vector<128x128xbf16>, vector<144x128xf32> -> vector<144x128xf32>
    %183 = arith.addf %178, %182 : vector<144x128xf32>
    %184 = vector.broadcast %86 : vector<1x128xf32> to vector<144x128xf32>
    %185 = arith.addf %183, %184 : vector<144x128xf32>
    %cst_174 = arith.constant 0.000000e+00 : f32
    %186 = vector.broadcast %cst_174 : f32 to vector<144x128xf32>
    %187 = arith.maximumf %185, %186 : vector<144x128xf32>
    %cst_175 = arith.constant 0.000000e+00 : f32
    %188 = vector.broadcast %cst_175 : f32 to vector<144x128xf32>
    %189 = arith.select %85, %187, %188 : vector<144x128xi1>, vector<144x128xf32>
    %190 = arith.truncf %189 : vector<144x128xf32> to vector<144x128xbf16>
    %c163_176 = arith.constant 163 : index
    %c0_177 = arith.constant 0 : index
    %191 = vector.load %arg8[%c163_176, %c0_177] : memref<328x128xbf16, #tpu.memory_space<vmem>>, vector<144x128xbf16>
    tpu.vector_store %arg8[%c163_176, %c0_177], %190 {strides = array<i32>} : memref<328x128xbf16, #tpu.memory_space<vmem>>, vector<144x128xbf16>,
    %c0_178 = arith.constant 0 : index
    %c0_179 = arith.constant 0 : index
    %192 = vector.load %arg8[%c0_178, %c0_179] : memref<328x128xbf16, #tpu.memory_space<vmem>>, vector<144x128xbf16>
    %c0_180 = arith.constant 0 : index
    %c0_181 = arith.constant 0 : index
    %c0_182 = arith.constant 0 : index
    %193 = vector.load %arg3[%c0_180, %c0_181, %c0_182] : memref<9x128x128xbf16, #tpu.memory_space<vmem>>, vector<1x128x128xbf16>
    %194 = vector.shape_cast %193 : vector<1x128x128xbf16> to vector<128x128xbf16>
    %cst_183 = arith.constant dense<0.000000e+00> : vector<144x128xf32>
    %195 = tpu.matmul %192, %194, %cst_183 {dimension_numbers = #tpu.dot_dimension_numbers<[1], [0], [0], [1], [0, 0, 1, 1], [], []>} : vector<144x128xbf16>, vector<128x128xbf16>, vector<144x128xf32> -> vector<144x128xf32>
    %c1_184 = arith.constant 1 : index
    %c0_185 = arith.constant 0 : index
    %196 = vector.load %arg8[%c1_184, %c0_185] : memref<328x128xbf16, #tpu.memory_space<vmem>>, vector<144x128xbf16>
    %c1_186 = arith.constant 1 : index
    %c0_187 = arith.constant 0 : index
    %c0_188 = arith.constant 0 : index
    %197 = vector.load %arg3[%c1_186, %c0_187, %c0_188] : memref<9x128x128xbf16, #tpu.memory_space<vmem>>, vector<1x128x128xbf16>
    %198 = vector.shape_cast %197 : vector<1x128x128xbf16> to vector<128x128xbf16>
    %cst_189 = arith.constant dense<0.000000e+00> : vector<144x128xf32>
    %199 = tpu.matmul %196, %198, %cst_189 {dimension_numbers = #tpu.dot_dimension_numbers<[1], [0], [0], [1], [0, 0, 1, 1], [], []>} : vector<144x128xbf16>, vector<128x128xbf16>, vector<144x128xf32> -> vector<144x128xf32>
    %200 = arith.addf %195, %199 : vector<144x128xf32>
    %c2_190 = arith.constant 2 : index
    %c0_191 = arith.constant 0 : index
    %201 = vector.load %arg8[%c2_190, %c0_191] : memref<328x128xbf16, #tpu.memory_space<vmem>>, vector<144x128xbf16>
    %c2_192 = arith.constant 2 : index
    %c0_193 = arith.constant 0 : index
    %c0_194 = arith.constant 0 : index
    %202 = vector.load %arg3[%c2_192, %c0_193, %c0_194] : memref<9x128x128xbf16, #tpu.memory_space<vmem>>, vector<1x128x128xbf16>
    %203 = vector.shape_cast %202 : vector<1x128x128xbf16> to vector<128x128xbf16>
    %cst_195 = arith.constant dense<0.000000e+00> : vector<144x128xf32>
    %204 = tpu.matmul %201, %203, %cst_195 {dimension_numbers = #tpu.dot_dimension_numbers<[1], [0], [0], [1], [0, 0, 1, 1], [], []>} : vector<144x128xbf16>, vector<128x128xbf16>, vector<144x128xf32> -> vector<144x128xf32>
    %205 = arith.addf %200, %204 : vector<144x128xf32>
    %c18_196 = arith.constant 18 : index
    %c0_197 = arith.constant 0 : index
    %206 = vector.load %arg8[%c18_196, %c0_197] : memref<328x128xbf16, #tpu.memory_space<vmem>>, vector<144x128xbf16>
    %c3_198 = arith.constant 3 : index
    %c0_199 = arith.constant 0 : index
    %c0_200 = arith.constant 0 : index
    %207 = vector.load %arg3[%c3_198, %c0_199, %c0_200] : memref<9x128x128xbf16, #tpu.memory_space<vmem>>, vector<1x128x128xbf16>
    %208 = vector.shape_cast %207 : vector<1x128x128xbf16> to vector<128x128xbf16>
    %cst_201 = arith.constant dense<0.000000e+00> : vector<144x128xf32>
    %209 = tpu.matmul %206, %208, %cst_201 {dimension_numbers = #tpu.dot_dimension_numbers<[1], [0], [0], [1], [0, 0, 1, 1], [], []>} : vector<144x128xbf16>, vector<128x128xbf16>, vector<144x128xf32> -> vector<144x128xf32>
    %210 = arith.addf %205, %209 : vector<144x128xf32>
    %c19_202 = arith.constant 19 : index
    %c0_203 = arith.constant 0 : index
    %211 = vector.load %arg8[%c19_202, %c0_203] : memref<328x128xbf16, #tpu.memory_space<vmem>>, vector<144x128xbf16>
    %c4_204 = arith.constant 4 : index
    %c0_205 = arith.constant 0 : index
    %c0_206 = arith.constant 0 : index
    %212 = vector.load %arg3[%c4_204, %c0_205, %c0_206] : memref<9x128x128xbf16, #tpu.memory_space<vmem>>, vector<1x128x128xbf16>
    %213 = vector.shape_cast %212 : vector<1x128x128xbf16> to vector<128x128xbf16>
    %cst_207 = arith.constant dense<0.000000e+00> : vector<144x128xf32>
    %214 = tpu.matmul %211, %213, %cst_207 {dimension_numbers = #tpu.dot_dimension_numbers<[1], [0], [0], [1], [0, 0, 1, 1], [], []>} : vector<144x128xbf16>, vector<128x128xbf16>, vector<144x128xf32> -> vector<144x128xf32>
    %215 = arith.addf %210, %214 : vector<144x128xf32>
    %c20_208 = arith.constant 20 : index
    %c0_209 = arith.constant 0 : index
    %216 = vector.load %arg8[%c20_208, %c0_209] : memref<328x128xbf16, #tpu.memory_space<vmem>>, vector<144x128xbf16>
    %c5_210 = arith.constant 5 : index
    %c0_211 = arith.constant 0 : index
    %c0_212 = arith.constant 0 : index
    %217 = vector.load %arg3[%c5_210, %c0_211, %c0_212] : memref<9x128x128xbf16, #tpu.memory_space<vmem>>, vector<1x128x128xbf16>
    %218 = vector.shape_cast %217 : vector<1x128x128xbf16> to vector<128x128xbf16>
    %cst_213 = arith.constant dense<0.000000e+00> : vector<144x128xf32>
    %219 = tpu.matmul %216, %218, %cst_213 {dimension_numbers = #tpu.dot_dimension_numbers<[1], [0], [0], [1], [0, 0, 1, 1], [], []>} : vector<144x128xbf16>, vector<128x128xbf16>, vector<144x128xf32> -> vector<144x128xf32>
    %220 = arith.addf %215, %219 : vector<144x128xf32>
    %c36_214 = arith.constant 36 : index
    %c0_215 = arith.constant 0 : index
    %221 = vector.load %arg8[%c36_214, %c0_215] : memref<328x128xbf16, #tpu.memory_space<vmem>>, vector<144x128xbf16>
    %c6_216 = arith.constant 6 : index
    %c0_217 = arith.constant 0 : index
    %c0_218 = arith.constant 0 : index
    %222 = vector.load %arg3[%c6_216, %c0_217, %c0_218] : memref<9x128x128xbf16, #tpu.memory_space<vmem>>, vector<1x128x128xbf16>
    %223 = vector.shape_cast %222 : vector<1x128x128xbf16> to vector<128x128xbf16>
    %cst_219 = arith.constant dense<0.000000e+00> : vector<144x128xf32>
    %224 = tpu.matmul %221, %223, %cst_219 {dimension_numbers = #tpu.dot_dimension_numbers<[1], [0], [0], [1], [0, 0, 1, 1], [], []>} : vector<144x128xbf16>, vector<128x128xbf16>, vector<144x128xf32> -> vector<144x128xf32>
    %225 = arith.addf %220, %224 : vector<144x128xf32>
    %c37_220 = arith.constant 37 : index
    %c0_221 = arith.constant 0 : index
    %226 = vector.load %arg8[%c37_220, %c0_221] : memref<328x128xbf16, #tpu.memory_space<vmem>>, vector<144x128xbf16>
    %c7_222 = arith.constant 7 : index
    %c0_223 = arith.constant 0 : index
    %c0_224 = arith.constant 0 : index
    %227 = vector.load %arg3[%c7_222, %c0_223, %c0_224] : memref<9x128x128xbf16, #tpu.memory_space<vmem>>, vector<1x128x128xbf16>
    %228 = vector.shape_cast %227 : vector<1x128x128xbf16> to vector<128x128xbf16>
    %cst_225 = arith.constant dense<0.000000e+00> : vector<144x128xf32>
    %229 = tpu.matmul %226, %228, %cst_225 {dimension_numbers = #tpu.dot_dimension_numbers<[1], [0], [0], [1], [0, 0, 1, 1], [], []>} : vector<144x128xbf16>, vector<128x128xbf16>, vector<144x128xf32> -> vector<144x128xf32>
    %230 = arith.addf %225, %229 : vector<144x128xf32>
    %c38_226 = arith.constant 38 : index
    %c0_227 = arith.constant 0 : index
    %231 = vector.load %arg8[%c38_226, %c0_227] : memref<328x128xbf16, #tpu.memory_space<vmem>>, vector<144x128xbf16>
    %c8_228 = arith.constant 8 : index
    %c0_229 = arith.constant 0 : index
    %c0_230 = arith.constant 0 : index
    %232 = vector.load %arg3[%c8_228, %c0_229, %c0_230] : memref<9x128x128xbf16, #tpu.memory_space<vmem>>, vector<1x128x128xbf16>
    %233 = vector.shape_cast %232 : vector<1x128x128xbf16> to vector<128x128xbf16>
    %cst_231 = arith.constant dense<0.000000e+00> : vector<144x128xf32>
    %234 = tpu.matmul %231, %233, %cst_231 {dimension_numbers = #tpu.dot_dimension_numbers<[1], [0], [0], [1], [0, 0, 1, 1], [], []>} : vector<144x128xbf16>, vector<128x128xbf16>, vector<144x128xf32> -> vector<144x128xf32>
    %235 = arith.addf %230, %234 : vector<144x128xf32>
    %236 = vector.broadcast %87 : vector<1x128xf32> to vector<144x128xf32>
    %237 = arith.addf %235, %236 : vector<144x128xf32>
    %238 = vector.extract_strided_slice %237 {offsets = [0, 0], sizes = [16, 128], strides = [1, 1]} : vector<144x128xf32> to vector<16x128xf32>
    %c0_232 = arith.constant 0 : index
    %c0_233 = arith.constant 0 : index
    %c0_234 = arith.constant 0 : index
    %c0_235 = arith.constant 0 : index
    %239 = vector.load %arg1[%c0_232, %c0_233, %c0_234, %c0_235] : memref<1x16x16x128xf32, #tpu.memory_space<vmem>>, vector<1x1x16x128xf32>
    %240 = vector.shape_cast %239 : vector<1x1x16x128xf32> to vector<16x128xf32>
    %241 = arith.addf %238, %240 : vector<16x128xf32>
    %cst_236 = arith.constant 0.000000e+00 : f32
    %242 = vector.broadcast %cst_236 : f32 to vector<16x128xf32>
    %243 = arith.maximumf %241, %242 : vector<16x128xf32>
    %c0_237 = arith.constant 0 : index
    %c0_238 = arith.constant 0 : index
    %c0_239 = arith.constant 0 : index
    %c0_240 = arith.constant 0 : index
    %244 = vector.load %arg6[%c0_237, %c0_238, %c0_239, %c0_240] : memref<1x16x16x128xf32, #tpu.memory_space<vmem>>, vector<1x1x16x128xf32>
    %245 = vector.shape_cast %244 : vector<1x1x16x128xf32> to vector<16x128xf32>
    %246 = vector.shape_cast %243 : vector<16x128xf32> to vector<1x1x16x128xf32>
    tpu.vector_store %arg6[%c0_237, %c0_238, %c0_239, %c0_240], %246 {strides = array<i32>} : memref<1x16x16x128xf32, #tpu.memory_space<vmem>>, vector<1x1x16x128xf32>,
    %247 = vector.extract_strided_slice %237 {offsets = [18, 0], sizes = [16, 128], strides = [1, 1]} : vector<144x128xf32> to vector<16x128xf32>
    %c0_241 = arith.constant 0 : index
    %c1_242 = arith.constant 1 : index
    %c0_243 = arith.constant 0 : index
    %c0_244 = arith.constant 0 : index
    %248 = vector.load %arg1[%c0_241, %c1_242, %c0_243, %c0_244] : memref<1x16x16x128xf32, #tpu.memory_space<vmem>>, vector<1x1x16x128xf32>
    %249 = vector.shape_cast %248 : vector<1x1x16x128xf32> to vector<16x128xf32>
    %250 = arith.addf %247, %249 : vector<16x128xf32>
    %cst_245 = arith.constant 0.000000e+00 : f32
    %251 = vector.broadcast %cst_245 : f32 to vector<16x128xf32>
    %252 = arith.maximumf %250, %251 : vector<16x128xf32>
    %c0_246 = arith.constant 0 : index
    %c1_247 = arith.constant 1 : index
    %c0_248 = arith.constant 0 : index
    %c0_249 = arith.constant 0 : index
    %253 = vector.load %arg6[%c0_246, %c1_247, %c0_248, %c0_249] : memref<1x16x16x128xf32, #tpu.memory_space<vmem>>, vector<1x1x16x128xf32>
    %254 = vector.shape_cast %253 : vector<1x1x16x128xf32> to vector<16x128xf32>
    %255 = vector.shape_cast %252 : vector<16x128xf32> to vector<1x1x16x128xf32>
    tpu.vector_store %arg6[%c0_246, %c1_247, %c0_248, %c0_249], %255 {strides = array<i32>} : memref<1x16x16x128xf32, #tpu.memory_space<vmem>>, vector<1x1x16x128xf32>,
    %256 = vector.extract_strided_slice %237 {offsets = [36, 0], sizes = [16, 128], strides = [1, 1]} : vector<144x128xf32> to vector<16x128xf32>
    %c0_250 = arith.constant 0 : index
    %c2_251 = arith.constant 2 : index
    %c0_252 = arith.constant 0 : index
    %c0_253 = arith.constant 0 : index
    %257 = vector.load %arg1[%c0_250, %c2_251, %c0_252, %c0_253] : memref<1x16x16x128xf32, #tpu.memory_space<vmem>>, vector<1x1x16x128xf32>
    %258 = vector.shape_cast %257 : vector<1x1x16x128xf32> to vector<16x128xf32>
    %259 = arith.addf %256, %258 : vector<16x128xf32>
    %cst_254 = arith.constant 0.000000e+00 : f32
    %260 = vector.broadcast %cst_254 : f32 to vector<16x128xf32>
    %261 = arith.maximumf %259, %260 : vector<16x128xf32>
    %c0_255 = arith.constant 0 : index
    %c2_256 = arith.constant 2 : index
    %c0_257 = arith.constant 0 : index
    %c0_258 = arith.constant 0 : index
    %262 = vector.load %arg6[%c0_255, %c2_256, %c0_257, %c0_258] : memref<1x16x16x128xf32, #tpu.memory_space<vmem>>, vector<1x1x16x128xf32>
    %263 = vector.shape_cast %262 : vector<1x1x16x128xf32> to vector<16x128xf32>
    %264 = vector.shape_cast %261 : vector<16x128xf32> to vector<1x1x16x128xf32>
    tpu.vector_store %arg6[%c0_255, %c2_256, %c0_257, %c0_258], %264 {strides = array<i32>} : memref<1x16x16x128xf32, #tpu.memory_space<vmem>>, vector<1x1x16x128xf32>,
    %265 = vector.extract_strided_slice %237 {offsets = [54, 0], sizes = [16, 128], strides = [1, 1]} : vector<144x128xf32> to vector<16x128xf32>
    %c0_259 = arith.constant 0 : index
    %c3_260 = arith.constant 3 : index
    %c0_261 = arith.constant 0 : index
    %c0_262 = arith.constant 0 : index
    %266 = vector.load %arg1[%c0_259, %c3_260, %c0_261, %c0_262] : memref<1x16x16x128xf32, #tpu.memory_space<vmem>>, vector<1x1x16x128xf32>
    %267 = vector.shape_cast %266 : vector<1x1x16x128xf32> to vector<16x128xf32>
    %268 = arith.addf %265, %267 : vector<16x128xf32>
    %cst_263 = arith.constant 0.000000e+00 : f32
    %269 = vector.broadcast %cst_263 : f32 to vector<16x128xf32>
    %270 = arith.maximumf %268, %269 : vector<16x128xf32>
    %c0_264 = arith.constant 0 : index
    %c3_265 = arith.constant 3 : index
    %c0_266 = arith.constant 0 : index
    %c0_267 = arith.constant 0 : index
    %271 = vector.load %arg6[%c0_264, %c3_265, %c0_266, %c0_267] : memref<1x16x16x128xf32, #tpu.memory_space<vmem>>, vector<1x1x16x128xf32>
    %272 = vector.shape_cast %271 : vector<1x1x16x128xf32> to vector<16x128xf32>
    %273 = vector.shape_cast %270 : vector<16x128xf32> to vector<1x1x16x128xf32>
    tpu.vector_store %arg6[%c0_264, %c3_265, %c0_266, %c0_267], %273 {strides = array<i32>} : memref<1x16x16x128xf32, #tpu.memory_space<vmem>>, vector<1x1x16x128xf32>,
    %274 = vector.extract_strided_slice %237 {offsets = [72, 0], sizes = [16, 128], strides = [1, 1]} : vector<144x128xf32> to vector<16x128xf32>
    %c0_268 = arith.constant 0 : index
    %c4_269 = arith.constant 4 : index
    %c0_270 = arith.constant 0 : index
    %c0_271 = arith.constant 0 : index
    %275 = vector.load %arg1[%c0_268, %c4_269, %c0_270, %c0_271] : memref<1x16x16x128xf32, #tpu.memory_space<vmem>>, vector<1x1x16x128xf32>
    %276 = vector.shape_cast %275 : vector<1x1x16x128xf32> to vector<16x128xf32>
    %277 = arith.addf %274, %276 : vector<16x128xf32>
    %cst_272 = arith.constant 0.000000e+00 : f32
    %278 = vector.broadcast %cst_272 : f32 to vector<16x128xf32>
    %279 = arith.maximumf %277, %278 : vector<16x128xf32>
    %c0_273 = arith.constant 0 : index
    %c4_274 = arith.constant 4 : index
    %c0_275 = arith.constant 0 : index
    %c0_276 = arith.constant 0 : index
    %280 = vector.load %arg6[%c0_273, %c4_274, %c0_275, %c0_276] : memref<1x16x16x128xf32, #tpu.memory_space<vmem>>, vector<1x1x16x128xf32>
    %281 = vector.shape_cast %280 : vector<1x1x16x128xf32> to vector<16x128xf32>
    %282 = vector.shape_cast %279 : vector<16x128xf32> to vector<1x1x16x128xf32>
    tpu.vector_store %arg6[%c0_273, %c4_274, %c0_275, %c0_276], %282 {strides = array<i32>} : memref<1x16x16x128xf32, #tpu.memory_space<vmem>>, vector<1x1x16x128xf32>,
    %283 = vector.extract_strided_slice %237 {offsets = [90, 0], sizes = [16, 128], strides = [1, 1]} : vector<144x128xf32> to vector<16x128xf32>
    %c0_277 = arith.constant 0 : index
    %c5_278 = arith.constant 5 : index
    %c0_279 = arith.constant 0 : index
    %c0_280 = arith.constant 0 : index
    %284 = vector.load %arg1[%c0_277, %c5_278, %c0_279, %c0_280] : memref<1x16x16x128xf32, #tpu.memory_space<vmem>>, vector<1x1x16x128xf32>
    %285 = vector.shape_cast %284 : vector<1x1x16x128xf32> to vector<16x128xf32>
    %286 = arith.addf %283, %285 : vector<16x128xf32>
    %cst_281 = arith.constant 0.000000e+00 : f32
    %287 = vector.broadcast %cst_281 : f32 to vector<16x128xf32>
    %288 = arith.maximumf %286, %287 : vector<16x128xf32>
    %c0_282 = arith.constant 0 : index
    %c5_283 = arith.constant 5 : index
    %c0_284 = arith.constant 0 : index
    %c0_285 = arith.constant 0 : index
    %289 = vector.load %arg6[%c0_282, %c5_283, %c0_284, %c0_285] : memref<1x16x16x128xf32, #tpu.memory_space<vmem>>, vector<1x1x16x128xf32>
    %290 = vector.shape_cast %289 : vector<1x1x16x128xf32> to vector<16x128xf32>
    %291 = vector.shape_cast %288 : vector<16x128xf32> to vector<1x1x16x128xf32>
    tpu.vector_store %arg6[%c0_282, %c5_283, %c0_284, %c0_285], %291 {strides = array<i32>} : memref<1x16x16x128xf32, #tpu.memory_space<vmem>>, vector<1x1x16x128xf32>,
    %292 = vector.extract_strided_slice %237 {offsets = [108, 0], sizes = [16, 128], strides = [1, 1]} : vector<144x128xf32> to vector<16x128xf32>
    %c0_286 = arith.constant 0 : index
    %c6_287 = arith.constant 6 : index
    %c0_288 = arith.constant 0 : index
    %c0_289 = arith.constant 0 : index
    %293 = vector.load %arg1[%c0_286, %c6_287, %c0_288, %c0_289] : memref<1x16x16x128xf32, #tpu.memory_space<vmem>>, vector<1x1x16x128xf32>
    %294 = vector.shape_cast %293 : vector<1x1x16x128xf32> to vector<16x128xf32>
    %295 = arith.addf %292, %294 : vector<16x128xf32>
    %cst_290 = arith.constant 0.000000e+00 : f32
    %296 = vector.broadcast %cst_290 : f32 to vector<16x128xf32>
    %297 = arith.maximumf %295, %296 : vector<16x128xf32>
    %c0_291 = arith.constant 0 : index
    %c6_292 = arith.constant 6 : index
    %c0_293 = arith.constant 0 : index
    %c0_294 = arith.constant 0 : index
    %298 = vector.load %arg6[%c0_291, %c6_292, %c0_293, %c0_294] : memref<1x16x16x128xf32, #tpu.memory_space<vmem>>, vector<1x1x16x128xf32>
    %299 = vector.shape_cast %298 : vector<1x1x16x128xf32> to vector<16x128xf32>
    %300 = vector.shape_cast %297 : vector<16x128xf32> to vector<1x1x16x128xf32>
    tpu.vector_store %arg6[%c0_291, %c6_292, %c0_293, %c0_294], %300 {strides = array<i32>} : memref<1x16x16x128xf32, #tpu.memory_space<vmem>>, vector<1x1x16x128xf32>,
    %301 = vector.extract_strided_slice %237 {offsets = [126, 0], sizes = [16, 128], strides = [1, 1]} : vector<144x128xf32> to vector<16x128xf32>
    %c0_295 = arith.constant 0 : index
    %c7_296 = arith.constant 7 : index
    %c0_297 = arith.constant 0 : index
    %c0_298 = arith.constant 0 : index
    %302 = vector.load %arg1[%c0_295, %c7_296, %c0_297, %c0_298] : memref<1x16x16x128xf32, #tpu.memory_space<vmem>>, vector<1x1x16x128xf32>
    %303 = vector.shape_cast %302 : vector<1x1x16x128xf32> to vector<16x128xf32>
    %304 = arith.addf %301, %303 : vector<16x128xf32>
    %cst_299 = arith.constant 0.000000e+00 : f32
    %305 = vector.broadcast %cst_299 : f32 to vector<16x128xf32>
    %306 = arith.maximumf %304, %305 : vector<16x128xf32>
    %c0_300 = arith.constant 0 : index
    %c7_301 = arith.constant 7 : index
    %c0_302 = arith.constant 0 : index
    %c0_303 = arith.constant 0 : index
    %307 = vector.load %arg6[%c0_300, %c7_301, %c0_302, %c0_303] : memref<1x16x16x128xf32, #tpu.memory_space<vmem>>, vector<1x1x16x128xf32>
    %308 = vector.shape_cast %307 : vector<1x1x16x128xf32> to vector<16x128xf32>
    %309 = vector.shape_cast %306 : vector<16x128xf32> to vector<1x1x16x128xf32>
    tpu.vector_store %arg6[%c0_300, %c7_301, %c0_302, %c0_303], %309 {strides = array<i32>} : memref<1x16x16x128xf32, #tpu.memory_space<vmem>>, vector<1x1x16x128xf32>,
    %c144_304 = arith.constant 144 : index
    %c0_305 = arith.constant 0 : index
    %310 = vector.load %arg8[%c144_304, %c0_305] : memref<328x128xbf16, #tpu.memory_space<vmem>>, vector<144x128xbf16>
    %c0_306 = arith.constant 0 : index
    %c0_307 = arith.constant 0 : index
    %c0_308 = arith.constant 0 : index
    %311 = vector.load %arg3[%c0_306, %c0_307, %c0_308] : memref<9x128x128xbf16, #tpu.memory_space<vmem>>, vector<1x128x128xbf16>
    %312 = vector.shape_cast %311 : vector<1x128x128xbf16> to vector<128x128xbf16>
    %cst_309 = arith.constant dense<0.000000e+00> : vector<144x128xf32>
    %313 = tpu.matmul %310, %312, %cst_309 {dimension_numbers = #tpu.dot_dimension_numbers<[1], [0], [0], [1], [0, 0, 1, 1], [], []>} : vector<144x128xbf16>, vector<128x128xbf16>, vector<144x128xf32> -> vector<144x128xf32>
    %c145_310 = arith.constant 145 : index
    %c0_311 = arith.constant 0 : index
    %314 = vector.load %arg8[%c145_310, %c0_311] : memref<328x128xbf16, #tpu.memory_space<vmem>>, vector<144x128xbf16>
    %c1_312 = arith.constant 1 : index
    %c0_313 = arith.constant 0 : index
    %c0_314 = arith.constant 0 : index
    %315 = vector.load %arg3[%c1_312, %c0_313, %c0_314] : memref<9x128x128xbf16, #tpu.memory_space<vmem>>, vector<1x128x128xbf16>
    %316 = vector.shape_cast %315 : vector<1x128x128xbf16> to vector<128x128xbf16>
    %cst_315 = arith.constant dense<0.000000e+00> : vector<144x128xf32>
    %317 = tpu.matmul %314, %316, %cst_315 {dimension_numbers = #tpu.dot_dimension_numbers<[1], [0], [0], [1], [0, 0, 1, 1], [], []>} : vector<144x128xbf16>, vector<128x128xbf16>, vector<144x128xf32> -> vector<144x128xf32>
    %318 = arith.addf %313, %317 : vector<144x128xf32>
    %c146_316 = arith.constant 146 : index
    %c0_317 = arith.constant 0 : index
    %319 = vector.load %arg8[%c146_316, %c0_317] : memref<328x128xbf16, #tpu.memory_space<vmem>>, vector<144x128xbf16>
    %c2_318 = arith.constant 2 : index
    %c0_319 = arith.constant 0 : index
    %c0_320 = arith.constant 0 : index
    %320 = vector.load %arg3[%c2_318, %c0_319, %c0_320] : memref<9x128x128xbf16, #tpu.memory_space<vmem>>, vector<1x128x128xbf16>
    %321 = vector.shape_cast %320 : vector<1x128x128xbf16> to vector<128x128xbf16>
    %cst_321 = arith.constant dense<0.000000e+00> : vector<144x128xf32>
    %322 = tpu.matmul %319, %321, %cst_321 {dimension_numbers = #tpu.dot_dimension_numbers<[1], [0], [0], [1], [0, 0, 1, 1], [], []>} : vector<144x128xbf16>, vector<128x128xbf16>, vector<144x128xf32> -> vector<144x128xf32>
    %323 = arith.addf %318, %322 : vector<144x128xf32>
    %c162_322 = arith.constant 162 : index
    %c0_323 = arith.constant 0 : index
    %324 = vector.load %arg8[%c162_322, %c0_323] : memref<328x128xbf16, #tpu.memory_space<vmem>>, vector<144x128xbf16>
    %c3_324 = arith.constant 3 : index
    %c0_325 = arith.constant 0 : index
    %c0_326 = arith.constant 0 : index
    %325 = vector.load %arg3[%c3_324, %c0_325, %c0_326] : memref<9x128x128xbf16, #tpu.memory_space<vmem>>, vector<1x128x128xbf16>
    %326 = vector.shape_cast %325 : vector<1x128x128xbf16> to vector<128x128xbf16>
    %cst_327 = arith.constant dense<0.000000e+00> : vector<144x128xf32>
    %327 = tpu.matmul %324, %326, %cst_327 {dimension_numbers = #tpu.dot_dimension_numbers<[1], [0], [0], [1], [0, 0, 1, 1], [], []>} : vector<144x128xbf16>, vector<128x128xbf16>, vector<144x128xf32> -> vector<144x128xf32>
    %328 = arith.addf %323, %327 : vector<144x128xf32>
    %c163_328 = arith.constant 163 : index
    %c0_329 = arith.constant 0 : index
    %329 = vector.load %arg8[%c163_328, %c0_329] : memref<328x128xbf16, #tpu.memory_space<vmem>>, vector<144x128xbf16>
    %c4_330 = arith.constant 4 : index
    %c0_331 = arith.constant 0 : index
    %c0_332 = arith.constant 0 : index
    %330 = vector.load %arg3[%c4_330, %c0_331, %c0_332] : memref<9x128x128xbf16, #tpu.memory_space<vmem>>, vector<1x128x128xbf16>
    %331 = vector.shape_cast %330 : vector<1x128x128xbf16> to vector<128x128xbf16>
    %cst_333 = arith.constant dense<0.000000e+00> : vector<144x128xf32>
    %332 = tpu.matmul %329, %331, %cst_333 {dimension_numbers = #tpu.dot_dimension_numbers<[1], [0], [0], [1], [0, 0, 1, 1], [], []>} : vector<144x128xbf16>, vector<128x128xbf16>, vector<144x128xf32> -> vector<144x128xf32>
    %333 = arith.addf %328, %332 : vector<144x128xf32>
    %c164_334 = arith.constant 164 : index
    %c0_335 = arith.constant 0 : index
    %334 = vector.load %arg8[%c164_334, %c0_335] : memref<328x128xbf16, #tpu.memory_space<vmem>>, vector<144x128xbf16>
    %c5_336 = arith.constant 5 : index
    %c0_337 = arith.constant 0 : index
    %c0_338 = arith.constant 0 : index
    %335 = vector.load %arg3[%c5_336, %c0_337, %c0_338] : memref<9x128x128xbf16, #tpu.memory_space<vmem>>, vector<1x128x128xbf16>
    %336 = vector.shape_cast %335 : vector<1x128x128xbf16> to vector<128x128xbf16>
    %cst_339 = arith.constant dense<0.000000e+00> : vector<144x128xf32>
    %337 = tpu.matmul %334, %336, %cst_339 {dimension_numbers = #tpu.dot_dimension_numbers<[1], [0], [0], [1], [0, 0, 1, 1], [], []>} : vector<144x128xbf16>, vector<128x128xbf16>, vector<144x128xf32> -> vector<144x128xf32>
    %338 = arith.addf %333, %337 : vector<144x128xf32>
    %c180_340 = arith.constant 180 : index
    %c0_341 = arith.constant 0 : index
    %339 = vector.load %arg8[%c180_340, %c0_341] : memref<328x128xbf16, #tpu.memory_space<vmem>>, vector<144x128xbf16>
    %c6_342 = arith.constant 6 : index
    %c0_343 = arith.constant 0 : index
    %c0_344 = arith.constant 0 : index
    %340 = vector.load %arg3[%c6_342, %c0_343, %c0_344] : memref<9x128x128xbf16, #tpu.memory_space<vmem>>, vector<1x128x128xbf16>
    %341 = vector.shape_cast %340 : vector<1x128x128xbf16> to vector<128x128xbf16>
    %cst_345 = arith.constant dense<0.000000e+00> : vector<144x128xf32>
    %342 = tpu.matmul %339, %341, %cst_345 {dimension_numbers = #tpu.dot_dimension_numbers<[1], [0], [0], [1], [0, 0, 1, 1], [], []>} : vector<144x128xbf16>, vector<128x128xbf16>, vector<144x128xf32> -> vector<144x128xf32>
    %343 = arith.addf %338, %342 : vector<144x128xf32>
    %c181_346 = arith.constant 181 : index
    %c0_347 = arith.constant 0 : index
    %344 = vector.load %arg8[%c181_346, %c0_347] : memref<328x128xbf16, #tpu.memory_space<vmem>>, vector<144x128xbf16>
    %c7_348 = arith.constant 7 : index
    %c0_349 = arith.constant 0 : index
    %c0_350 = arith.constant 0 : index
    %345 = vector.load %arg3[%c7_348, %c0_349, %c0_350] : memref<9x128x128xbf16, #tpu.memory_space<vmem>>, vector<1x128x128xbf16>
    %346 = vector.shape_cast %345 : vector<1x128x128xbf16> to vector<128x128xbf16>
    %cst_351 = arith.constant dense<0.000000e+00> : vector<144x128xf32>
    %347 = tpu.matmul %344, %346, %cst_351 {dimension_numbers = #tpu.dot_dimension_numbers<[1], [0], [0], [1], [0, 0, 1, 1], [], []>} : vector<144x128xbf16>, vector<128x128xbf16>, vector<144x128xf32> -> vector<144x128xf32>
    %348 = arith.addf %343, %347 : vector<144x128xf32>
    %c182_352 = arith.constant 182 : index
    %c0_353 = arith.constant 0 : index
    %349 = vector.load %arg8[%c182_352, %c0_353] : memref<328x128xbf16, #tpu.memory_space<vmem>>, vector<144x128xbf16>
    %c8_354 = arith.constant 8 : index
    %c0_355 = arith.constant 0 : index
    %c0_356 = arith.constant 0 : index
    %350 = vector.load %arg3[%c8_354, %c0_355, %c0_356] : memref<9x128x128xbf16, #tpu.memory_space<vmem>>, vector<1x128x128xbf16>
    %351 = vector.shape_cast %350 : vector<1x128x128xbf16> to vector<128x128xbf16>
    %cst_357 = arith.constant dense<0.000000e+00> : vector<144x128xf32>
    %352 = tpu.matmul %349, %351, %cst_357 {dimension_numbers = #tpu.dot_dimension_numbers<[1], [0], [0], [1], [0, 0, 1, 1], [], []>} : vector<144x128xbf16>, vector<128x128xbf16>, vector<144x128xf32> -> vector<144x128xf32>
    %353 = arith.addf %348, %352 : vector<144x128xf32>
    %354 = vector.broadcast %87 : vector<1x128xf32> to vector<144x128xf32>
    %355 = arith.addf %353, %354 : vector<144x128xf32>
    %356 = vector.extract_strided_slice %355 {offsets = [0, 0], sizes = [16, 128], strides = [1, 1]} : vector<144x128xf32> to vector<16x128xf32>
    %c0_358 = arith.constant 0 : index
    %c8_359 = arith.constant 8 : index
    %c0_360 = arith.constant 0 : index
    %c0_361 = arith.constant 0 : index
    %357 = vector.load %arg1[%c0_358, %c8_359, %c0_360, %c0_361] : memref<1x16x16x128xf32, #tpu.memory_space<vmem>>, vector<1x1x16x128xf32>
    %358 = vector.shape_cast %357 : vector<1x1x16x128xf32> to vector<16x128xf32>
    %359 = arith.addf %356, %358 : vector<16x128xf32>
    %cst_362 = arith.constant 0.000000e+00 : f32
    %360 = vector.broadcast %cst_362 : f32 to vector<16x128xf32>
    %361 = arith.maximumf %359, %360 : vector<16x128xf32>
    %c0_363 = arith.constant 0 : index
    %c8_364 = arith.constant 8 : index
    %c0_365 = arith.constant 0 : index
    %c0_366 = arith.constant 0 : index
    %362 = vector.load %arg6[%c0_363, %c8_364, %c0_365, %c0_366] : memref<1x16x16x128xf32, #tpu.memory_space<vmem>>, vector<1x1x16x128xf32>
    %363 = vector.shape_cast %362 : vector<1x1x16x128xf32> to vector<16x128xf32>
    %364 = vector.shape_cast %361 : vector<16x128xf32> to vector<1x1x16x128xf32>
    tpu.vector_store %arg6[%c0_363, %c8_364, %c0_365, %c0_366], %364 {strides = array<i32>} : memref<1x16x16x128xf32, #tpu.memory_space<vmem>>, vector<1x1x16x128xf32>,
    %365 = vector.extract_strided_slice %355 {offsets = [18, 0], sizes = [16, 128], strides = [1, 1]} : vector<144x128xf32> to vector<16x128xf32>
    %c0_367 = arith.constant 0 : index
    %c9_368 = arith.constant 9 : index
    %c0_369 = arith.constant 0 : index
    %c0_370 = arith.constant 0 : index
    %366 = vector.load %arg1[%c0_367, %c9_368, %c0_369, %c0_370] : memref<1x16x16x128xf32, #tpu.memory_space<vmem>>, vector<1x1x16x128xf32>
    %367 = vector.shape_cast %366 : vector<1x1x16x128xf32> to vector<16x128xf32>
    %368 = arith.addf %365, %367 : vector<16x128xf32>
    %cst_371 = arith.constant 0.000000e+00 : f32
    %369 = vector.broadcast %cst_371 : f32 to vector<16x128xf32>
    %370 = arith.maximumf %368, %369 : vector<16x128xf32>
    %c0_372 = arith.constant 0 : index
    %c9_373 = arith.constant 9 : index
    %c0_374 = arith.constant 0 : index
    %c0_375 = arith.constant 0 : index
    %371 = vector.load %arg6[%c0_372, %c9_373, %c0_374, %c0_375] : memref<1x16x16x128xf32, #tpu.memory_space<vmem>>, vector<1x1x16x128xf32>
    %372 = vector.shape_cast %371 : vector<1x1x16x128xf32> to vector<16x128xf32>
    %373 = vector.shape_cast %370 : vector<16x128xf32> to vector<1x1x16x128xf32>
    tpu.vector_store %arg6[%c0_372, %c9_373, %c0_374, %c0_375], %373 {strides = array<i32>} : memref<1x16x16x128xf32, #tpu.memory_space<vmem>>, vector<1x1x16x128xf32>,
    %374 = vector.extract_strided_slice %355 {offsets = [36, 0], sizes = [16, 128], strides = [1, 1]} : vector<144x128xf32> to vector<16x128xf32>
    %c0_376 = arith.constant 0 : index
    %c10_377 = arith.constant 10 : index
    %c0_378 = arith.constant 0 : index
    %c0_379 = arith.constant 0 : index
    %375 = vector.load %arg1[%c0_376, %c10_377, %c0_378, %c0_379] : memref<1x16x16x128xf32, #tpu.memory_space<vmem>>, vector<1x1x16x128xf32>
    %376 = vector.shape_cast %375 : vector<1x1x16x128xf32> to vector<16x128xf32>
    %377 = arith.addf %374, %376 : vector<16x128xf32>
    %cst_380 = arith.constant 0.000000e+00 : f32
    %378 = vector.broadcast %cst_380 : f32 to vector<16x128xf32>
    %379 = arith.maximumf %377, %378 : vector<16x128xf32>
    %c0_381 = arith.constant 0 : index
    %c10_382 = arith.constant 10 : index
    %c0_383 = arith.constant 0 : index
    %c0_384 = arith.constant 0 : index
    %380 = vector.load %arg6[%c0_381, %c10_382, %c0_383, %c0_384] : memref<1x16x16x128xf32, #tpu.memory_space<vmem>>, vector<1x1x16x128xf32>
    %381 = vector.shape_cast %380 : vector<1x1x16x128xf32> to vector<16x128xf32>
    %382 = vector.shape_cast %379 : vector<16x128xf32> to vector<1x1x16x128xf32>
    tpu.vector_store %arg6[%c0_381, %c10_382, %c0_383, %c0_384], %382 {strides = array<i32>} : memref<1x16x16x128xf32, #tpu.memory_space<vmem>>, vector<1x1x16x128xf32>,
    %383 = vector.extract_strided_slice %355 {offsets = [54, 0], sizes = [16, 128], strides = [1, 1]} : vector<144x128xf32> to vector<16x128xf32>
    %c0_385 = arith.constant 0 : index
    %c11_386 = arith.constant 11 : index
    %c0_387 = arith.constant 0 : index
    %c0_388 = arith.constant 0 : index
    %384 = vector.load %arg1[%c0_385, %c11_386, %c0_387, %c0_388] : memref<1x16x16x128xf32, #tpu.memory_space<vmem>>, vector<1x1x16x128xf32>
    %385 = vector.shape_cast %384 : vector<1x1x16x128xf32> to vector<16x128xf32>
    %386 = arith.addf %383, %385 : vector<16x128xf32>
    %cst_389 = arith.constant 0.000000e+00 : f32
    %387 = vector.broadcast %cst_389 : f32 to vector<16x128xf32>
    %388 = arith.maximumf %386, %387 : vector<16x128xf32>
    %c0_390 = arith.constant 0 : index
    %c11_391 = arith.constant 11 : index
    %c0_392 = arith.constant 0 : index
    %c0_393 = arith.constant 0 : index
    %389 = vector.load %arg6[%c0_390, %c11_391, %c0_392, %c0_393] : memref<1x16x16x128xf32, #tpu.memory_space<vmem>>, vector<1x1x16x128xf32>
    %390 = vector.shape_cast %389 : vector<1x1x16x128xf32> to vector<16x128xf32>
    %391 = vector.shape_cast %388 : vector<16x128xf32> to vector<1x1x16x128xf32>
    tpu.vector_store %arg6[%c0_390, %c11_391, %c0_392, %c0_393], %391 {strides = array<i32>} : memref<1x16x16x128xf32, #tpu.memory_space<vmem>>, vector<1x1x16x128xf32>,
    %392 = vector.extract_strided_slice %355 {offsets = [72, 0], sizes = [16, 128], strides = [1, 1]} : vector<144x128xf32> to vector<16x128xf32>
    %c0_394 = arith.constant 0 : index
    %c12_395 = arith.constant 12 : index
    %c0_396 = arith.constant 0 : index
    %c0_397 = arith.constant 0 : index
    %393 = vector.load %arg1[%c0_394, %c12_395, %c0_396, %c0_397] : memref<1x16x16x128xf32, #tpu.memory_space<vmem>>, vector<1x1x16x128xf32>
    %394 = vector.shape_cast %393 : vector<1x1x16x128xf32> to vector<16x128xf32>
    %395 = arith.addf %392, %394 : vector<16x128xf32>
    %cst_398 = arith.constant 0.000000e+00 : f32
    %396 = vector.broadcast %cst_398 : f32 to vector<16x128xf32>
    %397 = arith.maximumf %395, %396 : vector<16x128xf32>
    %c0_399 = arith.constant 0 : index
    %c12_400 = arith.constant 12 : index
    %c0_401 = arith.constant 0 : index
    %c0_402 = arith.constant 0 : index
    %398 = vector.load %arg6[%c0_399, %c12_400, %c0_401, %c0_402] : memref<1x16x16x128xf32, #tpu.memory_space<vmem>>, vector<1x1x16x128xf32>
    %399 = vector.shape_cast %398 : vector<1x1x16x128xf32> to vector<16x128xf32>
    %400 = vector.shape_cast %397 : vector<16x128xf32> to vector<1x1x16x128xf32>
    tpu.vector_store %arg6[%c0_399, %c12_400, %c0_401, %c0_402], %400 {strides = array<i32>} : memref<1x16x16x128xf32, #tpu.memory_space<vmem>>, vector<1x1x16x128xf32>,
    %401 = vector.extract_strided_slice %355 {offsets = [90, 0], sizes = [16, 128], strides = [1, 1]} : vector<144x128xf32> to vector<16x128xf32>
    %c0_403 = arith.constant 0 : index
    %c13_404 = arith.constant 13 : index
    %c0_405 = arith.constant 0 : index
    %c0_406 = arith.constant 0 : index
    %402 = vector.load %arg1[%c0_403, %c13_404, %c0_405, %c0_406] : memref<1x16x16x128xf32, #tpu.memory_space<vmem>>, vector<1x1x16x128xf32>
    %403 = vector.shape_cast %402 : vector<1x1x16x128xf32> to vector<16x128xf32>
    %404 = arith.addf %401, %403 : vector<16x128xf32>
    %cst_407 = arith.constant 0.000000e+00 : f32
    %405 = vector.broadcast %cst_407 : f32 to vector<16x128xf32>
    %406 = arith.maximumf %404, %405 : vector<16x128xf32>
    %c0_408 = arith.constant 0 : index
    %c13_409 = arith.constant 13 : index
    %c0_410 = arith.constant 0 : index
    %c0_411 = arith.constant 0 : index
    %407 = vector.load %arg6[%c0_408, %c13_409, %c0_410, %c0_411] : memref<1x16x16x128xf32, #tpu.memory_space<vmem>>, vector<1x1x16x128xf32>
    %408 = vector.shape_cast %407 : vector<1x1x16x128xf32> to vector<16x128xf32>
    %409 = vector.shape_cast %406 : vector<16x128xf32> to vector<1x1x16x128xf32>
    tpu.vector_store %arg6[%c0_408, %c13_409, %c0_410, %c0_411], %409 {strides = array<i32>} : memref<1x16x16x128xf32, #tpu.memory_space<vmem>>, vector<1x1x16x128xf32>,
    %410 = vector.extract_strided_slice %355 {offsets = [108, 0], sizes = [16, 128], strides = [1, 1]} : vector<144x128xf32> to vector<16x128xf32>
    %c0_412 = arith.constant 0 : index
    %c14_413 = arith.constant 14 : index
    %c0_414 = arith.constant 0 : index
    %c0_415 = arith.constant 0 : index
    %411 = vector.load %arg1[%c0_412, %c14_413, %c0_414, %c0_415] : memref<1x16x16x128xf32, #tpu.memory_space<vmem>>, vector<1x1x16x128xf32>
    %412 = vector.shape_cast %411 : vector<1x1x16x128xf32> to vector<16x128xf32>
    %413 = arith.addf %410, %412 : vector<16x128xf32>
    %cst_416 = arith.constant 0.000000e+00 : f32
    %414 = vector.broadcast %cst_416 : f32 to vector<16x128xf32>
    %415 = arith.maximumf %413, %414 : vector<16x128xf32>
    %c0_417 = arith.constant 0 : index
    %c14_418 = arith.constant 14 : index
    %c0_419 = arith.constant 0 : index
    %c0_420 = arith.constant 0 : index
    %416 = vector.load %arg6[%c0_417, %c14_418, %c0_419, %c0_420] : memref<1x16x16x128xf32, #tpu.memory_space<vmem>>, vector<1x1x16x128xf32>
    %417 = vector.shape_cast %416 : vector<1x1x16x128xf32> to vector<16x128xf32>
    %418 = vector.shape_cast %415 : vector<16x128xf32> to vector<1x1x16x128xf32>
    tpu.vector_store %arg6[%c0_417, %c14_418, %c0_419, %c0_420], %418 {strides = array<i32>} : memref<1x16x16x128xf32, #tpu.memory_space<vmem>>, vector<1x1x16x128xf32>,
    %419 = vector.extract_strided_slice %355 {offsets = [126, 0], sizes = [16, 128], strides = [1, 1]} : vector<144x128xf32> to vector<16x128xf32>
    %c0_421 = arith.constant 0 : index
    %c15_422 = arith.constant 15 : index
    %c0_423 = arith.constant 0 : index
    %c0_424 = arith.constant 0 : index
    %420 = vector.load %arg1[%c0_421, %c15_422, %c0_423, %c0_424] : memref<1x16x16x128xf32, #tpu.memory_space<vmem>>, vector<1x1x16x128xf32>
    %421 = vector.shape_cast %420 : vector<1x1x16x128xf32> to vector<16x128xf32>
    %422 = arith.addf %419, %421 : vector<16x128xf32>
    %cst_425 = arith.constant 0.000000e+00 : f32
    %423 = vector.broadcast %cst_425 : f32 to vector<16x128xf32>
    %424 = arith.maximumf %422, %423 : vector<16x128xf32>
    %c0_426 = arith.constant 0 : index
    %c15_427 = arith.constant 15 : index
    %c0_428 = arith.constant 0 : index
    %c0_429 = arith.constant 0 : index
    %425 = vector.load %arg6[%c0_426, %c15_427, %c0_428, %c0_429] : memref<1x16x16x128xf32, #tpu.memory_space<vmem>>, vector<1x1x16x128xf32>
    %426 = vector.shape_cast %425 : vector<1x1x16x128xf32> to vector<16x128xf32>
    %427 = vector.shape_cast %424 : vector<16x128xf32> to vector<1x1x16x128xf32>
    tpu.vector_store %arg6[%c0_426, %c15_427, %c0_428, %c0_429], %427 {strides = array<i32>} : memref<1x16x16x128xf32, #tpu.memory_space<vmem>>, vector<1x1x16x128xf32>,
    return
  }
  func.func @transform_0(%arg0: i32) -> (i32, i32, i32, i32) {
    %c0_i32 = arith.constant 0 : i32
    %c0_i32_0 = arith.constant 0 : i32
    %c0_i32_1 = arith.constant 0 : i32
    %c0_i32_2 = arith.constant 0 : i32
    return %arg0, %c0_i32, %c0_i32_0, %c0_i32_1 : i32, i32, i32, i32
  }
  func.func @transform_1(%arg0: i32) -> (i32, i32, i32) {
    %c0_i32 = arith.constant 0 : i32
    %c0_i32_0 = arith.constant 0 : i32
    %c0_i32_1 = arith.constant 0 : i32
    %c0_i32_2 = arith.constant 0 : i32
    return %c0_i32, %c0_i32_0, %c0_i32_1 : i32, i32, i32
  }
  func.func @transform_2(%arg0: i32) -> (i32, i32, i32) {
    %c0_i32 = arith.constant 0 : i32
    %c0_i32_0 = arith.constant 0 : i32
    %c0_i32_1 = arith.constant 0 : i32
    %c0_i32_2 = arith.constant 0 : i32
    return %c0_i32, %c0_i32_0, %c0_i32_1 : i32, i32, i32
  }
  func.func @transform_3(%arg0: i32) -> (i32, i32) {
    %c0_i32 = arith.constant 0 : i32
    %c0_i32_0 = arith.constant 0 : i32
    %c0_i32_1 = arith.constant 0 : i32
    return %c0_i32, %c0_i32_0 : i32, i32
  }
  func.func @transform_4(%arg0: i32) -> (i32, i32) {
    %c0_i32 = arith.constant 0 : i32
    %c0_i32_0 = arith.constant 0 : i32
    %c0_i32_1 = arith.constant 0 : i32
    return %c0_i32, %c0_i32_0 : i32, i32
  }
  func.func @transform_5(%arg0: i32) -> (i32, i32, i32, i32) {
    %c0_i32 = arith.constant 0 : i32
    %c0_i32_0 = arith.constant 0 : i32
    %c0_i32_1 = arith.constant 0 : i32
    %c0_i32_2 = arith.constant 0 : i32
    return %arg0, %c0_i32, %c0_i32_0, %c0_i32_1 : i32, i32, i32, i32
  }
}

</mosaic_0001>

<llo_original>
// kernel: tpu_custom_call.1
$region0: #{tpu_custom_call.1}
  #allocation0 [shape = 'u32[]', space=smem, size = 0x4, offset = 0x4, fixed_abs, tag = 'smem constant byte address 0x4 - core index']
  #allocation1 [shape = 'u32[144,128]{1,0:T(1,128)}', space=vmem, size = 0x12000, scoped, tag = 'internal scratch']
  #allocation2 [shape = 'bf16[328,128]{1,0:T(8,128)(2,1)}', space=vmem, size = 0x14800, scoped, tag = 'scratch operand']
  #allocation3 [shape = 'bf16[328,128]{1,0:T(8,128)(2,1)}', space=vmem, size = 0x14800, scoped, tag = 'scratch operand']
  %s0 = inlined_call_operand.hbm [shape: f32[2,16,16,128], index: 0, kind: input, shape index: {}]
  %s1 = inlined_call_operand.hbm [shape: bf16[9,128,128], index: 1, kind: input, shape index: {}]
  %s2 = inlined_call_operand.hbm [shape: bf16[9,128,128], index: 2, kind: input, shape index: {}]
  %s3 = inlined_call_operand.vmem [shape: f32[1,128], index: 3, kind: input, shape index: {}]
  %s4 = inlined_call_operand.vmem [shape: f32[1,128], index: 4, kind: input, shape index: {}]
  %s5 = inlined_call_operand.hbm [shape: f32[2,16,16,128], index: 5, kind: output, shape index: {}]
  %s6 = sld [smem:[#allocation0]]
  $region69: #{tpu_custom_call.1} parent=0
    _
  %s8 = ssub.s32 1, %s6
  %s9 = scalar_select 0, %s8, %s6
  $region1: #{tpu_custom_call.1} parent=0
    #allocation4 [shape = 'u8[262144]{0}', space=vmem, size = 0x40000, scoped, tag = 'input window, operand 0']
    #allocation5 [shape = 's32[2]{0}', space=sflag, size = 0x8, scoped, tag = 'scoped memory for tpu_custom_call.1']
    #allocation6 [shape = 's32[2]{0}', space=sflag, size = 0x8, scoped, tag = 'scoped memory for tpu_custom_call.1']
    #allocation7 [shape = 'u8[294912]{0}', space=vmem, size = 0x48000, scoped, tag = 'input window, operand 1, single buffered']
    #allocation8 [shape = 's32[1]{0}', space=sflag, size = 0x4, scoped, tag = 'scoped memory for tpu_custom_call.1']
    #allocation9 [shape = 'u8[294912]{0}', space=vmem, size = 0x48000, scoped, tag = 'input window, operand 2, single buffered']
    #allocation10 [shape = 'u8[262144]{0}', space=vmem, size = 0x40000, scoped, tag = 'output window, operand 0']
    %10 = vsyncpa [#allocation5], 0
    %s11 = scalar_lea.sflag [#allocation5], 1
    %12 = vsyncpa %s11, 0
    %13 = vsyncpa [#allocation8], 0
    %14 = vsyncpa [#allocation6], 0
    %s15 = scalar_lea.sflag [#allocation6], 1
    %16 = vsyncpa %s15, 0
    loop: start=0, step=1, limit=4
    $region2: #{tpu_custom_call.1} parent=1 // loop_pre_header
      _
    $region3: #{tpu_custom_call.1} parent=1 // loop_header
      %s18 = sphi 0, %s22
      %p19 = scmp.ge.s32.totalorder %s18, 4
      %s28 = sphi 0, %s30
      %s31 = sphi 0, %s28
      %s32 = sphi 0, %s31
      %s48 = sphi 0, %s32
      %s52 = sphi 0, %s52
      %s54 = sphi 0, %s52
      %s55 = sphi 0, %s54
      %s69 = sphi 0, %s55
      %s73 = sphi 0, %s73
      %s75 = sphi 0, %s73
      %s76 = sphi 0, %s75
      %s90 = sphi 0, %s76
      %s94 = sphi 0, %s94
      %s96 = sphi 0, %s94
      %s97 = sphi 0, %s96
      %s111 = sphi 0, %s97
      %s115 = sphi 0, %s115
      %s117 = sphi 0, %s115
      %s118 = sphi 0, %s117
      %s132 = sphi 0, %s118
      %s138 = sphi 0, %s140
      %s141 = sphi 0, %s138
      %s142 = sphi 0, %s141
      %s158 = sphi 0, %s142
    $region4: #{tpu_custom_call.1} parent=1 // loop_header_branch
      %21 = sbr.rel (%p19) target = $region8
    $region5: #{tpu_custom_call.1} parent=1 // loop_body
      %s23 = ssub.s32 %s18, 1
      %s24 = ssub.s32 %s18, 2
      %s25 = sadd.s32 %s18, 1
      %s26 = ssub.s32 %s18, %s25
      %p27 = scmp.eq.s32.totalorder %s26, 0
      %s29 = sadd.s32 %s28, 1
      %s30 = scalar_select %p27, %s28, %s29
      %p33 = pneg %p27
      %p34 = scmp.eq.s32.totalorder %s18, 1
      %p35 = por %p33, %p34
      %p36 = scmp.ne.s32.totalorder %s28, %s31
      %p37 = scmp.eq.s32.totalorder %s18, 0
      %p38 = por %p36, %p37
      %p39 = scmp.ne.s32.totalorder %s28, %s31
      %p40 = scmp.eq.s32.totalorder %s23, 1
      %p41 = por %p39, %p40
      %p42 = scmp.ne.s32.totalorder %s31, %s32
      %p43 = scmp.eq.s32.totalorder %s23, 0
      %p44 = por %p42, %p43
      %p45 = scmp.ne.s32.totalorder %s31, %s32
      %p46 = scmp.eq.s32.totalorder %s24, 1
      %p47 = por %p45, %p46
      %p49 = scmp.ne.s32.totalorder %s32, %s48
      %p50 = scmp.eq.s32.totalorder %s24, 0
      %p51 = por %p49, %p50
      %s53 = sadd.s32 %s52, 1
      %p56 = scmp.eq.s32.totalorder %s18, 1
      %p57 = scmp.ne.s32.totalorder %s52, %s54
      %p58 = scmp.eq.s32.totalorder %s18, 0
      %p59 = por %p57, %p58
      %p60 = scmp.ne.s32.totalorder %s52, %s54
      %p61 = scmp.eq.s32.totalorder %s23, 1
      %p62 = por %p60, %p61
      %p63 = scmp.ne.s32.totalorder %s54, %s55
      %p64 = scmp.eq.s32.totalorder %s23, 0
      %p65 = por %p63, %p64
      %p66 = scmp.ne.s32.totalorder %s54, %s55
      %p67 = scmp.eq.s32.totalorder %s24, 1
      %p68 = por %p66, %p67
      %p70 = scmp.ne.s32.totalorder %s55, %s69
      %p71 = scmp.eq.s32.totalorder %s24, 0
      %p72 = por %p70, %p71
      %s74 = sadd.s32 %s73, 1
      %p77 = scmp.eq.s32.totalorder %s18, 1
      %p78 = scmp.ne.s32.totalorder %s73, %s75
      %p79 = scmp.eq.s32.totalorder %s18, 0
      %p80 = por %p78, %p79
      %p81 = scmp.ne.s32.totalorder %s73, %s75
      %p82 = scmp.eq.s32.totalorder %s23, 1
      %p83 = por %p81, %p82
      %p84 = scmp.ne.s32.totalorder %s75, %s76
      %p85 = scmp.eq.s32.totalorder %s23, 0
      %p86 = por %p84, %p85
      %p87 = scmp.ne.s32.totalorder %s75, %s76
      %p88 = scmp.eq.s32.totalorder %s24, 1
      %p89 = por %p87, %p88
      %p91 = scmp.ne.s32.totalorder %s76, %s90
      %p92 = scmp.eq.s32.totalorder %s24, 0
      %p93 = por %p91, %p92
      %s95 = sadd.s32 %s94, 1
      %p98 = scmp.eq.s32.totalorder %s18, 1
      %p99 = scmp.ne.s32.totalorder %s94, %s96
      %p100 = scmp.eq.s32.totalorder %s18, 0
      %p101 = por %p99, %p100
      %p102 = scmp.ne.s32.totalorder %s94, %s96
      %p103 = scmp.eq.s32.totalorder %s23, 1
      %p104 = por %p102, %p103
      %p105 = scmp.ne.s32.totalorder %s96, %s97
      %p106 = scmp.eq.s32.totalorder %s23, 0
      %p107 = por %p105, %p106
      %p108 = scmp.ne.s32.totalorder %s96, %s97
      %p109 = scmp.eq.s32.totalorder %s24, 1
      %p110 = por %p108, %p109
      %p112 = scmp.ne.s32.totalorder %s97, %s111
      %p113 = scmp.eq.s32.totalorder %s24, 0
      %p114 = por %p112, %p113
      %s116 = sadd.s32 %s115, 1
      %p119 = scmp.eq.s32.totalorder %s18, 1
      %p120 = scmp.ne.s32.totalorder %s115, %s117
      %p121 = scmp.eq.s32.totalorder %s18, 0
      %p122 = por %p120, %p121
      %p123 = scmp.ne.s32.totalorder %s115, %s117
      %p124 = scmp.eq.s32.totalorder %s23, 1
      %p125 = por %p123, %p124
      %p126 = scmp.ne.s32.totalorder %s117, %s118
      %p127 = scmp.eq.s32.totalorder %s23, 0
      %p128 = por %p126, %p127
      %p129 = scmp.ne.s32.totalorder %s117, %s118
      %p130 = scmp.eq.s32.totalorder %s24, 1
      %p131 = por %p129, %p130
      %p133 = scmp.ne.s32.totalorder %s118, %s132
      %p134 = scmp.eq.s32.totalorder %s24, 0
      %p135 = por %p133, %p134
      %s136 = ssub.s32 %s18, %s25
      %p137 = scmp.eq.s32.totalorder %s136, 0
      %s139 = sadd.s32 %s138, 1
      %s140 = scalar_select %p137, %s138, %s139
      %p143 = pneg %p137
      %p144 = scmp.eq.s32.totalorder %s18, 1
      %p145 = por %p143, %p144
      %p146 = scmp.ne.s32.totalorder %s138, %s141
      %p147 = scmp.eq.s32.totalorder %s18, 0
      %p148 = por %p146, %p147
      %p149 = scmp.ne.s32.totalorder %s138, %s141
      %p150 = scmp.eq.s32.totalorder %s23, 1
      %p151 = por %p149, %p150
      %p152 = scmp.ne.s32.totalorder %s141, %s142
      %p153 = scmp.eq.s32.totalorder %s23, 0
      %p154 = por %p152, %p153
      %p155 = scmp.ne.s32.totalorder %s141, %s142
      %p156 = scmp.eq.s32.totalorder %s24, 1
      %p157 = por %p155, %p156
      %p159 = scmp.ne.s32.totalorder %s142, %s158
      %p160 = scmp.eq.s32.totalorder %s24, 0
      %p161 = por %p159, %p160
      %p162 = scmp.le.s32.totalorder 1, %s18
      %p163 = scmp.lt.s32.totalorder %s18, 3
      %p164 = pnand %p162, %p163
      %p165 = pneg %p164
      // Predicated region
      $region9: #{tpu_custom_call.1} parent=5 // pred_check
        _
      $region10: #{tpu_custom_call.1} parent=5 // pred_check_branch
        %167 = sbr.rel (%p164) target = $region12
      $region11: #{tpu_custom_call.1} parent=5 // pred_region
        %s168 = ssub.s32 %s18, 1
        // Predicated region
        $region13: #{tpu_custom_call.1} parent=11 // pred_check
          %p169 = pneg %p65
        $region14: #{tpu_custom_call.1} parent=11 // pred_check_branch
          %171 = sbr.rel (%p169) target = $region16
        $region15: #{tpu_custom_call.1} parent=11 // pred_region
          %s173 = ssub.s32 9216, 9216
          %174 = vsyncadd [#allocation8], %s173
          %s175 = sshll.u32 [#allocation7], 4
          %s176 = int_to_ptr.vmem [resolvable:$true] %s175
          %181 = dma.hbm_to_vmem [thread:$0]  %s1, 9216, %s176, [#allocation8], 64, 64, 4
        $region16: #{tpu_custom_call.1} parent=11 // pred_fallthru
          _
        // Predicated region
        $region17: #{tpu_custom_call.1} parent=11 // pred_check
          %p182 = pneg %p86
        $region18: #{tpu_custom_call.1} parent=11 // pred_check_branch
          %184 = sbr.rel (%p182) target = $region20
        $region19: #{tpu_custom_call.1} parent=11 // pred_region
          %s186 = ssub.s32 9216, 9216
          %187 = vsyncadd [#allocation8], %s186
          %s188 = sshll.u32 [#allocation9], 4
          %s189 = int_to_ptr.vmem [resolvable:$true] %s188
          %194 = dma.hbm_to_vmem [thread:$0]  %s2, 9216, %s189, [#allocation8], 64, 64, 4
        $region20: #{tpu_custom_call.1} parent=11 // pred_fallthru
          _
        // Predicated region
        $region21: #{tpu_custom_call.1} parent=11 // pred_check
          %p195 = pneg %p107
        $region22: #{tpu_custom_call.1} parent=11 // pred_check_branch
          %197 = sbr.rel (%p195) target = $region24
        $region23: #{tpu_custom_call.1} parent=11 // pred_region
          _
        $region24: #{tpu_custom_call.1} parent=11 // pred_fallthru
          _
        // Predicated region
        $region25: #{tpu_custom_call.1} parent=11 // pred_check
          %p198 = pneg %p128
        $region26: #{tpu_custom_call.1} parent=11 // pred_check_branch
          %200 = sbr.rel (%p198) target = $region28
        $region27: #{tpu_custom_call.1} parent=11 // pred_region
          _
        $region28: #{tpu_custom_call.1} parent=11 // pred_fallthru
          _
      $region12: #{tpu_custom_call.1} parent=5 // pred_fallthru
        _
      %p201 = scmp.lt.s32.totalorder %s18, 2
      // Predicated region
      $region29: #{tpu_custom_call.1} parent=5 // pred_check
        %p202 = pneg %p201
      $region30: #{tpu_custom_call.1} parent=5 // pred_check_branch
        %204 = sbr.rel (%p202) target = $region32
      $region31: #{tpu_custom_call.1} parent=5 // pred_region
        // Predicated region
        $region33: #{tpu_custom_call.1} parent=31 // pred_check
          %p205 = pneg %p38
        $region34: #{tpu_custom_call.1} parent=31 // pred_check_branch
          %207 = sbr.rel (%p205) target = $region36
        $region35: #{tpu_custom_call.1} parent=31 // pred_region
          %s208 = sand.u32 %s28, 1
          %s209 = scalar_lea.sflag [#allocation5], %s208
          %s210 = sand.u32 %s28, 1
          %s211 = smul.addr %s210, 256
          %s212 = scalar_lea.vmem [#allocation4], %s211
          %s214 = ssub.s32 4096, 4096
          %215 = vsyncadd %s209, %s214
          %s216 = smul.addr %s18, 32
          %s217 = smul.addr %s216, 128
          %s218 = scalar_lea.hbm %s0, %s217
          %s219 = sshll.u32 %s212, 4
          %s220 = int_to_ptr.vmem [resolvable:$true] %s219
          %225 = dma.hbm_to_vmem [thread:$0]  %s218, 4096, %s220, %s209, 128, 128, 8
        $region36: #{tpu_custom_call.1} parent=31 // pred_fallthru
          _
      $region32: #{tpu_custom_call.1} parent=5 // pred_fallthru
        _
      %p226 = scmp.le.s32.totalorder 1, %s18
      %p227 = scmp.lt.s32.totalorder %s18, 3
      %p228 = pnand %p226, %p227
      %p229 = pneg %p228
      // Predicated region
      $region37: #{tpu_custom_call.1} parent=5 // pred_check
        _
      $region38: #{tpu_custom_call.1} parent=5 // pred_check_branch
        %231 = sbr.rel (%p228) target = $region40
      $region39: #{tpu_custom_call.1} parent=5 // pred_region
        %s232 = ssub.s32 %s18, 1
        %s233 = sand.u32 %s31, 1
        %s234 = scalar_lea.sflag [#allocation5], %s233
        %s235 = sand.u32 %s31, 1
        %s236 = smul.addr %s235, 256
        %s237 = scalar_lea.vmem [#allocation4], %s236
        // Predicated region
        $region41: #{tpu_custom_call.1} parent=39 // pred_check
          %p238 = pneg %p44
        $region42: #{tpu_custom_call.1} parent=39 // pred_check_branch
          %240 = sbr.rel (%p238) target = $region44
        $region43: #{tpu_custom_call.1} parent=39 // pred_region
          %241 = dma.done %s234, 4096
        $region44: #{tpu_custom_call.1} parent=39 // pred_fallthru
          _
        // Predicated region
        $region45: #{tpu_custom_call.1} parent=39 // pred_check
          %p242 = pneg %p65
        $region46: #{tpu_custom_call.1} parent=39 // pred_check_branch
          %244 = sbr.rel (%p242) target = $region48
        $region47: #{tpu_custom_call.1} parent=39 // pred_region
          %245 = dma.done [#allocation8], 9216
        $region48: #{tpu_custom_call.1} parent=39 // pred_fallthru
          _
        // Predicated region
        $region49: #{tpu_custom_call.1} parent=39 // pred_check
          %p246 = pneg %p86
        $region50: #{tpu_custom_call.1} parent=39 // pred_check_branch
          %248 = sbr.rel (%p246) target = $region52
        $region51: #{tpu_custom_call.1} parent=39 // pred_region
          %249 = dma.done [#allocation8], 9216
        $region52: #{tpu_custom_call.1} parent=39 // pred_fallthru
          _
        %s250 = sand.u32 %s31, 1
        %s251 = scalar_lea.sflag [#allocation5], %s250
        %s252 = sand.u32 %s31, 1
        %s253 = smul.addr %s252, 256
        %s254 = scalar_lea.vmem [#allocation4], %s253
        %p255 = pneg %p44
        %p256 = pneg %p41
        %p257 = pneg %p65
        %p258 = pneg %p62
        %p259 = pneg %p86
        %p260 = pneg %p83
        %p261 = pneg %p107
        %p262 = pneg %p104
        %p263 = pneg %p128
        %p264 = pneg %p125
        %p265 = pneg %p154
        %p266 = pneg %p151
        %s267 = sand.u32 %s141, 1
        %s268 = scalar_lea.sflag [#allocation6], %s267
        %s269 = sand.u32 %s141, 1
        %s270 = smul.addr %s269, 256
        %s271 = scalar_lea.vmem [#allocation10], %s270
        %p273 = scmp.eq.s32.totalorder %s23, 0
        // Predicated region
        $region53: #{tpu_custom_call.1} parent=39 // pred_check
          %p274 = pneg %p273
        $region54: #{tpu_custom_call.1} parent=39 // pred_check_branch
          %276 = sbr.rel (%p274) target = $region56
        $region55: #{tpu_custom_call.1} parent=39 // pred_region
          %277 = vst [vmem:[#allocation2] sm:$0xf] 0
          %278 = vst [vmem:[#allocation2 + $0x4] sm:$0xf] 0
          %279 = vst [vmem:[#allocation2 + $0x8] sm:$0xf] 0
          %280 = vst [vmem:[#allocation2 + $0xc] sm:$0xf] 0
          %281 = vst [vmem:[#allocation2 + $0x10] sm:$0xf] 0
          %282 = vst [vmem:[#allocation2 + $0x14] sm:$0xf] 0
          %283 = vst [vmem:[#allocation2 + $0x18] sm:$0xf] 0
          %284 = vst [vmem:[#allocation2 + $0x1c] sm:$0xf] 0
          %285 = vst [vmem:[#allocation2 + $0x20] sm:$0xf] 0
          %286 = vst [vmem:[#allocation2 + $0x24] sm:$0xf] 0
          %287 = vst [vmem:[#allocation2 + $0x28] sm:$0xf] 0
          %288 = vst [vmem:[#allocation2 + $0x2c] sm:$0xf] 0
          %289 = vst [vmem:[#allocation2 + $0x30] sm:$0xf] 0
          %290 = vst [vmem:[#allocation2 + $0x34] sm:$0xf] 0
          %291 = vst [vmem:[#allocation2 + $0x38] sm:$0xf] 0
          %292 = vst [vmem:[#allocation2 + $0x3c] sm:$0xf] 0
          %293 = vst [vmem:[#allocation2 + $0x40] sm:$0xf] 0
          %294 = vst [vmem:[#allocation2 + $0x44] sm:$0xf] 0
          %295 = vst [vmem:[#allocation2 + $0x48] sm:$0xf] 0
          %296 = vst [vmem:[#allocation2 + $0x4c] sm:$0xf] 0
          %297 = vst [vmem:[#allocation2 + $0x50] sm:$0xf] 0
          %298 = vst [vmem:[#allocation2 + $0x54] sm:$0xf] 0
          %299 = vst [vmem:[#allocation2 + $0x58] sm:$0xf] 0
          %300 = vst [vmem:[#allocation2 + $0x5c] sm:$0xf] 0
          %301 = vst [vmem:[#allocation2 + $0x60] sm:$0xf] 0
          %302 = vst [vmem:[#allocation2 + $0x64] sm:$0xf] 0
          %303 = vst [vmem:[#allocation2 + $0x68] sm:$0xf] 0
          %304 = vst [vmem:[#allocation2 + $0x6c] sm:$0xf] 0
          %305 = vst [vmem:[#allocation2 + $0x70] sm:$0xf] 0
          %306 = vst [vmem:[#allocation2 + $0x74] sm:$0xf] 0
          %307 = vst [vmem:[#allocation2 + $0x78] sm:$0xf] 0
          %308 = vst [vmem:[#allocation2 + $0x7c] sm:$0xf] 0
          %309 = vst [vmem:[#allocation2 + $0x80] sm:$0xf] 0
          %310 = vst [vmem:[#allocation2 + $0x84] sm:$0xf] 0
          %311 = vst [vmem:[#allocation2 + $0x88] sm:$0xf] 0
          %312 = vst [vmem:[#allocation2 + $0x8c] sm:$0xf] 0
          %313 = vst [vmem:[#allocation2 + $0x90] sm:$0xf] 0
          %314 = vst [vmem:[#allocation2 + $0x94] sm:$0xf] 0
          %315 = vst [vmem:[#allocation2 + $0x98] sm:$0xf] 0
          %316 = vst [vmem:[#allocation2 + $0x9c] sm:$0xf] 0
          %317 = vst [vmem:[#allocation2 + $0xa0] sm:$0xf] 0
          %318 = vst [vmem:[#allocation3] sm:$0xf] 0
          %319 = vst [vmem:[#allocation3 + $0x4] sm:$0xf] 0
          %320 = vst [vmem:[#allocation3 + $0x8] sm:$0xf] 0
          %321 = vst [vmem:[#allocation3 + $0xc] sm:$0xf] 0
          %322 = vst [vmem:[#allocation3 + $0x10] sm:$0xf] 0
          %323 = vst [vmem:[#allocation3 + $0x14] sm:$0xf] 0
          %324 = vst [vmem:[#allocation3 + $0x18] sm:$0xf] 0
          %325 = vst [vmem:[#allocation3 + $0x1c] sm:$0xf] 0
          %326 = vst [vmem:[#allocation3 + $0x20] sm:$0xf] 0
          %327 = vst [vmem:[#allocation3 + $0x24] sm:$0xf] 0
          %328 = vst [vmem:[#allocation3 + $0x28] sm:$0xf] 0
          %329 = vst [vmem:[#allocation3 + $0x2c] sm:$0xf] 0
          %330 = vst [vmem:[#allocation3 + $0x30] sm:$0xf] 0
          %331 = vst [vmem:[#allocation3 + $0x34] sm:$0xf] 0
          %332 = vst [vmem:[#allocation3 + $0x38] sm:$0xf] 0
          %333 = vst [vmem:[#allocation3 + $0x3c] sm:$0xf] 0
          %334 = vst [vmem:[#allocation3 + $0x40] sm:$0xf] 0
          %335 = vst [vmem:[#allocation3 + $0x44] sm:$0xf] 0
          %336 = vst [vmem:[#allocation3 + $0x48] sm:$0xf] 0
          %337 = vst [vmem:[#allocation3 + $0x4c] sm:$0xf] 0
          %338 = vst [vmem:[#allocation3 + $0x50] sm:$0xf] 0
          %339 = vst [vmem:[#allocation3 + $0x54] sm:$0xf] 0
          %340 = vst [vmem:[#allocation3 + $0x58] sm:$0xf] 0
          %341 = vst [vmem:[#allocation3 + $0x5c] sm:$0xf] 0
          %342 = vst [vmem:[#allocation3 + $0x60] sm:$0xf] 0
          %343 = vst [vmem:[#allocation3 + $0x64] sm:$0xf] 0
          %344 = vst [vmem:[#allocation3 + $0x68] sm:$0xf] 0
          %345 = vst [vmem:[#allocation3 + $0x6c] sm:$0xf] 0
          %346 = vst [vmem:[#allocation3 + $0x70] sm:$0xf] 0
          %347 = vst [vmem:[#allocation3 + $0x74] sm:$0xf] 0
          %348 = vst [vmem:[#allocation3 + $0x78] sm:$0xf] 0
          %349 = vst [vmem:[#allocation3 + $0x7c] sm:$0xf] 0
          %350 = vst [vmem:[#allocation3 + $0x80] sm:$0xf] 0
          %351 = vst [vmem:[#allocation3 + $0x84] sm:$0xf] 0
          %352 = vst [vmem:[#allocation3 + $0x88] sm:$0xf] 0
          %353 = vst [vmem:[#allocation3 + $0x8c] sm:$0xf] 0
          %354 = vst [vmem:[#allocation3 + $0x90] sm:$0xf] 0
          %355 = vst [vmem:[#allocation3 + $0x94] sm:$0xf] 0
          %356 = vst [vmem:[#allocation3 + $0x98] sm:$0xf] 0
          %357 = vst [vmem:[#allocation3 + $0x9c] sm:$0xf] 0
          %358 = vst [vmem:[#allocation3 + $0xa0] sm:$0xf] 0
        $region56: #{tpu_custom_call.1} parent=39 // pred_fallthru
          _
        %v359 = vld [vmem:[%s237] sm:$0xff]
        %v360 = vld [vmem:[%s237 + $0x8] sm:$0xff]
        %v361 = vpack.c.bf16 %v360, %v359
        %v363 = vunpack.c.l.b16 %v361
        %v364 = vunpack.c.h.b16 %v361
        %v365 = vpack.c.b16 %v363, %v363
        %v366 = vpack.c.b16 %v364, %v364
        %vm367 = vsmask.f32 1280
        %vm368 = vsmask.f32 5392
        %vm369 = vmor %vm367, %vm368
        %v371 = vshrl.u32 %v365, 16
        %v373 = vrot.slane %v371, 6
        %v374 = vshll.u32 %v365, 16
        %v376 = vrot.slane %v374, 7
        %v377 = vor.u32 %v373, %v376
        %v378 = vrot.slane %v377, 4
        %v380 = vshrl.u32 %v366, 16
        %v382 = vrot.slane %v380, 6
        %v383 = vshll.u32 %v366, 16
        %v385 = vrot.slane %v383, 7
        %v386 = vor.u32 %v382, %v385
        %v387 = vsel %vm369, %v378, %v386
        %v388 = vrot.slane %v386, 4
        %vm392 = vcmask 1043457
        %vm393 = vsmask.f32 7942
        %vm394 = vmand %vm392, %vm393
        %v395 = vld [vmem:[#allocation2 + $0x8] sm:$0xe]
        %v396 = vsel %vm394, %v377, %v395
        %397 = vst [vmem:[#allocation2 + $0x8] sm:$0xe] %v396
        %398 = vst [vmem:[#allocation2 + $0xc] sm:$0xf] %v387
        %vm399 = vcmask 1041408
        %vm400 = vmand %vm399, %vm367
        %v401 = vld [vmem:[#allocation2 + $0x10] sm:$0x3]
        %v402 = vsel %vm400, %v388, %v401
        %403 = vst [vmem:[#allocation2 + $0x10] sm:$0x3] %v402
        %s404 = scalar_lea.vmem %s237, 16 [#allocation4]
        %v405 = vld [vmem:[%s404] sm:$0xff]
        %v406 = vld [vmem:[%s404 + $0x8] sm:$0xff]
        %v407 = vpack.c.bf16 %v406, %v405
        %v409 = vunpack.c.l.b16 %v407
        %v410 = vunpack.c.h.b16 %v407
        %v411 = vpack.c.b16 %v409, %v409
        %v412 = vpack.c.b16 %v410, %v410
        %vm413 = vsmask.f32 2304
        %vm414 = vsmask.f32 6416
        %vm415 = vmor %vm413, %vm414
        %v417 = vshrl.u32 %v411, 16
        %v419 = vrot.slane %v417, 5
        %v420 = vshll.u32 %v411, 16
        %v422 = vrot.slane %v420, 6
        %v423 = vor.u32 %v419, %v422
        %v424 = vrot.slane %v423, 4
        %v426 = vshrl.u32 %v412, 16
        %v428 = vrot.slane %v426, 5
        %v429 = vshll.u32 %v412, 16
        %v431 = vrot.slane %v429, 6
        %v432 = vor.u32 %v428, %v431
        %v433 = vsel %vm415, %v424, %v432
        %v434 = vrot.slane %v432, 4
        %vm438 = vcmask 1043458
        %vm439 = vsmask.f32 7946
        %vm440 = vmand %vm438, %vm439
        %v441 = vld [vmem:[#allocation2 + $0x10] sm:$0xc]
        %v442 = vsel %vm440, %v423, %v441
        %443 = vst [vmem:[#allocation2 + $0x10] sm:$0xc] %v442
        %444 = vst [vmem:[#allocation2 + $0x14] sm:$0xf] %v433
        %vm445 = vcmask 1042432
        %vm446 = vmand %vm445, %vm413
        %v447 = vld [vmem:[#allocation2 + $0x18] sm:$0x7]
        %v448 = vsel %vm446, %v434, %v447
        %449 = vst [vmem:[#allocation2 + $0x18] sm:$0x7] %v448
        %s450 = scalar_lea.vmem %s237, 32 [#allocation4]
        %v451 = vld [vmem:[%s450] sm:$0xff]
        %v452 = vld [vmem:[%s450 + $0x8] sm:$0xff]
        %v453 = vpack.c.bf16 %v452, %v451
        %v455 = vunpack.c.l.b16 %v453
        %v456 = vunpack.c.h.b16 %v453
        %v457 = vpack.c.b16 %v455, %v455
        %v458 = vpack.c.b16 %v456, %v456
        %vm459 = vsmask.f32 3328
        %vm460 = vsmask.f32 7440
        %vm461 = vmor %vm459, %vm460
        %v463 = vshll.u32 %v457, 16
        %v465 = vrot.slane %v463, 5
        %v466 = vshrl.u32 %v457, 16
        %v468 = vrot.slane %v466, 4
        %v469 = vor.u32 %v468, %v465
        %v470 = vrot.slane %v469, 4
        %v472 = vshll.u32 %v458, 16
        %v474 = vrot.slane %v472, 5
        %v475 = vsel %vm461, %v470, %v474
        %v476 = vshrl.u32 %v458, 16
        %v478 = vrot.slane %v476, 4
        %v479 = vor.u32 %v478, %v474
        %v480 = vrot.slane %v479, 4
        %vm484 = vcmask 1043459
        %vm485 = vsmask.f32 7950
        %vm486 = vmand %vm484, %vm485
        %v487 = vld [vmem:[#allocation2 + $0x18] sm:$0x8]
        %v488 = vsel %vm486, %v465, %v487
        %489 = vst [vmem:[#allocation2 + $0x18] sm:$0x8] %v488
        %490 = vst [vmem:[#allocation2 + $0x1c] sm:$0xf] %v475
        %vm491 = vcmask 1043456
        %vm492 = vmand %vm491, %vm459
        %v493 = vld [vmem:[#allocation2 + $0x20] sm:$0xf]
        %v494 = vsel %vm492, %v480, %v493
        %495 = vst [vmem:[#allocation2 + $0x20] sm:$0xf] %v494
        %s496 = scalar_lea.vmem %s237, 48 [#allocation4]
        %v497 = vld [vmem:[%s496] sm:$0xff]
        %v498 = vld [vmem:[%s496 + $0x8] sm:$0xff]
        %v499 = vpack.c.bf16 %v498, %v497
        %v501 = vunpack.c.l.b16 %v499
        %v502 = vunpack.c.h.b16 %v499
        %v503 = vpack.c.b16 %v501, %v501
        %v504 = vpack.c.b16 %v502, %v502
        %vm505 = vsmask.f32 256
        %vm506 = vsmask.f32 4368
        %vm507 = vmor %vm505, %vm506
        %v509 = vshrl.u32 %v503, 16
        %v511 = vrot.slane %v509, 7
        %v512 = vshll.u32 %v503, 16
        %v514 = vor.u32 %v511, %v512
        %v515 = vrot.slane %v511, 4
        %v517 = vshrl.u32 %v504, 16
        %v519 = vrot.slane %v517, 7
        %v520 = vshll.u32 %v504, 16
        %v522 = vor.u32 %v519, %v520
        %v523 = vsel %vm507, %v515, %v522
        %v524 = vrot.slane %v519, 4
        %vm528 = vsmask.f32 7938
        %vm529 = vmand %vm491, %vm528
        %v530 = vld [vmem:[#allocation2 + $0x24] sm:$0xf]
        %v531 = vsel %vm529, %v514, %v530
        %532 = vst [vmem:[#allocation2 + $0x24] sm:$0xf] %v531
        %533 = vst [vmem:[#allocation2 + $0x28] sm:$0xf] %v523
        %vm534 = vcmask 1040384
        %vm535 = vmand %vm534, %vm505
        %v536 = vld [vmem:[#allocation2 + $0x2c] sm:$0x1]
        %v537 = vsel %vm535, %v524, %v536
        %538 = vst [vmem:[#allocation2 + $0x2c] sm:$0x1] %v537
        %s539 = scalar_lea.vmem %s237, 64 [#allocation4]
        %v540 = vld [vmem:[%s539] sm:$0xff]
        %v541 = vld [vmem:[%s539 + $0x8] sm:$0xff]
        %v542 = vpack.c.bf16 %v541, %v540
        %v544 = vunpack.c.l.b16 %v542
        %v545 = vunpack.c.h.b16 %v542
        %v546 = vpack.c.b16 %v544, %v544
        %v547 = vpack.c.b16 %v545, %v545
        %v549 = vshrl.u32 %v546, 16
        %v551 = vrot.slane %v549, 6
        %v552 = vshll.u32 %v546, 16
        %v554 = vrot.slane %v552, 7
        %v555 = vor.u32 %v551, %v554
        %v556 = vrot.slane %v555, 4
        %v558 = vshrl.u32 %v547, 16
        %v560 = vrot.slane %v558, 6
        %v561 = vshll.u32 %v547, 16
        %v563 = vrot.slane %v561, 7
        %v564 = vor.u32 %v560, %v563
        %v565 = vsel %vm369, %v556, %v564
        %v566 = vrot.slane %v564, 4
        %v570 = vld [vmem:[#allocation2 + $0x2c] sm:$0xe]
        %v571 = vsel %vm394, %v555, %v570
        %572 = vst [vmem:[#allocation2 + $0x2c] sm:$0xe] %v571
        %573 = vst [vmem:[#allocation2 + $0x30] sm:$0xf] %v565
        %v574 = vld [vmem:[#allocation2 + $0x34] sm:$0x3]
        %v575 = vsel %vm400, %v566, %v574
        %576 = vst [vmem:[#allocation2 + $0x34] sm:$0x3] %v575
        %s577 = scalar_lea.vmem %s237, 80 [#allocation4]
        %v578 = vld [vmem:[%s577] sm:$0xff]
        %v579 = vld [vmem:[%s577 + $0x8] sm:$0xff]
        %v580 = vpack.c.bf16 %v579, %v578
        %v582 = vunpack.c.l.b16 %v580
        %v583 = vunpack.c.h.b16 %v580
        %v584 = vpack.c.b16 %v582, %v582
        %v585 = vpack.c.b16 %v583, %v583
        %v587 = vshrl.u32 %v584, 16
        %v589 = vrot.slane %v587, 5
        %v590 = vshll.u32 %v584, 16
        %v592 = vrot.slane %v590, 6
        %v593 = vor.u32 %v589, %v592
        %v594 = vrot.slane %v593, 4
        %v596 = vshrl.u32 %v585, 16
        %v598 = vrot.slane %v596, 5
        %v599 = vshll.u32 %v585, 16
        %v601 = vrot.slane %v599, 6
        %v602 = vor.u32 %v598, %v601
        %v603 = vsel %vm415, %v594, %v602
        %v604 = vrot.slane %v602, 4
        %v608 = vld [vmem:[#allocation2 + $0x34] sm:$0xc]
        %v609 = vsel %vm440, %v593, %v608
        %610 = vst [vmem:[#allocation2 + $0x34] sm:$0xc] %v609
        %611 = vst [vmem:[#allocation2 + $0x38] sm:$0xf] %v603
        %v612 = vld [vmem:[#allocation2 + $0x3c] sm:$0x7]
        %v613 = vsel %vm446, %v604, %v612
        %614 = vst [vmem:[#allocation2 + $0x3c] sm:$0x7] %v613
        %s615 = scalar_lea.vmem %s237, 96 [#allocation4]
        %v616 = vld [vmem:[%s615] sm:$0xff]
        %v617 = vld [vmem:[%s615 + $0x8] sm:$0xff]
        %v618 = vpack.c.bf16 %v617, %v616
        %v620 = vunpack.c.l.b16 %v618
        %v621 = vunpack.c.h.b16 %v618
        %v622 = vpack.c.b16 %v620, %v620
        %v623 = vpack.c.b16 %v621, %v621
        %v625 = vshll.u32 %v622, 16
        %v627 = vrot.slane %v625, 5
        %v628 = vshrl.u32 %v622, 16
        %v630 = vrot.slane %v628, 4
        %v631 = vor.u32 %v630, %v627
        %v632 = vrot.slane %v631, 4
        %v634 = vshll.u32 %v623, 16
        %v636 = vrot.slane %v634, 5
        %v637 = vsel %vm461, %v632, %v636
        %v638 = vshrl.u32 %v623, 16
        %v640 = vrot.slane %v638, 4
        %v641 = vor.u32 %v640, %v636
        %v642 = vrot.slane %v641, 4
        %v646 = vld [vmem:[#allocation2 + $0x3c] sm:$0x8]
        %v647 = vsel %vm486, %v627, %v646
        %648 = vst [vmem:[#allocation2 + $0x3c] sm:$0x8] %v647
        %649 = vst [vmem:[#allocation2 + $0x40] sm:$0xf] %v637
        %v650 = vld [vmem:[#allocation2 + $0x44] sm:$0xf]
        %v651 = vsel %vm492, %v642, %v650
        %652 = vst [vmem:[#allocation2 + $0x44] sm:$0xf] %v651
        %s653 = scalar_lea.vmem %s237, 112 [#allocation4]
        %v654 = vld [vmem:[%s653] sm:$0xff]
        %v655 = vld [vmem:[%s653 + $0x8] sm:$0xff]
        %v656 = vpack.c.bf16 %v655, %v654
        %v658 = vunpack.c.l.b16 %v656
        %v659 = vunpack.c.h.b16 %v656
        %v660 = vpack.c.b16 %v658, %v658
        %v661 = vpack.c.b16 %v659, %v659
        %v663 = vshrl.u32 %v660, 16
        %v665 = vrot.slane %v663, 7
        %v666 = vshll.u32 %v660, 16
        %v668 = vor.u32 %v665, %v666
        %v669 = vrot.slane %v665, 4
        %v671 = vshrl.u32 %v661, 16
        %v673 = vrot.slane %v671, 7
        %v674 = vshll.u32 %v661, 16
        %v676 = vor.u32 %v673, %v674
        %v677 = vsel %vm507, %v669, %v676
        %v678 = vrot.slane %v673, 4
        %v682 = vld [vmem:[#allocation2 + $0x48] sm:$0xf]
        %v683 = vsel %vm529, %v668, %v682
        %684 = vst [vmem:[#allocation2 + $0x48] sm:$0xf] %v683
        %685 = vst [vmem:[#allocation2 + $0x4c] sm:$0xf] %v677
        %v686 = vld [vmem:[#allocation2 + $0x50] sm:$0x1]
        %v687 = vsel %vm535, %v678, %v686
        %688 = vst [vmem:[#allocation2 + $0x50] sm:$0x1] %v687
        %s689 = scalar_lea.vmem %s237, 128 [#allocation4]
        %v690 = vld [vmem:[%s689] sm:$0xff]
        %v691 = vld [vmem:[%s689 + $0x8] sm:$0xff]
        %v692 = vpack.c.bf16 %v691, %v690
        %v694 = vunpack.c.l.b16 %v692
        %v695 = vunpack.c.h.b16 %v692
        %v696 = vpack.c.b16 %v694, %v694
        %v697 = vpack.c.b16 %v695, %v695
        %v699 = vshrl.u32 %v696, 16
        %v701 = vrot.slane %v699, 6
        %v702 = vshll.u32 %v696, 16
        %v704 = vrot.slane %v702, 7
        %v705 = vor.u32 %v701, %v704
        %v706 = vrot.slane %v705, 4
        %v708 = vshrl.u32 %v697, 16
        %v710 = vrot.slane %v708, 6
        %v711 = vshll.u32 %v697, 16
        %v713 = vrot.slane %v711, 7
        %v714 = vor.u32 %v710, %v713
        %v715 = vsel %vm369, %v706, %v714
        %v716 = vrot.slane %v714, 4
        %v720 = vld [vmem:[#allocation2 + $0x50] sm:$0xe]
        %v721 = vsel %vm394, %v705, %v720
        %722 = vst [vmem:[#allocation2 + $0x50] sm:$0xe] %v721
        %723 = vst [vmem:[#allocation2 + $0x54] sm:$0xf] %v715
        %v724 = vld [vmem:[#allocation2 + $0x58] sm:$0x3]
        %v725 = vsel %vm400, %v716, %v724
        %726 = vst [vmem:[#allocation2 + $0x58] sm:$0x3] %v725
        %s727 = scalar_lea.vmem %s237, 144 [#allocation4]
        %v728 = vld [vmem:[%s727] sm:$0xff]
        %v729 = vld [vmem:[%s727 + $0x8] sm:$0xff]
        %v730 = vpack.c.bf16 %v729, %v728
        %v732 = vunpack.c.l.b16 %v730
        %v733 = vunpack.c.h.b16 %v730
        %v734 = vpack.c.b16 %v732, %v732
        %v735 = vpack.c.b16 %v733, %v733
        %v737 = vshrl.u32 %v734, 16
        %v739 = vrot.slane %v737, 5
        %v740 = vshll.u32 %v734, 16
        %v742 = vrot.slane %v740, 6
        %v743 = vor.u32 %v739, %v742
        %v744 = vrot.slane %v743, 4
        %v746 = vshrl.u32 %v735, 16
        %v748 = vrot.slane %v746, 5
        %v749 = vshll.u32 %v735, 16
        %v751 = vrot.slane %v749, 6
        %v752 = vor.u32 %v748, %v751
        %v753 = vsel %vm415, %v744, %v752
        %v754 = vrot.slane %v752, 4
        %v758 = vld [vmem:[#allocation2 + $0x58] sm:$0xc]
        %v759 = vsel %vm440, %v743, %v758
        %760 = vst [vmem:[#allocation2 + $0x58] sm:$0xc] %v759
        %761 = vst [vmem:[#allocation2 + $0x5c] sm:$0xf] %v753
        %v762 = vld [vmem:[#allocation2 + $0x60] sm:$0x7]
        %v763 = vsel %vm446, %v754, %v762
        %764 = vst [vmem:[#allocation2 + $0x60] sm:$0x7] %v763
        %s765 = scalar_lea.vmem %s237, 160 [#allocation4]
        %v766 = vld [vmem:[%s765] sm:$0xff]
        %v767 = vld [vmem:[%s765 + $0x8] sm:$0xff]
        %v768 = vpack.c.bf16 %v767, %v766
        %v770 = vunpack.c.l.b16 %v768
        %v771 = vunpack.c.h.b16 %v768
        %v772 = vpack.c.b16 %v770, %v770
        %v773 = vpack.c.b16 %v771, %v771
        %v775 = vshll.u32 %v772, 16
        %v777 = vrot.slane %v775, 5
        %v778 = vshrl.u32 %v772, 16
        %v780 = vrot.slane %v778, 4
        %v781 = vor.u32 %v780, %v777
        %v782 = vrot.slane %v781, 4
        %v784 = vshll.u32 %v773, 16
        %v786 = vrot.slane %v784, 5
        %v787 = vsel %vm461, %v782, %v786
        %v788 = vshrl.u32 %v773, 16
        %v790 = vrot.slane %v788, 4
        %v791 = vor.u32 %v790, %v786
        %v792 = vrot.slane %v791, 4
        %v796 = vld [vmem:[#allocation2 + $0x60] sm:$0x8]
        %v797 = vsel %vm486, %v777, %v796
        %798 = vst [vmem:[#allocation2 + $0x60] sm:$0x8] %v797
        %799 = vst [vmem:[#allocation2 + $0x64] sm:$0xf] %v787
        %v800 = vld [vmem:[#allocation2 + $0x68] sm:$0xf]
        %v801 = vsel %vm492, %v792, %v800
        %802 = vst [vmem:[#allocation2 + $0x68] sm:$0xf] %v801
        %s803 = scalar_lea.vmem %s237, 176 [#allocation4]
        %v804 = vld [vmem:[%s803] sm:$0xff]
        %v805 = vld [vmem:[%s803 + $0x8] sm:$0xff]
        %v806 = vpack.c.bf16 %v805, %v804
        %v808 = vunpack.c.l.b16 %v806
        %v809 = vunpack.c.h.b16 %v806
        %v810 = vpack.c.b16 %v808, %v808
        %v811 = vpack.c.b16 %v809, %v809
        %v813 = vshrl.u32 %v810, 16
        %v815 = vrot.slane %v813, 7
        %v816 = vshll.u32 %v810, 16
        %v818 = vor.u32 %v815, %v816
        %v819 = vrot.slane %v815, 4
        %v821 = vshrl.u32 %v811, 16
        %v823 = vrot.slane %v821, 7
        %v824 = vshll.u32 %v811, 16
        %v826 = vor.u32 %v823, %v824
        %v827 = vsel %vm507, %v819, %v826
        %v828 = vrot.slane %v823, 4
        %v832 = vld [vmem:[#allocation2 + $0x6c] sm:$0xf]
        %v833 = vsel %vm529, %v818, %v832
        %834 = vst [vmem:[#allocation2 + $0x6c] sm:$0xf] %v833
        %835 = vst [vmem:[#allocation2 + $0x70] sm:$0xf] %v827
        %v836 = vld [vmem:[#allocation2 + $0x74] sm:$0x1]
        %v837 = vsel %vm535, %v828, %v836
        %838 = vst [vmem:[#allocation2 + $0x74] sm:$0x1] %v837
        %s839 = scalar_lea.vmem %s237, 192 [#allocation4]
        %v840 = vld [vmem:[%s839] sm:$0xff]
        %v841 = vld [vmem:[%s839 + $0x8] sm:$0xff]
        %v842 = vpack.c.bf16 %v841, %v840
        %v844 = vunpack.c.l.b16 %v842
        %v845 = vunpack.c.h.b16 %v842
        %v846 = vpack.c.b16 %v844, %v844
        %v847 = vpack.c.b16 %v845, %v845
        %v849 = vshrl.u32 %v846, 16
        %v851 = vrot.slane %v849, 6
        %v852 = vshll.u32 %v846, 16
        %v854 = vrot.slane %v852, 7
        %v855 = vor.u32 %v851, %v854
        %v856 = vrot.slane %v855, 4
        %v858 = vshrl.u32 %v847, 16
        %v860 = vrot.slane %v858, 6
        %v861 = vshll.u32 %v847, 16
        %v863 = vrot.slane %v861, 7
        %v864 = vor.u32 %v860, %v863
        %v865 = vsel %vm369, %v856, %v864
        %v866 = vrot.slane %v864, 4
        %v870 = vld [vmem:[#allocation2 + $0x74] sm:$0xe]
        %v871 = vsel %vm394, %v855, %v870
        %872 = vst [vmem:[#allocation2 + $0x74] sm:$0xe] %v871
        %873 = vst [vmem:[#allocation2 + $0x78] sm:$0xf] %v865
        %v874 = vld [vmem:[#allocation2 + $0x7c] sm:$0x3]
        %v875 = vsel %vm400, %v866, %v874
        %876 = vst [vmem:[#allocation2 + $0x7c] sm:$0x3] %v875
        %s877 = scalar_lea.vmem %s237, 208 [#allocation4]
        %v878 = vld [vmem:[%s877] sm:$0xff]
        %v879 = vld [vmem:[%s877 + $0x8] sm:$0xff]
        %v880 = vpack.c.bf16 %v879, %v878
        %v882 = vunpack.c.l.b16 %v880
        %v883 = vunpack.c.h.b16 %v880
        %v884 = vpack.c.b16 %v882, %v882
        %v885 = vpack.c.b16 %v883, %v883
        %v887 = vshrl.u32 %v884, 16
        %v889 = vrot.slane %v887, 5
        %v890 = vshll.u32 %v884, 16
        %v892 = vrot.slane %v890, 6
        %v893 = vor.u32 %v889, %v892
        %v894 = vrot.slane %v893, 4
        %v896 = vshrl.u32 %v885, 16
        %v898 = vrot.slane %v896, 5
        %v899 = vshll.u32 %v885, 16
        %v901 = vrot.slane %v899, 6
        %v902 = vor.u32 %v898, %v901
        %v903 = vsel %vm415, %v894, %v902
        %v904 = vrot.slane %v902, 4
        %v908 = vld [vmem:[#allocation2 + $0x7c] sm:$0xc]
        %v909 = vsel %vm440, %v893, %v908
        %910 = vst [vmem:[#allocation2 + $0x7c] sm:$0xc] %v909
        %911 = vst [vmem:[#allocation2 + $0x80] sm:$0xf] %v903
        %v912 = vld [vmem:[#allocation2 + $0x84] sm:$0x7]
        %v913 = vsel %vm446, %v904, %v912
        %914 = vst [vmem:[#allocation2 + $0x84] sm:$0x7] %v913
        %s915 = scalar_lea.vmem %s237, 224 [#allocation4]
        %v916 = vld [vmem:[%s915] sm:$0xff]
        %v917 = vld [vmem:[%s915 + $0x8] sm:$0xff]
        %v918 = vpack.c.bf16 %v917, %v916
        %v920 = vunpack.c.l.b16 %v918
        %v921 = vunpack.c.h.b16 %v918
        %v922 = vpack.c.b16 %v920, %v920
        %v923 = vpack.c.b16 %v921, %v921
        %v925 = vshll.u32 %v922, 16
        %v927 = vrot.slane %v925, 5
        %v928 = vshrl.u32 %v922, 16
        %v930 = vrot.slane %v928, 4
        %v931 = vor.u32 %v930, %v927
        %v932 = vrot.slane %v931, 4
        %v934 = vshll.u32 %v923, 16
        %v936 = vrot.slane %v934, 5
        %v937 = vsel %vm461, %v932, %v936
        %v938 = vshrl.u32 %v923, 16
        %v940 = vrot.slane %v938, 4
        %v941 = vor.u32 %v940, %v936
        %v942 = vrot.slane %v941, 4
        %v946 = vld [vmem:[#allocation2 + $0x84] sm:$0x8]
        %v947 = vsel %vm486, %v927, %v946
        %948 = vst [vmem:[#allocation2 + $0x84] sm:$0x8] %v947
        %949 = vst [vmem:[#allocation2 + $0x88] sm:$0xf] %v937
        %v950 = vld [vmem:[#allocation2 + $0x8c] sm:$0xf]
        %v951 = vsel %vm492, %v942, %v950
        %952 = vst [vmem:[#allocation2 + $0x8c] sm:$0xf] %v951
        %s953 = scalar_lea.vmem %s237, 240 [#allocation4]
        %v954 = vld [vmem:[%s953] sm:$0xff]
        %v955 = vld [vmem:[%s953 + $0x8] sm:$0xff]
        %v956 = vpack.c.bf16 %v955, %v954
        %v958 = vunpack.c.l.b16 %v956
        %v959 = vunpack.c.h.b16 %v956
        %v960 = vpack.c.b16 %v958, %v958
        %v961 = vpack.c.b16 %v959, %v959
        %v963 = vshrl.u32 %v960, 16
        %v965 = vrot.slane %v963, 7
        %v966 = vshll.u32 %v960, 16
        %v968 = vor.u32 %v965, %v966
        %v969 = vrot.slane %v965, 4
        %v971 = vshrl.u32 %v961, 16
        %v973 = vrot.slane %v971, 7
        %v974 = vshll.u32 %v961, 16
        %v976 = vor.u32 %v973, %v974
        %v977 = vsel %vm507, %v969, %v976
        %v978 = vrot.slane %v973, 4
        %v982 = vld [vmem:[#allocation2 + $0x90] sm:$0xf]
        %v983 = vsel %vm529, %v968, %v982
        %984 = vst [vmem:[#allocation2 + $0x90] sm:$0xf] %v983
        %985 = vst [vmem:[#allocation2 + $0x94] sm:$0xf] %v977
        %v986 = vld [vmem:[#allocation2 + $0x98] sm:$0x1]
        %v987 = vsel %vm535, %v978, %v986
        %988 = vst [vmem:[#allocation2 + $0x98] sm:$0x1] %v987
        %v989 = vlaneseq
        %v990 = vshrl.u32 %v989, 7
        %v991 = vadd.s32 %v990, 8
        %v992 = vadd.s32 %v990, 16
        %v993 = vadd.s32 %v990, 24
        %v994 = vadd.s32 %v990, 32
        %v995 = vadd.s32 %v990, 40
        %v996 = vadd.s32 %v990, 48
        %v997 = vadd.s32 %v990, 56
        %v998 = vadd.s32 %v990, 64
        %v999 = vadd.s32 %v990, 72
        %v1000 = vadd.s32 %v990, 80
        %v1001 = vadd.s32 %v990, 88
        %v1002 = vadd.s32 %v990, 96
        %v1003 = vadd.s32 %v990, 104
        %v1004 = vadd.s32 %v990, 112
        %v1005 = vadd.s32 %v990, 120
        %v1006 = vadd.s32 %v990, 128
        %v1007 = vadd.s32 %v990, 136
        %vm1008 = vcmp.lt.s32.totalorder %v990, 0
        %v1009 = vsub.s32 0, %v990
        %v1010 = vsel %vm1008, %v1009, %v990
        %v1011 = vmul.u32.u64.compose %v1010, 3817748708
        %v1012 = vextract.low.u32 %v1011
        %v1013 = vextract.high.u32 %v1011
        %v1014 = vshrl.u32 %v1013, 4
        %v1015 = vmul.u32 %v1014, 18
        %v1016 = vsub.s32 %v1010, %v1015
        %v1017 = vsub.s32 0, %v1016
        %v1018 = vsel %vm1008, %v1017, %v1016
        %vm1019 = vcmp.lt.s32.totalorder %v991, 0
        %v1020 = vsub.s32 0, %v991
        %v1021 = vsel %vm1019, %v1020, %v991
        %v1022 = vmul.u32.u64.compose %v1021, 3817748708
        %v1023 = vextract.low.u32 %v1022
        %v1024 = vextract.high.u32 %v1022
        %v1025 = vshrl.u32 %v1024, 4
        %v1026 = vmul.u32 %v1025, 18
        %v1027 = vsub.s32 %v1021, %v1026
        %v1028 = vsub.s32 0, %v1027
        %v1029 = vsel %vm1019, %v1028, %v1027
        %vm1030 = vcmp.lt.s32.totalorder %v992, 0
        %v1031 = vsub.s32 0, %v992
        %v1032 = vsel %vm1030, %v1031, %v992
        %v1033 = vmul.u32.u64.compose %v1032, 3817748708
        %v1034 = vextract.low.u32 %v1033
        %v1035 = vextract.high.u32 %v1033
        %v1036 = vshrl.u32 %v1035, 4
        %v1037 = vmul.u32 %v1036, 18
        %v1038 = vsub.s32 %v1032, %v1037
        %v1039 = vsub.s32 0, %v1038
        %v1040 = vsel %vm1030, %v1039, %v1038
        %vm1041 = vcmp.lt.s32.totalorder %v993, 0
        %v1042 = vsub.s32 0, %v993
        %v1043 = vsel %vm1041, %v1042, %v993
        %v1044 = vmul.u32.u64.compose %v1043, 3817748708
        %v1045 = vextract.low.u32 %v1044
        %v1046 = vextract.high.u32 %v1044
        %v1047 = vshrl.u32 %v1046, 4
        %v1048 = vmul.u32 %v1047, 18
        %v1049 = vsub.s32 %v1043, %v1048
        %v1050 = vsub.s32 0, %v1049
        %v1051 = vsel %vm1041, %v1050, %v1049
        %vm1052 = vcmp.lt.s32.totalorder %v994, 0
        %v1053 = vsub.s32 0, %v994
        %v1054 = vsel %vm1052, %v1053, %v994
        %v1055 = vmul.u32.u64.compose %v1054, 3817748708
        %v1056 = vextract.low.u32 %v1055
        %v1057 = vextract.high.u32 %v1055
        %v1058 = vshrl.u32 %v1057, 4
        %v1059 = vmul.u32 %v1058, 18
        %v1060 = vsub.s32 %v1054, %v1059
        %v1061 = vsub.s32 0, %v1060
        %v1062 = vsel %vm1052, %v1061, %v1060
        %vm1063 = vcmp.lt.s32.totalorder %v995, 0
        %v1064 = vsub.s32 0, %v995
        %v1065 = vsel %vm1063, %v1064, %v995
        %v1066 = vmul.u32.u64.compose %v1065, 3817748708
        %v1067 = vextract.low.u32 %v1066
        %v1068 = vextract.high.u32 %v1066
        %v1069 = vshrl.u32 %v1068, 4
        %v1070 = vmul.u32 %v1069, 18
        %v1071 = vsub.s32 %v1065, %v1070
        %v1072 = vsub.s32 0, %v1071
        %v1073 = vsel %vm1063, %v1072, %v1071
        %vm1074 = vcmp.lt.s32.totalorder %v996, 0
        %v1075 = vsub.s32 0, %v996
        %v1076 = vsel %vm1074, %v1075, %v996
        %v1077 = vmul.u32.u64.compose %v1076, 3817748708
        %v1078 = vextract.low.u32 %v1077
        %v1079 = vextract.high.u32 %v1077
        %v1080 = vshrl.u32 %v1079, 4
        %v1081 = vmul.u32 %v1080, 18
        %v1082 = vsub.s32 %v1076, %v1081
        %v1083 = vsub.s32 0, %v1082
        %v1084 = vsel %vm1074, %v1083, %v1082
        %vm1085 = vcmp.lt.s32.totalorder %v997, 0
        %v1086 = vsub.s32 0, %v997
        %v1087 = vsel %vm1085, %v1086, %v997
        %v1088 = vmul.u32.u64.compose %v1087, 3817748708
        %v1089 = vextract.low.u32 %v1088
        %v1090 = vextract.high.u32 %v1088
        %v1091 = vshrl.u32 %v1090, 4
        %v1092 = vmul.u32 %v1091, 18
        %v1093 = vsub.s32 %v1087, %v1092
        %v1094 = vsub.s32 0, %v1093
        %v1095 = vsel %vm1085, %v1094, %v1093
        %vm1096 = vcmp.lt.s32.totalorder %v998, 0
        %v1097 = vsub.s32 0, %v998
        %v1098 = vsel %vm1096, %v1097, %v998
        %v1099 = vmul.u32.u64.compose %v1098, 3817748708
        %v1100 = vextract.low.u32 %v1099
        %v1101 = vextract.high.u32 %v1099
        %v1102 = vshrl.u32 %v1101, 4
        %v1103 = vmul.u32 %v1102, 18
        %v1104 = vsub.s32 %v1098, %v1103
        %v1105 = vsub.s32 0, %v1104
        %v1106 = vsel %vm1096, %v1105, %v1104
        %vm1107 = vcmp.lt.s32.totalorder %v999, 0
        %v1108 = vsub.s32 0, %v999
        %v1109 = vsel %vm1107, %v1108, %v999
        %v1110 = vmul.u32.u64.compose %v1109, 3817748708
        %v1111 = vextract.low.u32 %v1110
        %v1112 = vextract.high.u32 %v1110
        %v1113 = vshrl.u32 %v1112, 4
        %v1114 = vmul.u32 %v1113, 18
        %v1115 = vsub.s32 %v1109, %v1114
        %v1116 = vsub.s32 0, %v1115
        %v1117 = vsel %vm1107, %v1116, %v1115
        %vm1118 = vcmp.lt.s32.totalorder %v1000, 0
        %v1119 = vsub.s32 0, %v1000
        %v1120 = vsel %vm1118, %v1119, %v1000
        %v1121 = vmul.u32.u64.compose %v1120, 3817748708
        %v1122 = vextract.low.u32 %v1121
        %v1123 = vextract.high.u32 %v1121
        %v1124 = vshrl.u32 %v1123, 4
        %v1125 = vmul.u32 %v1124, 18
        %v1126 = vsub.s32 %v1120, %v1125
        %v1127 = vsub.s32 0, %v1126
        %v1128 = vsel %vm1118, %v1127, %v1126
        %vm1129 = vcmp.lt.s32.totalorder %v1001, 0
        %v1130 = vsub.s32 0, %v1001
        %v1131 = vsel %vm1129, %v1130, %v1001
        %v1132 = vmul.u32.u64.compose %v1131, 3817748708
        %v1133 = vextract.low.u32 %v1132
        %v1134 = vextract.high.u32 %v1132
        %v1135 = vshrl.u32 %v1134, 4
        %v1136 = vmul.u32 %v1135, 18
        %v1137 = vsub.s32 %v1131, %v1136
        %v1138 = vsub.s32 0, %v1137
        %v1139 = vsel %vm1129, %v1138, %v1137
        %vm1140 = vcmp.lt.s32.totalorder %v1002, 0
        %v1141 = vsub.s32 0, %v1002
        %v1142 = vsel %vm1140, %v1141, %v1002
        %v1143 = vmul.u32.u64.compose %v1142, 3817748708
        %v1144 = vextract.low.u32 %v1143
        %v1145 = vextract.high.u32 %v1143
        %v1146 = vshrl.u32 %v1145, 4
        %v1147 = vmul.u32 %v1146, 18
        %v1148 = vsub.s32 %v1142, %v1147
        %v1149 = vsub.s32 0, %v1148
        %v1150 = vsel %vm1140, %v1149, %v1148
        %vm1151 = vcmp.lt.s32.totalorder %v1003, 0
        %v1152 = vsub.s32 0, %v1003
        %v1153 = vsel %vm1151, %v1152, %v1003
        %v1154 = vmul.u32.u64.compose %v1153, 3817748708
        %v1155 = vextract.low.u32 %v1154
        %v1156 = vextract.high.u32 %v1154
        %v1157 = vshrl.u32 %v1156, 4
        %v1158 = vmul.u32 %v1157, 18
        %v1159 = vsub.s32 %v1153, %v1158
        %v1160 = vsub.s32 0, %v1159
        %v1161 = vsel %vm1151, %v1160, %v1159
        %vm1162 = vcmp.lt.s32.totalorder %v1004, 0
        %v1163 = vsub.s32 0, %v1004
        %v1164 = vsel %vm1162, %v1163, %v1004
        %v1165 = vmul.u32.u64.compose %v1164, 3817748708
        %v1166 = vextract.low.u32 %v1165
        %v1167 = vextract.high.u32 %v1165
        %v1168 = vshrl.u32 %v1167, 4
        %v1169 = vmul.u32 %v1168, 18
        %v1170 = vsub.s32 %v1164, %v1169
        %v1171 = vsub.s32 0, %v1170
        %v1172 = vsel %vm1162, %v1171, %v1170
        %vm1173 = vcmp.lt.s32.totalorder %v1005, 0
        %v1174 = vsub.s32 0, %v1005
        %v1175 = vsel %vm1173, %v1174, %v1005
        %v1176 = vmul.u32.u64.compose %v1175, 3817748708
        %v1177 = vextract.low.u32 %v1176
        %v1178 = vextract.high.u32 %v1176
        %v1179 = vshrl.u32 %v1178, 4
        %v1180 = vmul.u32 %v1179, 18
        %v1181 = vsub.s32 %v1175, %v1180
        %v1182 = vsub.s32 0, %v1181
        %v1183 = vsel %vm1173, %v1182, %v1181
        %vm1184 = vcmp.lt.s32.totalorder %v1006, 0
        %v1185 = vsub.s32 0, %v1006
        %v1186 = vsel %vm1184, %v1185, %v1006
        %v1187 = vmul.u32.u64.compose %v1186, 3817748708
        %v1188 = vextract.low.u32 %v1187
        %v1189 = vextract.high.u32 %v1187
        %v1190 = vshrl.u32 %v1189, 4
        %v1191 = vmul.u32 %v1190, 18
        %v1192 = vsub.s32 %v1186, %v1191
        %v1193 = vsub.s32 0, %v1192
        %v1194 = vsel %vm1184, %v1193, %v1192
        %vm1195 = vcmp.lt.s32.totalorder %v1007, 0
        %v1196 = vsub.s32 0, %v1007
        %v1197 = vsel %vm1195, %v1196, %v1007
        %v1198 = vmul.u32.u64.compose %v1197, 3817748708
        %v1199 = vextract.low.u32 %v1198
        %v1200 = vextract.high.u32 %v1198
        %v1201 = vshrl.u32 %v1200, 4
        %v1202 = vmul.u32 %v1201, 18
        %v1203 = vsub.s32 %v1197, %v1202
        %v1204 = vsub.s32 0, %v1203
        %v1205 = vsel %vm1195, %v1204, %v1203
        %vm1206 = vcmp.ne.s32.totalorder %v1018, 0
        %vm1207 = vcmp.ne.s32.totalorder %v1029, 0
        %vm1208 = vcmp.ne.s32.totalorder %v1040, 0
        %vm1209 = vcmp.ne.s32.totalorder %v1051, 0
        %vm1210 = vcmp.ne.s32.totalorder %v1062, 0
        %vm1211 = vcmp.ne.s32.totalorder %v1073, 0
        %vm1212 = vcmp.ne.s32.totalorder %v1084, 0
        %vm1213 = vcmp.ne.s32.totalorder %v1095, 0
        %vm1214 = vcmp.ne.s32.totalorder %v1106, 0
        %vm1215 = vcmp.ne.s32.totalorder %v1117, 0
        %vm1216 = vcmp.ne.s32.totalorder %v1128, 0
        %vm1217 = vcmp.ne.s32.totalorder %v1139, 0
        %vm1218 = vcmp.ne.s32.totalorder %v1150, 0
        %vm1219 = vcmp.ne.s32.totalorder %v1161, 0
        %vm1220 = vcmp.ne.s32.totalorder %v1172, 0
        %vm1221 = vcmp.ne.s32.totalorder %v1183, 0
        %vm1222 = vcmp.ne.s32.totalorder %v1194, 0
        %vm1223 = vcmp.ne.s32.totalorder %v1205, 0
        %vm1224 = vcmp.lt.s32.totalorder %v1018, 0
        %vm1225 = vcmp.lt.s32.totalorder %v1029, 0
        %vm1226 = vcmp.lt.s32.totalorder %v1040, 0
        %vm1227 = vcmp.lt.s32.totalorder %v1051, 0
        %vm1228 = vcmp.lt.s32.totalorder %v1062, 0
        %vm1229 = vcmp.lt.s32.totalorder %v1073, 0
        %vm1230 = vcmp.lt.s32.totalorder %v1084, 0
        %vm1231 = vcmp.lt.s32.totalorder %v1095, 0
        %vm1232 = vcmp.lt.s32.totalorder %v1106, 0
        %vm1233 = vcmp.lt.s32.totalorder %v1117, 0
        %vm1234 = vcmp.lt.s32.totalorder %v1128, 0
        %vm1235 = vcmp.lt.s32.totalorder %v1139, 0
        %vm1236 = vcmp.lt.s32.totalorder %v1150, 0
        %vm1237 = vcmp.lt.s32.totalorder %v1161, 0
        %vm1238 = vcmp.lt.s32.totalorder %v1172, 0
        %vm1239 = vcmp.lt.s32.totalorder %v1183, 0
        %vm1240 = vcmp.lt.s32.totalorder %v1194, 0
        %vm1241 = vcmp.lt.s32.totalorder %v1205, 0
        %vm1242 = vmand %vm1224, %vm1206
        %vm1243 = vmand %vm1225, %vm1207
        %vm1244 = vmand %vm1226, %vm1208
        %vm1245 = vmand %vm1227, %vm1209
        %vm1246 = vmand %vm1228, %vm1210
        %vm1247 = vmand %vm1229, %vm1211
        %vm1248 = vmand %vm1230, %vm1212
        %vm1249 = vmand %vm1231, %vm1213
        %vm1250 = vmand %vm1232, %vm1214
        %vm1251 = vmand %vm1233, %vm1215
        %vm1252 = vmand %vm1234, %vm1216
        %vm1253 = vmand %vm1235, %vm1217
        %vm1254 = vmand %vm1236, %vm1218
        %vm1255 = vmand %vm1237, %vm1219
        %vm1256 = vmand %vm1238, %vm1220
        %vm1257 = vmand %vm1239, %vm1221
        %vm1258 = vmand %vm1240, %vm1222
        %vm1259 = vmand %vm1241, %vm1223
        %v1260 = vadd.s32 %v1018, 18
        %v1261 = vadd.s32 %v1029, 18
        %v1262 = vadd.s32 %v1040, 18
        %v1263 = vadd.s32 %v1051, 18
        %v1264 = vadd.s32 %v1062, 18
        %v1265 = vadd.s32 %v1073, 18
        %v1266 = vadd.s32 %v1084, 18
        %v1267 = vadd.s32 %v1095, 18
        %v1268 = vadd.s32 %v1106, 18
        %v1269 = vadd.s32 %v1117, 18
        %v1270 = vadd.s32 %v1128, 18
        %v1271 = vadd.s32 %v1139, 18
        %v1272 = vadd.s32 %v1150, 18
        %v1273 = vadd.s32 %v1161, 18
        %v1274 = vadd.s32 %v1172, 18
        %v1275 = vadd.s32 %v1183, 18
        %v1276 = vadd.s32 %v1194, 18
        %v1277 = vadd.s32 %v1205, 18
        %v1278 = vsel %vm1242, %v1260, %v1018
        %v1279 = vsel %vm1243, %v1261, %v1029
        %v1280 = vsel %vm1244, %v1262, %v1040
        %v1281 = vsel %vm1245, %v1263, %v1051
        %v1282 = vsel %vm1246, %v1264, %v1062
        %v1283 = vsel %vm1247, %v1265, %v1073
        %v1284 = vsel %vm1248, %v1266, %v1084
        %v1285 = vsel %vm1249, %v1267, %v1095
        %v1286 = vsel %vm1250, %v1268, %v1106
        %v1287 = vsel %vm1251, %v1269, %v1117
        %v1288 = vsel %vm1252, %v1270, %v1128
        %v1289 = vsel %vm1253, %v1271, %v1139
        %v1290 = vsel %vm1254, %v1272, %v1150
        %v1291 = vsel %vm1255, %v1273, %v1161
        %v1292 = vsel %vm1256, %v1274, %v1172
        %v1293 = vsel %vm1257, %v1275, %v1183
        %v1294 = vsel %vm1258, %v1276, %v1194
        %v1295 = vsel %vm1259, %v1277, %v1205
        %vm1296 = vcmp.lt.s32.totalorder %v1278, 16
        %vm1297 = vcmp.lt.s32.totalorder %v1279, 16
        %vm1298 = vcmp.lt.s32.totalorder %v1280, 16
        %vm1299 = vcmp.lt.s32.totalorder %v1281, 16
        %vm1300 = vcmp.lt.s32.totalorder %v1282, 16
        %vm1301 = vcmp.lt.s32.totalorder %v1283, 16
        %vm1302 = vcmp.lt.s32.totalorder %v1284, 16
        %vm1303 = vcmp.lt.s32.totalorder %v1285, 16
        %vm1304 = vcmp.lt.s32.totalorder %v1286, 16
        %vm1305 = vcmp.lt.s32.totalorder %v1287, 16
        %vm1306 = vcmp.lt.s32.totalorder %v1288, 16
        %vm1307 = vcmp.lt.s32.totalorder %v1289, 16
        %vm1308 = vcmp.lt.s32.totalorder %v1290, 16
        %vm1309 = vcmp.lt.s32.totalorder %v1291, 16
        %vm1310 = vcmp.lt.s32.totalorder %v1292, 16
        %vm1311 = vcmp.lt.s32.totalorder %v1293, 16
        %vm1312 = vcmp.lt.s32.totalorder %v1294, 16
        %vm1313 = vcmp.lt.s32.totalorder %v1295, 16
        %v1314 = vld [vmem:[%s3] sm:$0x1]
        %v1315 = vld [vmem:[%s4] sm:$0x1]
        %v1316 = vld [vmem:[#allocation2] sm:$0xf]
        %v1317 = vld [vmem:[#allocation2 + $0x4] sm:$0xf]
        %v1318 = vld [vmem:[#allocation2 + $0x8] sm:$0xf]
        %v1319 = vld [vmem:[#allocation2 + $0xc] sm:$0xf]
        %v1320 = vld [vmem:[#allocation2 + $0x10] sm:$0xf]
        %v1321 = vld [vmem:[#allocation2 + $0x14] sm:$0xf]
        %v1322 = vld [vmem:[#allocation2 + $0x18] sm:$0xf]
        %v1323 = vld [vmem:[#allocation2 + $0x1c] sm:$0xf]
        %v1324 = vld [vmem:[#allocation2 + $0x20] sm:$0xf]
        %v1325 = vld [vmem:[#allocation2 + $0x24] sm:$0xf]
        %v1326 = vld [vmem:[#allocation2 + $0x28] sm:$0xf]
        %v1327 = vld [vmem:[#allocation2 + $0x2c] sm:$0xf]
        %v1328 = vld [vmem:[#allocation2 + $0x30] sm:$0xf]
        %v1329 = vld [vmem:[#allocation2 + $0x34] sm:$0xf]
        %v1330 = vld [vmem:[#allocation2 + $0x38] sm:$0xf]
        %v1331 = vld [vmem:[#allocation2 + $0x3c] sm:$0xf]
        %v1332 = vld [vmem:[#allocation2 + $0x40] sm:$0xf]
        %v1333 = vld [vmem:[#allocation2 + $0x44] sm:$0xf]
        %v1334 = vld [vmem:[#allocation7] sm:$0xf]
        %v1335 = vld [vmem:[#allocation7 + $0x4] sm:$0xf]
        %v1336 = vld [vmem:[#allocation7 + $0x8] sm:$0xf]
        %v1337 = vld [vmem:[#allocation7 + $0xc] sm:$0xf]
        %v1338 = vld [vmem:[#allocation7 + $0x10] sm:$0xf]
        %v1339 = vld [vmem:[#allocation7 + $0x14] sm:$0xf]
        %v1340 = vld [vmem:[#allocation7 + $0x18] sm:$0xf]
        %v1341 = vld [vmem:[#allocation7 + $0x1c] sm:$0xf]
        %v1342 = vld [vmem:[#allocation7 + $0x20] sm:$0xf]
        %v1343 = vld [vmem:[#allocation7 + $0x24] sm:$0xf]
        %v1344 = vld [vmem:[#allocation7 + $0x28] sm:$0xf]
        %v1345 = vld [vmem:[#allocation7 + $0x2c] sm:$0xf]
        %v1346 = vld [vmem:[#allocation7 + $0x30] sm:$0xf]
        %v1347 = vld [vmem:[#allocation7 + $0x34] sm:$0xf]
        %v1348 = vld [vmem:[#allocation7 + $0x38] sm:$0xf]
        %v1349 = vld [vmem:[#allocation7 + $0x3c] sm:$0xf]
        %v1350 = vld [vmem:[#allocation2 + $0x48] sm:$0x1]
        %s1351 = scalar_lea.vmem [#allocation7], 64
        %v1352 = vld [vmem:[%s1351] sm:$0xf]
        %v1353 = vld [vmem:[%s1351 + $0x4] sm:$0xf]
        %v1354 = vld [vmem:[%s1351 + $0x8] sm:$0xf]
        %v1355 = vld [vmem:[%s1351 + $0xc] sm:$0xf]
        %v1356 = vld [vmem:[%s1351 + $0x10] sm:$0xf]
        %v1357 = vld [vmem:[%s1351 + $0x14] sm:$0xf]
        %v1358 = vld [vmem:[%s1351 + $0x18] sm:$0xf]
        %v1359 = vld [vmem:[%s1351 + $0x1c] sm:$0xf]
        %v1360 = vld [vmem:[%s1351 + $0x20] sm:$0xf]
        %v1361 = vld [vmem:[%s1351 + $0x24] sm:$0xf]
        %v1362 = vld [vmem:[%s1351 + $0x28] sm:$0xf]
        %v1363 = vld [vmem:[%s1351 + $0x2c] sm:$0xf]
        %v1364 = vld [vmem:[%s1351 + $0x30] sm:$0xf]
        %v1365 = vld [vmem:[%s1351 + $0x34] sm:$0xf]
        %v1366 = vld [vmem:[%s1351 + $0x38] sm:$0xf]
        %v1367 = vld [vmem:[%s1351 + $0x3c] sm:$0xf]
        %v1387 = vunpack.c.l.b16 %v1316
        %v1388 = vunpack.c.l.b16 %v1317
        %v1389 = vunpack.c.l.b16 %v1318
        %v1390 = vunpack.c.l.b16 %v1319
        %v1391 = vunpack.c.l.b16 %v1320
        %v1392 = vunpack.c.l.b16 %v1321
        %v1393 = vunpack.c.l.b16 %v1322
        %v1394 = vunpack.c.l.b16 %v1323
        %v1395 = vunpack.c.l.b16 %v1324
        %v1396 = vunpack.c.l.b16 %v1325
        %v1397 = vunpack.c.l.b16 %v1326
        %v1398 = vunpack.c.l.b16 %v1327
        %v1399 = vunpack.c.l.b16 %v1328
        %v1400 = vunpack.c.l.b16 %v1329
        %v1401 = vunpack.c.l.b16 %v1330
        %v1402 = vunpack.c.l.b16 %v1331
        %v1403 = vunpack.c.l.b16 %v1332
        %v1404 = vunpack.c.l.b16 %v1333
        %v1405 = vunpack.c.l.b16 %v1350
        %v1406 = vpack.c.b16 %v1388, %v1387
        %v1407 = vpack.c.b16 %v1390, %v1389
        %v1408 = vpack.c.b16 %v1392, %v1391
        %v1409 = vpack.c.b16 %v1394, %v1393
        %v1410 = vpack.c.b16 %v1396, %v1395
        %v1411 = vpack.c.b16 %v1398, %v1397
        %v1412 = vpack.c.b16 %v1400, %v1399
        %v1413 = vpack.c.b16 %v1402, %v1401
        %v1414 = vpack.c.b16 %v1404, %v1403
        %v1415 = vpack.c.b16 %v1405, %v1405
        %vm1416 = vsmask.f32 7424
        %v1418 = vshrl.u32 %v1406, 16
        %v1420 = vshll.u32 %v1406, 16
        %v1422 = vrot.slane %v1420, 1
        %v1423 = vor.u32 %v1418, %v1422
        %v1425 = vshll.u32 %v1407, 16
        %v1427 = vrot.slane %v1425, 1
        %v1428 = vsel %vm1416, %v1423, %v1427
        %v1429 = vshrl.u32 %v1407, 16
        %v1431 = vor.u32 %v1429, %v1427
        %v1433 = vshll.u32 %v1408, 16
        %v1435 = vrot.slane %v1433, 1
        %v1436 = vsel %vm1416, %v1431, %v1435
        %v1437 = vshrl.u32 %v1408, 16
        %v1439 = vor.u32 %v1437, %v1435
        %v1441 = vshll.u32 %v1409, 16
        %v1443 = vrot.slane %v1441, 1
        %v1444 = vsel %vm1416, %v1439, %v1443
        %v1445 = vshrl.u32 %v1409, 16
        %v1447 = vor.u32 %v1445, %v1443
        %v1449 = vshll.u32 %v1410, 16
        %v1451 = vrot.slane %v1449, 1
        %v1452 = vsel %vm1416, %v1447, %v1451
        %v1453 = vshrl.u32 %v1410, 16
        %v1455 = vor.u32 %v1453, %v1451
        %v1457 = vshll.u32 %v1411, 16
        %v1459 = vrot.slane %v1457, 1
        %v1460 = vsel %vm1416, %v1455, %v1459
        %v1461 = vshrl.u32 %v1411, 16
        %v1463 = vor.u32 %v1461, %v1459
        %v1465 = vshll.u32 %v1412, 16
        %v1467 = vrot.slane %v1465, 1
        %v1468 = vsel %vm1416, %v1463, %v1467
        %v1469 = vshrl.u32 %v1412, 16
        %v1471 = vor.u32 %v1469, %v1467
        %v1473 = vshll.u32 %v1413, 16
        %v1475 = vrot.slane %v1473, 1
        %v1476 = vsel %vm1416, %v1471, %v1475
        %v1477 = vshrl.u32 %v1413, 16
        %v1479 = vor.u32 %v1477, %v1475
        %v1481 = vshll.u32 %v1414, 16
        %v1483 = vrot.slane %v1481, 1
        %v1484 = vsel %vm1416, %v1479, %v1483
        %v1485 = vshrl.u32 %v1414, 16
        %v1487 = vor.u32 %v1485, %v1483
        %v1489 = vshll.u32 %v1415, 16
        %v1491 = vrot.slane %v1489, 1
        %v1492 = vsel %vm1416, %v1487, %v1491
        %v1518 = vunpack.c.l.b16 %v1352
        %v1519 = vunpack.c.l.b16 %v1353
        %v1520 = vunpack.c.l.b16 %v1354
        %v1521 = vunpack.c.l.b16 %v1355
        %v1522 = vunpack.c.l.b16 %v1356
        %v1523 = vunpack.c.l.b16 %v1357
        %v1524 = vunpack.c.l.b16 %v1358
        %v1525 = vunpack.c.l.b16 %v1359
        %v1526 = vunpack.c.l.b16 %v1360
        %v1527 = vunpack.c.l.b16 %v1361
        %v1528 = vunpack.c.l.b16 %v1362
        %v1529 = vunpack.c.l.b16 %v1363
        %v1530 = vunpack.c.l.b16 %v1364
        %v1531 = vunpack.c.l.b16 %v1365
        %v1532 = vunpack.c.l.b16 %v1366
        %v1533 = vunpack.c.l.b16 %v1367
        %v1534 = vpack.c.b16 %v1519, %v1518
        %v1535 = vpack.c.b16 %v1521, %v1520
        %v1536 = vpack.c.b16 %v1523, %v1522
        %v1537 = vpack.c.b16 %v1525, %v1524
        %v1538 = vpack.c.b16 %v1527, %v1526
        %v1539 = vpack.c.b16 %v1529, %v1528
        %v1540 = vpack.c.b16 %v1531, %v1530
        %v1541 = vpack.c.b16 %v1533, %v1532
        %1550 = vmatprep.subr.bf16.mxu0 0
        %1551 = vmatpush1.bf16.msra.mxu0 %v1534
        %1552 = vmatprep.subr.bf16.mxu0 0
        %1553 = vmatpush1.bf16.msra.mxu0 %v1535
        %1554 = vmatprep.subr.bf16.mxu0 0
        %1555 = vmatpush1.bf16.msra.mxu0 %v1536
        %1556 = vmatprep.subr.bf16.mxu0 0
        %1557 = vmatpush1.bf16.msra.mxu0 %v1537
        %1558 = vmatprep.subr.bf16.mxu0 0
        %1559 = vmatpush1.bf16.msra.mxu0 %v1538
        %1560 = vmatprep.subr.bf16.mxu0 0
        %1561 = vmatpush1.bf16.msra.mxu0 %v1539
        %1562 = vmatprep.subr.bf16.mxu0 0
        %1563 = vmatpush1.bf16.msra.mxu0 %v1540
        %1564 = vmatprep.subr.bf16.mxu0 0
        %1565 = vmatpush1.bf16.msra.mxu0 %v1541
        %1566 = vmatprep.subr.bf16.mxu0 0
        %1567 = vmatpush1.bf16.msra.mxu0 0
        %1568 = vmatprep.subr.bf16.mxu0 0
        %1569 = vmatpush1.bf16.msra.mxu0 0
        %1570 = vmatprep.subr.bf16.mxu0 0
        %1571 = vmatpush1.bf16.msra.mxu0 0
        %1572 = vmatprep.subr.bf16.mxu0 0
        %1573 = vmatpush1.bf16.msra.mxu0 0
        %1574 = vmatprep.subr.bf16.mxu0 0
        %1575 = vmatpush1.bf16.msra.mxu0 0
        %1576 = vmatprep.subr.bf16.mxu0 0
        %1577 = vmatpush1.bf16.msra.mxu0 0
        %1578 = vmatprep.subr.bf16.mxu0 0
        %1579 = vmatpush1.bf16.msra.mxu0 0
        %1580 = vmatprep.subr.bf16.mxu0 0
        %1581 = vmatpush1.bf16.msra.mxu0 0
        %1582 = vmatprep.mubr.bf16.mxu0 0
        %1583 = vmatmul.mubr.bf16.gmra.mrb[0].mxu0 %v1428
        %v1584 = vpop.f32.mrb[0].mxu0
        %v1585 = vadd.f32 0.0, %v1584
        %v1586 = vpop.f32.mrb[0].mxu0
        %v1587 = vpop.f32.mrb[0].mxu0
        %v1588 = vadd.f32 0.0, %v1587
        %v1589 = vpop.f32.mrb[0].mxu0
        %1590 = vmatprep.mubr.bf16.mxu0 0
        %1591 = vmatmul.mubr.bf16.gmra.mrb[0].mxu0 %v1436
        %v1592 = vpop.f32.mrb[0].mxu0
        %v1593 = vadd.f32 0.0, %v1592
        %v1594 = vpop.f32.mrb[0].mxu0
        %v1595 = vpop.f32.mrb[0].mxu0
        %v1596 = vadd.f32 0.0, %v1595
        %v1597 = vpop.f32.mrb[0].mxu0
        %1598 = vmatprep.mubr.bf16.mxu0 0
        %1599 = vmatmul.mubr.bf16.gmra.mrb[0].mxu0 %v1444
        %v1600 = vpop.f32.mrb[0].mxu0
        %v1601 = vadd.f32 0.0, %v1600
        %v1602 = vpop.f32.mrb[0].mxu0
        %v1603 = vpop.f32.mrb[0].mxu0
        %v1604 = vadd.f32 0.0, %v1603
        %v1605 = vpop.f32.mrb[0].mxu0
        %1606 = vmatprep.mubr.bf16.mxu0 0
        %1607 = vmatmul.mubr.bf16.gmra.mrb[0].mxu0 %v1452
        %v1608 = vpop.f32.mrb[0].mxu0
        %v1609 = vadd.f32 0.0, %v1608
        %v1610 = vpop.f32.mrb[0].mxu0
        %v1611 = vpop.f32.mrb[0].mxu0
        %v1612 = vadd.f32 0.0, %v1611
        %v1613 = vpop.f32.mrb[0].mxu0
        %1614 = vmatprep.mubr.bf16.mxu0 0
        %1615 = vmatmul.mubr.bf16.gmra.mrb[0].mxu0 %v1460
        %v1616 = vpop.f32.mrb[0].mxu0
        %v1617 = vadd.f32 0.0, %v1616
        %v1618 = vpop.f32.mrb[0].mxu0
        %v1619 = vpop.f32.mrb[0].mxu0
        %v1620 = vadd.f32 0.0, %v1619
        %v1621 = vpop.f32.mrb[0].mxu0
        %1622 = vmatprep.mubr.bf16.mxu0 0
        %1623 = vmatmul.mubr.bf16.gmra.mrb[0].mxu0 %v1468
        %v1624 = vpop.f32.mrb[0].mxu0
        %v1625 = vadd.f32 0.0, %v1624
        %v1626 = vpop.f32.mrb[0].mxu0
        %v1627 = vpop.f32.mrb[0].mxu0
        %v1628 = vadd.f32 0.0, %v1627
        %v1629 = vpop.f32.mrb[0].mxu0
        %1630 = vmatprep.mubr.bf16.mxu0 0
        %1631 = vmatmul.mubr.bf16.gmra.mrb[0].mxu0 %v1476
        %v1632 = vpop.f32.mrb[0].mxu0
        %v1633 = vadd.f32 0.0, %v1632
        %v1634 = vpop.f32.mrb[0].mxu0
        %v1635 = vpop.f32.mrb[0].mxu0
        %v1636 = vadd.f32 0.0, %v1635
        %v1637 = vpop.f32.mrb[0].mxu0
        %1638 = vmatprep.mubr.bf16.mxu0 0
        %1639 = vmatmul.mubr.bf16.gmra.mrb[0].mxu0 %v1484
        %v1640 = vpop.f32.mrb[0].mxu0
        %v1641 = vadd.f32 0.0, %v1640
        %v1642 = vpop.f32.mrb[0].mxu0
        %v1643 = vpop.f32.mrb[0].mxu0
        %v1644 = vadd.f32 0.0, %v1643
        %v1645 = vpop.f32.mrb[0].mxu0
        %1646 = vmatprep.mubr.bf16.mxu0 0
        %1647 = vmatmul.mubr.bf16.gmra.mrb[0].mxu0 %v1492
        %v1648 = vpop.f32.mrb[0].mxu0
        %v1649 = vadd.f32 0.0, %v1648
        %v1650 = vpop.f32.mrb[0].mxu0
        %v1651 = vpop.f32.mrb[0].mxu0
        %v1652 = vadd.f32 0.0, %v1651
        %v1653 = vpop.f32.mrb[0].mxu0
        %1654 = vdwg.mxu0
        %v1680 = vunpack.c.l.b16 %v1334
        %v1681 = vunpack.c.l.b16 %v1335
        %v1682 = vunpack.c.l.b16 %v1336
        %v1683 = vunpack.c.l.b16 %v1337
        %v1684 = vunpack.c.l.b16 %v1338
        %v1685 = vunpack.c.l.b16 %v1339
        %v1686 = vunpack.c.l.b16 %v1340
        %v1687 = vunpack.c.l.b16 %v1341
        %v1688 = vunpack.c.l.b16 %v1342
        %v1689 = vunpack.c.l.b16 %v1343
        %v1690 = vunpack.c.l.b16 %v1344
        %v1691 = vunpack.c.l.b16 %v1345
        %v1692 = vunpack.c.l.b16 %v1346
        %v1693 = vunpack.c.l.b16 %v1347
        %v1694 = vunpack.c.l.b16 %v1348
        %v1695 = vunpack.c.l.b16 %v1349
        %v1696 = vpack.c.b16 %v1681, %v1680
        %v1697 = vpack.c.b16 %v1683, %v1682
        %v1698 = vpack.c.b16 %v1685, %v1684
        %v1699 = vpack.c.b16 %v1687, %v1686
        %v1700 = vpack.c.b16 %v1689, %v1688
        %v1701 = vpack.c.b16 %v1691, %v1690
        %v1702 = vpack.c.b16 %v1693, %v1692
        %v1703 = vpack.c.b16 %v1695, %v1694
        %1712 = vmatprep.subr.bf16.mxu0 0
        %1713 = vmatpush1.bf16.msra.mxu0 %v1696
        %1714 = vmatprep.subr.bf16.mxu0 0
        %1715 = vmatpush1.bf16.msra.mxu0 %v1697
        %1716 = vmatprep.subr.bf16.mxu0 0
        %1717 = vmatpush1.bf16.msra.mxu0 %v1698
        %1718 = vmatprep.subr.bf16.mxu0 0
        %1719 = vmatpush1.bf16.msra.mxu0 %v1699
        %1720 = vmatprep.subr.bf16.mxu0 0
        %1721 = vmatpush1.bf16.msra.mxu0 %v1700
        %1722 = vmatprep.subr.bf16.mxu0 0
        %1723 = vmatpush1.bf16.msra.mxu0 %v1701
        %1724 = vmatprep.subr.bf16.mxu0 0
        %1725 = vmatpush1.bf16.msra.mxu0 %v1702
        %1726 = vmatprep.subr.bf16.mxu0 0
        %1727 = vmatpush1.bf16.msra.mxu0 %v1703
        %1728 = vmatprep.subr.bf16.mxu0 0
        %1729 = vmatpush1.bf16.msra.mxu0 0
        %1730 = vmatprep.subr.bf16.mxu0 0
        %1731 = vmatpush1.bf16.msra.mxu0 0
        %1732 = vmatprep.subr.bf16.mxu0 0
        %1733 = vmatpush1.bf16.msra.mxu0 0
        %1734 = vmatprep.subr.bf16.mxu0 0
        %1735 = vmatpush1.bf16.msra.mxu0 0
        %1736 = vmatprep.subr.bf16.mxu0 0
        %1737 = vmatpush1.bf16.msra.mxu0 0
        %1738 = vmatprep.subr.bf16.mxu0 0
        %1739 = vmatpush1.bf16.msra.mxu0 0
        %1740 = vmatprep.subr.bf16.mxu0 0
        %1741 = vmatpush1.bf16.msra.mxu0 0
        %1742 = vmatprep.subr.bf16.mxu0 0
        %1743 = vmatpush1.bf16.msra.mxu0 0
        %1744 = vmatprep.mubr.bf16.mxu0 0
        %1745 = vmatmul.mubr.bf16.gmra.mrb[0].mxu0 %v1406
        %v1746 = vpop.f32.mrb[0].mxu0
        %v1747 = vadd.f32 %v1585, %v1746
        %v1748 = vpop.f32.mrb[0].mxu0
        %v1749 = vpop.f32.mrb[0].mxu0
        %v1750 = vadd.f32 %v1588, %v1749
        %v1751 = vpop.f32.mrb[0].mxu0
        %1752 = vmatprep.mubr.bf16.mxu0 0
        %1753 = vmatmul.mubr.bf16.gmra.mrb[0].mxu0 %v1407
        %v1754 = vpop.f32.mrb[0].mxu0
        %v1755 = vadd.f32 %v1593, %v1754
        %v1756 = vpop.f32.mrb[0].mxu0
        %v1757 = vpop.f32.mrb[0].mxu0
        %v1758 = vadd.f32 %v1596, %v1757
        %v1759 = vpop.f32.mrb[0].mxu0
        %1760 = vmatprep.mubr.bf16.mxu0 0
        %1761 = vmatmul.mubr.bf16.gmra.mrb[0].mxu0 %v1408
        %v1762 = vpop.f32.mrb[0].mxu0
        %v1763 = vadd.f32 %v1601, %v1762
        %v1764 = vpop.f32.mrb[0].mxu0
        %v1765 = vpop.f32.mrb[0].mxu0
        %v1766 = vadd.f32 %v1604, %v1765
        %v1767 = vpop.f32.mrb[0].mxu0
        %1768 = vmatprep.mubr.bf16.mxu0 0
        %1769 = vmatmul.mubr.bf16.gmra.mrb[0].mxu0 %v1409
        %v1770 = vpop.f32.mrb[0].mxu0
        %v1771 = vadd.f32 %v1609, %v1770
        %v1772 = vpop.f32.mrb[0].mxu0
        %v1773 = vpop.f32.mrb[0].mxu0
        %v1774 = vadd.f32 %v1612, %v1773
        %v1775 = vpop.f32.mrb[0].mxu0
        %1776 = vmatprep.mubr.bf16.mxu0 0
        %1777 = vmatmul.mubr.bf16.gmra.mrb[0].mxu0 %v1410
        %v1778 = vpop.f32.mrb[0].mxu0
        %v1779 = vadd.f32 %v1617, %v1778
        %v1780 = vpop.f32.mrb[0].mxu0
        %v1781 = vpop.f32.mrb[0].mxu0
        %v1782 = vadd.f32 %v1620, %v1781
        %v1783 = vpop.f32.mrb[0].mxu0
        %1784 = vmatprep.mubr.bf16.mxu0 0
        %1785 = vmatmul.mubr.bf16.gmra.mrb[0].mxu0 %v1411
        %v1786 = vpop.f32.mrb[0].mxu0
        %v1787 = vadd.f32 %v1625, %v1786
        %v1788 = vpop.f32.mrb[0].mxu0
        %v1789 = vpop.f32.mrb[0].mxu0
        %v1790 = vadd.f32 %v1628, %v1789
        %v1791 = vpop.f32.mrb[0].mxu0
        %1792 = vmatprep.mubr.bf16.mxu0 0
        %1793 = vmatmul.mubr.bf16.gmra.mrb[0].mxu0 %v1412
        %v1794 = vpop.f32.mrb[0].mxu0
        %v1795 = vadd.f32 %v1633, %v1794
        %v1796 = vpop.f32.mrb[0].mxu0
        %v1797 = vpop.f32.mrb[0].mxu0
        %v1798 = vadd.f32 %v1636, %v1797
        %v1799 = vpop.f32.mrb[0].mxu0
        %1800 = vmatprep.mubr.bf16.mxu0 0
        %1801 = vmatmul.mubr.bf16.gmra.mrb[0].mxu0 %v1413
        %v1802 = vpop.f32.mrb[0].mxu0
        %v1803 = vadd.f32 %v1641, %v1802
        %v1804 = vpop.f32.mrb[0].mxu0
        %v1805 = vpop.f32.mrb[0].mxu0
        %v1806 = vadd.f32 %v1644, %v1805
        %v1807 = vpop.f32.mrb[0].mxu0
        %1808 = vmatprep.mubr.bf16.mxu0 0
        %1809 = vmatmul.mubr.bf16.gmra.mrb[0].mxu0 %v1414
        %v1810 = vpop.f32.mrb[0].mxu0
        %v1811 = vadd.f32 %v1649, %v1810
        %v1812 = vpop.f32.mrb[0].mxu0
        %v1813 = vpop.f32.mrb[0].mxu0
        %v1814 = vadd.f32 %v1652, %v1813
        %v1815 = vpop.f32.mrb[0].mxu0
        %1816 = vdwg.mxu0
        %v1817 = vld [vmem:[#allocation2] sm:$0xe]
        %s1818 = scalar_lea.vmem [#allocation7], 128
        %v1819 = vld [vmem:[%s1818] sm:$0xf]
        %v1820 = vld [vmem:[%s1818 + $0x4] sm:$0xf]
        %v1821 = vld [vmem:[%s1818 + $0x8] sm:$0xf]
        %v1822 = vld [vmem:[%s1818 + $0xc] sm:$0xf]
        %v1823 = vld [vmem:[%s1818 + $0x10] sm:$0xf]
        %v1824 = vld [vmem:[%s1818 + $0x14] sm:$0xf]
        %v1825 = vld [vmem:[%s1818 + $0x18] sm:$0xf]
        %v1826 = vld [vmem:[%s1818 + $0x1c] sm:$0xf]
        %v1827 = vld [vmem:[%s1818 + $0x20] sm:$0xf]
        %v1828 = vld [vmem:[%s1818 + $0x24] sm:$0xf]
        %v1829 = vld [vmem:[%s1818 + $0x28] sm:$0xf]
        %v1830 = vld [vmem:[%s1818 + $0x2c] sm:$0xf]
        %v1831 = vld [vmem:[%s1818 + $0x30] sm:$0xf]
        %v1832 = vld [vmem:[%s1818 + $0x34] sm:$0xf]
        %v1833 = vld [vmem:[%s1818 + $0x38] sm:$0xf]
        %v1834 = vld [vmem:[%s1818 + $0x3c] sm:$0xf]
        %v1836 = vunpack.c.l.b16 %v1817
        %v1837 = vpack.c.b16 %v1388, %v1836
        %vm1838 = vcmask 1046528
        %v1839 = vrot.slane %v1837, 1
        %v1840 = vrot.slane %v1407, 1
        %v1841 = vsel %vm1838, %v1839, %v1840
        %v1842 = vrot.slane %v1408, 1
        %v1843 = vsel %vm1838, %v1840, %v1842
        %v1844 = vrot.slane %v1409, 1
        %v1845 = vsel %vm1838, %v1842, %v1844
        %v1846 = vrot.slane %v1410, 1
        %v1847 = vsel %vm1838, %v1844, %v1846
        %v1848 = vrot.slane %v1411, 1
        %v1849 = vsel %vm1838, %v1846, %v1848
        %v1850 = vrot.slane %v1412, 1
        %v1851 = vsel %vm1838, %v1848, %v1850
        %v1852 = vrot.slane %v1413, 1
        %v1853 = vsel %vm1838, %v1850, %v1852
        %v1854 = vrot.slane %v1414, 1
        %v1855 = vsel %vm1838, %v1852, %v1854
        %v1856 = vrot.slane %v1415, 1
        %v1857 = vsel %vm1838, %v1854, %v1856
        %v1883 = vunpack.c.l.b16 %v1819
        %v1884 = vunpack.c.l.b16 %v1820
        %v1885 = vunpack.c.l.b16 %v1821
        %v1886 = vunpack.c.l.b16 %v1822
        %v1887 = vunpack.c.l.b16 %v1823
        %v1888 = vunpack.c.l.b16 %v1824
        %v1889 = vunpack.c.l.b16 %v1825
        %v1890 = vunpack.c.l.b16 %v1826
        %v1891 = vunpack.c.l.b16 %v1827
        %v1892 = vunpack.c.l.b16 %v1828
        %v1893 = vunpack.c.l.b16 %v1829
        %v1894 = vunpack.c.l.b16 %v1830
        %v1895 = vunpack.c.l.b16 %v1831
        %v1896 = vunpack.c.l.b16 %v1832
        %v1897 = vunpack.c.l.b16 %v1833
        %v1898 = vunpack.c.l.b16 %v1834
        %v1899 = vpack.c.b16 %v1884, %v1883
        %v1900 = vpack.c.b16 %v1886, %v1885
        %v1901 = vpack.c.b16 %v1888, %v1887
        %v1902 = vpack.c.b16 %v1890, %v1889
        %v1903 = vpack.c.b16 %v1892, %v1891
        %v1904 = vpack.c.b16 %v1894, %v1893
        %v1905 = vpack.c.b16 %v1896, %v1895
        %v1906 = vpack.c.b16 %v1898, %v1897
        %1915 = vmatprep.subr.bf16.mxu0 0
        %1916 = vmatpush1.bf16.msra.mxu0 %v1899
        %1917 = vmatprep.subr.bf16.mxu0 0
        %1918 = vmatpush1.bf16.msra.mxu0 %v1900
        %1919 = vmatprep.subr.bf16.mxu0 0
        %1920 = vmatpush1.bf16.msra.mxu0 %v1901
        %1921 = vmatprep.subr.bf16.mxu0 0
        %1922 = vmatpush1.bf16.msra.mxu0 %v1902
        %1923 = vmatprep.subr.bf16.mxu0 0
        %1924 = vmatpush1.bf16.msra.mxu0 %v1903
        %1925 = vmatprep.subr.bf16.mxu0 0
        %1926 = vmatpush1.bf16.msra.mxu0 %v1904
        %1927 = vmatprep.subr.bf16.mxu0 0
        %1928 = vmatpush1.bf16.msra.mxu0 %v1905
        %1929 = vmatprep.subr.bf16.mxu0 0
        %1930 = vmatpush1.bf16.msra.mxu0 %v1906
        %1931 = vmatprep.subr.bf16.mxu0 0
        %1932 = vmatpush1.bf16.msra.mxu0 0
        %1933 = vmatprep.subr.bf16.mxu0 0
        %1934 = vmatpush1.bf16.msra.mxu0 0
        %1935 = vmatprep.subr.bf16.mxu0 0
        %1936 = vmatpush1.bf16.msra.mxu0 0
        %1937 = vmatprep.subr.bf16.mxu0 0
        %1938 = vmatpush1.bf16.msra.mxu0 0
        %1939 = vmatprep.subr.bf16.mxu0 0
        %1940 = vmatpush1.bf16.msra.mxu0 0
        %1941 = vmatprep.subr.bf16.mxu0 0
        %1942 = vmatpush1.bf16.msra.mxu0 0
        %1943 = vmatprep.subr.bf16.mxu0 0
        %1944 = vmatpush1.bf16.msra.mxu0 0
        %1945 = vmatprep.subr.bf16.mxu0 0
        %1946 = vmatpush1.bf16.msra.mxu0 0
        %1947 = vmatprep.mubr.bf16.mxu0 0
        %1948 = vmatmul.mubr.bf16.gmra.mrb[0].mxu0 %v1841
        %v1949 = vpop.f32.mrb[0].mxu0
        %v1950 = vadd.f32 0.0, %v1949
        %v1951 = vpop.f32.mrb[0].mxu0
        %v1952 = vpop.f32.mrb[0].mxu0
        %v1953 = vadd.f32 0.0, %v1952
        %v1954 = vpop.f32.mrb[0].mxu0
        %1955 = vmatprep.mubr.bf16.mxu0 0
        %1956 = vmatmul.mubr.bf16.gmra.mrb[0].mxu0 %v1843
        %v1957 = vpop.f32.mrb[0].mxu0
        %v1958 = vadd.f32 0.0, %v1957
        %v1959 = vpop.f32.mrb[0].mxu0
        %v1960 = vpop.f32.mrb[0].mxu0
        %v1961 = vadd.f32 0.0, %v1960
        %v1962 = vpop.f32.mrb[0].mxu0
        %1963 = vmatprep.mubr.bf16.mxu0 0
        %1964 = vmatmul.mubr.bf16.gmra.mrb[0].mxu0 %v1845
        %v1965 = vpop.f32.mrb[0].mxu0
        %v1966 = vadd.f32 0.0, %v1965
        %v1967 = vpop.f32.mrb[0].mxu0
        %v1968 = vpop.f32.mrb[0].mxu0
        %v1969 = vadd.f32 0.0, %v1968
        %v1970 = vpop.f32.mrb[0].mxu0
        %1971 = vmatprep.mubr.bf16.mxu0 0
        %1972 = vmatmul.mubr.bf16.gmra.mrb[0].mxu0 %v1847
        %v1973 = vpop.f32.mrb[0].mxu0
        %v1974 = vadd.f32 0.0, %v1973
        %v1975 = vpop.f32.mrb[0].mxu0
        %v1976 = vpop.f32.mrb[0].mxu0
        %v1977 = vadd.f32 0.0, %v1976
        %v1978 = vpop.f32.mrb[0].mxu0
        %1979 = vmatprep.mubr.bf16.mxu0 0
        %1980 = vmatmul.mubr.bf16.gmra.mrb[0].mxu0 %v1849
        %v1981 = vpop.f32.mrb[0].mxu0
        %v1982 = vadd.f32 0.0, %v1981
        %v1983 = vpop.f32.mrb[0].mxu0
        %v1984 = vpop.f32.mrb[0].mxu0
        %v1985 = vadd.f32 0.0, %v1984
        %v1986 = vpop.f32.mrb[0].mxu0
        %1987 = vmatprep.mubr.bf16.mxu0 0
        %1988 = vmatmul.mubr.bf16.gmra.mrb[0].mxu0 %v1851
        %v1989 = vpop.f32.mrb[0].mxu0
        %v1990 = vadd.f32 0.0, %v1989
        %v1991 = vpop.f32.mrb[0].mxu0
        %v1992 = vpop.f32.mrb[0].mxu0
        %v1993 = vadd.f32 0.0, %v1992
        %v1994 = vpop.f32.mrb[0].mxu0
        %1995 = vmatprep.mubr.bf16.mxu0 0
        %1996 = vmatmul.mubr.bf16.gmra.mrb[0].mxu0 %v1853
        %v1997 = vpop.f32.mrb[0].mxu0
        %v1998 = vadd.f32 0.0, %v1997
        %v1999 = vpop.f32.mrb[0].mxu0
        %v2000 = vpop.f32.mrb[0].mxu0
        %v2001 = vadd.f32 0.0, %v2000
        %v2002 = vpop.f32.mrb[0].mxu0
        %2003 = vmatprep.mubr.bf16.mxu0 0
        %2004 = vmatmul.mubr.bf16.gmra.mrb[0].mxu0 %v1855
        %v2005 = vpop.f32.mrb[0].mxu0
        %v2006 = vadd.f32 0.0, %v2005
        %v2007 = vpop.f32.mrb[0].mxu0
        %v2008 = vpop.f32.mrb[0].mxu0
        %v2009 = vadd.f32 0.0, %v2008
        %v2010 = vpop.f32.mrb[0].mxu0
        %2011 = vmatprep.mubr.bf16.mxu0 0
        %2012 = vmatmul.mubr.bf16.gmra.mrb[0].mxu0 %v1857
        %v2013 = vpop.f32.mrb[0].mxu0
        %v2014 = vadd.f32 0.0, %v2013
        %v2015 = vpop.f32.mrb[0].mxu0
        %v2016 = vpop.f32.mrb[0].mxu0
        %v2017 = vadd.f32 0.0, %v2016
        %v2018 = vpop.f32.mrb[0].mxu0
        %2019 = vdwg.mxu0
        %v2020 = vadd.f32 %v1747, %v1950
        %v2021 = vadd.f32 %v1750, %v1953
        %v2022 = vadd.f32 %v1755, %v1958
        %v2023 = vadd.f32 %v1758, %v1961
        %v2024 = vadd.f32 %v1763, %v1966
        %v2025 = vadd.f32 %v1766, %v1969
        %v2026 = vadd.f32 %v1771, %v1974
        %v2027 = vadd.f32 %v1774, %v1977
        %v2028 = vadd.f32 %v1779, %v1982
        %v2029 = vadd.f32 %v1782, %v1985
        %v2030 = vadd.f32 %v1787, %v1990
        %v2031 = vadd.f32 %v1790, %v1993
        %v2032 = vadd.f32 %v1795, %v1998
        %v2033 = vadd.f32 %v1798, %v2001
        %v2034 = vadd.f32 %v1803, %v2006
        %v2035 = vadd.f32 %v1806, %v2009
        %v2036 = vadd.f32 %v1811, %v2014
        %v2037 = vadd.f32 %v1814, %v2017
        %v2038 = vld [vmem:[#allocation2 + $0x8] sm:$0xe]
        %v2039 = vld [vmem:[#allocation2 + $0xc] sm:$0xf]
        %v2040 = vld [vmem:[#allocation2 + $0x10] sm:$0xf]
        %v2041 = vld [vmem:[#allocation2 + $0x14] sm:$0xf]
        %v2042 = vld [vmem:[#allocation2 + $0x18] sm:$0xf]
        %v2043 = vld [vmem:[#allocation2 + $0x1c] sm:$0xf]
        %v2044 = vld [vmem:[#allocation2 + $0x20] sm:$0xf]
        %v2045 = vld [vmem:[#allocation2 + $0x24] sm:$0xf]
        %v2046 = vld [vmem:[#allocation2 + $0x28] sm:$0xf]
        %v2047 = vld [vmem:[#allocation2 + $0x2c] sm:$0xf]
        %v2048 = vld [vmem:[#allocation2 + $0x30] sm:$0xf]
        %v2049 = vld [vmem:[#allocation2 + $0x34] sm:$0xf]
        %v2050 = vld [vmem:[#allocation2 + $0x38] sm:$0xf]
        %v2051 = vld [vmem:[#allocation2 + $0x3c] sm:$0xf]
        %v2052 = vld [vmem:[#allocation2 + $0x40] sm:$0xf]
        %v2053 = vld [vmem:[#allocation2 + $0x44] sm:$0xf]
        %v2054 = vld [vmem:[#allocation2 + $0x48] sm:$0xf]
        %v2055 = vld [vmem:[#allocation2 + $0x4c] sm:$0xf]
        %v2056 = vld [vmem:[#allocation2 + $0x50] sm:$0x1]
        %s2057 = scalar_lea.vmem [#allocation7], 192
        %v2058 = vld [vmem:[%s2057] sm:$0xf]
        %v2059 = vld [vmem:[%s2057 + $0x4] sm:$0xf]
        %v2060 = vld [vmem:[%s2057 + $0x8] sm:$0xf]
        %v2061 = vld [vmem:[%s2057 + $0xc] sm:$0xf]
        %v2062 = vld [vmem:[%s2057 + $0x10] sm:$0xf]
        %v2063 = vld [vmem:[%s2057 + $0x14] sm:$0xf]
        %v2064 = vld [vmem:[%s2057 + $0x18] sm:$0xf]
        %v2065 = vld [vmem:[%s2057 + $0x1c] sm:$0xf]
        %v2066 = vld [vmem:[%s2057 + $0x20] sm:$0xf]
        %v2067 = vld [vmem:[%s2057 + $0x24] sm:$0xf]
        %v2068 = vld [vmem:[%s2057 + $0x28] sm:$0xf]
        %v2069 = vld [vmem:[%s2057 + $0x2c] sm:$0xf]
        %v2070 = vld [vmem:[%s2057 + $0x30] sm:$0xf]
        %v2071 = vld [vmem:[%s2057 + $0x34] sm:$0xf]
        %v2072 = vld [vmem:[%s2057 + $0x38] sm:$0xf]
        %v2073 = vld [vmem:[%s2057 + $0x3c] sm:$0xf]
        %v2093 = vunpack.c.l.b16 %v2038
        %v2094 = vunpack.c.l.b16 %v2039
        %v2095 = vunpack.c.l.b16 %v2040
        %v2096 = vunpack.c.l.b16 %v2041
        %v2097 = vunpack.c.l.b16 %v2042
        %v2098 = vunpack.c.l.b16 %v2043
        %v2099 = vunpack.c.l.b16 %v2044
        %v2100 = vunpack.c.l.b16 %v2045
        %v2101 = vunpack.c.l.b16 %v2046
        %v2102 = vunpack.c.l.b16 %v2047
        %v2103 = vunpack.c.l.b16 %v2048
        %v2104 = vunpack.c.l.b16 %v2049
        %v2105 = vunpack.c.l.b16 %v2050
        %v2106 = vunpack.c.l.b16 %v2051
        %v2107 = vunpack.c.l.b16 %v2052
        %v2108 = vunpack.c.l.b16 %v2053
        %v2109 = vunpack.c.l.b16 %v2054
        %v2110 = vunpack.c.l.b16 %v2055
        %v2111 = vunpack.c.l.b16 %v2056
        %v2112 = vpack.c.b16 %v2094, %v2093
        %v2113 = vpack.c.b16 %v2096, %v2095
        %v2114 = vpack.c.b16 %v2098, %v2097
        %v2115 = vpack.c.b16 %v2100, %v2099
        %v2116 = vpack.c.b16 %v2102, %v2101
        %v2117 = vpack.c.b16 %v2104, %v2103
        %v2118 = vpack.c.b16 %v2106, %v2105
        %v2119 = vpack.c.b16 %v2108, %v2107
        %v2120 = vpack.c.b16 %v2110, %v2109
        %v2121 = vpack.c.b16 %v2111, %v2111
        %v2122 = vrot.slane %v2112, 1
        %v2123 = vrot.slane %v2113, 1
        %v2124 = vsel %vm1838, %v2122, %v2123
        %v2125 = vrot.slane %v2114, 1
        %v2126 = vsel %vm1838, %v2123, %v2125
        %v2127 = vrot.slane %v2115, 1
        %v2128 = vsel %vm1838, %v2125, %v2127
        %v2129 = vrot.slane %v2116, 1
        %v2130 = vsel %vm1838, %v2127, %v2129
        %v2131 = vrot.slane %v2117, 1
        %v2132 = vsel %vm1838, %v2129, %v2131
        %v2133 = vrot.slane %v2118, 1
        %v2134 = vsel %vm1838, %v2131, %v2133
        %v2135 = vrot.slane %v2119, 1
        %v2136 = vsel %vm1838, %v2133, %v2135
        %v2137 = vrot.slane %v2120, 1
        %v2138 = vsel %vm1838, %v2135, %v2137
        %v2139 = vrot.slane %v2121, 1
        %v2140 = vsel %vm1838, %v2137, %v2139
        %v2166 = vunpack.c.l.b16 %v2058
        %v2167 = vunpack.c.l.b16 %v2059
        %v2168 = vunpack.c.l.b16 %v2060
        %v2169 = vunpack.c.l.b16 %v2061
        %v2170 = vunpack.c.l.b16 %v2062
        %v2171 = vunpack.c.l.b16 %v2063
        %v2172 = vunpack.c.l.b16 %v2064
        %v2173 = vunpack.c.l.b16 %v2065
        %v2174 = vunpack.c.l.b16 %v2066
        %v2175 = vunpack.c.l.b16 %v2067
        %v2176 = vunpack.c.l.b16 %v2068
        %v2177 = vunpack.c.l.b16 %v2069
        %v2178 = vunpack.c.l.b16 %v2070
        %v2179 = vunpack.c.l.b16 %v2071
        %v2180 = vunpack.c.l.b16 %v2072
        %v2181 = vunpack.c.l.b16 %v2073
        %v2182 = vpack.c.b16 %v2167, %v2166
        %v2183 = vpack.c.b16 %v2169, %v2168
        %v2184 = vpack.c.b16 %v2171, %v2170
        %v2185 = vpack.c.b16 %v2173, %v2172
        %v2186 = vpack.c.b16 %v2175, %v2174
        %v2187 = vpack.c.b16 %v2177, %v2176
        %v2188 = vpack.c.b16 %v2179, %v2178
        %v2189 = vpack.c.b16 %v2181, %v2180
        %2198 = vmatprep.subr.bf16.mxu0 0
        %2199 = vmatpush1.bf16.msra.mxu0 %v2182
        %2200 = vmatprep.subr.bf16.mxu0 0
        %2201 = vmatpush1.bf16.msra.mxu0 %v2183
        %2202 = vmatprep.subr.bf16.mxu0 0
        %2203 = vmatpush1.bf16.msra.mxu0 %v2184
        %2204 = vmatprep.subr.bf16.mxu0 0
        %2205 = vmatpush1.bf16.msra.mxu0 %v2185
        %2206 = vmatprep.subr.bf16.mxu0 0
        %2207 = vmatpush1.bf16.msra.mxu0 %v2186
        %2208 = vmatprep.subr.bf16.mxu0 0
        %2209 = vmatpush1.bf16.msra.mxu0 %v2187
        %2210 = vmatprep.subr.bf16.mxu0 0
        %2211 = vmatpush1.bf16.msra.mxu0 %v2188
        %2212 = vmatprep.subr.bf16.mxu0 0
        %2213 = vmatpush1.bf16.msra.mxu0 %v2189
        %2214 = vmatprep.subr.bf16.mxu0 0
        %2215 = vmatpush1.bf16.msra.mxu0 0
        %2216 = vmatprep.subr.bf16.mxu0 0
        %2217 = vmatpush1.bf16.msra.mxu0 0
        %2218 = vmatprep.subr.bf16.mxu0 0
        %2219 = vmatpush1.bf16.msra.mxu0 0
        %2220 = vmatprep.subr.bf16.mxu0 0
        %2221 = vmatpush1.bf16.msra.mxu0 0
        %2222 = vmatprep.subr.bf16.mxu0 0
        %2223 = vmatpush1.bf16.msra.mxu0 0
        %2224 = vmatprep.subr.bf16.mxu0 0
        %2225 = vmatpush1.bf16.msra.mxu0 0
        %2226 = vmatprep.subr.bf16.mxu0 0
        %2227 = vmatpush1.bf16.msra.mxu0 0
        %2228 = vmatprep.subr.bf16.mxu0 0
        %2229 = vmatpush1.bf16.msra.mxu0 0
        %2230 = vmatprep.mubr.bf16.mxu0 0
        %2231 = vmatmul.mubr.bf16.gmra.mrb[0].mxu0 %v2124
        %v2232 = vpop.f32.mrb[0].mxu0
        %v2233 = vadd.f32 0.0, %v2232
        %v2234 = vpop.f32.mrb[0].mxu0
        %v2235 = vpop.f32.mrb[0].mxu0
        %v2236 = vadd.f32 0.0, %v2235
        %v2237 = vpop.f32.mrb[0].mxu0
        %2238 = vmatprep.mubr.bf16.mxu0 0
        %2239 = vmatmul.mubr.bf16.gmra.mrb[0].mxu0 %v2126
        %v2240 = vpop.f32.mrb[0].mxu0
        %v2241 = vadd.f32 0.0, %v2240
        %v2242 = vpop.f32.mrb[0].mxu0
        %v2243 = vpop.f32.mrb[0].mxu0
        %v2244 = vadd.f32 0.0, %v2243
        %v2245 = vpop.f32.mrb[0].mxu0
        %2246 = vmatprep.mubr.bf16.mxu0 0
        %2247 = vmatmul.mubr.bf16.gmra.mrb[0].mxu0 %v2128
        %v2248 = vpop.f32.mrb[0].mxu0
        %v2249 = vadd.f32 0.0, %v2248
        %v2250 = vpop.f32.mrb[0].mxu0
        %v2251 = vpop.f32.mrb[0].mxu0
        %v2252 = vadd.f32 0.0, %v2251
        %v2253 = vpop.f32.mrb[0].mxu0
        %2254 = vmatprep.mubr.bf16.mxu0 0
        %2255 = vmatmul.mubr.bf16.gmra.mrb[0].mxu0 %v2130
        %v2256 = vpop.f32.mrb[0].mxu0
        %v2257 = vadd.f32 0.0, %v2256
        %v2258 = vpop.f32.mrb[0].mxu0
        %v2259 = vpop.f32.mrb[0].mxu0
        %v2260 = vadd.f32 0.0, %v2259
        %v2261 = vpop.f32.mrb[0].mxu0
        %2262 = vmatprep.mubr.bf16.mxu0 0
        %2263 = vmatmul.mubr.bf16.gmra.mrb[0].mxu0 %v2132
        %v2264 = vpop.f32.mrb[0].mxu0
        %v2265 = vadd.f32 0.0, %v2264
        %v2266 = vpop.f32.mrb[0].mxu0
        %v2267 = vpop.f32.mrb[0].mxu0
        %v2268 = vadd.f32 0.0, %v2267
        %v2269 = vpop.f32.mrb[0].mxu0
        %2270 = vmatprep.mubr.bf16.mxu0 0
        %2271 = vmatmul.mubr.bf16.gmra.mrb[0].mxu0 %v2134
        %v2272 = vpop.f32.mrb[0].mxu0
        %v2273 = vadd.f32 0.0, %v2272
        %v2274 = vpop.f32.mrb[0].mxu0
        %v2275 = vpop.f32.mrb[0].mxu0
        %v2276 = vadd.f32 0.0, %v2275
        %v2277 = vpop.f32.mrb[0].mxu0
        %2278 = vmatprep.mubr.bf16.mxu0 0
        %2279 = vmatmul.mubr.bf16.gmra.mrb[0].mxu0 %v2136
        %v2280 = vpop.f32.mrb[0].mxu0
        %v2281 = vadd.f32 0.0, %v2280
        %v2282 = vpop.f32.mrb[0].mxu0
        %v2283 = vpop.f32.mrb[0].mxu0
        %v2284 = vadd.f32 0.0, %v2283
        %v2285 = vpop.f32.mrb[0].mxu0
        %2286 = vmatprep.mubr.bf16.mxu0 0
        %2287 = vmatmul.mubr.bf16.gmra.mrb[0].mxu0 %v2138
        %v2288 = vpop.f32.mrb[0].mxu0
        %v2289 = vadd.f32 0.0, %v2288
        %v2290 = vpop.f32.mrb[0].mxu0
        %v2291 = vpop.f32.mrb[0].mxu0
        %v2292 = vadd.f32 0.0, %v2291
        %v2293 = vpop.f32.mrb[0].mxu0
        %2294 = vmatprep.mubr.bf16.mxu0 0
        %2295 = vmatmul.mubr.bf16.gmra.mrb[0].mxu0 %v2140
        %v2296 = vpop.f32.mrb[0].mxu0
        %v2297 = vadd.f32 0.0, %v2296
        %v2298 = vpop.f32.mrb[0].mxu0
        %v2299 = vpop.f32.mrb[0].mxu0
        %v2300 = vadd.f32 0.0, %v2299
        %v2301 = vpop.f32.mrb[0].mxu0
        %2302 = vdwg.mxu0
        %v2303 = vadd.f32 %v2020, %v2233
        %v2304 = vadd.f32 %v2021, %v2236
        %v2305 = vadd.f32 %v2022, %v2241
        %v2306 = vadd.f32 %v2023, %v2244
        %v2307 = vadd.f32 %v2024, %v2249
        %v2308 = vadd.f32 %v2025, %v2252
        %v2309 = vadd.f32 %v2026, %v2257
        %v2310 = vadd.f32 %v2027, %v2260
        %v2311 = vadd.f32 %v2028, %v2265
        %v2312 = vadd.f32 %v2029, %v2268
        %v2313 = vadd.f32 %v2030, %v2273
        %v2314 = vadd.f32 %v2031, %v2276
        %v2315 = vadd.f32 %v2032, %v2281
        %v2316 = vadd.f32 %v2033, %v2284
        %v2317 = vadd.f32 %v2034, %v2289
        %v2318 = vadd.f32 %v2035, %v2292
        %v2319 = vadd.f32 %v2036, %v2297
        %v2320 = vadd.f32 %v2037, %v2300
        %v2321 = vld [vmem:[#allocation2 + $0x50] sm:$0x3]
        %s2322 = scalar_lea.vmem [#allocation7], 256
        %v2323 = vld [vmem:[%s2322] sm:$0xf]
        %v2324 = vld [vmem:[%s2322 + $0x4] sm:$0xf]
        %v2325 = vld [vmem:[%s2322 + $0x8] sm:$0xf]
        %v2326 = vld [vmem:[%s2322 + $0xc] sm:$0xf]
        %v2327 = vld [vmem:[%s2322 + $0x10] sm:$0xf]
        %v2328 = vld [vmem:[%s2322 + $0x14] sm:$0xf]
        %v2329 = vld [vmem:[%s2322 + $0x18] sm:$0xf]
        %v2330 = vld [vmem:[%s2322 + $0x1c] sm:$0xf]
        %v2331 = vld [vmem:[%s2322 + $0x20] sm:$0xf]
        %v2332 = vld [vmem:[%s2322 + $0x24] sm:$0xf]
        %v2333 = vld [vmem:[%s2322 + $0x28] sm:$0xf]
        %v2334 = vld [vmem:[%s2322 + $0x2c] sm:$0xf]
        %v2335 = vld [vmem:[%s2322 + $0x30] sm:$0xf]
        %v2336 = vld [vmem:[%s2322 + $0x34] sm:$0xf]
        %v2337 = vld [vmem:[%s2322 + $0x38] sm:$0xf]
        %v2338 = vld [vmem:[%s2322 + $0x3c] sm:$0xf]
        %v2340 = vunpack.c.l.b16 %v2321
        %v2341 = vpack.c.b16 %v2340, %v2340
        %vm2342 = vsmask.f32 6400
        %v2344 = vshrl.u32 %v2112, 16
        %v2346 = vrot.slane %v2344, 1
        %v2347 = vshll.u32 %v2112, 16
        %v2349 = vrot.slane %v2347, 2
        %v2350 = vor.u32 %v2346, %v2349
        %v2352 = vshrl.u32 %v2113, 16
        %v2354 = vrot.slane %v2352, 1
        %v2355 = vshll.u32 %v2113, 16
        %v2357 = vrot.slane %v2355, 2
        %v2358 = vor.u32 %v2354, %v2357
        %v2359 = vsel %vm2342, %v2350, %v2358
        %v2361 = vshrl.u32 %v2114, 16
        %v2363 = vrot.slane %v2361, 1
        %v2364 = vshll.u32 %v2114, 16
        %v2366 = vrot.slane %v2364, 2
        %v2367 = vor.u32 %v2363, %v2366
        %v2368 = vsel %vm2342, %v2358, %v2367
        %v2370 = vshrl.u32 %v2115, 16
        %v2372 = vrot.slane %v2370, 1
        %v2373 = vshll.u32 %v2115, 16
        %v2375 = vrot.slane %v2373, 2
        %v2376 = vor.u32 %v2372, %v2375
        %v2377 = vsel %vm2342, %v2367, %v2376
        %v2379 = vshrl.u32 %v2116, 16
        %v2381 = vrot.slane %v2379, 1
        %v2382 = vshll.u32 %v2116, 16
        %v2384 = vrot.slane %v2382, 2
        %v2385 = vor.u32 %v2381, %v2384
        %v2386 = vsel %vm2342, %v2376, %v2385
        %v2388 = vshrl.u32 %v2117, 16
        %v2390 = vrot.slane %v2388, 1
        %v2391 = vshll.u32 %v2117, 16
        %v2393 = vrot.slane %v2391, 2
        %v2394 = vor.u32 %v2390, %v2393
        %v2395 = vsel %vm2342, %v2385, %v2394
        %v2397 = vshrl.u32 %v2118, 16
        %v2399 = vrot.slane %v2397, 1
        %v2400 = vshll.u32 %v2118, 16
        %v2402 = vrot.slane %v2400, 2
        %v2403 = vor.u32 %v2399, %v2402
        %v2404 = vsel %vm2342, %v2394, %v2403
        %v2406 = vshrl.u32 %v2119, 16
        %v2408 = vrot.slane %v2406, 1
        %v2409 = vshll.u32 %v2119, 16
        %v2411 = vrot.slane %v2409, 2
        %v2412 = vor.u32 %v2408, %v2411
        %v2413 = vsel %vm2342, %v2403, %v2412
        %v2415 = vshrl.u32 %v2120, 16
        %v2417 = vrot.slane %v2415, 1
        %v2418 = vshll.u32 %v2120, 16
        %v2420 = vrot.slane %v2418, 2
        %v2421 = vor.u32 %v2417, %v2420
        %v2422 = vsel %vm2342, %v2412, %v2421
        %v2424 = vshrl.u32 %v2341, 16
        %v2426 = vrot.slane %v2424, 1
        %v2427 = vshll.u32 %v2341, 16
        %v2429 = vrot.slane %v2427, 2
        %v2430 = vor.u32 %v2426, %v2429
        %v2431 = vsel %vm2342, %v2421, %v2430
        %v2457 = vunpack.c.l.b16 %v2323
        %v2458 = vunpack.c.l.b16 %v2324
        %v2459 = vunpack.c.l.b16 %v2325
        %v2460 = vunpack.c.l.b16 %v2326
        %v2461 = vunpack.c.l.b16 %v2327
        %v2462 = vunpack.c.l.b16 %v2328
        %v2463 = vunpack.c.l.b16 %v2329
        %v2464 = vunpack.c.l.b16 %v2330
        %v2465 = vunpack.c.l.b16 %v2331
        %v2466 = vunpack.c.l.b16 %v2332
        %v2467 = vunpack.c.l.b16 %v2333
        %v2468 = vunpack.c.l.b16 %v2334
        %v2469 = vunpack.c.l.b16 %v2335
        %v2470 = vunpack.c.l.b16 %v2336
        %v2471 = vunpack.c.l.b16 %v2337
        %v2472 = vunpack.c.l.b16 %v2338
        %v2473 = vpack.c.b16 %v2458, %v2457
        %v2474 = vpack.c.b16 %v2460, %v2459
        %v2475 = vpack.c.b16 %v2462, %v2461
        %v2476 = vpack.c.b16 %v2464, %v2463
        %v2477 = vpack.c.b16 %v2466, %v2465
        %v2478 = vpack.c.b16 %v2468, %v2467
        %v2479 = vpack.c.b16 %v2470, %v2469
        %v2480 = vpack.c.b16 %v2472, %v2471
        %2489 = vmatprep.subr.bf16.mxu0 0
        %2490 = vmatpush1.bf16.msra.mxu0 %v2473
        %2491 = vmatprep.subr.bf16.mxu0 0
        %2492 = vmatpush1.bf16.msra.mxu0 %v2474
        %2493 = vmatprep.subr.bf16.mxu0 0
        %2494 = vmatpush1.bf16.msra.mxu0 %v2475
        %2495 = vmatprep.subr.bf16.mxu0 0
        %2496 = vmatpush1.bf16.msra.mxu0 %v2476
        %2497 = vmatprep.subr.bf16.mxu0 0
        %2498 = vmatpush1.bf16.msra.mxu0 %v2477
        %2499 = vmatprep.subr.bf16.mxu0 0
        %2500 = vmatpush1.bf16.msra.mxu0 %v2478
        %2501 = vmatprep.subr.bf16.mxu0 0
        %2502 = vmatpush1.bf16.msra.mxu0 %v2479
        %2503 = vmatprep.subr.bf16.mxu0 0
        %2504 = vmatpush1.bf16.msra.mxu0 %v2480
        %2505 = vmatprep.subr.bf16.mxu0 0
        %2506 = vmatpush1.bf16.msra.mxu0 0
        %2507 = vmatprep.subr.bf16.mxu0 0
        %2508 = vmatpush1.bf16.msra.mxu0 0
        %2509 = vmatprep.subr.bf16.mxu0 0
        %2510 = vmatpush1.bf16.msra.mxu0 0
        %2511 = vmatprep.subr.bf16.mxu0 0
        %2512 = vmatpush1.bf16.msra.mxu0 0
        %2513 = vmatprep.subr.bf16.mxu0 0
        %2514 = vmatpush1.bf16.msra.mxu0 0
        %2515 = vmatprep.subr.bf16.mxu0 0
        %2516 = vmatpush1.bf16.msra.mxu0 0
        %2517 = vmatprep.subr.bf16.mxu0 0
        %2518 = vmatpush1.bf16.msra.mxu0 0
        %2519 = vmatprep.subr.bf16.mxu0 0
        %2520 = vmatpush1.bf16.msra.mxu0 0
        %2521 = vmatprep.mubr.bf16.mxu0 0
        %2522 = vmatmul.mubr.bf16.gmra.mrb[0].mxu0 %v2359
        %v2523 = vpop.f32.mrb[0].mxu0
        %v2524 = vadd.f32 0.0, %v2523
        %v2525 = vpop.f32.mrb[0].mxu0
        %v2526 = vpop.f32.mrb[0].mxu0
        %v2527 = vadd.f32 0.0, %v2526
        %v2528 = vpop.f32.mrb[0].mxu0
        %2529 = vmatprep.mubr.bf16.mxu0 0
        %2530 = vmatmul.mubr.bf16.gmra.mrb[0].mxu0 %v2368
        %v2531 = vpop.f32.mrb[0].mxu0
        %v2532 = vadd.f32 0.0, %v2531
        %v2533 = vpop.f32.mrb[0].mxu0
        %v2534 = vpop.f32.mrb[0].mxu0
        %v2535 = vadd.f32 0.0, %v2534
        %v2536 = vpop.f32.mrb[0].mxu0
        %2537 = vmatprep.mubr.bf16.mxu0 0
        %2538 = vmatmul.mubr.bf16.gmra.mrb[0].mxu0 %v2377
        %v2539 = vpop.f32.mrb[0].mxu0
        %v2540 = vadd.f32 0.0, %v2539
        %v2541 = vpop.f32.mrb[0].mxu0
        %v2542 = vpop.f32.mrb[0].mxu0
        %v2543 = vadd.f32 0.0, %v2542
        %v2544 = vpop.f32.mrb[0].mxu0
        %2545 = vmatprep.mubr.bf16.mxu0 0
        %2546 = vmatmul.mubr.bf16.gmra.mrb[0].mxu0 %v2386
        %v2547 = vpop.f32.mrb[0].mxu0
        %v2548 = vadd.f32 0.0, %v2547
        %v2549 = vpop.f32.mrb[0].mxu0
        %v2550 = vpop.f32.mrb[0].mxu0
        %v2551 = vadd.f32 0.0, %v2550
        %v2552 = vpop.f32.mrb[0].mxu0
        %2553 = vmatprep.mubr.bf16.mxu0 0
        %2554 = vmatmul.mubr.bf16.gmra.mrb[0].mxu0 %v2395
        %v2555 = vpop.f32.mrb[0].mxu0
        %v2556 = vadd.f32 0.0, %v2555
        %v2557 = vpop.f32.mrb[0].mxu0
        %v2558 = vpop.f32.mrb[0].mxu0
        %v2559 = vadd.f32 0.0, %v2558
        %v2560 = vpop.f32.mrb[0].mxu0
        %2561 = vmatprep.mubr.bf16.mxu0 0
        %2562 = vmatmul.mubr.bf16.gmra.mrb[0].mxu0 %v2404
        %v2563 = vpop.f32.mrb[0].mxu0
        %v2564 = vadd.f32 0.0, %v2563
        %v2565 = vpop.f32.mrb[0].mxu0
        %v2566 = vpop.f32.mrb[0].mxu0
        %v2567 = vadd.f32 0.0, %v2566
        %v2568 = vpop.f32.mrb[0].mxu0
        %2569 = vmatprep.mubr.bf16.mxu0 0
        %2570 = vmatmul.mubr.bf16.gmra.mrb[0].mxu0 %v2413
        %v2571 = vpop.f32.mrb[0].mxu0
        %v2572 = vadd.f32 0.0, %v2571
        %v2573 = vpop.f32.mrb[0].mxu0
        %v2574 = vpop.f32.mrb[0].mxu0
        %v2575 = vadd.f32 0.0, %v2574
        %v2576 = vpop.f32.mrb[0].mxu0
        %2577 = vmatprep.mubr.bf16.mxu0 0
        %2578 = vmatmul.mubr.bf16.gmra.mrb[0].mxu0 %v2422
        %v2579 = vpop.f32.mrb[0].mxu0
        %v2580 = vadd.f32 0.0, %v2579
        %v2581 = vpop.f32.mrb[0].mxu0
        %v2582 = vpop.f32.mrb[0].mxu0
        %v2583 = vadd.f32 0.0, %v2582
        %v2584 = vpop.f32.mrb[0].mxu0
        %2585 = vmatprep.mubr.bf16.mxu0 0
        %2586 = vmatmul.mubr.bf16.gmra.mrb[0].mxu0 %v2431
        %v2587 = vpop.f32.mrb[0].mxu0
        %v2588 = vadd.f32 0.0, %v2587
        %v2589 = vpop.f32.mrb[0].mxu0
        %v2590 = vpop.f32.mrb[0].mxu0
        %v2591 = vadd.f32 0.0, %v2590
        %v2592 = vpop.f32.mrb[0].mxu0
        %2593 = vdwg.mxu0
        %v2594 = vadd.f32 %v2303, %v2524
        %v2595 = vadd.f32 %v2304, %v2527
        %v2596 = vadd.f32 %v2305, %v2532
        %v2597 = vadd.f32 %v2306, %v2535
        %v2598 = vadd.f32 %v2307, %v2540
        %v2599 = vadd.f32 %v2308, %v2543
        %v2600 = vadd.f32 %v2309, %v2548
        %v2601 = vadd.f32 %v2310, %v2551
        %v2602 = vadd.f32 %v2311, %v2556
        %v2603 = vadd.f32 %v2312, %v2559
        %v2604 = vadd.f32 %v2313, %v2564
        %v2605 = vadd.f32 %v2314, %v2567
        %v2606 = vadd.f32 %v2315, %v2572
        %v2607 = vadd.f32 %v2316, %v2575
        %v2608 = vadd.f32 %v2317, %v2580
        %v2609 = vadd.f32 %v2318, %v2583
        %v2610 = vadd.f32 %v2319, %v2588
        %v2611 = vadd.f32 %v2320, %v2591
        %v2612 = vld [vmem:[#allocation2 + $0x8] sm:$0xc]
        %s2613 = scalar_lea.vmem [#allocation7], 320
        %v2614 = vld [vmem:[%s2613] sm:$0xf]
        %v2615 = vld [vmem:[%s2613 + $0x4] sm:$0xf]
        %v2616 = vld [vmem:[%s2613 + $0x8] sm:$0xf]
        %v2617 = vld [vmem:[%s2613 + $0xc] sm:$0xf]
        %v2618 = vld [vmem:[%s2613 + $0x10] sm:$0xf]
        %v2619 = vld [vmem:[%s2613 + $0x14] sm:$0xf]
        %v2620 = vld [vmem:[%s2613 + $0x18] sm:$0xf]
        %v2621 = vld [vmem:[%s2613 + $0x1c] sm:$0xf]
        %v2622 = vld [vmem:[%s2613 + $0x20] sm:$0xf]
        %v2623 = vld [vmem:[%s2613 + $0x24] sm:$0xf]
        %v2624 = vld [vmem:[%s2613 + $0x28] sm:$0xf]
        %v2625 = vld [vmem:[%s2613 + $0x2c] sm:$0xf]
        %v2626 = vld [vmem:[%s2613 + $0x30] sm:$0xf]
        %v2627 = vld [vmem:[%s2613 + $0x34] sm:$0xf]
        %v2628 = vld [vmem:[%s2613 + $0x38] sm:$0xf]
        %v2629 = vld [vmem:[%s2613 + $0x3c] sm:$0xf]
        %v2631 = vunpack.c.l.b16 %v2612
        %v2632 = vpack.c.b16 %v2094, %v2631
        %vm2633 = vcmask 1045504
        %v2634 = vrot.slane %v2632, 2
        %v2635 = vrot.slane %v2113, 2
        %v2636 = vsel %vm2633, %v2634, %v2635
        %v2637 = vrot.slane %v2114, 2
        %v2638 = vsel %vm2633, %v2635, %v2637
        %v2639 = vrot.slane %v2115, 2
        %v2640 = vsel %vm2633, %v2637, %v2639
        %v2641 = vrot.slane %v2116, 2
        %v2642 = vsel %vm2633, %v2639, %v2641
        %v2643 = vrot.slane %v2117, 2
        %v2644 = vsel %vm2633, %v2641, %v2643
        %v2645 = vrot.slane %v2118, 2
        %v2646 = vsel %vm2633, %v2643, %v2645
        %v2647 = vrot.slane %v2119, 2
        %v2648 = vsel %vm2633, %v2645, %v2647
        %v2649 = vrot.slane %v2120, 2
        %v2650 = vsel %vm2633, %v2647, %v2649
        %v2651 = vrot.slane %v2341, 2
        %v2652 = vsel %vm2633, %v2649, %v2651
        %v2678 = vunpack.c.l.b16 %v2614
        %v2679 = vunpack.c.l.b16 %v2615
        %v2680 = vunpack.c.l.b16 %v2616
        %v2681 = vunpack.c.l.b16 %v2617
        %v2682 = vunpack.c.l.b16 %v2618
        %v2683 = vunpack.c.l.b16 %v2619
        %v2684 = vunpack.c.l.b16 %v2620
        %v2685 = vunpack.c.l.b16 %v2621
        %v2686 = vunpack.c.l.b16 %v2622
        %v2687 = vunpack.c.l.b16 %v2623
        %v2688 = vunpack.c.l.b16 %v2624
        %v2689 = vunpack.c.l.b16 %v2625
        %v2690 = vunpack.c.l.b16 %v2626
        %v2691 = vunpack.c.l.b16 %v2627
        %v2692 = vunpack.c.l.b16 %v2628
        %v2693 = vunpack.c.l.b16 %v2629
        %v2694 = vpack.c.b16 %v2679, %v2678
        %v2695 = vpack.c.b16 %v2681, %v2680
        %v2696 = vpack.c.b16 %v2683, %v2682
        %v2697 = vpack.c.b16 %v2685, %v2684
        %v2698 = vpack.c.b16 %v2687, %v2686
        %v2699 = vpack.c.b16 %v2689, %v2688
        %v2700 = vpack.c.b16 %v2691, %v2690
        %v2701 = vpack.c.b16 %v2693, %v2692
        %2710 = vmatprep.subr.bf16.mxu0 0
        %2711 = vmatpush1.bf16.msra.mxu0 %v2694
        %2712 = vmatprep.subr.bf16.mxu0 0
        %2713 = vmatpush1.bf16.msra.mxu0 %v2695
        %2714 = vmatprep.subr.bf16.mxu0 0
        %2715 = vmatpush1.bf16.msra.mxu0 %v2696
        %2716 = vmatprep.subr.bf16.mxu0 0
        %2717 = vmatpush1.bf16.msra.mxu0 %v2697
        %2718 = vmatprep.subr.bf16.mxu0 0
        %2719 = vmatpush1.bf16.msra.mxu0 %v2698
        %2720 = vmatprep.subr.bf16.mxu0 0
        %2721 = vmatpush1.bf16.msra.mxu0 %v2699
        %2722 = vmatprep.subr.bf16.mxu0 0
        %2723 = vmatpush1.bf16.msra.mxu0 %v2700
        %2724 = vmatprep.subr.bf16.mxu0 0
        %2725 = vmatpush1.bf16.msra.mxu0 %v2701
        %2726 = vmatprep.subr.bf16.mxu0 0
        %2727 = vmatpush1.bf16.msra.mxu0 0
        %2728 = vmatprep.subr.bf16.mxu0 0
        %2729 = vmatpush1.bf16.msra.mxu0 0
        %2730 = vmatprep.subr.bf16.mxu0 0
        %2731 = vmatpush1.bf16.msra.mxu0 0
        %2732 = vmatprep.subr.bf16.mxu0 0
        %2733 = vmatpush1.bf16.msra.mxu0 0
        %2734 = vmatprep.subr.bf16.mxu0 0
        %2735 = vmatpush1.bf16.msra.mxu0 0
        %2736 = vmatprep.subr.bf16.mxu0 0
        %2737 = vmatpush1.bf16.msra.mxu0 0
        %2738 = vmatprep.subr.bf16.mxu0 0
        %2739 = vmatpush1.bf16.msra.mxu0 0
        %2740 = vmatprep.subr.bf16.mxu0 0
        %2741 = vmatpush1.bf16.msra.mxu0 0
        %2742 = vmatprep.mubr.bf16.mxu0 0
        %2743 = vmatmul.mubr.bf16.gmra.mrb[0].mxu0 %v2636
        %v2744 = vpop.f32.mrb[0].mxu0
        %v2745 = vadd.f32 0.0, %v2744
        %v2746 = vpop.f32.mrb[0].mxu0
        %v2747 = vpop.f32.mrb[0].mxu0
        %v2748 = vadd.f32 0.0, %v2747
        %v2749 = vpop.f32.mrb[0].mxu0
        %2750 = vmatprep.mubr.bf16.mxu0 0
        %2751 = vmatmul.mubr.bf16.gmra.mrb[0].mxu0 %v2638
        %v2752 = vpop.f32.mrb[0].mxu0
        %v2753 = vadd.f32 0.0, %v2752
        %v2754 = vpop.f32.mrb[0].mxu0
        %v2755 = vpop.f32.mrb[0].mxu0
        %v2756 = vadd.f32 0.0, %v2755
        %v2757 = vpop.f32.mrb[0].mxu0
        %2758 = vmatprep.mubr.bf16.mxu0 0
        %2759 = vmatmul.mubr.bf16.gmra.mrb[0].mxu0 %v2640
        %v2760 = vpop.f32.mrb[0].mxu0
        %v2761 = vadd.f32 0.0, %v2760
        %v2762 = vpop.f32.mrb[0].mxu0
        %v2763 = vpop.f32.mrb[0].mxu0
        %v2764 = vadd.f32 0.0, %v2763
        %v2765 = vpop.f32.mrb[0].mxu0
        %2766 = vmatprep.mubr.bf16.mxu0 0
        %2767 = vmatmul.mubr.bf16.gmra.mrb[0].mxu0 %v2642
        %v2768 = vpop.f32.mrb[0].mxu0
        %v2769 = vadd.f32 0.0, %v2768
        %v2770 = vpop.f32.mrb[0].mxu0
        %v2771 = vpop.f32.mrb[0].mxu0
        %v2772 = vadd.f32 0.0, %v2771
        %v2773 = vpop.f32.mrb[0].mxu0
        %2774 = vmatprep.mubr.bf16.mxu0 0
        %2775 = vmatmul.mubr.bf16.gmra.mrb[0].mxu0 %v2644
        %v2776 = vpop.f32.mrb[0].mxu0
        %v2777 = vadd.f32 0.0, %v2776
        %v2778 = vpop.f32.mrb[0].mxu0
        %v2779 = vpop.f32.mrb[0].mxu0
        %v2780 = vadd.f32 0.0, %v2779
        %v2781 = vpop.f32.mrb[0].mxu0
        %2782 = vmatprep.mubr.bf16.mxu0 0
        %2783 = vmatmul.mubr.bf16.gmra.mrb[0].mxu0 %v2646
        %v2784 = vpop.f32.mrb[0].mxu0
        %v2785 = vadd.f32 0.0, %v2784
        %v2786 = vpop.f32.mrb[0].mxu0
        %v2787 = vpop.f32.mrb[0].mxu0
        %v2788 = vadd.f32 0.0, %v2787
        %v2789 = vpop.f32.mrb[0].mxu0
        %2790 = vmatprep.mubr.bf16.mxu0 0
        %2791 = vmatmul.mubr.bf16.gmra.mrb[0].mxu0 %v2648
        %v2792 = vpop.f32.mrb[0].mxu0
        %v2793 = vadd.f32 0.0, %v2792
        %v2794 = vpop.f32.mrb[0].mxu0
        %v2795 = vpop.f32.mrb[0].mxu0
        %v2796 = vadd.f32 0.0, %v2795
        %v2797 = vpop.f32.mrb[0].mxu0
        %2798 = vmatprep.mubr.bf16.mxu0 0
        %2799 = vmatmul.mubr.bf16.gmra.mrb[0].mxu0 %v2650
        %v2800 = vpop.f32.mrb[0].mxu0
        %v2801 = vadd.f32 0.0, %v2800
        %v2802 = vpop.f32.mrb[0].mxu0
        %v2803 = vpop.f32.mrb[0].mxu0
        %v2804 = vadd.f32 0.0, %v2803
        %v2805 = vpop.f32.mrb[0].mxu0
        %2806 = vmatprep.mubr.bf16.mxu0 0
        %2807 = vmatmul.mubr.bf16.gmra.mrb[0].mxu0 %v2652
        %v2808 = vpop.f32.mrb[0].mxu0
        %v2809 = vadd.f32 0.0, %v2808
        %v2810 = vpop.f32.mrb[0].mxu0
        %v2811 = vpop.f32.mrb[0].mxu0
        %v2812 = vadd.f32 0.0, %v2811
        %v2813 = vpop.f32.mrb[0].mxu0
        %2814 = vdwg.mxu0
        %v2815 = vadd.f32 %v2594, %v2745
        %v2816 = vadd.f32 %v2595, %v2748
        %v2817 = vadd.f32 %v2596, %v2753
        %v2818 = vadd.f32 %v2597, %v2756
        %v2819 = vadd.f32 %v2598, %v2761
        %v2820 = vadd.f32 %v2599, %v2764
        %v2821 = vadd.f32 %v2600, %v2769
        %v2822 = vadd.f32 %v2601, %v2772
        %v2823 = vadd.f32 %v2602, %v2777
        %v2824 = vadd.f32 %v2603, %v2780
        %v2825 = vadd.f32 %v2604, %v2785
        %v2826 = vadd.f32 %v2605, %v2788
        %v2827 = vadd.f32 %v2606, %v2793
        %v2828 = vadd.f32 %v2607, %v2796
        %v2829 = vadd.f32 %v2608, %v2801
        %v2830 = vadd.f32 %v2609, %v2804
        %v2831 = vadd.f32 %v2610, %v2809
        %v2832 = vadd.f32 %v2611, %v2812
        %v2833 = vld [vmem:[#allocation2 + $0x10] sm:$0xc]
        %v2834 = vld [vmem:[#allocation2 + $0x14] sm:$0xf]
        %v2835 = vld [vmem:[#allocation2 + $0x18] sm:$0xf]
        %v2836 = vld [vmem:[#allocation2 + $0x1c] sm:$0xf]
        %v2837 = vld [vmem:[#allocation2 + $0x20] sm:$0xf]
        %v2838 = vld [vmem:[#allocation2 + $0x24] sm:$0xf]
        %v2839 = vld [vmem:[#allocation2 + $0x28] sm:$0xf]
        %v2840 = vld [vmem:[#allocation2 + $0x2c] sm:$0xf]
        %v2841 = vld [vmem:[#allocation2 + $0x30] sm:$0xf]
        %v2842 = vld [vmem:[#allocation2 + $0x34] sm:$0xf]
        %v2843 = vld [vmem:[#allocation2 + $0x38] sm:$0xf]
        %v2844 = vld [vmem:[#allocation2 + $0x3c] sm:$0xf]
        %v2845 = vld [vmem:[#allocation2 + $0x40] sm:$0xf]
        %v2846 = vld [vmem:[#allocation2 + $0x44] sm:$0xf]
        %v2847 = vld [vmem:[#allocation2 + $0x48] sm:$0xf]
        %v2848 = vld [vmem:[#allocation2 + $0x4c] sm:$0xf]
        %v2849 = vld [vmem:[#allocation2 + $0x50] sm:$0xf]
        %v2850 = vld [vmem:[#allocation2 + $0x54] sm:$0xf]
        %v2851 = vld [vmem:[#allocation2 + $0x58] sm:$0x3]
        %s2852 = scalar_lea.vmem [#allocation7], 384
        %v2853 = vld [vmem:[%s2852] sm:$0xf]
        %v2854 = vld [vmem:[%s2852 + $0x4] sm:$0xf]
        %v2855 = vld [vmem:[%s2852 + $0x8] sm:$0xf]
        %v2856 = vld [vmem:[%s2852 + $0xc] sm:$0xf]
        %v2857 = vld [vmem:[%s2852 + $0x10] sm:$0xf]
        %v2858 = vld [vmem:[%s2852 + $0x14] sm:$0xf]
        %v2859 = vld [vmem:[%s2852 + $0x18] sm:$0xf]
        %v2860 = vld [vmem:[%s2852 + $0x1c] sm:$0xf]
        %v2861 = vld [vmem:[%s2852 + $0x20] sm:$0xf]
        %v2862 = vld [vmem:[%s2852 + $0x24] sm:$0xf]
        %v2863 = vld [vmem:[%s2852 + $0x28] sm:$0xf]
        %v2864 = vld [vmem:[%s2852 + $0x2c] sm:$0xf]
        %v2865 = vld [vmem:[%s2852 + $0x30] sm:$0xf]
        %v2866 = vld [vmem:[%s2852 + $0x34] sm:$0xf]
        %v2867 = vld [vmem:[%s2852 + $0x38] sm:$0xf]
        %v2868 = vld [vmem:[%s2852 + $0x3c] sm:$0xf]
        %v2888 = vunpack.c.l.b16 %v2833
        %v2889 = vunpack.c.l.b16 %v2834
        %v2890 = vunpack.c.l.b16 %v2835
        %v2891 = vunpack.c.l.b16 %v2836
        %v2892 = vunpack.c.l.b16 %v2837
        %v2893 = vunpack.c.l.b16 %v2838
        %v2894 = vunpack.c.l.b16 %v2839
        %v2895 = vunpack.c.l.b16 %v2840
        %v2896 = vunpack.c.l.b16 %v2841
        %v2897 = vunpack.c.l.b16 %v2842
        %v2898 = vunpack.c.l.b16 %v2843
        %v2899 = vunpack.c.l.b16 %v2844
        %v2900 = vunpack.c.l.b16 %v2845
        %v2901 = vunpack.c.l.b16 %v2846
        %v2902 = vunpack.c.l.b16 %v2847
        %v2903 = vunpack.c.l.b16 %v2848
        %v2904 = vunpack.c.l.b16 %v2849
        %v2905 = vunpack.c.l.b16 %v2850
        %v2906 = vunpack.c.l.b16 %v2851
        %v2907 = vpack.c.b16 %v2889, %v2888
        %v2908 = vpack.c.b16 %v2891, %v2890
        %v2909 = vpack.c.b16 %v2893, %v2892
        %v2910 = vpack.c.b16 %v2895, %v2894
        %v2911 = vpack.c.b16 %v2897, %v2896
        %v2912 = vpack.c.b16 %v2899, %v2898
        %v2913 = vpack.c.b16 %v2901, %v2900
        %v2914 = vpack.c.b16 %v2903, %v2902
        %v2915 = vpack.c.b16 %v2905, %v2904
        %v2916 = vpack.c.b16 %v2906, %v2906
        %v2917 = vrot.slane %v2907, 2
        %v2918 = vrot.slane %v2908, 2
        %v2919 = vsel %vm2633, %v2917, %v2918
        %v2920 = vrot.slane %v2909, 2
        %v2921 = vsel %vm2633, %v2918, %v2920
        %v2922 = vrot.slane %v2910, 2
        %v2923 = vsel %vm2633, %v2920, %v2922
        %v2924 = vrot.slane %v2911, 2
        %v2925 = vsel %vm2633, %v2922, %v2924
        %v2926 = vrot.slane %v2912, 2
        %v2927 = vsel %vm2633, %v2924, %v2926
        %v2928 = vrot.slane %v2913, 2
        %v2929 = vsel %vm2633, %v2926, %v2928
        %v2930 = vrot.slane %v2914, 2
        %v2931 = vsel %vm2633, %v2928, %v2930
        %v2932 = vrot.slane %v2915, 2
        %v2933 = vsel %vm2633, %v2930, %v2932
        %v2934 = vrot.slane %v2916, 2
        %v2935 = vsel %vm2633, %v2932, %v2934
        %v2961 = vunpack.c.l.b16 %v2853
        %v2962 = vunpack.c.l.b16 %v2854
        %v2963 = vunpack.c.l.b16 %v2855
        %v2964 = vunpack.c.l.b16 %v2856
        %v2965 = vunpack.c.l.b16 %v2857
        %v2966 = vunpack.c.l.b16 %v2858
        %v2967 = vunpack.c.l.b16 %v2859
        %v2968 = vunpack.c.l.b16 %v2860
        %v2969 = vunpack.c.l.b16 %v2861
        %v2970 = vunpack.c.l.b16 %v2862
        %v2971 = vunpack.c.l.b16 %v2863
        %v2972 = vunpack.c.l.b16 %v2864
        %v2973 = vunpack.c.l.b16 %v2865
        %v2974 = vunpack.c.l.b16 %v2866
        %v2975 = vunpack.c.l.b16 %v2867
        %v2976 = vunpack.c.l.b16 %v2868
        %v2977 = vpack.c.b16 %v2962, %v2961
        %v2978 = vpack.c.b16 %v2964, %v2963
        %v2979 = vpack.c.b16 %v2966, %v2965
        %v2980 = vpack.c.b16 %v2968, %v2967
        %v2981 = vpack.c.b16 %v2970, %v2969
        %v2982 = vpack.c.b16 %v2972, %v2971
        %v2983 = vpack.c.b16 %v2974, %v2973
        %v2984 = vpack.c.b16 %v2976, %v2975
        %2993 = vmatprep.subr.bf16.mxu0 0
        %2994 = vmatpush1.bf16.msra.mxu0 %v2977
        %2995 = vmatprep.subr.bf16.mxu0 0
        %2996 = vmatpush1.bf16.msra.mxu0 %v2978
        %2997 = vmatprep.subr.bf16.mxu0 0
        %2998 = vmatpush1.bf16.msra.mxu0 %v2979
        %2999 = vmatprep.subr.bf16.mxu0 0
        %3000 = vmatpush1.bf16.msra.mxu0 %v2980
        %3001 = vmatprep.subr.bf16.mxu0 0
        %3002 = vmatpush1.bf16.msra.mxu0 %v2981
        %3003 = vmatprep.subr.bf16.mxu0 0
        %3004 = vmatpush1.bf16.msra.mxu0 %v2982
        %3005 = vmatprep.subr.bf16.mxu0 0
        %3006 = vmatpush1.bf16.msra.mxu0 %v2983
        %3007 = vmatprep.subr.bf16.mxu0 0
        %3008 = vmatpush1.bf16.msra.mxu0 %v2984
        %3009 = vmatprep.subr.bf16.mxu0 0
        %3010 = vmatpush1.bf16.msra.mxu0 0
        %3011 = vmatprep.subr.bf16.mxu0 0
        %3012 = vmatpush1.bf16.msra.mxu0 0
        %3013 = vmatprep.subr.bf16.mxu0 0
        %3014 = vmatpush1.bf16.msra.mxu0 0
        %3015 = vmatprep.subr.bf16.mxu0 0
        %3016 = vmatpush1.bf16.msra.mxu0 0
        %3017 = vmatprep.subr.bf16.mxu0 0
        %3018 = vmatpush1.bf16.msra.mxu0 0
        %3019 = vmatprep.subr.bf16.mxu0 0
        %3020 = vmatpush1.bf16.msra.mxu0 0
        %3021 = vmatprep.subr.bf16.mxu0 0
        %3022 = vmatpush1.bf16.msra.mxu0 0
        %3023 = vmatprep.subr.bf16.mxu0 0
        %3024 = vmatpush1.bf16.msra.mxu0 0
        %3025 = vmatprep.mubr.bf16.mxu0 0
        %3026 = vmatmul.mubr.bf16.gmra.mrb[0].mxu0 %v2919
        %v3027 = vpop.f32.mrb[0].mxu0
        %v3028 = vadd.f32 0.0, %v3027
        %v3029 = vpop.f32.mrb[0].mxu0
        %v3030 = vpop.f32.mrb[0].mxu0
        %v3031 = vadd.f32 0.0, %v3030
        %v3032 = vpop.f32.mrb[0].mxu0
        %3033 = vmatprep.mubr.bf16.mxu0 0
        %3034 = vmatmul.mubr.bf16.gmra.mrb[0].mxu0 %v2921
        %v3035 = vpop.f32.mrb[0].mxu0
        %v3036 = vadd.f32 0.0, %v3035
        %v3037 = vpop.f32.mrb[0].mxu0
        %v3038 = vpop.f32.mrb[0].mxu0
        %v3039 = vadd.f32 0.0, %v3038
        %v3040 = vpop.f32.mrb[0].mxu0
        %3041 = vmatprep.mubr.bf16.mxu0 0
        %3042 = vmatmul.mubr.bf16.gmra.mrb[0].mxu0 %v2923
        %v3043 = vpop.f32.mrb[0].mxu0
        %v3044 = vadd.f32 0.0, %v3043
        %v3045 = vpop.f32.mrb[0].mxu0
        %v3046 = vpop.f32.mrb[0].mxu0
        %v3047 = vadd.f32 0.0, %v3046
        %v3048 = vpop.f32.mrb[0].mxu0
        %3049 = vmatprep.mubr.bf16.mxu0 0
        %3050 = vmatmul.mubr.bf16.gmra.mrb[0].mxu0 %v2925
        %v3051 = vpop.f32.mrb[0].mxu0
        %v3052 = vadd.f32 0.0, %v3051
        %v3053 = vpop.f32.mrb[0].mxu0
        %v3054 = vpop.f32.mrb[0].mxu0
        %v3055 = vadd.f32 0.0, %v3054
        %v3056 = vpop.f32.mrb[0].mxu0
        %3057 = vmatprep.mubr.bf16.mxu0 0
        %3058 = vmatmul.mubr.bf16.gmra.mrb[0].mxu0 %v2927
        %v3059 = vpop.f32.mrb[0].mxu0
        %v3060 = vadd.f32 0.0, %v3059
        %v3061 = vpop.f32.mrb[0].mxu0
        %v3062 = vpop.f32.mrb[0].mxu0
        %v3063 = vadd.f32 0.0, %v3062
        %v3064 = vpop.f32.mrb[0].mxu0
        %3065 = vmatprep.mubr.bf16.mxu0 0
        %3066 = vmatmul.mubr.bf16.gmra.mrb[0].mxu0 %v2929
        %v3067 = vpop.f32.mrb[0].mxu0
        %v3068 = vadd.f32 0.0, %v3067
        %v3069 = vpop.f32.mrb[0].mxu0
        %v3070 = vpop.f32.mrb[0].mxu0
        %v3071 = vadd.f32 0.0, %v3070
        %v3072 = vpop.f32.mrb[0].mxu0
        %3073 = vmatprep.mubr.bf16.mxu0 0
        %3074 = vmatmul.mubr.bf16.gmra.mrb[0].mxu0 %v2931
        %v3075 = vpop.f32.mrb[0].mxu0
        %v3076 = vadd.f32 0.0, %v3075
        %v3077 = vpop.f32.mrb[0].mxu0
        %v3078 = vpop.f32.mrb[0].mxu0
        %v3079 = vadd.f32 0.0, %v3078
        %v3080 = vpop.f32.mrb[0].mxu0
        %3081 = vmatprep.mubr.bf16.mxu0 0
        %3082 = vmatmul.mubr.bf16.gmra.mrb[0].mxu0 %v2933
        %v3083 = vpop.f32.mrb[0].mxu0
        %v3084 = vadd.f32 0.0, %v3083
        %v3085 = vpop.f32.mrb[0].mxu0
        %v3086 = vpop.f32.mrb[0].mxu0
        %v3087 = vadd.f32 0.0, %v3086
        %v3088 = vpop.f32.mrb[0].mxu0
        %3089 = vmatprep.mubr.bf16.mxu0 0
        %3090 = vmatmul.mubr.bf16.gmra.mrb[0].mxu0 %v2935
        %v3091 = vpop.f32.mrb[0].mxu0
        %v3092 = vadd.f32 0.0, %v3091
        %v3093 = vpop.f32.mrb[0].mxu0
        %v3094 = vpop.f32.mrb[0].mxu0
        %v3095 = vadd.f32 0.0, %v3094
        %v3096 = vpop.f32.mrb[0].mxu0
        %3097 = vdwg.mxu0
        %v3098 = vadd.f32 %v2815, %v3028
        %v3099 = vadd.f32 %v2816, %v3031
        %v3100 = vadd.f32 %v2817, %v3036
        %v3101 = vadd.f32 %v2818, %v3039
        %v3102 = vadd.f32 %v2819, %v3044
        %v3103 = vadd.f32 %v2820, %v3047
        %v3104 = vadd.f32 %v2821, %v3052
        %v3105 = vadd.f32 %v2822, %v3055
        %v3106 = vadd.f32 %v2823, %v3060
        %v3107 = vadd.f32 %v2824, %v3063
        %v3108 = vadd.f32 %v2825, %v3068
        %v3109 = vadd.f32 %v2826, %v3071
        %v3110 = vadd.f32 %v2827, %v3076
        %v3111 = vadd.f32 %v2828, %v3079
        %v3112 = vadd.f32 %v2829, %v3084
        %v3113 = vadd.f32 %v2830, %v3087
        %v3114 = vadd.f32 %v2831, %v3092
        %v3115 = vadd.f32 %v2832, %v3095
        %v3116 = vld [vmem:[#allocation2 + $0x58] sm:$0x7]
        %s3117 = scalar_lea.vmem [#allocation7], 448
        %v3118 = vld [vmem:[%s3117] sm:$0xf]
        %v3119 = vld [vmem:[%s3117 + $0x4] sm:$0xf]
        %v3120 = vld [vmem:[%s3117 + $0x8] sm:$0xf]
        %v3121 = vld [vmem:[%s3117 + $0xc] sm:$0xf]
        %v3122 = vld [vmem:[%s3117 + $0x10] sm:$0xf]
        %v3123 = vld [vmem:[%s3117 + $0x14] sm:$0xf]
        %v3124 = vld [vmem:[%s3117 + $0x18] sm:$0xf]
        %v3125 = vld [vmem:[%s3117 + $0x1c] sm:$0xf]
        %v3126 = vld [vmem:[%s3117 + $0x20] sm:$0xf]
        %v3127 = vld [vmem:[%s3117 + $0x24] sm:$0xf]
        %v3128 = vld [vmem:[%s3117 + $0x28] sm:$0xf]
        %v3129 = vld [vmem:[%s3117 + $0x2c] sm:$0xf]
        %v3130 = vld [vmem:[%s3117 + $0x30] sm:$0xf]
        %v3131 = vld [vmem:[%s3117 + $0x34] sm:$0xf]
        %v3132 = vld [vmem:[%s3117 + $0x38] sm:$0xf]
        %v3133 = vld [vmem:[%s3117 + $0x3c] sm:$0xf]
        %v3135 = vunpack.c.l.b16 %v3116
        %v3136 = vpack.c.b16 %v3135, %v3135
        %vm3137 = vsmask.f32 5376
        %v3139 = vshrl.u32 %v2907, 16
        %v3141 = vrot.slane %v3139, 2
        %v3142 = vshll.u32 %v2907, 16
        %v3144 = vrot.slane %v3142, 3
        %v3145 = vor.u32 %v3141, %v3144
        %v3147 = vshrl.u32 %v2908, 16
        %v3149 = vrot.slane %v3147, 2
        %v3150 = vshll.u32 %v2908, 16
        %v3152 = vrot.slane %v3150, 3
        %v3153 = vor.u32 %v3149, %v3152
        %v3154 = vsel %vm3137, %v3145, %v3153
        %v3156 = vshrl.u32 %v2909, 16
        %v3158 = vrot.slane %v3156, 2
        %v3159 = vshll.u32 %v2909, 16
        %v3161 = vrot.slane %v3159, 3
        %v3162 = vor.u32 %v3158, %v3161
        %v3163 = vsel %vm3137, %v3153, %v3162
        %v3165 = vshrl.u32 %v2910, 16
        %v3167 = vrot.slane %v3165, 2
        %v3168 = vshll.u32 %v2910, 16
        %v3170 = vrot.slane %v3168, 3
        %v3171 = vor.u32 %v3167, %v3170
        %v3172 = vsel %vm3137, %v3162, %v3171
        %v3174 = vshrl.u32 %v2911, 16
        %v3176 = vrot.slane %v3174, 2
        %v3177 = vshll.u32 %v2911, 16
        %v3179 = vrot.slane %v3177, 3
        %v3180 = vor.u32 %v3176, %v3179
        %v3181 = vsel %vm3137, %v3171, %v3180
        %v3183 = vshrl.u32 %v2912, 16
        %v3185 = vrot.slane %v3183, 2
        %v3186 = vshll.u32 %v2912, 16
        %v3188 = vrot.slane %v3186, 3
        %v3189 = vor.u32 %v3185, %v3188
        %v3190 = vsel %vm3137, %v3180, %v3189
        %v3192 = vshrl.u32 %v2913, 16
        %v3194 = vrot.slane %v3192, 2
        %v3195 = vshll.u32 %v2913, 16
        %v3197 = vrot.slane %v3195, 3
        %v3198 = vor.u32 %v3194, %v3197
        %v3199 = vsel %vm3137, %v3189, %v3198
        %v3201 = vshrl.u32 %v2914, 16
        %v3203 = vrot.slane %v3201, 2
        %v3204 = vshll.u32 %v2914, 16
        %v3206 = vrot.slane %v3204, 3
        %v3207 = vor.u32 %v3203, %v3206
        %v3208 = vsel %vm3137, %v3198, %v3207
        %v3210 = vshrl.u32 %v2915, 16
        %v3212 = vrot.slane %v3210, 2
        %v3213 = vshll.u32 %v2915, 16
        %v3215 = vrot.slane %v3213, 3
        %v3216 = vor.u32 %v3212, %v3215
        %v3217 = vsel %vm3137, %v3207, %v3216
        %v3219 = vshrl.u32 %v3136, 16
        %v3221 = vrot.slane %v3219, 2
        %v3222 = vshll.u32 %v3136, 16
        %v3224 = vrot.slane %v3222, 3
        %v3225 = vor.u32 %v3221, %v3224
        %v3226 = vsel %vm3137, %v3216, %v3225
        %v3252 = vunpack.c.l.b16 %v3118
        %v3253 = vunpack.c.l.b16 %v3119
        %v3254 = vunpack.c.l.b16 %v3120
        %v3255 = vunpack.c.l.b16 %v3121
        %v3256 = vunpack.c.l.b16 %v3122
        %v3257 = vunpack.c.l.b16 %v3123
        %v3258 = vunpack.c.l.b16 %v3124
        %v3259 = vunpack.c.l.b16 %v3125
        %v3260 = vunpack.c.l.b16 %v3126
        %v3261 = vunpack.c.l.b16 %v3127
        %v3262 = vunpack.c.l.b16 %v3128
        %v3263 = vunpack.c.l.b16 %v3129
        %v3264 = vunpack.c.l.b16 %v3130
        %v3265 = vunpack.c.l.b16 %v3131
        %v3266 = vunpack.c.l.b16 %v3132
        %v3267 = vunpack.c.l.b16 %v3133
        %v3268 = vpack.c.b16 %v3253, %v3252
        %v3269 = vpack.c.b16 %v3255, %v3254
        %v3270 = vpack.c.b16 %v3257, %v3256
        %v3271 = vpack.c.b16 %v3259, %v3258
        %v3272 = vpack.c.b16 %v3261, %v3260
        %v3273 = vpack.c.b16 %v3263, %v3262
        %v3274 = vpack.c.b16 %v3265, %v3264
        %v3275 = vpack.c.b16 %v3267, %v3266
        %3284 = vmatprep.subr.bf16.mxu0 0
        %3285 = vmatpush1.bf16.msra.mxu0 %v3268
        %3286 = vmatprep.subr.bf16.mxu0 0
        %3287 = vmatpush1.bf16.msra.mxu0 %v3269
        %3288 = vmatprep.subr.bf16.mxu0 0
        %3289 = vmatpush1.bf16.msra.mxu0 %v3270
        %3290 = vmatprep.subr.bf16.mxu0 0
        %3291 = vmatpush1.bf16.msra.mxu0 %v3271
        %3292 = vmatprep.subr.bf16.mxu0 0
        %3293 = vmatpush1.bf16.msra.mxu0 %v3272
        %3294 = vmatprep.subr.bf16.mxu0 0
        %3295 = vmatpush1.bf16.msra.mxu0 %v3273
        %3296 = vmatprep.subr.bf16.mxu0 0
        %3297 = vmatpush1.bf16.msra.mxu0 %v3274
        %3298 = vmatprep.subr.bf16.mxu0 0
        %3299 = vmatpush1.bf16.msra.mxu0 %v3275
        %3300 = vmatprep.subr.bf16.mxu0 0
        %3301 = vmatpush1.bf16.msra.mxu0 0
        %3302 = vmatprep.subr.bf16.mxu0 0
        %3303 = vmatpush1.bf16.msra.mxu0 0
        %3304 = vmatprep.subr.bf16.mxu0 0
        %3305 = vmatpush1.bf16.msra.mxu0 0
        %3306 = vmatprep.subr.bf16.mxu0 0
        %3307 = vmatpush1.bf16.msra.mxu0 0
        %3308 = vmatprep.subr.bf16.mxu0 0
        %3309 = vmatpush1.bf16.msra.mxu0 0
        %3310 = vmatprep.subr.bf16.mxu0 0
        %3311 = vmatpush1.bf16.msra.mxu0 0
        %3312 = vmatprep.subr.bf16.mxu0 0
        %3313 = vmatpush1.bf16.msra.mxu0 0
        %3314 = vmatprep.subr.bf16.mxu0 0
        %3315 = vmatpush1.bf16.msra.mxu0 0
        %3316 = vmatprep.mubr.bf16.mxu0 0
        %3317 = vmatmul.mubr.bf16.gmra.mrb[0].mxu0 %v3154
        %v3318 = vpop.f32.mrb[0].mxu0
        %v3319 = vadd.f32 0.0, %v3318
        %v3320 = vpop.f32.mrb[0].mxu0
        %v3321 = vpop.f32.mrb[0].mxu0
        %v3322 = vadd.f32 0.0, %v3321
        %v3323 = vpop.f32.mrb[0].mxu0
        %3324 = vmatprep.mubr.bf16.mxu0 0
        %3325 = vmatmul.mubr.bf16.gmra.mrb[0].mxu0 %v3163
        %v3326 = vpop.f32.mrb[0].mxu0
        %v3327 = vadd.f32 0.0, %v3326
        %v3328 = vpop.f32.mrb[0].mxu0
        %v3329 = vpop.f32.mrb[0].mxu0
        %v3330 = vadd.f32 0.0, %v3329
        %v3331 = vpop.f32.mrb[0].mxu0
        %3332 = vmatprep.mubr.bf16.mxu0 0
        %3333 = vmatmul.mubr.bf16.gmra.mrb[0].mxu0 %v3172
        %v3334 = vpop.f32.mrb[0].mxu0
        %v3335 = vadd.f32 0.0, %v3334
        %v3336 = vpop.f32.mrb[0].mxu0
        %v3337 = vpop.f32.mrb[0].mxu0
        %v3338 = vadd.f32 0.0, %v3337
        %v3339 = vpop.f32.mrb[0].mxu0
        %3340 = vmatprep.mubr.bf16.mxu0 0
        %3341 = vmatmul.mubr.bf16.gmra.mrb[0].mxu0 %v3181
        %v3342 = vpop.f32.mrb[0].mxu0
        %v3343 = vadd.f32 0.0, %v3342
        %v3344 = vpop.f32.mrb[0].mxu0
        %v3345 = vpop.f32.mrb[0].mxu0
        %v3346 = vadd.f32 0.0, %v3345
        %v3347 = vpop.f32.mrb[0].mxu0
        %3348 = vmatprep.mubr.bf16.mxu0 0
        %3349 = vmatmul.mubr.bf16.gmra.mrb[0].mxu0 %v3190
        %v3350 = vpop.f32.mrb[0].mxu0
        %v3351 = vadd.f32 0.0, %v3350
        %v3352 = vpop.f32.mrb[0].mxu0
        %v3353 = vpop.f32.mrb[0].mxu0
        %v3354 = vadd.f32 0.0, %v3353
        %v3355 = vpop.f32.mrb[0].mxu0
        %3356 = vmatprep.mubr.bf16.mxu0 0
        %3357 = vmatmul.mubr.bf16.gmra.mrb[0].mxu0 %v3199
        %v3358 = vpop.f32.mrb[0].mxu0
        %v3359 = vadd.f32 0.0, %v3358
        %v3360 = vpop.f32.mrb[0].mxu0
        %v3361 = vpop.f32.mrb[0].mxu0
        %v3362 = vadd.f32 0.0, %v3361
        %v3363 = vpop.f32.mrb[0].mxu0
        %3364 = vmatprep.mubr.bf16.mxu0 0
        %3365 = vmatmul.mubr.bf16.gmra.mrb[0].mxu0 %v3208
        %v3366 = vpop.f32.mrb[0].mxu0
        %v3367 = vadd.f32 0.0, %v3366
        %v3368 = vpop.f32.mrb[0].mxu0
        %v3369 = vpop.f32.mrb[0].mxu0
        %v3370 = vadd.f32 0.0, %v3369
        %v3371 = vpop.f32.mrb[0].mxu0
        %3372 = vmatprep.mubr.bf16.mxu0 0
        %3373 = vmatmul.mubr.bf16.gmra.mrb[0].mxu0 %v3217
        %v3374 = vpop.f32.mrb[0].mxu0
        %v3375 = vadd.f32 0.0, %v3374
        %v3376 = vpop.f32.mrb[0].mxu0
        %v3377 = vpop.f32.mrb[0].mxu0
        %v3378 = vadd.f32 0.0, %v3377
        %v3379 = vpop.f32.mrb[0].mxu0
        %3380 = vmatprep.mubr.bf16.mxu0 0
        %3381 = vmatmul.mubr.bf16.gmra.mrb[0].mxu0 %v3226
        %v3382 = vpop.f32.mrb[0].mxu0
        %v3383 = vadd.f32 0.0, %v3382
        %v3384 = vpop.f32.mrb[0].mxu0
        %v3385 = vpop.f32.mrb[0].mxu0
        %v3386 = vadd.f32 0.0, %v3385
        %v3387 = vpop.f32.mrb[0].mxu0
        %3388 = vdwg.mxu0
        %v3389 = vadd.f32 %v3098, %v3319
        %v3390 = vadd.f32 %v3099, %v3322
        %v3391 = vadd.f32 %v3100, %v3327
        %v3392 = vadd.f32 %v3101, %v3330
        %v3393 = vadd.f32 %v3102, %v3335
        %v3394 = vadd.f32 %v3103, %v3338
        %v3395 = vadd.f32 %v3104, %v3343
        %v3396 = vadd.f32 %v3105, %v3346
        %v3397 = vadd.f32 %v3106, %v3351
        %v3398 = vadd.f32 %v3107, %v3354
        %v3399 = vadd.f32 %v3108, %v3359
        %v3400 = vadd.f32 %v3109, %v3362
        %v3401 = vadd.f32 %v3110, %v3367
        %v3402 = vadd.f32 %v3111, %v3370
        %v3403 = vadd.f32 %v3112, %v3375
        %v3404 = vadd.f32 %v3113, %v3378
        %v3405 = vadd.f32 %v3114, %v3383
        %v3406 = vadd.f32 %v3115, %v3386
        %v3407 = vld [vmem:[#allocation2 + $0x10] sm:$0x8]
        %s3408 = scalar_lea.vmem [#allocation7], 512
        %v3409 = vld [vmem:[%s3408] sm:$0xf]
        %v3410 = vld [vmem:[%s3408 + $0x4] sm:$0xf]
        %v3411 = vld [vmem:[%s3408 + $0x8] sm:$0xf]
        %v3412 = vld [vmem:[%s3408 + $0xc] sm:$0xf]
        %v3413 = vld [vmem:[%s3408 + $0x10] sm:$0xf]
        %v3414 = vld [vmem:[%s3408 + $0x14] sm:$0xf]
        %v3415 = vld [vmem:[%s3408 + $0x18] sm:$0xf]
        %v3416 = vld [vmem:[%s3408 + $0x1c] sm:$0xf]
        %v3417 = vld [vmem:[%s3408 + $0x20] sm:$0xf]
        %v3418 = vld [vmem:[%s3408 + $0x24] sm:$0xf]
        %v3419 = vld [vmem:[%s3408 + $0x28] sm:$0xf]
        %v3420 = vld [vmem:[%s3408 + $0x2c] sm:$0xf]
        %v3421 = vld [vmem:[%s3408 + $0x30] sm:$0xf]
        %v3422 = vld [vmem:[%s3408 + $0x34] sm:$0xf]
        %v3423 = vld [vmem:[%s3408 + $0x38] sm:$0xf]
        %v3424 = vld [vmem:[%s3408 + $0x3c] sm:$0xf]
        %v3426 = vunpack.c.l.b16 %v3407
        %v3427 = vpack.c.b16 %v2889, %v3426
        %vm3428 = vcmask 1044480
        %v3429 = vrot.slane %v3427, 3
        %v3430 = vrot.slane %v2908, 3
        %v3431 = vsel %vm3428, %v3429, %v3430
        %v3432 = vrot.slane %v2909, 3
        %v3433 = vsel %vm3428, %v3430, %v3432
        %v3434 = vrot.slane %v2910, 3
        %v3435 = vsel %vm3428, %v3432, %v3434
        %v3436 = vrot.slane %v2911, 3
        %v3437 = vsel %vm3428, %v3434, %v3436
        %v3438 = vrot.slane %v2912, 3
        %v3439 = vsel %vm3428, %v3436, %v3438
        %v3440 = vrot.slane %v2913, 3
        %v3441 = vsel %vm3428, %v3438, %v3440
        %v3442 = vrot.slane %v2914, 3
        %v3443 = vsel %vm3428, %v3440, %v3442
        %v3444 = vrot.slane %v2915, 3
        %v3445 = vsel %vm3428, %v3442, %v3444
        %v3446 = vrot.slane %v3136, 3
        %v3447 = vsel %vm3428, %v3444, %v3446
        %v3473 = vunpack.c.l.b16 %v3409
        %v3474 = vunpack.c.l.b16 %v3410
        %v3475 = vunpack.c.l.b16 %v3411
        %v3476 = vunpack.c.l.b16 %v3412
        %v3477 = vunpack.c.l.b16 %v3413
        %v3478 = vunpack.c.l.b16 %v3414
        %v3479 = vunpack.c.l.b16 %v3415
        %v3480 = vunpack.c.l.b16 %v3416
        %v3481 = vunpack.c.l.b16 %v3417
        %v3482 = vunpack.c.l.b16 %v3418
        %v3483 = vunpack.c.l.b16 %v3419
        %v3484 = vunpack.c.l.b16 %v3420
        %v3485 = vunpack.c.l.b16 %v3421
        %v3486 = vunpack.c.l.b16 %v3422
        %v3487 = vunpack.c.l.b16 %v3423
        %v3488 = vunpack.c.l.b16 %v3424
        %v3489 = vpack.c.b16 %v3474, %v3473
        %v3490 = vpack.c.b16 %v3476, %v3475
        %v3491 = vpack.c.b16 %v3478, %v3477
        %v3492 = vpack.c.b16 %v3480, %v3479
        %v3493 = vpack.c.b16 %v3482, %v3481
        %v3494 = vpack.c.b16 %v3484, %v3483
        %v3495 = vpack.c.b16 %v3486, %v3485
        %v3496 = vpack.c.b16 %v3488, %v3487
        %3505 = vmatprep.subr.bf16.mxu0 0
        %3506 = vmatpush1.bf16.msra.mxu0 %v3489
        %3507 = vmatprep.subr.bf16.mxu0 0
        %3508 = vmatpush1.bf16.msra.mxu0 %v3490
        %3509 = vmatprep.subr.bf16.mxu0 0
        %3510 = vmatpush1.bf16.msra.mxu0 %v3491
        %3511 = vmatprep.subr.bf16.mxu0 0
        %3512 = vmatpush1.bf16.msra.mxu0 %v3492
        %3513 = vmatprep.subr.bf16.mxu0 0
        %3514 = vmatpush1.bf16.msra.mxu0 %v3493
        %3515 = vmatprep.subr.bf16.mxu0 0
        %3516 = vmatpush1.bf16.msra.mxu0 %v3494
        %3517 = vmatprep.subr.bf16.mxu0 0
        %3518 = vmatpush1.bf16.msra.mxu0 %v3495
        %3519 = vmatprep.subr.bf16.mxu0 0
        %3520 = vmatpush1.bf16.msra.mxu0 %v3496
        %3521 = vmatprep.subr.bf16.mxu0 0
        %3522 = vmatpush1.bf16.msra.mxu0 0
        %3523 = vmatprep.subr.bf16.mxu0 0
        %3524 = vmatpush1.bf16.msra.mxu0 0
        %3525 = vmatprep.subr.bf16.mxu0 0
        %3526 = vmatpush1.bf16.msra.mxu0 0
        %3527 = vmatprep.subr.bf16.mxu0 0
        %3528 = vmatpush1.bf16.msra.mxu0 0
        %3529 = vmatprep.subr.bf16.mxu0 0
        %3530 = vmatpush1.bf16.msra.mxu0 0
        %3531 = vmatprep.subr.bf16.mxu0 0
        %3532 = vmatpush1.bf16.msra.mxu0 0
        %3533 = vmatprep.subr.bf16.mxu0 0
        %3534 = vmatpush1.bf16.msra.mxu0 0
        %3535 = vmatprep.subr.bf16.mxu0 0
        %3536 = vmatpush1.bf16.msra.mxu0 0
        %3537 = vmatprep.mubr.bf16.mxu0 0
        %3538 = vmatmul.mubr.bf16.gmra.mrb[0].mxu0 %v3431
        %v3539 = vpop.f32.mrb[0].mxu0
        %v3540 = vadd.f32 0.0, %v3539
        %v3541 = vpop.f32.mrb[0].mxu0
        %v3542 = vpop.f32.mrb[0].mxu0
        %v3543 = vadd.f32 0.0, %v3542
        %v3544 = vpop.f32.mrb[0].mxu0
        %3545 = vmatprep.mubr.bf16.mxu0 0
        %3546 = vmatmul.mubr.bf16.gmra.mrb[0].mxu0 %v3433
        %v3547 = vpop.f32.mrb[0].mxu0
        %v3548 = vadd.f32 0.0, %v3547
        %v3549 = vpop.f32.mrb[0].mxu0
        %v3550 = vpop.f32.mrb[0].mxu0
        %v3551 = vadd.f32 0.0, %v3550
        %v3552 = vpop.f32.mrb[0].mxu0
        %3553 = vmatprep.mubr.bf16.mxu0 0
        %3554 = vmatmul.mubr.bf16.gmra.mrb[0].mxu0 %v3435
        %v3555 = vpop.f32.mrb[0].mxu0
        %v3556 = vadd.f32 0.0, %v3555
        %v3557 = vpop.f32.mrb[0].mxu0
        %v3558 = vpop.f32.mrb[0].mxu0
        %v3559 = vadd.f32 0.0, %v3558
        %v3560 = vpop.f32.mrb[0].mxu0
        %3561 = vmatprep.mubr.bf16.mxu0 0
        %3562 = vmatmul.mubr.bf16.gmra.mrb[0].mxu0 %v3437
        %v3563 = vpop.f32.mrb[0].mxu0
        %v3564 = vadd.f32 0.0, %v3563
        %v3565 = vpop.f32.mrb[0].mxu0
        %v3566 = vpop.f32.mrb[0].mxu0
        %v3567 = vadd.f32 0.0, %v3566
        %v3568 = vpop.f32.mrb[0].mxu0
        %3569 = vmatprep.mubr.bf16.mxu0 0
        %3570 = vmatmul.mubr.bf16.gmra.mrb[0].mxu0 %v3439
        %v3571 = vpop.f32.mrb[0].mxu0
        %v3572 = vadd.f32 0.0, %v3571
        %v3573 = vpop.f32.mrb[0].mxu0
        %v3574 = vpop.f32.mrb[0].mxu0
        %v3575 = vadd.f32 0.0, %v3574
        %v3576 = vpop.f32.mrb[0].mxu0
        %3577 = vmatprep.mubr.bf16.mxu0 0
        %3578 = vmatmul.mubr.bf16.gmra.mrb[0].mxu0 %v3441
        %v3579 = vpop.f32.mrb[0].mxu0
        %v3580 = vadd.f32 0.0, %v3579
        %v3581 = vpop.f32.mrb[0].mxu0
        %v3582 = vpop.f32.mrb[0].mxu0
        %v3583 = vadd.f32 0.0, %v3582
        %v3584 = vpop.f32.mrb[0].mxu0
        %3585 = vmatprep.mubr.bf16.mxu0 0
        %3586 = vmatmul.mubr.bf16.gmra.mrb[0].mxu0 %v3443
        %v3587 = vpop.f32.mrb[0].mxu0
        %v3588 = vadd.f32 0.0, %v3587
        %v3589 = vpop.f32.mrb[0].mxu0
        %v3590 = vpop.f32.mrb[0].mxu0
        %v3591 = vadd.f32 0.0, %v3590
        %v3592 = vpop.f32.mrb[0].mxu0
        %3593 = vmatprep.mubr.bf16.mxu0 0
        %3594 = vmatmul.mubr.bf16.gmra.mrb[0].mxu0 %v3445
        %v3595 = vpop.f32.mrb[0].mxu0
        %v3596 = vadd.f32 0.0, %v3595
        %v3597 = vpop.f32.mrb[0].mxu0
        %v3598 = vpop.f32.mrb[0].mxu0
        %v3599 = vadd.f32 0.0, %v3598
        %v3600 = vpop.f32.mrb[0].mxu0
        %3601 = vmatprep.mubr.bf16.mxu0 0
        %3602 = vmatmul.mubr.bf16.gmra.mrb[0].mxu0 %v3447
        %v3603 = vpop.f32.mrb[0].mxu0
        %v3604 = vadd.f32 0.0, %v3603
        %v3605 = vpop.f32.mrb[0].mxu0
        %v3606 = vpop.f32.mrb[0].mxu0
        %v3607 = vadd.f32 0.0, %v3606
        %v3608 = vpop.f32.mrb[0].mxu0
        %3609 = vdwg.mxu0
        %v3610 = vadd.f32 %v3389, %v3540
        %v3611 = vadd.f32 %v3390, %v3543
        %v3612 = vadd.f32 %v3391, %v3548
        %v3613 = vadd.f32 %v3392, %v3551
        %v3614 = vadd.f32 %v3393, %v3556
        %v3615 = vadd.f32 %v3394, %v3559
        %v3616 = vadd.f32 %v3395, %v3564
        %v3617 = vadd.f32 %v3396, %v3567
        %v3618 = vadd.f32 %v3397, %v3572
        %v3619 = vadd.f32 %v3398, %v3575
        %v3620 = vadd.f32 %v3399, %v3580
        %v3621 = vadd.f32 %v3400, %v3583
        %v3622 = vadd.f32 %v3401, %v3588
        %v3623 = vadd.f32 %v3402, %v3591
        %v3624 = vadd.f32 %v3403, %v3596
        %v3625 = vadd.f32 %v3404, %v3599
        %v3626 = vadd.f32 %v3405, %v3604
        %v3627 = vadd.f32 %v3406, %v3607
        %v3629 = vlaneseq
        %v3630 = vshrl.u32 %v3629, 7
        %v3631 = vsub.s32 0, %v3630
        %v3632 = vrot.slane %v1314, %v3631
        %v3634 = vadd.f32 %v3610, %v3632
        %v3635 = vadd.f32 %v3611, %v3632
        %v3636 = vadd.f32 %v3612, %v3632
        %v3637 = vadd.f32 %v3613, %v3632
        %v3638 = vadd.f32 %v3614, %v3632
        %v3639 = vadd.f32 %v3615, %v3632
        %v3640 = vadd.f32 %v3616, %v3632
        %v3641 = vadd.f32 %v3617, %v3632
        %v3642 = vadd.f32 %v3618, %v3632
        %v3643 = vadd.f32 %v3619, %v3632
        %v3644 = vadd.f32 %v3620, %v3632
        %v3645 = vadd.f32 %v3621, %v3632
        %v3646 = vadd.f32 %v3622, %v3632
        %v3647 = vadd.f32 %v3623, %v3632
        %v3648 = vadd.f32 %v3624, %v3632
        %v3649 = vadd.f32 %v3625, %v3632
        %v3650 = vadd.f32 %v3626, %v3632
        %v3651 = vadd.f32 %v3627, %v3632
        %v3652 = vmax.f32 %v3634, 0.0
        %v3653 = vmax.f32 %v3635, 0.0
        %v3654 = vmax.f32 %v3636, 0.0
        %v3655 = vmax.f32 %v3637, 0.0
        %v3656 = vmax.f32 %v3638, 0.0
        %v3657 = vmax.f32 %v3639, 0.0
        %v3658 = vmax.f32 %v3640, 0.0
        %v3659 = vmax.f32 %v3641, 0.0
        %v3660 = vmax.f32 %v3642, 0.0
        %v3661 = vmax.f32 %v3643, 0.0
        %v3662 = vmax.f32 %v3644, 0.0
        %v3663 = vmax.f32 %v3645, 0.0
        %v3664 = vmax.f32 %v3646, 0.0
        %v3665 = vmax.f32 %v3647, 0.0
        %v3666 = vmax.f32 %v3648, 0.0
        %v3667 = vmax.f32 %v3649, 0.0
        %v3668 = vmax.f32 %v3650, 0.0
        %v3669 = vmax.f32 %v3651, 0.0
        %v3670 = vsel %vm1296, %v3652, 0.0
        %v3671 = vsel %vm1297, %v3653, 0.0
        %v3672 = vsel %vm1298, %v3654, 0.0
        %v3673 = vsel %vm1299, %v3655, 0.0
        %v3674 = vsel %vm1300, %v3656, 0.0
        %v3675 = vsel %vm1301, %v3657, 0.0
        %v3676 = vsel %vm1302, %v3658, 0.0
        %v3677 = vsel %vm1303, %v3659, 0.0
        %v3678 = vsel %vm1304, %v3660, 0.0
        %v3679 = vsel %vm1305, %v3661, 0.0
        %v3680 = vsel %vm1306, %v3662, 0.0
        %v3681 = vsel %vm1307, %v3663, 0.0
        %v3682 = vsel %vm1308, %v3664, 0.0
        %v3683 = vsel %vm1309, %v3665, 0.0
        %v3684 = vsel %vm1310, %v3666, 0.0
        %v3685 = vsel %vm1311, %v3667, 0.0
        %v3686 = vsel %vm1312, %v3668, 0.0
        %v3687 = vsel %vm1313, %v3669, 0.0
        %v3688 = vpack.c.bf16 %v3671, %v3670
        %v3689 = vpack.c.bf16 %v3673, %v3672
        %v3690 = vpack.c.bf16 %v3675, %v3674
        %v3691 = vpack.c.bf16 %v3677, %v3676
        %v3692 = vpack.c.bf16 %v3679, %v3678
        %v3693 = vpack.c.bf16 %v3681, %v3680
        %v3694 = vpack.c.bf16 %v3683, %v3682
        %v3695 = vpack.c.bf16 %v3685, %v3684
        %v3696 = vpack.c.bf16 %v3687, %v3686
        %v3706 = vunpack.c.l.b16 %v3688
        %v3707 = vunpack.c.h.b16 %v3688
        %v3708 = vunpack.c.l.b16 %v3689
        %v3709 = vunpack.c.h.b16 %v3689
        %v3710 = vunpack.c.l.b16 %v3690
        %v3711 = vunpack.c.h.b16 %v3690
        %v3712 = vunpack.c.l.b16 %v3691
        %v3713 = vunpack.c.h.b16 %v3691
        %v3714 = vunpack.c.l.b16 %v3692
        %v3715 = vunpack.c.h.b16 %v3692
        %v3716 = vunpack.c.l.b16 %v3693
        %v3717 = vunpack.c.h.b16 %v3693
        %v3718 = vunpack.c.l.b16 %v3694
        %v3719 = vunpack.c.h.b16 %v3694
        %v3720 = vunpack.c.l.b16 %v3695
        %v3721 = vunpack.c.h.b16 %v3695
        %v3722 = vunpack.c.l.b16 %v3696
        %v3723 = vunpack.c.h.b16 %v3696
        %v3724 = vpack.c.b16 %v3706, %v3706
        %v3725 = vpack.c.b16 %v3707, %v3707
        %v3726 = vpack.c.b16 %v3708, %v3708
        %v3727 = vpack.c.b16 %v3709, %v3709
        %v3728 = vpack.c.b16 %v3710, %v3710
        %v3729 = vpack.c.b16 %v3711, %v3711
        %v3730 = vpack.c.b16 %v3712, %v3712
        %v3731 = vpack.c.b16 %v3713, %v3713
        %v3732 = vpack.c.b16 %v3714, %v3714
        %v3733 = vpack.c.b16 %v3715, %v3715
        %v3734 = vpack.c.b16 %v3716, %v3716
        %v3735 = vpack.c.b16 %v3717, %v3717
        %v3736 = vpack.c.b16 %v3718, %v3718
        %v3737 = vpack.c.b16 %v3719, %v3719
        %v3738 = vpack.c.b16 %v3720, %v3720
        %v3739 = vpack.c.b16 %v3721, %v3721
        %v3740 = vpack.c.b16 %v3722, %v3722
        %v3741 = vpack.c.b16 %v3723, %v3723
        %v3743 = vshrl.u32 %v3724, 16
        %v3745 = vrot.slane %v3743, 6
        %v3746 = vshll.u32 %v3724, 16
        %v3748 = vrot.slane %v3746, 7
        %v3749 = vor.u32 %v3745, %v3748
        %v3750 = vrot.slane %v3749, 4
        %v3752 = vshrl.u32 %v3725, 16
        %v3754 = vrot.slane %v3752, 6
        %v3755 = vshll.u32 %v3725, 16
        %v3757 = vrot.slane %v3755, 7
        %v3758 = vor.u32 %v3754, %v3757
        %v3759 = vsel %vm369, %v3750, %v3758
        %v3760 = vrot.slane %v3758, 4
        %v3762 = vshrl.u32 %v3726, 16
        %v3764 = vrot.slane %v3762, 6
        %v3765 = vshll.u32 %v3726, 16
        %v3767 = vrot.slane %v3765, 7
        %v3768 = vor.u32 %v3764, %v3767
        %v3769 = vsel %vm369, %v3760, %v3768
        %v3770 = vrot.slane %v3768, 4
        %v3772 = vshrl.u32 %v3727, 16
        %v3774 = vrot.slane %v3772, 6
        %v3775 = vshll.u32 %v3727, 16
        %v3777 = vrot.slane %v3775, 7
        %v3778 = vor.u32 %v3774, %v3777
        %v3779 = vsel %vm369, %v3770, %v3778
        %v3780 = vrot.slane %v3778, 4
        %v3782 = vshrl.u32 %v3728, 16
        %v3784 = vrot.slane %v3782, 6
        %v3785 = vshll.u32 %v3728, 16
        %v3787 = vrot.slane %v3785, 7
        %v3788 = vor.u32 %v3784, %v3787
        %v3789 = vsel %vm369, %v3780, %v3788
        %v3790 = vrot.slane %v3788, 4
        %v3792 = vshrl.u32 %v3729, 16
        %v3794 = vrot.slane %v3792, 6
        %v3795 = vshll.u32 %v3729, 16
        %v3797 = vrot.slane %v3795, 7
        %v3798 = vor.u32 %v3794, %v3797
        %v3799 = vsel %vm369, %v3790, %v3798
        %v3800 = vrot.slane %v3798, 4
        %v3802 = vshrl.u32 %v3730, 16
        %v3804 = vrot.slane %v3802, 6
        %v3805 = vshll.u32 %v3730, 16
        %v3807 = vrot.slane %v3805, 7
        %v3808 = vor.u32 %v3804, %v3807
        %v3809 = vsel %vm369, %v3800, %v3808
        %v3810 = vrot.slane %v3808, 4
        %v3812 = vshrl.u32 %v3731, 16
        %v3814 = vrot.slane %v3812, 6
        %v3815 = vshll.u32 %v3731, 16
        %v3817 = vrot.slane %v3815, 7
        %v3818 = vor.u32 %v3814, %v3817
        %v3819 = vsel %vm369, %v3810, %v3818
        %v3820 = vrot.slane %v3818, 4
        %v3822 = vshrl.u32 %v3732, 16
        %v3824 = vrot.slane %v3822, 6
        %v3825 = vshll.u32 %v3732, 16
        %v3827 = vrot.slane %v3825, 7
        %v3828 = vor.u32 %v3824, %v3827
        %v3829 = vsel %vm369, %v3820, %v3828
        %v3830 = vrot.slane %v3828, 4
        %v3832 = vshrl.u32 %v3733, 16
        %v3834 = vrot.slane %v3832, 6
        %v3835 = vshll.u32 %v3733, 16
        %v3837 = vrot.slane %v3835, 7
        %v3838 = vor.u32 %v3834, %v3837
        %v3839 = vsel %vm369, %v3830, %v3838
        %v3840 = vrot.slane %v3838, 4
        %v3842 = vshrl.u32 %v3734, 16
        %v3844 = vrot.slane %v3842, 6
        %v3845 = vshll.u32 %v3734, 16
        %v3847 = vrot.slane %v3845, 7
        %v3848 = vor.u32 %v3844, %v3847
        %v3849 = vsel %vm369, %v3840, %v3848
        %v3850 = vrot.slane %v3848, 4
        %v3852 = vshrl.u32 %v3735, 16
        %v3854 = vrot.slane %v3852, 6
        %v3855 = vshll.u32 %v3735, 16
        %v3857 = vrot.slane %v3855, 7
        %v3858 = vor.u32 %v3854, %v3857
        %v3859 = vsel %vm369, %v3850, %v3858
        %v3860 = vrot.slane %v3858, 4
        %v3862 = vshrl.u32 %v3736, 16
        %v3864 = vrot.slane %v3862, 6
        %v3865 = vshll.u32 %v3736, 16
        %v3867 = vrot.slane %v3865, 7
        %v3868 = vor.u32 %v3864, %v3867
        %v3869 = vsel %vm369, %v3860, %v3868
        %v3870 = vrot.slane %v3868, 4
        %v3872 = vshrl.u32 %v3737, 16
        %v3874 = vrot.slane %v3872, 6
        %v3875 = vshll.u32 %v3737, 16
        %v3877 = vrot.slane %v3875, 7
        %v3878 = vor.u32 %v3874, %v3877
        %v3879 = vsel %vm369, %v3870, %v3878
        %v3880 = vrot.slane %v3878, 4
        %v3882 = vshrl.u32 %v3738, 16
        %v3884 = vrot.slane %v3882, 6
        %v3885 = vshll.u32 %v3738, 16
        %v3887 = vrot.slane %v3885, 7
        %v3888 = vor.u32 %v3884, %v3887
        %v3889 = vsel %vm369, %v3880, %v3888
        %v3890 = vrot.slane %v3888, 4
        %v3892 = vshrl.u32 %v3739, 16
        %v3894 = vrot.slane %v3892, 6
        %v3895 = vshll.u32 %v3739, 16
        %v3897 = vrot.slane %v3895, 7
        %v3898 = vor.u32 %v3894, %v3897
        %v3899 = vsel %vm369, %v3890, %v3898
        %v3900 = vrot.slane %v3898, 4
        %v3902 = vshrl.u32 %v3740, 16
        %v3904 = vrot.slane %v3902, 6
        %v3905 = vshll.u32 %v3740, 16
        %v3907 = vrot.slane %v3905, 7
        %v3908 = vor.u32 %v3904, %v3907
        %v3909 = vsel %vm369, %v3900, %v3908
        %v3910 = vrot.slane %v3908, 4
        %v3912 = vshrl.u32 %v3741, 16
        %v3914 = vrot.slane %v3912, 6
        %v3915 = vshll.u32 %v3741, 16
        %v3917 = vrot.slane %v3915, 7
        %v3918 = vor.u32 %v3914, %v3917
        %v3919 = vsel %vm369, %v3910, %v3918
        %v3920 = vrot.slane %v3918, 4
        %v3940 = vld [vmem:[#allocation3 + $0x8] sm:$0xe]
        %v3941 = vsel %vm394, %v3749, %v3940
        %3942 = vst [vmem:[#allocation3 + $0x8] sm:$0xe] %v3941
        %3943 = vst [vmem:[#allocation3 + $0xc] sm:$0xf] %v3759
        %3944 = vst [vmem:[#allocation3 + $0x10] sm:$0xf] %v3769
        %3945 = vst [vmem:[#allocation3 + $0x14] sm:$0xf] %v3779
        %3946 = vst [vmem:[#allocation3 + $0x18] sm:$0xf] %v3789
        %3947 = vst [vmem:[#allocation3 + $0x1c] sm:$0xf] %v3799
        %3948 = vst [vmem:[#allocation3 + $0x20] sm:$0xf] %v3809
        %3949 = vst [vmem:[#allocation3 + $0x24] sm:$0xf] %v3819
        %3950 = vst [vmem:[#allocation3 + $0x28] sm:$0xf] %v3829
        %3951 = vst [vmem:[#allocation3 + $0x2c] sm:$0xf] %v3839
        %3952 = vst [vmem:[#allocation3 + $0x30] sm:$0xf] %v3849
        %3953 = vst [vmem:[#allocation3 + $0x34] sm:$0xf] %v3859
        %3954 = vst [vmem:[#allocation3 + $0x38] sm:$0xf] %v3869
        %3955 = vst [vmem:[#allocation3 + $0x3c] sm:$0xf] %v3879
        %3956 = vst [vmem:[#allocation3 + $0x40] sm:$0xf] %v3889
        %3957 = vst [vmem:[#allocation3 + $0x44] sm:$0xf] %v3899
        %3958 = vst [vmem:[#allocation3 + $0x48] sm:$0xf] %v3909
        %3959 = vst [vmem:[#allocation3 + $0x4c] sm:$0xf] %v3919
        %v3960 = vld [vmem:[#allocation3 + $0x50] sm:$0x3]
        %v3961 = vsel %vm400, %v3920, %v3960
        %3962 = vst [vmem:[#allocation3 + $0x50] sm:$0x3] %v3961
        %v3963 = vld [vmem:[#allocation2 + $0x48] sm:$0xf]
        %v3964 = vld [vmem:[#allocation2 + $0x4c] sm:$0xf]
        %v3965 = vld [vmem:[#allocation2 + $0x50] sm:$0xf]
        %v3966 = vld [vmem:[#allocation2 + $0x54] sm:$0xf]
        %v3967 = vld [vmem:[#allocation2 + $0x58] sm:$0xf]
        %v3968 = vld [vmem:[#allocation2 + $0x5c] sm:$0xf]
        %v3969 = vld [vmem:[#allocation2 + $0x60] sm:$0xf]
        %v3970 = vld [vmem:[#allocation2 + $0x64] sm:$0xf]
        %v3971 = vld [vmem:[#allocation2 + $0x68] sm:$0xf]
        %v3972 = vld [vmem:[#allocation2 + $0x6c] sm:$0xf]
        %v3973 = vld [vmem:[#allocation2 + $0x70] sm:$0xf]
        %v3974 = vld [vmem:[#allocation2 + $0x74] sm:$0xf]
        %v3975 = vld [vmem:[#allocation2 + $0x78] sm:$0xf]
        %v3976 = vld [vmem:[#allocation2 + $0x7c] sm:$0xf]
        %v3977 = vld [vmem:[#allocation2 + $0x80] sm:$0xf]
        %v3978 = vld [vmem:[#allocation2 + $0x84] sm:$0xf]
        %v3979 = vld [vmem:[#allocation2 + $0x88] sm:$0xf]
        %v3980 = vld [vmem:[#allocation2 + $0x8c] sm:$0xf]
        %v3981 = vld [vmem:[#allocation7] sm:$0xf]
        %v3982 = vld [vmem:[#allocation7 + $0x4] sm:$0xf]
        %v3983 = vld [vmem:[#allocation7 + $0x8] sm:$0xf]
        %v3984 = vld [vmem:[#allocation7 + $0xc] sm:$0xf]
        %v3985 = vld [vmem:[#allocation7 + $0x10] sm:$0xf]
        %v3986 = vld [vmem:[#allocation7 + $0x14] sm:$0xf]
        %v3987 = vld [vmem:[#allocation7 + $0x18] sm:$0xf]
        %v3988 = vld [vmem:[#allocation7 + $0x1c] sm:$0xf]
        %v3989 = vld [vmem:[#allocation7 + $0x20] sm:$0xf]
        %v3990 = vld [vmem:[#allocation7 + $0x24] sm:$0xf]
        %v3991 = vld [vmem:[#allocation7 + $0x28] sm:$0xf]
        %v3992 = vld [vmem:[#allocation7 + $0x2c] sm:$0xf]
        %v3993 = vld [vmem:[#allocation7 + $0x30] sm:$0xf]
        %v3994 = vld [vmem:[#allocation7 + $0x34] sm:$0xf]
        %v3995 = vld [vmem:[#allocation7 + $0x38] sm:$0xf]
        %v3996 = vld [vmem:[#allocation7 + $0x3c] sm:$0xf]
        %v3997 = vld [vmem:[#allocation2 + $0x90] sm:$0x1]
        %v3998 = vld [vmem:[%s1351] sm:$0xf]
        %v3999 = vld [vmem:[%s1351 + $0x4] sm:$0xf]
        %v4000 = vld [vmem:[%s1351 + $0x8] sm:$0xf]
        %v4001 = vld [vmem:[%s1351 + $0xc] sm:$0xf]
        %v4002 = vld [vmem:[%s1351 + $0x10] sm:$0xf]
        %v4003 = vld [vmem:[%s1351 + $0x14] sm:$0xf]
        %v4004 = vld [vmem:[%s1351 + $0x18] sm:$0xf]
        %v4005 = vld [vmem:[%s1351 + $0x1c] sm:$0xf]
        %v4006 = vld [vmem:[%s1351 + $0x20] sm:$0xf]
        %v4007 = vld [vmem:[%s1351 + $0x24] sm:$0xf]
        %v4008 = vld [vmem:[%s1351 + $0x28] sm:$0xf]
        %v4009 = vld [vmem:[%s1351 + $0x2c] sm:$0xf]
        %v4010 = vld [vmem:[%s1351 + $0x30] sm:$0xf]
        %v4011 = vld [vmem:[%s1351 + $0x34] sm:$0xf]
        %v4012 = vld [vmem:[%s1351 + $0x38] sm:$0xf]
        %v4013 = vld [vmem:[%s1351 + $0x3c] sm:$0xf]
        %v4033 = vunpack.c.l.b16 %v3963
        %v4034 = vunpack.c.l.b16 %v3964
        %v4035 = vunpack.c.l.b16 %v3965
        %v4036 = vunpack.c.l.b16 %v3966
        %v4037 = vunpack.c.l.b16 %v3967
        %v4038 = vunpack.c.l.b16 %v3968
        %v4039 = vunpack.c.l.b16 %v3969
        %v4040 = vunpack.c.l.b16 %v3970
        %v4041 = vunpack.c.l.b16 %v3971
        %v4042 = vunpack.c.l.b16 %v3972
        %v4043 = vunpack.c.l.b16 %v3973
        %v4044 = vunpack.c.l.b16 %v3974
        %v4045 = vunpack.c.l.b16 %v3975
        %v4046 = vunpack.c.l.b16 %v3976
        %v4047 = vunpack.c.l.b16 %v3977
        %v4048 = vunpack.c.l.b16 %v3978
        %v4049 = vunpack.c.l.b16 %v3979
        %v4050 = vunpack.c.l.b16 %v3980
        %v4051 = vunpack.c.l.b16 %v3997
        %v4052 = vpack.c.b16 %v4034, %v4033
        %v4053 = vpack.c.b16 %v4036, %v4035
        %v4054 = vpack.c.b16 %v4038, %v4037
        %v4055 = vpack.c.b16 %v4040, %v4039
        %v4056 = vpack.c.b16 %v4042, %v4041
        %v4057 = vpack.c.b16 %v4044, %v4043
        %v4058 = vpack.c.b16 %v4046, %v4045
        %v4059 = vpack.c.b16 %v4048, %v4047
        %v4060 = vpack.c.b16 %v4050, %v4049
        %v4061 = vpack.c.b16 %v4051, %v4051
        %v4063 = vshrl.u32 %v4052, 16
        %v4065 = vshll.u32 %v4052, 16
        %v4067 = vrot.slane %v4065, 1
        %v4068 = vor.u32 %v4063, %v4067
        %v4070 = vshll.u32 %v4053, 16
        %v4072 = vrot.slane %v4070, 1
        %v4073 = vsel %vm1416, %v4068, %v4072
        %v4074 = vshrl.u32 %v4053, 16
        %v4076 = vor.u32 %v4074, %v4072
        %v4078 = vshll.u32 %v4054, 16
        %v4080 = vrot.slane %v4078, 1
        %v4081 = vsel %vm1416, %v4076, %v4080
        %v4082 = vshrl.u32 %v4054, 16
        %v4084 = vor.u32 %v4082, %v4080
        %v4086 = vshll.u32 %v4055, 16
        %v4088 = vrot.slane %v4086, 1
        %v4089 = vsel %vm1416, %v4084, %v4088
        %v4090 = vshrl.u32 %v4055, 16
        %v4092 = vor.u32 %v4090, %v4088
        %v4094 = vshll.u32 %v4056, 16
        %v4096 = vrot.slane %v4094, 1
        %v4097 = vsel %vm1416, %v4092, %v4096
        %v4098 = vshrl.u32 %v4056, 16
        %v4100 = vor.u32 %v4098, %v4096
        %v4102 = vshll.u32 %v4057, 16
        %v4104 = vrot.slane %v4102, 1
        %v4105 = vsel %vm1416, %v4100, %v4104
        %v4106 = vshrl.u32 %v4057, 16
        %v4108 = vor.u32 %v4106, %v4104
        %v4110 = vshll.u32 %v4058, 16
        %v4112 = vrot.slane %v4110, 1
        %v4113 = vsel %vm1416, %v4108, %v4112
        %v4114 = vshrl.u32 %v4058, 16
        %v4116 = vor.u32 %v4114, %v4112
        %v4118 = vshll.u32 %v4059, 16
        %v4120 = vrot.slane %v4118, 1
        %v4121 = vsel %vm1416, %v4116, %v4120
        %v4122 = vshrl.u32 %v4059, 16
        %v4124 = vor.u32 %v4122, %v4120
        %v4126 = vshll.u32 %v4060, 16
        %v4128 = vrot.slane %v4126, 1
        %v4129 = vsel %vm1416, %v4124, %v4128
        %v4130 = vshrl.u32 %v4060, 16
        %v4132 = vor.u32 %v4130, %v4128
        %v4134 = vshll.u32 %v4061, 16
        %v4136 = vrot.slane %v4134, 1
        %v4137 = vsel %vm1416, %v4132, %v4136
        %v4163 = vunpack.c.l.b16 %v3998
        %v4164 = vunpack.c.l.b16 %v3999
        %v4165 = vunpack.c.l.b16 %v4000
        %v4166 = vunpack.c.l.b16 %v4001
        %v4167 = vunpack.c.l.b16 %v4002
        %v4168 = vunpack.c.l.b16 %v4003
        %v4169 = vunpack.c.l.b16 %v4004
        %v4170 = vunpack.c.l.b16 %v4005
        %v4171 = vunpack.c.l.b16 %v4006
        %v4172 = vunpack.c.l.b16 %v4007
        %v4173 = vunpack.c.l.b16 %v4008
        %v4174 = vunpack.c.l.b16 %v4009
        %v4175 = vunpack.c.l.b16 %v4010
        %v4176 = vunpack.c.l.b16 %v4011
        %v4177 = vunpack.c.l.b16 %v4012
        %v4178 = vunpack.c.l.b16 %v4013
        %v4179 = vpack.c.b16 %v4164, %v4163
        %v4180 = vpack.c.b16 %v4166, %v4165
        %v4181 = vpack.c.b16 %v4168, %v4167
        %v4182 = vpack.c.b16 %v4170, %v4169
        %v4183 = vpack.c.b16 %v4172, %v4171
        %v4184 = vpack.c.b16 %v4174, %v4173
        %v4185 = vpack.c.b16 %v4176, %v4175
        %v4186 = vpack.c.b16 %v4178, %v4177
        %4195 = vmatprep.subr.bf16.mxu0 0
        %4196 = vmatpush1.bf16.msra.mxu0 %v4179
        %4197 = vmatprep.subr.bf16.mxu0 0
        %4198 = vmatpush1.bf16.msra.mxu0 %v4180
        %4199 = vmatprep.subr.bf16.mxu0 0
        %4200 = vmatpush1.bf16.msra.mxu0 %v4181
        %4201 = vmatprep.subr.bf16.mxu0 0
        %4202 = vmatpush1.bf16.msra.mxu0 %v4182
        %4203 = vmatprep.subr.bf16.mxu0 0
        %4204 = vmatpush1.bf16.msra.mxu0 %v4183
        %4205 = vmatprep.subr.bf16.mxu0 0
        %4206 = vmatpush1.bf16.msra.mxu0 %v4184
        %4207 = vmatprep.subr.bf16.mxu0 0
        %4208 = vmatpush1.bf16.msra.mxu0 %v4185
        %4209 = vmatprep.subr.bf16.mxu0 0
        %4210 = vmatpush1.bf16.msra.mxu0 %v4186
        %4211 = vmatprep.subr.bf16.mxu0 0
        %4212 = vmatpush1.bf16.msra.mxu0 0
        %4213 = vmatprep.subr.bf16.mxu0 0
        %4214 = vmatpush1.bf16.msra.mxu0 0
        %4215 = vmatprep.subr.bf16.mxu0 0
        %4216 = vmatpush1.bf16.msra.mxu0 0
        %4217 = vmatprep.subr.bf16.mxu0 0
        %4218 = vmatpush1.bf16.msra.mxu0 0
        %4219 = vmatprep.subr.bf16.mxu0 0
        %4220 = vmatpush1.bf16.msra.mxu0 0
        %4221 = vmatprep.subr.bf16.mxu0 0
        %4222 = vmatpush1.bf16.msra.mxu0 0
        %4223 = vmatprep.subr.bf16.mxu0 0
        %4224 = vmatpush1.bf16.msra.mxu0 0
        %4225 = vmatprep.subr.bf16.mxu0 0
        %4226 = vmatpush1.bf16.msra.mxu0 0
        %4227 = vmatprep.mubr.bf16.mxu0 0
        %4228 = vmatmul.mubr.bf16.gmra.mrb[0].mxu0 %v4073
        %v4229 = vpop.f32.mrb[0].mxu0
        %v4230 = vadd.f32 0.0, %v4229
        %v4231 = vpop.f32.mrb[0].mxu0
        %v4232 = vpop.f32.mrb[0].mxu0
        %v4233 = vadd.f32 0.0, %v4232
        %v4234 = vpop.f32.mrb[0].mxu0
        %4235 = vmatprep.mubr.bf16.mxu0 0
        %4236 = vmatmul.mubr.bf16.gmra.mrb[0].mxu0 %v4081
        %v4237 = vpop.f32.mrb[0].mxu0
        %v4238 = vadd.f32 0.0, %v4237
        %v4239 = vpop.f32.mrb[0].mxu0
        %v4240 = vpop.f32.mrb[0].mxu0
        %v4241 = vadd.f32 0.0, %v4240
        %v4242 = vpop.f32.mrb[0].mxu0
        %4243 = vmatprep.mubr.bf16.mxu0 0
        %4244 = vmatmul.mubr.bf16.gmra.mrb[0].mxu0 %v4089
        %v4245 = vpop.f32.mrb[0].mxu0
        %v4246 = vadd.f32 0.0, %v4245
        %v4247 = vpop.f32.mrb[0].mxu0
        %v4248 = vpop.f32.mrb[0].mxu0
        %v4249 = vadd.f32 0.0, %v4248
        %v4250 = vpop.f32.mrb[0].mxu0
        %4251 = vmatprep.mubr.bf16.mxu0 0
        %4252 = vmatmul.mubr.bf16.gmra.mrb[0].mxu0 %v4097
        %v4253 = vpop.f32.mrb[0].mxu0
        %v4254 = vadd.f32 0.0, %v4253
        %v4255 = vpop.f32.mrb[0].mxu0
        %v4256 = vpop.f32.mrb[0].mxu0
        %v4257 = vadd.f32 0.0, %v4256
        %v4258 = vpop.f32.mrb[0].mxu0
        %4259 = vmatprep.mubr.bf16.mxu0 0
        %4260 = vmatmul.mubr.bf16.gmra.mrb[0].mxu0 %v4105
        %v4261 = vpop.f32.mrb[0].mxu0
        %v4262 = vadd.f32 0.0, %v4261
        %v4263 = vpop.f32.mrb[0].mxu0
        %v4264 = vpop.f32.mrb[0].mxu0
        %v4265 = vadd.f32 0.0, %v4264
        %v4266 = vpop.f32.mrb[0].mxu0
        %4267 = vmatprep.mubr.bf16.mxu0 0
        %4268 = vmatmul.mubr.bf16.gmra.mrb[0].mxu0 %v4113
        %v4269 = vpop.f32.mrb[0].mxu0
        %v4270 = vadd.f32 0.0, %v4269
        %v4271 = vpop.f32.mrb[0].mxu0
        %v4272 = vpop.f32.mrb[0].mxu0
        %v4273 = vadd.f32 0.0, %v4272
        %v4274 = vpop.f32.mrb[0].mxu0
        %4275 = vmatprep.mubr.bf16.mxu0 0
        %4276 = vmatmul.mubr.bf16.gmra.mrb[0].mxu0 %v4121
        %v4277 = vpop.f32.mrb[0].mxu0
        %v4278 = vadd.f32 0.0, %v4277
        %v4279 = vpop.f32.mrb[0].mxu0
        %v4280 = vpop.f32.mrb[0].mxu0
        %v4281 = vadd.f32 0.0, %v4280
        %v4282 = vpop.f32.mrb[0].mxu0
        %4283 = vmatprep.mubr.bf16.mxu0 0
        %4284 = vmatmul.mubr.bf16.gmra.mrb[0].mxu0 %v4129
        %v4285 = vpop.f32.mrb[0].mxu0
        %v4286 = vadd.f32 0.0, %v4285
        %v4287 = vpop.f32.mrb[0].mxu0
        %v4288 = vpop.f32.mrb[0].mxu0
        %v4289 = vadd.f32 0.0, %v4288
        %v4290 = vpop.f32.mrb[0].mxu0
        %4291 = vmatprep.mubr.bf16.mxu0 0
        %4292 = vmatmul.mubr.bf16.gmra.mrb[0].mxu0 %v4137
        %v4293 = vpop.f32.mrb[0].mxu0
        %v4294 = vadd.f32 0.0, %v4293
        %v4295 = vpop.f32.mrb[0].mxu0
        %v4296 = vpop.f32.mrb[0].mxu0
        %v4297 = vadd.f32 0.0, %v4296
        %v4298 = vpop.f32.mrb[0].mxu0
        %4299 = vdwg.mxu0
        %v4325 = vunpack.c.l.b16 %v3981
        %v4326 = vunpack.c.l.b16 %v3982
        %v4327 = vunpack.c.l.b16 %v3983
        %v4328 = vunpack.c.l.b16 %v3984
        %v4329 = vunpack.c.l.b16 %v3985
        %v4330 = vunpack.c.l.b16 %v3986
        %v4331 = vunpack.c.l.b16 %v3987
        %v4332 = vunpack.c.l.b16 %v3988
        %v4333 = vunpack.c.l.b16 %v3989
        %v4334 = vunpack.c.l.b16 %v3990
        %v4335 = vunpack.c.l.b16 %v3991
        %v4336 = vunpack.c.l.b16 %v3992
        %v4337 = vunpack.c.l.b16 %v3993
        %v4338 = vunpack.c.l.b16 %v3994
        %v4339 = vunpack.c.l.b16 %v3995
        %v4340 = vunpack.c.l.b16 %v3996
        %v4341 = vpack.c.b16 %v4326, %v4325
        %v4342 = vpack.c.b16 %v4328, %v4327
        %v4343 = vpack.c.b16 %v4330, %v4329
        %v4344 = vpack.c.b16 %v4332, %v4331
        %v4345 = vpack.c.b16 %v4334, %v4333
        %v4346 = vpack.c.b16 %v4336, %v4335
        %v4347 = vpack.c.b16 %v4338, %v4337
        %v4348 = vpack.c.b16 %v4340, %v4339
        %4357 = vmatprep.subr.bf16.mxu0 0
        %4358 = vmatpush1.bf16.msra.mxu0 %v4341
        %4359 = vmatprep.subr.bf16.mxu0 0
        %4360 = vmatpush1.bf16.msra.mxu0 %v4342
        %4361 = vmatprep.subr.bf16.mxu0 0
        %4362 = vmatpush1.bf16.msra.mxu0 %v4343
        %4363 = vmatprep.subr.bf16.mxu0 0
        %4364 = vmatpush1.bf16.msra.mxu0 %v4344
        %4365 = vmatprep.subr.bf16.mxu0 0
        %4366 = vmatpush1.bf16.msra.mxu0 %v4345
        %4367 = vmatprep.subr.bf16.mxu0 0
        %4368 = vmatpush1.bf16.msra.mxu0 %v4346
        %4369 = vmatprep.subr.bf16.mxu0 0
        %4370 = vmatpush1.bf16.msra.mxu0 %v4347
        %4371 = vmatprep.subr.bf16.mxu0 0
        %4372 = vmatpush1.bf16.msra.mxu0 %v4348
        %4373 = vmatprep.subr.bf16.mxu0 0
        %4374 = vmatpush1.bf16.msra.mxu0 0
        %4375 = vmatprep.subr.bf16.mxu0 0
        %4376 = vmatpush1.bf16.msra.mxu0 0
        %4377 = vmatprep.subr.bf16.mxu0 0
        %4378 = vmatpush1.bf16.msra.mxu0 0
        %4379 = vmatprep.subr.bf16.mxu0 0
        %4380 = vmatpush1.bf16.msra.mxu0 0
        %4381 = vmatprep.subr.bf16.mxu0 0
        %4382 = vmatpush1.bf16.msra.mxu0 0
        %4383 = vmatprep.subr.bf16.mxu0 0
        %4384 = vmatpush1.bf16.msra.mxu0 0
        %4385 = vmatprep.subr.bf16.mxu0 0
        %4386 = vmatpush1.bf16.msra.mxu0 0
        %4387 = vmatprep.subr.bf16.mxu0 0
        %4388 = vmatpush1.bf16.msra.mxu0 0
        %4389 = vmatprep.mubr.bf16.mxu0 0
        %4390 = vmatmul.mubr.bf16.gmra.mrb[0].mxu0 %v4052
        %v4391 = vpop.f32.mrb[0].mxu0
        %v4392 = vadd.f32 %v4230, %v4391
        %v4393 = vpop.f32.mrb[0].mxu0
        %v4394 = vpop.f32.mrb[0].mxu0
        %v4395 = vadd.f32 %v4233, %v4394
        %v4396 = vpop.f32.mrb[0].mxu0
        %4397 = vmatprep.mubr.bf16.mxu0 0
        %4398 = vmatmul.mubr.bf16.gmra.mrb[0].mxu0 %v4053
        %v4399 = vpop.f32.mrb[0].mxu0
        %v4400 = vadd.f32 %v4238, %v4399
        %v4401 = vpop.f32.mrb[0].mxu0
        %v4402 = vpop.f32.mrb[0].mxu0
        %v4403 = vadd.f32 %v4241, %v4402
        %v4404 = vpop.f32.mrb[0].mxu0
        %4405 = vmatprep.mubr.bf16.mxu0 0
        %4406 = vmatmul.mubr.bf16.gmra.mrb[0].mxu0 %v4054
        %v4407 = vpop.f32.mrb[0].mxu0
        %v4408 = vadd.f32 %v4246, %v4407
        %v4409 = vpop.f32.mrb[0].mxu0
        %v4410 = vpop.f32.mrb[0].mxu0
        %v4411 = vadd.f32 %v4249, %v4410
        %v4412 = vpop.f32.mrb[0].mxu0
        %4413 = vmatprep.mubr.bf16.mxu0 0
        %4414 = vmatmul.mubr.bf16.gmra.mrb[0].mxu0 %v4055
        %v4415 = vpop.f32.mrb[0].mxu0
        %v4416 = vadd.f32 %v4254, %v4415
        %v4417 = vpop.f32.mrb[0].mxu0
        %v4418 = vpop.f32.mrb[0].mxu0
        %v4419 = vadd.f32 %v4257, %v4418
        %v4420 = vpop.f32.mrb[0].mxu0
        %4421 = vmatprep.mubr.bf16.mxu0 0
        %4422 = vmatmul.mubr.bf16.gmra.mrb[0].mxu0 %v4056
        %v4423 = vpop.f32.mrb[0].mxu0
        %v4424 = vadd.f32 %v4262, %v4423
        %v4425 = vpop.f32.mrb[0].mxu0
        %v4426 = vpop.f32.mrb[0].mxu0
        %v4427 = vadd.f32 %v4265, %v4426
        %v4428 = vpop.f32.mrb[0].mxu0
        %4429 = vmatprep.mubr.bf16.mxu0 0
        %4430 = vmatmul.mubr.bf16.gmra.mrb[0].mxu0 %v4057
        %v4431 = vpop.f32.mrb[0].mxu0
        %v4432 = vadd.f32 %v4270, %v4431
        %v4433 = vpop.f32.mrb[0].mxu0
        %v4434 = vpop.f32.mrb[0].mxu0
        %v4435 = vadd.f32 %v4273, %v4434
        %v4436 = vpop.f32.mrb[0].mxu0
        %4437 = vmatprep.mubr.bf16.mxu0 0
        %4438 = vmatmul.mubr.bf16.gmra.mrb[0].mxu0 %v4058
        %v4439 = vpop.f32.mrb[0].mxu0
        %v4440 = vadd.f32 %v4278, %v4439
        %v4441 = vpop.f32.mrb[0].mxu0
        %v4442 = vpop.f32.mrb[0].mxu0
        %v4443 = vadd.f32 %v4281, %v4442
        %v4444 = vpop.f32.mrb[0].mxu0
        %4445 = vmatprep.mubr.bf16.mxu0 0
        %4446 = vmatmul.mubr.bf16.gmra.mrb[0].mxu0 %v4059
        %v4447 = vpop.f32.mrb[0].mxu0
        %v4448 = vadd.f32 %v4286, %v4447
        %v4449 = vpop.f32.mrb[0].mxu0
        %v4450 = vpop.f32.mrb[0].mxu0
        %v4451 = vadd.f32 %v4289, %v4450
        %v4452 = vpop.f32.mrb[0].mxu0
        %4453 = vmatprep.mubr.bf16.mxu0 0
        %4454 = vmatmul.mubr.bf16.gmra.mrb[0].mxu0 %v4060
        %v4455 = vpop.f32.mrb[0].mxu0
        %v4456 = vadd.f32 %v4294, %v4455
        %v4457 = vpop.f32.mrb[0].mxu0
        %v4458 = vpop.f32.mrb[0].mxu0
        %v4459 = vadd.f32 %v4297, %v4458
        %v4460 = vpop.f32.mrb[0].mxu0
        %4461 = vdwg.mxu0
        %v4462 = vld [vmem:[#allocation2 + $0x48] sm:$0xe]
        %v4463 = vld [vmem:[%s1818] sm:$0xf]
        %v4464 = vld [vmem:[%s1818 + $0x4] sm:$0xf]
        %v4465 = vld [vmem:[%s1818 + $0x8] sm:$0xf]
        %v4466 = vld [vmem:[%s1818 + $0xc] sm:$0xf]
        %v4467 = vld [vmem:[%s1818 + $0x10] sm:$0xf]
        %v4468 = vld [vmem:[%s1818 + $0x14] sm:$0xf]
        %v4469 = vld [vmem:[%s1818 + $0x18] sm:$0xf]
        %v4470 = vld [vmem:[%s1818 + $0x1c] sm:$0xf]
        %v4471 = vld [vmem:[%s1818 + $0x20] sm:$0xf]
        %v4472 = vld [vmem:[%s1818 + $0x24] sm:$0xf]
        %v4473 = vld [vmem:[%s1818 + $0x28] sm:$0xf]
        %v4474 = vld [vmem:[%s1818 + $0x2c] sm:$0xf]
        %v4475 = vld [vmem:[%s1818 + $0x30] sm:$0xf]
        %v4476 = vld [vmem:[%s1818 + $0x34] sm:$0xf]
        %v4477 = vld [vmem:[%s1818 + $0x38] sm:$0xf]
        %v4478 = vld [vmem:[%s1818 + $0x3c] sm:$0xf]
        %v4480 = vunpack.c.l.b16 %v4462
        %v4481 = vpack.c.b16 %v4034, %v4480
        %v4482 = vrot.slane %v4481, 1
        %v4483 = vrot.slane %v4053, 1
        %v4484 = vsel %vm1838, %v4482, %v4483
        %v4485 = vrot.slane %v4054, 1
        %v4486 = vsel %vm1838, %v4483, %v4485
        %v4487 = vrot.slane %v4055, 1
        %v4488 = vsel %vm1838, %v4485, %v4487
        %v4489 = vrot.slane %v4056, 1
        %v4490 = vsel %vm1838, %v4487, %v4489
        %v4491 = vrot.slane %v4057, 1
        %v4492 = vsel %vm1838, %v4489, %v4491
        %v4493 = vrot.slane %v4058, 1
        %v4494 = vsel %vm1838, %v4491, %v4493
        %v4495 = vrot.slane %v4059, 1
        %v4496 = vsel %vm1838, %v4493, %v4495
        %v4497 = vrot.slane %v4060, 1
        %v4498 = vsel %vm1838, %v4495, %v4497
        %v4499 = vrot.slane %v4061, 1
        %v4500 = vsel %vm1838, %v4497, %v4499
        %v4526 = vunpack.c.l.b16 %v4463
        %v4527 = vunpack.c.l.b16 %v4464
        %v4528 = vunpack.c.l.b16 %v4465
        %v4529 = vunpack.c.l.b16 %v4466
        %v4530 = vunpack.c.l.b16 %v4467
        %v4531 = vunpack.c.l.b16 %v4468
        %v4532 = vunpack.c.l.b16 %v4469
        %v4533 = vunpack.c.l.b16 %v4470
        %v4534 = vunpack.c.l.b16 %v4471
        %v4535 = vunpack.c.l.b16 %v4472
        %v4536 = vunpack.c.l.b16 %v4473
        %v4537 = vunpack.c.l.b16 %v4474
        %v4538 = vunpack.c.l.b16 %v4475
        %v4539 = vunpack.c.l.b16 %v4476
        %v4540 = vunpack.c.l.b16 %v4477
        %v4541 = vunpack.c.l.b16 %v4478
        %v4542 = vpack.c.b16 %v4527, %v4526
        %v4543 = vpack.c.b16 %v4529, %v4528
        %v4544 = vpack.c.b16 %v4531, %v4530
        %v4545 = vpack.c.b16 %v4533, %v4532
        %v4546 = vpack.c.b16 %v4535, %v4534
        %v4547 = vpack.c.b16 %v4537, %v4536
        %v4548 = vpack.c.b16 %v4539, %v4538
        %v4549 = vpack.c.b16 %v4541, %v4540
        %4558 = vmatprep.subr.bf16.mxu0 0
        %4559 = vmatpush1.bf16.msra.mxu0 %v4542
        %4560 = vmatprep.subr.bf16.mxu0 0
        %4561 = vmatpush1.bf16.msra.mxu0 %v4543
        %4562 = vmatprep.subr.bf16.mxu0 0
        %4563 = vmatpush1.bf16.msra.mxu0 %v4544
        %4564 = vmatprep.subr.bf16.mxu0 0
        %4565 = vmatpush1.bf16.msra.mxu0 %v4545
        %4566 = vmatprep.subr.bf16.mxu0 0
        %4567 = vmatpush1.bf16.msra.mxu0 %v4546
        %4568 = vmatprep.subr.bf16.mxu0 0
        %4569 = vmatpush1.bf16.msra.mxu0 %v4547
        %4570 = vmatprep.subr.bf16.mxu0 0
        %4571 = vmatpush1.bf16.msra.mxu0 %v4548
        %4572 = vmatprep.subr.bf16.mxu0 0
        %4573 = vmatpush1.bf16.msra.mxu0 %v4549
        %4574 = vmatprep.subr.bf16.mxu0 0
        %4575 = vmatpush1.bf16.msra.mxu0 0
        %4576 = vmatprep.subr.bf16.mxu0 0
        %4577 = vmatpush1.bf16.msra.mxu0 0
        %4578 = vmatprep.subr.bf16.mxu0 0
        %4579 = vmatpush1.bf16.msra.mxu0 0
        %4580 = vmatprep.subr.bf16.mxu0 0
        %4581 = vmatpush1.bf16.msra.mxu0 0
        %4582 = vmatprep.subr.bf16.mxu0 0
        %4583 = vmatpush1.bf16.msra.mxu0 0
        %4584 = vmatprep.subr.bf16.mxu0 0
        %4585 = vmatpush1.bf16.msra.mxu0 0
        %4586 = vmatprep.subr.bf16.mxu0 0
        %4587 = vmatpush1.bf16.msra.mxu0 0
        %4588 = vmatprep.subr.bf16.mxu0 0
        %4589 = vmatpush1.bf16.msra.mxu0 0
        %4590 = vmatprep.mubr.bf16.mxu0 0
        %4591 = vmatmul.mubr.bf16.gmra.mrb[0].mxu0 %v4484
        %v4592 = vpop.f32.mrb[0].mxu0
        %v4593 = vadd.f32 0.0, %v4592
        %v4594 = vpop.f32.mrb[0].mxu0
        %v4595 = vpop.f32.mrb[0].mxu0
        %v4596 = vadd.f32 0.0, %v4595
        %v4597 = vpop.f32.mrb[0].mxu0
        %4598 = vmatprep.mubr.bf16.mxu0 0
        %4599 = vmatmul.mubr.bf16.gmra.mrb[0].mxu0 %v4486
        %v4600 = vpop.f32.mrb[0].mxu0
        %v4601 = vadd.f32 0.0, %v4600
        %v4602 = vpop.f32.mrb[0].mxu0
        %v4603 = vpop.f32.mrb[0].mxu0
        %v4604 = vadd.f32 0.0, %v4603
        %v4605 = vpop.f32.mrb[0].mxu0
        %4606 = vmatprep.mubr.bf16.mxu0 0
        %4607 = vmatmul.mubr.bf16.gmra.mrb[0].mxu0 %v4488
        %v4608 = vpop.f32.mrb[0].mxu0
        %v4609 = vadd.f32 0.0, %v4608
        %v4610 = vpop.f32.mrb[0].mxu0
        %v4611 = vpop.f32.mrb[0].mxu0
        %v4612 = vadd.f32 0.0, %v4611
        %v4613 = vpop.f32.mrb[0].mxu0
        %4614 = vmatprep.mubr.bf16.mxu0 0
        %4615 = vmatmul.mubr.bf16.gmra.mrb[0].mxu0 %v4490
        %v4616 = vpop.f32.mrb[0].mxu0
        %v4617 = vadd.f32 0.0, %v4616
        %v4618 = vpop.f32.mrb[0].mxu0
        %v4619 = vpop.f32.mrb[0].mxu0
        %v4620 = vadd.f32 0.0, %v4619
        %v4621 = vpop.f32.mrb[0].mxu0
        %4622 = vmatprep.mubr.bf16.mxu0 0
        %4623 = vmatmul.mubr.bf16.gmra.mrb[0].mxu0 %v4492
        %v4624 = vpop.f32.mrb[0].mxu0
        %v4625 = vadd.f32 0.0, %v4624
        %v4626 = vpop.f32.mrb[0].mxu0
        %v4627 = vpop.f32.mrb[0].mxu0
        %v4628 = vadd.f32 0.0, %v4627
        %v4629 = vpop.f32.mrb[0].mxu0
        %4630 = vmatprep.mubr.bf16.mxu0 0
        %4631 = vmatmul.mubr.bf16.gmra.mrb[0].mxu0 %v4494
        %v4632 = vpop.f32.mrb[0].mxu0
        %v4633 = vadd.f32 0.0, %v4632
        %v4634 = vpop.f32.mrb[0].mxu0
        %v4635 = vpop.f32.mrb[0].mxu0
        %v4636 = vadd.f32 0.0, %v4635
        %v4637 = vpop.f32.mrb[0].mxu0
        %4638 = vmatprep.mubr.bf16.mxu0 0
        %4639 = vmatmul.mubr.bf16.gmra.mrb[0].mxu0 %v4496
        %v4640 = vpop.f32.mrb[0].mxu0
        %v4641 = vadd.f32 0.0, %v4640
        %v4642 = vpop.f32.mrb[0].mxu0
        %v4643 = vpop.f32.mrb[0].mxu0
        %v4644 = vadd.f32 0.0, %v4643
        %v4645 = vpop.f32.mrb[0].mxu0
        %4646 = vmatprep.mubr.bf16.mxu0 0
        %4647 = vmatmul.mubr.bf16.gmra.mrb[0].mxu0 %v4498
        %v4648 = vpop.f32.mrb[0].mxu0
        %v4649 = vadd.f32 0.0, %v4648
        %v4650 = vpop.f32.mrb[0].mxu0
        %v4651 = vpop.f32.mrb[0].mxu0
        %v4652 = vadd.f32 0.0, %v4651
        %v4653 = vpop.f32.mrb[0].mxu0
        %4654 = vmatprep.mubr.bf16.mxu0 0
        %4655 = vmatmul.mubr.bf16.gmra.mrb[0].mxu0 %v4500
        %v4656 = vpop.f32.mrb[0].mxu0
        %v4657 = vadd.f32 0.0, %v4656
        %v4658 = vpop.f32.mrb[0].mxu0
        %v4659 = vpop.f32.mrb[0].mxu0
        %v4660 = vadd.f32 0.0, %v4659
        %v4661 = vpop.f32.mrb[0].mxu0
        %4662 = vdwg.mxu0
        %v4663 = vadd.f32 %v4392, %v4593
        %v4664 = vadd.f32 %v4395, %v4596
        %v4665 = vadd.f32 %v4400, %v4601
        %v4666 = vadd.f32 %v4403, %v4604
        %v4667 = vadd.f32 %v4408, %v4609
        %v4668 = vadd.f32 %v4411, %v4612
        %v4669 = vadd.f32 %v4416, %v4617
        %v4670 = vadd.f32 %v4419, %v4620
        %v4671 = vadd.f32 %v4424, %v4625
        %v4672 = vadd.f32 %v4427, %v4628
        %v4673 = vadd.f32 %v4432, %v4633
        %v4674 = vadd.f32 %v4435, %v4636
        %v4675 = vadd.f32 %v4440, %v4641
        %v4676 = vadd.f32 %v4443, %v4644
        %v4677 = vadd.f32 %v4448, %v4649
        %v4678 = vadd.f32 %v4451, %v4652
        %v4679 = vadd.f32 %v4456, %v4657
        %v4680 = vadd.f32 %v4459, %v4660
        %v4681 = vld [vmem:[#allocation2 + $0x50] sm:$0xe]
        %v4682 = vld [vmem:[#allocation2 + $0x54] sm:$0xf]
        %v4683 = vld [vmem:[#allocation2 + $0x58] sm:$0xf]
        %v4684 = vld [vmem:[#allocation2 + $0x5c] sm:$0xf]
        %v4685 = vld [vmem:[#allocation2 + $0x60] sm:$0xf]
        %v4686 = vld [vmem:[#allocation2 + $0x64] sm:$0xf]
        %v4687 = vld [vmem:[#allocation2 + $0x68] sm:$0xf]
        %v4688 = vld [vmem:[#allocation2 + $0x6c] sm:$0xf]
        %v4689 = vld [vmem:[#allocation2 + $0x70] sm:$0xf]
        %v4690 = vld [vmem:[#allocation2 + $0x74] sm:$0xf]
        %v4691 = vld [vmem:[#allocation2 + $0x78] sm:$0xf]
        %v4692 = vld [vmem:[#allocation2 + $0x7c] sm:$0xf]
        %v4693 = vld [vmem:[#allocation2 + $0x80] sm:$0xf]
        %v4694 = vld [vmem:[#allocation2 + $0x84] sm:$0xf]
        %v4695 = vld [vmem:[#allocation2 + $0x88] sm:$0xf]
        %v4696 = vld [vmem:[#allocation2 + $0x8c] sm:$0xf]
        %v4697 = vld [vmem:[#allocation2 + $0x90] sm:$0xf]
        %v4698 = vld [vmem:[#allocation2 + $0x94] sm:$0xf]
        %v4699 = vld [vmem:[#allocation2 + $0x98] sm:$0x1]
        %v4700 = vld [vmem:[%s2057] sm:$0xf]
        %v4701 = vld [vmem:[%s2057 + $0x4] sm:$0xf]
        %v4702 = vld [vmem:[%s2057 + $0x8] sm:$0xf]
        %v4703 = vld [vmem:[%s2057 + $0xc] sm:$0xf]
        %v4704 = vld [vmem:[%s2057 + $0x10] sm:$0xf]
        %v4705 = vld [vmem:[%s2057 + $0x14] sm:$0xf]
        %v4706 = vld [vmem:[%s2057 + $0x18] sm:$0xf]
        %v4707 = vld [vmem:[%s2057 + $0x1c] sm:$0xf]
        %v4708 = vld [vmem:[%s2057 + $0x20] sm:$0xf]
        %v4709 = vld [vmem:[%s2057 + $0x24] sm:$0xf]
        %v4710 = vld [vmem:[%s2057 + $0x28] sm:$0xf]
        %v4711 = vld [vmem:[%s2057 + $0x2c] sm:$0xf]
        %v4712 = vld [vmem:[%s2057 + $0x30] sm:$0xf]
        %v4713 = vld [vmem:[%s2057 + $0x34] sm:$0xf]
        %v4714 = vld [vmem:[%s2057 + $0x38] sm:$0xf]
        %v4715 = vld [vmem:[%s2057 + $0x3c] sm:$0xf]
        %v4735 = vunpack.c.l.b16 %v4681
        %v4736 = vunpack.c.l.b16 %v4682
        %v4737 = vunpack.c.l.b16 %v4683
        %v4738 = vunpack.c.l.b16 %v4684
        %v4739 = vunpack.c.l.b16 %v4685
        %v4740 = vunpack.c.l.b16 %v4686
        %v4741 = vunpack.c.l.b16 %v4687
        %v4742 = vunpack.c.l.b16 %v4688
        %v4743 = vunpack.c.l.b16 %v4689
        %v4744 = vunpack.c.l.b16 %v4690
        %v4745 = vunpack.c.l.b16 %v4691
        %v4746 = vunpack.c.l.b16 %v4692
        %v4747 = vunpack.c.l.b16 %v4693
        %v4748 = vunpack.c.l.b16 %v4694
        %v4749 = vunpack.c.l.b16 %v4695
        %v4750 = vunpack.c.l.b16 %v4696
        %v4751 = vunpack.c.l.b16 %v4697
        %v4752 = vunpack.c.l.b16 %v4698
        %v4753 = vunpack.c.l.b16 %v4699
        %v4754 = vpack.c.b16 %v4736, %v4735
        %v4755 = vpack.c.b16 %v4738, %v4737
        %v4756 = vpack.c.b16 %v4740, %v4739
        %v4757 = vpack.c.b16 %v4742, %v4741
        %v4758 = vpack.c.b16 %v4744, %v4743
        %v4759 = vpack.c.b16 %v4746, %v4745
        %v4760 = vpack.c.b16 %v4748, %v4747
        %v4761 = vpack.c.b16 %v4750, %v4749
        %v4762 = vpack.c.b16 %v4752, %v4751
        %v4763 = vpack.c.b16 %v4753, %v4753
        %v4764 = vrot.slane %v4754, 1
        %v4765 = vrot.slane %v4755, 1
        %v4766 = vsel %vm1838, %v4764, %v4765
        %v4767 = vrot.slane %v4756, 1
        %v4768 = vsel %vm1838, %v4765, %v4767
        %v4769 = vrot.slane %v4757, 1
        %v4770 = vsel %vm1838, %v4767, %v4769
        %v4771 = vrot.slane %v4758, 1
        %v4772 = vsel %vm1838, %v4769, %v4771
        %v4773 = vrot.slane %v4759, 1
        %v4774 = vsel %vm1838, %v4771, %v4773
        %v4775 = vrot.slane %v4760, 1
        %v4776 = vsel %vm1838, %v4773, %v4775
        %v4777 = vrot.slane %v4761, 1
        %v4778 = vsel %vm1838, %v4775, %v4777
        %v4779 = vrot.slane %v4762, 1
        %v4780 = vsel %vm1838, %v4777, %v4779
        %v4781 = vrot.slane %v4763, 1
        %v4782 = vsel %vm1838, %v4779, %v4781
        %v4808 = vunpack.c.l.b16 %v4700
        %v4809 = vunpack.c.l.b16 %v4701
        %v4810 = vunpack.c.l.b16 %v4702
        %v4811 = vunpack.c.l.b16 %v4703
        %v4812 = vunpack.c.l.b16 %v4704
        %v4813 = vunpack.c.l.b16 %v4705
        %v4814 = vunpack.c.l.b16 %v4706
        %v4815 = vunpack.c.l.b16 %v4707
        %v4816 = vunpack.c.l.b16 %v4708
        %v4817 = vunpack.c.l.b16 %v4709
        %v4818 = vunpack.c.l.b16 %v4710
        %v4819 = vunpack.c.l.b16 %v4711
        %v4820 = vunpack.c.l.b16 %v4712
        %v4821 = vunpack.c.l.b16 %v4713
        %v4822 = vunpack.c.l.b16 %v4714
        %v4823 = vunpack.c.l.b16 %v4715
        %v4824 = vpack.c.b16 %v4809, %v4808
        %v4825 = vpack.c.b16 %v4811, %v4810
        %v4826 = vpack.c.b16 %v4813, %v4812
        %v4827 = vpack.c.b16 %v4815, %v4814
        %v4828 = vpack.c.b16 %v4817, %v4816
        %v4829 = vpack.c.b16 %v4819, %v4818
        %v4830 = vpack.c.b16 %v4821, %v4820
        %v4831 = vpack.c.b16 %v4823, %v4822
        %4840 = vmatprep.subr.bf16.mxu0 0
        %4841 = vmatpush1.bf16.msra.mxu0 %v4824
        %4842 = vmatprep.subr.bf16.mxu0 0
        %4843 = vmatpush1.bf16.msra.mxu0 %v4825
        %4844 = vmatprep.subr.bf16.mxu0 0
        %4845 = vmatpush1.bf16.msra.mxu0 %v4826
        %4846 = vmatprep.subr.bf16.mxu0 0
        %4847 = vmatpush1.bf16.msra.mxu0 %v4827
        %4848 = vmatprep.subr.bf16.mxu0 0
        %4849 = vmatpush1.bf16.msra.mxu0 %v4828
        %4850 = vmatprep.subr.bf16.mxu0 0
        %4851 = vmatpush1.bf16.msra.mxu0 %v4829
        %4852 = vmatprep.subr.bf16.mxu0 0
        %4853 = vmatpush1.bf16.msra.mxu0 %v4830
        %4854 = vmatprep.subr.bf16.mxu0 0
        %4855 = vmatpush1.bf16.msra.mxu0 %v4831
        %4856 = vmatprep.subr.bf16.mxu0 0
        %4857 = vmatpush1.bf16.msra.mxu0 0
        %4858 = vmatprep.subr.bf16.mxu0 0
        %4859 = vmatpush1.bf16.msra.mxu0 0
        %4860 = vmatprep.subr.bf16.mxu0 0
        %4861 = vmatpush1.bf16.msra.mxu0 0
        %4862 = vmatprep.subr.bf16.mxu0 0
        %4863 = vmatpush1.bf16.msra.mxu0 0
        %4864 = vmatprep.subr.bf16.mxu0 0
        %4865 = vmatpush1.bf16.msra.mxu0 0
        %4866 = vmatprep.subr.bf16.mxu0 0
        %4867 = vmatpush1.bf16.msra.mxu0 0
        %4868 = vmatprep.subr.bf16.mxu0 0
        %4869 = vmatpush1.bf16.msra.mxu0 0
        %4870 = vmatprep.subr.bf16.mxu0 0
        %4871 = vmatpush1.bf16.msra.mxu0 0
        %4872 = vmatprep.mubr.bf16.mxu0 0
        %4873 = vmatmul.mubr.bf16.gmra.mrb[0].mxu0 %v4766
        %v4874 = vpop.f32.mrb[0].mxu0
        %v4875 = vadd.f32 0.0, %v4874
        %v4876 = vpop.f32.mrb[0].mxu0
        %v4877 = vpop.f32.mrb[0].mxu0
        %v4878 = vadd.f32 0.0, %v4877
        %v4879 = vpop.f32.mrb[0].mxu0
        %4880 = vmatprep.mubr.bf16.mxu0 0
        %4881 = vmatmul.mubr.bf16.gmra.mrb[0].mxu0 %v4768
        %v4882 = vpop.f32.mrb[0].mxu0
        %v4883 = vadd.f32 0.0, %v4882
        %v4884 = vpop.f32.mrb[0].mxu0
        %v4885 = vpop.f32.mrb[0].mxu0
        %v4886 = vadd.f32 0.0, %v4885
        %v4887 = vpop.f32.mrb[0].mxu0
        %4888 = vmatprep.mubr.bf16.mxu0 0
        %4889 = vmatmul.mubr.bf16.gmra.mrb[0].mxu0 %v4770
        %v4890 = vpop.f32.mrb[0].mxu0
        %v4891 = vadd.f32 0.0, %v4890
        %v4892 = vpop.f32.mrb[0].mxu0
        %v4893 = vpop.f32.mrb[0].mxu0
        %v4894 = vadd.f32 0.0, %v4893
        %v4895 = vpop.f32.mrb[0].mxu0
        %4896 = vmatprep.mubr.bf16.mxu0 0
        %4897 = vmatmul.mubr.bf16.gmra.mrb[0].mxu0 %v4772
        %v4898 = vpop.f32.mrb[0].mxu0
        %v4899 = vadd.f32 0.0, %v4898
        %v4900 = vpop.f32.mrb[0].mxu0
        %v4901 = vpop.f32.mrb[0].mxu0
        %v4902 = vadd.f32 0.0, %v4901
        %v4903 = vpop.f32.mrb[0].mxu0
        %4904 = vmatprep.mubr.bf16.mxu0 0
        %4905 = vmatmul.mubr.bf16.gmra.mrb[0].mxu0 %v4774
        %v4906 = vpop.f32.mrb[0].mxu0
        %v4907 = vadd.f32 0.0, %v4906
        %v4908 = vpop.f32.mrb[0].mxu0
        %v4909 = vpop.f32.mrb[0].mxu0
        %v4910 = vadd.f32 0.0, %v4909
        %v4911 = vpop.f32.mrb[0].mxu0
        %4912 = vmatprep.mubr.bf16.mxu0 0
        %4913 = vmatmul.mubr.bf16.gmra.mrb[0].mxu0 %v4776
        %v4914 = vpop.f32.mrb[0].mxu0
        %v4915 = vadd.f32 0.0, %v4914
        %v4916 = vpop.f32.mrb[0].mxu0
        %v4917 = vpop.f32.mrb[0].mxu0
        %v4918 = vadd.f32 0.0, %v4917
        %v4919 = vpop.f32.mrb[0].mxu0
        %4920 = vmatprep.mubr.bf16.mxu0 0
        %4921 = vmatmul.mubr.bf16.gmra.mrb[0].mxu0 %v4778
        %v4922 = vpop.f32.mrb[0].mxu0
        %v4923 = vadd.f32 0.0, %v4922
        %v4924 = vpop.f32.mrb[0].mxu0
        %v4925 = vpop.f32.mrb[0].mxu0
        %v4926 = vadd.f32 0.0, %v4925
        %v4927 = vpop.f32.mrb[0].mxu0
        %4928 = vmatprep.mubr.bf16.mxu0 0
        %4929 = vmatmul.mubr.bf16.gmra.mrb[0].mxu0 %v4780
        %v4930 = vpop.f32.mrb[0].mxu0
        %v4931 = vadd.f32 0.0, %v4930
        %v4932 = vpop.f32.mrb[0].mxu0
        %v4933 = vpop.f32.mrb[0].mxu0
        %v4934 = vadd.f32 0.0, %v4933
        %v4935 = vpop.f32.mrb[0].mxu0
        %4936 = vmatprep.mubr.bf16.mxu0 0
        %4937 = vmatmul.mubr.bf16.gmra.mrb[0].mxu0 %v4782
        %v4938 = vpop.f32.mrb[0].mxu0
        %v4939 = vadd.f32 0.0, %v4938
        %v4940 = vpop.f32.mrb[0].mxu0
        %v4941 = vpop.f32.mrb[0].mxu0
        %v4942 = vadd.f32 0.0, %v4941
        %v4943 = vpop.f32.mrb[0].mxu0
        %4944 = vdwg.mxu0
        %v4945 = vadd.f32 %v4663, %v4875
        %v4946 = vadd.f32 %v4664, %v4878
        %v4947 = vadd.f32 %v4665, %v4883
        %v4948 = vadd.f32 %v4666, %v4886
        %v4949 = vadd.f32 %v4667, %v4891
        %v4950 = vadd.f32 %v4668, %v4894
        %v4951 = vadd.f32 %v4669, %v4899
        %v4952 = vadd.f32 %v4670, %v4902
        %v4953 = vadd.f32 %v4671, %v4907
        %v4954 = vadd.f32 %v4672, %v4910
        %v4955 = vadd.f32 %v4673, %v4915
        %v4956 = vadd.f32 %v4674, %v4918
        %v4957 = vadd.f32 %v4675, %v4923
        %v4958 = vadd.f32 %v4676, %v4926
        %v4959 = vadd.f32 %v4677, %v4931
        %v4960 = vadd.f32 %v4678, %v4934
        %v4961 = vadd.f32 %v4679, %v4939
        %v4962 = vadd.f32 %v4680, %v4942
        %v4963 = vld [vmem:[#allocation2 + $0x98] sm:$0x3]
        %v4964 = vld [vmem:[%s2322] sm:$0xf]
        %v4965 = vld [vmem:[%s2322 + $0x4] sm:$0xf]
        %v4966 = vld [vmem:[%s2322 + $0x8] sm:$0xf]
        %v4967 = vld [vmem:[%s2322 + $0xc] sm:$0xf]
        %v4968 = vld [vmem:[%s2322 + $0x10] sm:$0xf]
        %v4969 = vld [vmem:[%s2322 + $0x14] sm:$0xf]
        %v4970 = vld [vmem:[%s2322 + $0x18] sm:$0xf]
        %v4971 = vld [vmem:[%s2322 + $0x1c] sm:$0xf]
        %v4972 = vld [vmem:[%s2322 + $0x20] sm:$0xf]
        %v4973 = vld [vmem:[%s2322 + $0x24] sm:$0xf]
        %v4974 = vld [vmem:[%s2322 + $0x28] sm:$0xf]
        %v4975 = vld [vmem:[%s2322 + $0x2c] sm:$0xf]
        %v4976 = vld [vmem:[%s2322 + $0x30] sm:$0xf]
        %v4977 = vld [vmem:[%s2322 + $0x34] sm:$0xf]
        %v4978 = vld [vmem:[%s2322 + $0x38] sm:$0xf]
        %v4979 = vld [vmem:[%s2322 + $0x3c] sm:$0xf]
        %v4981 = vunpack.c.l.b16 %v4963
        %v4982 = vpack.c.b16 %v4981, %v4981
        %v4984 = vshrl.u32 %v4754, 16
        %v4986 = vrot.slane %v4984, 1
        %v4987 = vshll.u32 %v4754, 16
        %v4989 = vrot.slane %v4987, 2
        %v4990 = vor.u32 %v4986, %v4989
        %v4992 = vshrl.u32 %v4755, 16
        %v4994 = vrot.slane %v4992, 1
        %v4995 = vshll.u32 %v4755, 16
        %v4997 = vrot.slane %v4995, 2
        %v4998 = vor.u32 %v4994, %v4997
        %v4999 = vsel %vm2342, %v4990, %v4998
        %v5001 = vshrl.u32 %v4756, 16
        %v5003 = vrot.slane %v5001, 1
        %v5004 = vshll.u32 %v4756, 16
        %v5006 = vrot.slane %v5004, 2
        %v5007 = vor.u32 %v5003, %v5006
        %v5008 = vsel %vm2342, %v4998, %v5007
        %v5010 = vshrl.u32 %v4757, 16
        %v5012 = vrot.slane %v5010, 1
        %v5013 = vshll.u32 %v4757, 16
        %v5015 = vrot.slane %v5013, 2
        %v5016 = vor.u32 %v5012, %v5015
        %v5017 = vsel %vm2342, %v5007, %v5016
        %v5019 = vshrl.u32 %v4758, 16
        %v5021 = vrot.slane %v5019, 1
        %v5022 = vshll.u32 %v4758, 16
        %v5024 = vrot.slane %v5022, 2
        %v5025 = vor.u32 %v5021, %v5024
        %v5026 = vsel %vm2342, %v5016, %v5025
        %v5028 = vshrl.u32 %v4759, 16
        %v5030 = vrot.slane %v5028, 1
        %v5031 = vshll.u32 %v4759, 16
        %v5033 = vrot.slane %v5031, 2
        %v5034 = vor.u32 %v5030, %v5033
        %v5035 = vsel %vm2342, %v5025, %v5034
        %v5037 = vshrl.u32 %v4760, 16
        %v5039 = vrot.slane %v5037, 1
        %v5040 = vshll.u32 %v4760, 16
        %v5042 = vrot.slane %v5040, 2
        %v5043 = vor.u32 %v5039, %v5042
        %v5044 = vsel %vm2342, %v5034, %v5043
        %v5046 = vshrl.u32 %v4761, 16
        %v5048 = vrot.slane %v5046, 1
        %v5049 = vshll.u32 %v4761, 16
        %v5051 = vrot.slane %v5049, 2
        %v5052 = vor.u32 %v5048, %v5051
        %v5053 = vsel %vm2342, %v5043, %v5052
        %v5055 = vshrl.u32 %v4762, 16
        %v5057 = vrot.slane %v5055, 1
        %v5058 = vshll.u32 %v4762, 16
        %v5060 = vrot.slane %v5058, 2
        %v5061 = vor.u32 %v5057, %v5060
        %v5062 = vsel %vm2342, %v5052, %v5061
        %v5064 = vshrl.u32 %v4982, 16
        %v5066 = vrot.slane %v5064, 1
        %v5067 = vshll.u32 %v4982, 16
        %v5069 = vrot.slane %v5067, 2
        %v5070 = vor.u32 %v5066, %v5069
        %v5071 = vsel %vm2342, %v5061, %v5070
        %v5097 = vunpack.c.l.b16 %v4964
        %v5098 = vunpack.c.l.b16 %v4965
        %v5099 = vunpack.c.l.b16 %v4966
        %v5100 = vunpack.c.l.b16 %v4967
        %v5101 = vunpack.c.l.b16 %v4968
        %v5102 = vunpack.c.l.b16 %v4969
        %v5103 = vunpack.c.l.b16 %v4970
        %v5104 = vunpack.c.l.b16 %v4971
        %v5105 = vunpack.c.l.b16 %v4972
        %v5106 = vunpack.c.l.b16 %v4973
        %v5107 = vunpack.c.l.b16 %v4974
        %v5108 = vunpack.c.l.b16 %v4975
        %v5109 = vunpack.c.l.b16 %v4976
        %v5110 = vunpack.c.l.b16 %v4977
        %v5111 = vunpack.c.l.b16 %v4978
        %v5112 = vunpack.c.l.b16 %v4979
        %v5113 = vpack.c.b16 %v5098, %v5097
        %v5114 = vpack.c.b16 %v5100, %v5099
        %v5115 = vpack.c.b16 %v5102, %v5101
        %v5116 = vpack.c.b16 %v5104, %v5103
        %v5117 = vpack.c.b16 %v5106, %v5105
        %v5118 = vpack.c.b16 %v5108, %v5107
        %v5119 = vpack.c.b16 %v5110, %v5109
        %v5120 = vpack.c.b16 %v5112, %v5111
        %5129 = vmatprep.subr.bf16.mxu0 0
        %5130 = vmatpush1.bf16.msra.mxu0 %v5113
        %5131 = vmatprep.subr.bf16.mxu0 0
        %5132 = vmatpush1.bf16.msra.mxu0 %v5114
        %5133 = vmatprep.subr.bf16.mxu0 0
        %5134 = vmatpush1.bf16.msra.mxu0 %v5115
        %5135 = vmatprep.subr.bf16.mxu0 0
        %5136 = vmatpush1.bf16.msra.mxu0 %v5116
        %5137 = vmatprep.subr.bf16.mxu0 0
        %5138 = vmatpush1.bf16.msra.mxu0 %v5117
        %5139 = vmatprep.subr.bf16.mxu0 0
        %5140 = vmatpush1.bf16.msra.mxu0 %v5118
        %5141 = vmatprep.subr.bf16.mxu0 0
        %5142 = vmatpush1.bf16.msra.mxu0 %v5119
        %5143 = vmatprep.subr.bf16.mxu0 0
        %5144 = vmatpush1.bf16.msra.mxu0 %v5120
        %5145 = vmatprep.subr.bf16.mxu0 0
        %5146 = vmatpush1.bf16.msra.mxu0 0
        %5147 = vmatprep.subr.bf16.mxu0 0
        %5148 = vmatpush1.bf16.msra.mxu0 0
        %5149 = vmatprep.subr.bf16.mxu0 0
        %5150 = vmatpush1.bf16.msra.mxu0 0
        %5151 = vmatprep.subr.bf16.mxu0 0
        %5152 = vmatpush1.bf16.msra.mxu0 0
        %5153 = vmatprep.subr.bf16.mxu0 0
        %5154 = vmatpush1.bf16.msra.mxu0 0
        %5155 = vmatprep.subr.bf16.mxu0 0
        %5156 = vmatpush1.bf16.msra.mxu0 0
        %5157 = vmatprep.subr.bf16.mxu0 0
        %5158 = vmatpush1.bf16.msra.mxu0 0
        %5159 = vmatprep.subr.bf16.mxu0 0
        %5160 = vmatpush1.bf16.msra.mxu0 0
        %5161 = vmatprep.mubr.bf16.mxu0 0
        %5162 = vmatmul.mubr.bf16.gmra.mrb[0].mxu0 %v4999
        %v5163 = vpop.f32.mrb[0].mxu0
        %v5164 = vadd.f32 0.0, %v5163
        %v5165 = vpop.f32.mrb[0].mxu0
        %v5166 = vpop.f32.mrb[0].mxu0
        %v5167 = vadd.f32 0.0, %v5166
        %v5168 = vpop.f32.mrb[0].mxu0
        %5169 = vmatprep.mubr.bf16.mxu0 0
        %5170 = vmatmul.mubr.bf16.gmra.mrb[0].mxu0 %v5008
        %v5171 = vpop.f32.mrb[0].mxu0
        %v5172 = vadd.f32 0.0, %v5171
        %v5173 = vpop.f32.mrb[0].mxu0
        %v5174 = vpop.f32.mrb[0].mxu0
        %v5175 = vadd.f32 0.0, %v5174
        %v5176 = vpop.f32.mrb[0].mxu0
        %5177 = vmatprep.mubr.bf16.mxu0 0
        %5178 = vmatmul.mubr.bf16.gmra.mrb[0].mxu0 %v5017
        %v5179 = vpop.f32.mrb[0].mxu0
        %v5180 = vadd.f32 0.0, %v5179
        %v5181 = vpop.f32.mrb[0].mxu0
        %v5182 = vpop.f32.mrb[0].mxu0
        %v5183 = vadd.f32 0.0, %v5182
        %v5184 = vpop.f32.mrb[0].mxu0
        %5185 = vmatprep.mubr.bf16.mxu0 0
        %5186 = vmatmul.mubr.bf16.gmra.mrb[0].mxu0 %v5026
        %v5187 = vpop.f32.mrb[0].mxu0
        %v5188 = vadd.f32 0.0, %v5187
        %v5189 = vpop.f32.mrb[0].mxu0
        %v5190 = vpop.f32.mrb[0].mxu0
        %v5191 = vadd.f32 0.0, %v5190
        %v5192 = vpop.f32.mrb[0].mxu0
        %5193 = vmatprep.mubr.bf16.mxu0 0
        %5194 = vmatmul.mubr.bf16.gmra.mrb[0].mxu0 %v5035
        %v5195 = vpop.f32.mrb[0].mxu0
        %v5196 = vadd.f32 0.0, %v5195
        %v5197 = vpop.f32.mrb[0].mxu0
        %v5198 = vpop.f32.mrb[0].mxu0
        %v5199 = vadd.f32 0.0, %v5198
        %v5200 = vpop.f32.mrb[0].mxu0
        %5201 = vmatprep.mubr.bf16.mxu0 0
        %5202 = vmatmul.mubr.bf16.gmra.mrb[0].mxu0 %v5044
        %v5203 = vpop.f32.mrb[0].mxu0
        %v5204 = vadd.f32 0.0, %v5203
        %v5205 = vpop.f32.mrb[0].mxu0
        %v5206 = vpop.f32.mrb[0].mxu0
        %v5207 = vadd.f32 0.0, %v5206
        %v5208 = vpop.f32.mrb[0].mxu0
        %5209 = vmatprep.mubr.bf16.mxu0 0
        %5210 = vmatmul.mubr.bf16.gmra.mrb[0].mxu0 %v5053
        %v5211 = vpop.f32.mrb[0].mxu0
        %v5212 = vadd.f32 0.0, %v5211
        %v5213 = vpop.f32.mrb[0].mxu0
        %v5214 = vpop.f32.mrb[0].mxu0
        %v5215 = vadd.f32 0.0, %v5214
        %v5216 = vpop.f32.mrb[0].mxu0
        %5217 = vmatprep.mubr.bf16.mxu0 0
        %5218 = vmatmul.mubr.bf16.gmra.mrb[0].mxu0 %v5062
        %v5219 = vpop.f32.mrb[0].mxu0
        %v5220 = vadd.f32 0.0, %v5219
        %v5221 = vpop.f32.mrb[0].mxu0
        %v5222 = vpop.f32.mrb[0].mxu0
        %v5223 = vadd.f32 0.0, %v5222
        %v5224 = vpop.f32.mrb[0].mxu0
        %5225 = vmatprep.mubr.bf16.mxu0 0
        %5226 = vmatmul.mubr.bf16.gmra.mrb[0].mxu0 %v5071
        %v5227 = vpop.f32.mrb[0].mxu0
        %v5228 = vadd.f32 0.0, %v5227
        %v5229 = vpop.f32.mrb[0].mxu0
        %v5230 = vpop.f32.mrb[0].mxu0
        %v5231 = vadd.f32 0.0, %v5230
        %v5232 = vpop.f32.mrb[0].mxu0
        %5233 = vdwg.mxu0
        %v5234 = vadd.f32 %v4945, %v5164
        %v5235 = vadd.f32 %v4946, %v5167
        %v5236 = vadd.f32 %v4947, %v5172
        %v5237 = vadd.f32 %v4948, %v5175
        %v5238 = vadd.f32 %v4949, %v5180
        %v5239 = vadd.f32 %v4950, %v5183
        %v5240 = vadd.f32 %v4951, %v5188
        %v5241 = vadd.f32 %v4952, %v5191
        %v5242 = vadd.f32 %v4953, %v5196
        %v5243 = vadd.f32 %v4954, %v5199
        %v5244 = vadd.f32 %v4955, %v5204
        %v5245 = vadd.f32 %v4956, %v5207
        %v5246 = vadd.f32 %v4957, %v5212
        %v5247 = vadd.f32 %v4958, %v5215
        %v5248 = vadd.f32 %v4959, %v5220
        %v5249 = vadd.f32 %v4960, %v5223
        %v5250 = vadd.f32 %v4961, %v5228
        %v5251 = vadd.f32 %v4962, %v5231
        %v5252 = vld [vmem:[#allocation2 + $0x50] sm:$0xc]
        %v5253 = vld [vmem:[%s2613] sm:$0xf]
        %v5254 = vld [vmem:[%s2613 + $0x4] sm:$0xf]
        %v5255 = vld [vmem:[%s2613 + $0x8] sm:$0xf]
        %v5256 = vld [vmem:[%s2613 + $0xc] sm:$0xf]
        %v5257 = vld [vmem:[%s2613 + $0x10] sm:$0xf]
        %v5258 = vld [vmem:[%s2613 + $0x14] sm:$0xf]
        %v5259 = vld [vmem:[%s2613 + $0x18] sm:$0xf]
        %v5260 = vld [vmem:[%s2613 + $0x1c] sm:$0xf]
        %v5261 = vld [vmem:[%s2613 + $0x20] sm:$0xf]
        %v5262 = vld [vmem:[%s2613 + $0x24] sm:$0xf]
        %v5263 = vld [vmem:[%s2613 + $0x28] sm:$0xf]
        %v5264 = vld [vmem:[%s2613 + $0x2c] sm:$0xf]
        %v5265 = vld [vmem:[%s2613 + $0x30] sm:$0xf]
        %v5266 = vld [vmem:[%s2613 + $0x34] sm:$0xf]
        %v5267 = vld [vmem:[%s2613 + $0x38] sm:$0xf]
        %v5268 = vld [vmem:[%s2613 + $0x3c] sm:$0xf]
        %v5270 = vunpack.c.l.b16 %v5252
        %v5271 = vpack.c.b16 %v4736, %v5270
        %v5272 = vrot.slane %v5271, 2
        %v5273 = vrot.slane %v4755, 2
        %v5274 = vsel %vm2633, %v5272, %v5273
        %v5275 = vrot.slane %v4756, 2
        %v5276 = vsel %vm2633, %v5273, %v5275
        %v5277 = vrot.slane %v4757, 2
        %v5278 = vsel %vm2633, %v5275, %v5277
        %v5279 = vrot.slane %v4758, 2
        %v5280 = vsel %vm2633, %v5277, %v5279
        %v5281 = vrot.slane %v4759, 2
        %v5282 = vsel %vm2633, %v5279, %v5281
        %v5283 = vrot.slane %v4760, 2
        %v5284 = vsel %vm2633, %v5281, %v5283
        %v5285 = vrot.slane %v4761, 2
        %v5286 = vsel %vm2633, %v5283, %v5285
        %v5287 = vrot.slane %v4762, 2
        %v5288 = vsel %vm2633, %v5285, %v5287
        %v5289 = vrot.slane %v4982, 2
        %v5290 = vsel %vm2633, %v5287, %v5289
        %v5316 = vunpack.c.l.b16 %v5253
        %v5317 = vunpack.c.l.b16 %v5254
        %v5318 = vunpack.c.l.b16 %v5255
        %v5319 = vunpack.c.l.b16 %v5256
        %v5320 = vunpack.c.l.b16 %v5257
        %v5321 = vunpack.c.l.b16 %v5258
        %v5322 = vunpack.c.l.b16 %v5259
        %v5323 = vunpack.c.l.b16 %v5260
        %v5324 = vunpack.c.l.b16 %v5261
        %v5325 = vunpack.c.l.b16 %v5262
        %v5326 = vunpack.c.l.b16 %v5263
        %v5327 = vunpack.c.l.b16 %v5264
        %v5328 = vunpack.c.l.b16 %v5265
        %v5329 = vunpack.c.l.b16 %v5266
        %v5330 = vunpack.c.l.b16 %v5267
        %v5331 = vunpack.c.l.b16 %v5268
        %v5332 = vpack.c.b16 %v5317, %v5316
        %v5333 = vpack.c.b16 %v5319, %v5318
        %v5334 = vpack.c.b16 %v5321, %v5320
        %v5335 = vpack.c.b16 %v5323, %v5322
        %v5336 = vpack.c.b16 %v5325, %v5324
        %v5337 = vpack.c.b16 %v5327, %v5326
        %v5338 = vpack.c.b16 %v5329, %v5328
        %v5339 = vpack.c.b16 %v5331, %v5330
        %5348 = vmatprep.subr.bf16.mxu0 0
        %5349 = vmatpush1.bf16.msra.mxu0 %v5332
        %5350 = vmatprep.subr.bf16.mxu0 0
        %5351 = vmatpush1.bf16.msra.mxu0 %v5333
        %5352 = vmatprep.subr.bf16.mxu0 0
        %5353 = vmatpush1.bf16.msra.mxu0 %v5334
        %5354 = vmatprep.subr.bf16.mxu0 0
        %5355 = vmatpush1.bf16.msra.mxu0 %v5335
        %5356 = vmatprep.subr.bf16.mxu0 0
        %5357 = vmatpush1.bf16.msra.mxu0 %v5336
        %5358 = vmatprep.subr.bf16.mxu0 0
        %5359 = vmatpush1.bf16.msra.mxu0 %v5337
        %5360 = vmatprep.subr.bf16.mxu0 0
        %5361 = vmatpush1.bf16.msra.mxu0 %v5338
        %5362 = vmatprep.subr.bf16.mxu0 0
        %5363 = vmatpush1.bf16.msra.mxu0 %v5339
        %5364 = vmatprep.subr.bf16.mxu0 0
        %5365 = vmatpush1.bf16.msra.mxu0 0
        %5366 = vmatprep.subr.bf16.mxu0 0
        %5367 = vmatpush1.bf16.msra.mxu0 0
        %5368 = vmatprep.subr.bf16.mxu0 0
        %5369 = vmatpush1.bf16.msra.mxu0 0
        %5370 = vmatprep.subr.bf16.mxu0 0
        %5371 = vmatpush1.bf16.msra.mxu0 0
        %5372 = vmatprep.subr.bf16.mxu0 0
        %5373 = vmatpush1.bf16.msra.mxu0 0
        %5374 = vmatprep.subr.bf16.mxu0 0
        %5375 = vmatpush1.bf16.msra.mxu0 0
        %5376 = vmatprep.subr.bf16.mxu0 0
        %5377 = vmatpush1.bf16.msra.mxu0 0
        %5378 = vmatprep.subr.bf16.mxu0 0
        %5379 = vmatpush1.bf16.msra.mxu0 0
        %5380 = vmatprep.mubr.bf16.mxu0 0
        %5381 = vmatmul.mubr.bf16.gmra.mrb[0].mxu0 %v5274
        %v5382 = vpop.f32.mrb[0].mxu0
        %v5383 = vadd.f32 0.0, %v5382
        %v5384 = vpop.f32.mrb[0].mxu0
        %v5385 = vpop.f32.mrb[0].mxu0
        %v5386 = vadd.f32 0.0, %v5385
        %v5387 = vpop.f32.mrb[0].mxu0
        %5388 = vmatprep.mubr.bf16.mxu0 0
        %5389 = vmatmul.mubr.bf16.gmra.mrb[0].mxu0 %v5276
        %v5390 = vpop.f32.mrb[0].mxu0
        %v5391 = vadd.f32 0.0, %v5390
        %v5392 = vpop.f32.mrb[0].mxu0
        %v5393 = vpop.f32.mrb[0].mxu0
        %v5394 = vadd.f32 0.0, %v5393
        %v5395 = vpop.f32.mrb[0].mxu0
        %5396 = vmatprep.mubr.bf16.mxu0 0
        %5397 = vmatmul.mubr.bf16.gmra.mrb[0].mxu0 %v5278
        %v5398 = vpop.f32.mrb[0].mxu0
        %v5399 = vadd.f32 0.0, %v5398
        %v5400 = vpop.f32.mrb[0].mxu0
        %v5401 = vpop.f32.mrb[0].mxu0
        %v5402 = vadd.f32 0.0, %v5401
        %v5403 = vpop.f32.mrb[0].mxu0
        %5404 = vmatprep.mubr.bf16.mxu0 0
        %5405 = vmatmul.mubr.bf16.gmra.mrb[0].mxu0 %v5280
        %v5406 = vpop.f32.mrb[0].mxu0
        %v5407 = vadd.f32 0.0, %v5406
        %v5408 = vpop.f32.mrb[0].mxu0
        %v5409 = vpop.f32.mrb[0].mxu0
        %v5410 = vadd.f32 0.0, %v5409
        %v5411 = vpop.f32.mrb[0].mxu0
        %5412 = vmatprep.mubr.bf16.mxu0 0
        %5413 = vmatmul.mubr.bf16.gmra.mrb[0].mxu0 %v5282
        %v5414 = vpop.f32.mrb[0].mxu0
        %v5415 = vadd.f32 0.0, %v5414
        %v5416 = vpop.f32.mrb[0].mxu0
        %v5417 = vpop.f32.mrb[0].mxu0
        %v5418 = vadd.f32 0.0, %v5417
        %v5419 = vpop.f32.mrb[0].mxu0
        %5420 = vmatprep.mubr.bf16.mxu0 0
        %5421 = vmatmul.mubr.bf16.gmra.mrb[0].mxu0 %v5284
        %v5422 = vpop.f32.mrb[0].mxu0
        %v5423 = vadd.f32 0.0, %v5422
        %v5424 = vpop.f32.mrb[0].mxu0
        %v5425 = vpop.f32.mrb[0].mxu0
        %v5426 = vadd.f32 0.0, %v5425
        %v5427 = vpop.f32.mrb[0].mxu0
        %5428 = vmatprep.mubr.bf16.mxu0 0
        %5429 = vmatmul.mubr.bf16.gmra.mrb[0].mxu0 %v5286
        %v5430 = vpop.f32.mrb[0].mxu0
        %v5431 = vadd.f32 0.0, %v5430
        %v5432 = vpop.f32.mrb[0].mxu0
        %v5433 = vpop.f32.mrb[0].mxu0
        %v5434 = vadd.f32 0.0, %v5433
        %v5435 = vpop.f32.mrb[0].mxu0
        %5436 = vmatprep.mubr.bf16.mxu0 0
        %5437 = vmatmul.mubr.bf16.gmra.mrb[0].mxu0 %v5288
        %v5438 = vpop.f32.mrb[0].mxu0
        %v5439 = vadd.f32 0.0, %v5438
        %v5440 = vpop.f32.mrb[0].mxu0
        %v5441 = vpop.f32.mrb[0].mxu0
        %v5442 = vadd.f32 0.0, %v5441
        %v5443 = vpop.f32.mrb[0].mxu0
        %5444 = vmatprep.mubr.bf16.mxu0 0
        %5445 = vmatmul.mubr.bf16.gmra.mrb[0].mxu0 %v5290
        %v5446 = vpop.f32.mrb[0].mxu0
        %v5447 = vadd.f32 0.0, %v5446
        %v5448 = vpop.f32.mrb[0].mxu0
        %v5449 = vpop.f32.mrb[0].mxu0
        %v5450 = vadd.f32 0.0, %v5449
        %v5451 = vpop.f32.mrb[0].mxu0
        %5452 = vdwg.mxu0
        %v5453 = vadd.f32 %v5234, %v5383
        %v5454 = vadd.f32 %v5235, %v5386
        %v5455 = vadd.f32 %v5236, %v5391
        %v5456 = vadd.f32 %v5237, %v5394
        %v5457 = vadd.f32 %v5238, %v5399
        %v5458 = vadd.f32 %v5239, %v5402
        %v5459 = vadd.f32 %v5240, %v5407
        %v5460 = vadd.f32 %v5241, %v5410
        %v5461 = vadd.f32 %v5242, %v5415
        %v5462 = vadd.f32 %v5243, %v5418
        %v5463 = vadd.f32 %v5244, %v5423
        %v5464 = vadd.f32 %v5245, %v5426
        %v5465 = vadd.f32 %v5246, %v5431
        %v5466 = vadd.f32 %v5247, %v5434
        %v5467 = vadd.f32 %v5248, %v5439
        %v5468 = vadd.f32 %v5249, %v5442
        %v5469 = vadd.f32 %v5250, %v5447
        %v5470 = vadd.f32 %v5251, %v5450
        %v5471 = vld [vmem:[#allocation2 + $0x58] sm:$0xc]
        %v5472 = vld [vmem:[#allocation2 + $0x5c] sm:$0xf]
        %v5473 = vld [vmem:[#allocation2 + $0x60] sm:$0xf]
        %v5474 = vld [vmem:[#allocation2 + $0x64] sm:$0xf]
        %v5475 = vld [vmem:[#allocation2 + $0x68] sm:$0xf]
        %v5476 = vld [vmem:[#allocation2 + $0x6c] sm:$0xf]
        %v5477 = vld [vmem:[#allocation2 + $0x70] sm:$0xf]
        %v5478 = vld [vmem:[#allocation2 + $0x74] sm:$0xf]
        %v5479 = vld [vmem:[#allocation2 + $0x78] sm:$0xf]
        %v5480 = vld [vmem:[#allocation2 + $0x7c] sm:$0xf]
        %v5481 = vld [vmem:[#allocation2 + $0x80] sm:$0xf]
        %v5482 = vld [vmem:[#allocation2 + $0x84] sm:$0xf]
        %v5483 = vld [vmem:[#allocation2 + $0x88] sm:$0xf]
        %v5484 = vld [vmem:[#allocation2 + $0x8c] sm:$0xf]
        %v5485 = vld [vmem:[#allocation2 + $0x90] sm:$0xf]
        %v5486 = vld [vmem:[#allocation2 + $0x94] sm:$0xf]
        %v5487 = vld [vmem:[#allocation2 + $0x98] sm:$0xf]
        %v5488 = vld [vmem:[#allocation2 + $0x9c] sm:$0xf]
        %v5489 = vld [vmem:[#allocation2 + $0xa0] sm:$0x3]
        %v5490 = vld [vmem:[%s2852] sm:$0xf]
        %v5491 = vld [vmem:[%s2852 + $0x4] sm:$0xf]
        %v5492 = vld [vmem:[%s2852 + $0x8] sm:$0xf]
        %v5493 = vld [vmem:[%s2852 + $0xc] sm:$0xf]
        %v5494 = vld [vmem:[%s2852 + $0x10] sm:$0xf]
        %v5495 = vld [vmem:[%s2852 + $0x14] sm:$0xf]
        %v5496 = vld [vmem:[%s2852 + $0x18] sm:$0xf]
        %v5497 = vld [vmem:[%s2852 + $0x1c] sm:$0xf]
        %v5498 = vld [vmem:[%s2852 + $0x20] sm:$0xf]
        %v5499 = vld [vmem:[%s2852 + $0x24] sm:$0xf]
        %v5500 = vld [vmem:[%s2852 + $0x28] sm:$0xf]
        %v5501 = vld [vmem:[%s2852 + $0x2c] sm:$0xf]
        %v5502 = vld [vmem:[%s2852 + $0x30] sm:$0xf]
        %v5503 = vld [vmem:[%s2852 + $0x34] sm:$0xf]
        %v5504 = vld [vmem:[%s2852 + $0x38] sm:$0xf]
        %v5505 = vld [vmem:[%s2852 + $0x3c] sm:$0xf]
        %v5525 = vunpack.c.l.b16 %v5471
        %v5526 = vunpack.c.l.b16 %v5472
        %v5527 = vunpack.c.l.b16 %v5473
        %v5528 = vunpack.c.l.b16 %v5474
        %v5529 = vunpack.c.l.b16 %v5475
        %v5530 = vunpack.c.l.b16 %v5476
        %v5531 = vunpack.c.l.b16 %v5477
        %v5532 = vunpack.c.l.b16 %v5478
        %v5533 = vunpack.c.l.b16 %v5479
        %v5534 = vunpack.c.l.b16 %v5480
        %v5535 = vunpack.c.l.b16 %v5481
        %v5536 = vunpack.c.l.b16 %v5482
        %v5537 = vunpack.c.l.b16 %v5483
        %v5538 = vunpack.c.l.b16 %v5484
        %v5539 = vunpack.c.l.b16 %v5485
        %v5540 = vunpack.c.l.b16 %v5486
        %v5541 = vunpack.c.l.b16 %v5487
        %v5542 = vunpack.c.l.b16 %v5488
        %v5543 = vunpack.c.l.b16 %v5489
        %v5544 = vpack.c.b16 %v5526, %v5525
        %v5545 = vpack.c.b16 %v5528, %v5527
        %v5546 = vpack.c.b16 %v5530, %v5529
        %v5547 = vpack.c.b16 %v5532, %v5531
        %v5548 = vpack.c.b16 %v5534, %v5533
        %v5549 = vpack.c.b16 %v5536, %v5535
        %v5550 = vpack.c.b16 %v5538, %v5537
        %v5551 = vpack.c.b16 %v5540, %v5539
        %v5552 = vpack.c.b16 %v5542, %v5541
        %v5553 = vpack.c.b16 %v5543, %v5543
        %v5554 = vrot.slane %v5544, 2
        %v5555 = vrot.slane %v5545, 2
        %v5556 = vsel %vm2633, %v5554, %v5555
        %v5557 = vrot.slane %v5546, 2
        %v5558 = vsel %vm2633, %v5555, %v5557
        %v5559 = vrot.slane %v5547, 2
        %v5560 = vsel %vm2633, %v5557, %v5559
        %v5561 = vrot.slane %v5548, 2
        %v5562 = vsel %vm2633, %v5559, %v5561
        %v5563 = vrot.slane %v5549, 2
        %v5564 = vsel %vm2633, %v5561, %v5563
        %v5565 = vrot.slane %v5550, 2
        %v5566 = vsel %vm2633, %v5563, %v5565
        %v5567 = vrot.slane %v5551, 2
        %v5568 = vsel %vm2633, %v5565, %v5567
        %v5569 = vrot.slane %v5552, 2
        %v5570 = vsel %vm2633, %v5567, %v5569
        %v5571 = vrot.slane %v5553, 2
        %v5572 = vsel %vm2633, %v5569, %v5571
        %v5598 = vunpack.c.l.b16 %v5490
        %v5599 = vunpack.c.l.b16 %v5491
        %v5600 = vunpack.c.l.b16 %v5492
        %v5601 = vunpack.c.l.b16 %v5493
        %v5602 = vunpack.c.l.b16 %v5494
        %v5603 = vunpack.c.l.b16 %v5495
        %v5604 = vunpack.c.l.b16 %v5496
        %v5605 = vunpack.c.l.b16 %v5497
        %v5606 = vunpack.c.l.b16 %v5498
        %v5607 = vunpack.c.l.b16 %v5499
        %v5608 = vunpack.c.l.b16 %v5500
        %v5609 = vunpack.c.l.b16 %v5501
        %v5610 = vunpack.c.l.b16 %v5502
        %v5611 = vunpack.c.l.b16 %v5503
        %v5612 = vunpack.c.l.b16 %v5504
        %v5613 = vunpack.c.l.b16 %v5505
        %v5614 = vpack.c.b16 %v5599, %v5598
        %v5615 = vpack.c.b16 %v5601, %v5600
        %v5616 = vpack.c.b16 %v5603, %v5602
        %v5617 = vpack.c.b16 %v5605, %v5604
        %v5618 = vpack.c.b16 %v5607, %v5606
        %v5619 = vpack.c.b16 %v5609, %v5608
        %v5620 = vpack.c.b16 %v5611, %v5610
        %v5621 = vpack.c.b16 %v5613, %v5612
        %5630 = vmatprep.subr.bf16.mxu0 0
        %5631 = vmatpush1.bf16.msra.mxu0 %v5614
        %5632 = vmatprep.subr.bf16.mxu0 0
        %5633 = vmatpush1.bf16.msra.mxu0 %v5615
        %5634 = vmatprep.subr.bf16.mxu0 0
        %5635 = vmatpush1.bf16.msra.mxu0 %v5616
        %5636 = vmatprep.subr.bf16.mxu0 0
        %5637 = vmatpush1.bf16.msra.mxu0 %v5617
        %5638 = vmatprep.subr.bf16.mxu0 0
        %5639 = vmatpush1.bf16.msra.mxu0 %v5618
        %5640 = vmatprep.subr.bf16.mxu0 0
        %5641 = vmatpush1.bf16.msra.mxu0 %v5619
        %5642 = vmatprep.subr.bf16.mxu0 0
        %5643 = vmatpush1.bf16.msra.mxu0 %v5620
        %5644 = vmatprep.subr.bf16.mxu0 0
        %5645 = vmatpush1.bf16.msra.mxu0 %v5621
        %5646 = vmatprep.subr.bf16.mxu0 0
        %5647 = vmatpush1.bf16.msra.mxu0 0
        %5648 = vmatprep.subr.bf16.mxu0 0
        %5649 = vmatpush1.bf16.msra.mxu0 0
        %5650 = vmatprep.subr.bf16.mxu0 0
        %5651 = vmatpush1.bf16.msra.mxu0 0
        %5652 = vmatprep.subr.bf16.mxu0 0
        %5653 = vmatpush1.bf16.msra.mxu0 0
        %5654 = vmatprep.subr.bf16.mxu0 0
        %5655 = vmatpush1.bf16.msra.mxu0 0
        %5656 = vmatprep.subr.bf16.mxu0 0
        %5657 = vmatpush1.bf16.msra.mxu0 0
        %5658 = vmatprep.subr.bf16.mxu0 0
        %5659 = vmatpush1.bf16.msra.mxu0 0
        %5660 = vmatprep.subr.bf16.mxu0 0
        %5661 = vmatpush1.bf16.msra.mxu0 0
        %5662 = vmatprep.mubr.bf16.mxu0 0
        %5663 = vmatmul.mubr.bf16.gmra.mrb[0].mxu0 %v5556
        %v5664 = vpop.f32.mrb[0].mxu0
        %v5665 = vadd.f32 0.0, %v5664
        %v5666 = vpop.f32.mrb[0].mxu0
        %v5667 = vpop.f32.mrb[0].mxu0
        %v5668 = vadd.f32 0.0, %v5667
        %v5669 = vpop.f32.mrb[0].mxu0
        %5670 = vmatprep.mubr.bf16.mxu0 0
        %5671 = vmatmul.mubr.bf16.gmra.mrb[0].mxu0 %v5558
        %v5672 = vpop.f32.mrb[0].mxu0
        %v5673 = vadd.f32 0.0, %v5672
        %v5674 = vpop.f32.mrb[0].mxu0
        %v5675 = vpop.f32.mrb[0].mxu0
        %v5676 = vadd.f32 0.0, %v5675
        %v5677 = vpop.f32.mrb[0].mxu0
        %5678 = vmatprep.mubr.bf16.mxu0 0
        %5679 = vmatmul.mubr.bf16.gmra.mrb[0].mxu0 %v5560
        %v5680 = vpop.f32.mrb[0].mxu0
        %v5681 = vadd.f32 0.0, %v5680
        %v5682 = vpop.f32.mrb[0].mxu0
        %v5683 = vpop.f32.mrb[0].mxu0
        %v5684 = vadd.f32 0.0, %v5683
        %v5685 = vpop.f32.mrb[0].mxu0
        %5686 = vmatprep.mubr.bf16.mxu0 0
        %5687 = vmatmul.mubr.bf16.gmra.mrb[0].mxu0 %v5562
        %v5688 = vpop.f32.mrb[0].mxu0
        %v5689 = vadd.f32 0.0, %v5688
        %v5690 = vpop.f32.mrb[0].mxu0
        %v5691 = vpop.f32.mrb[0].mxu0
        %v5692 = vadd.f32 0.0, %v5691
        %v5693 = vpop.f32.mrb[0].mxu0
        %5694 = vmatprep.mubr.bf16.mxu0 0
        %5695 = vmatmul.mubr.bf16.gmra.mrb[0].mxu0 %v5564
        %v5696 = vpop.f32.mrb[0].mxu0
        %v5697 = vadd.f32 0.0, %v5696
        %v5698 = vpop.f32.mrb[0].mxu0
        %v5699 = vpop.f32.mrb[0].mxu0
        %v5700 = vadd.f32 0.0, %v5699
        %v5701 = vpop.f32.mrb[0].mxu0
        %5702 = vmatprep.mubr.bf16.mxu0 0
        %5703 = vmatmul.mubr.bf16.gmra.mrb[0].mxu0 %v5566
        %v5704 = vpop.f32.mrb[0].mxu0
        %v5705 = vadd.f32 0.0, %v5704
        %v5706 = vpop.f32.mrb[0].mxu0
        %v5707 = vpop.f32.mrb[0].mxu0
        %v5708 = vadd.f32 0.0, %v5707
        %v5709 = vpop.f32.mrb[0].mxu0
        %5710 = vmatprep.mubr.bf16.mxu0 0
        %5711 = vmatmul.mubr.bf16.gmra.mrb[0].mxu0 %v5568
        %v5712 = vpop.f32.mrb[0].mxu0
        %v5713 = vadd.f32 0.0, %v5712
        %v5714 = vpop.f32.mrb[0].mxu0
        %v5715 = vpop.f32.mrb[0].mxu0
        %v5716 = vadd.f32 0.0, %v5715
        %v5717 = vpop.f32.mrb[0].mxu0
        %5718 = vmatprep.mubr.bf16.mxu0 0
        %5719 = vmatmul.mubr.bf16.gmra.mrb[0].mxu0 %v5570
        %v5720 = vpop.f32.mrb[0].mxu0
        %v5721 = vadd.f32 0.0, %v5720
        %v5722 = vpop.f32.mrb[0].mxu0
        %v5723 = vpop.f32.mrb[0].mxu0
        %v5724 = vadd.f32 0.0, %v5723
        %v5725 = vpop.f32.mrb[0].mxu0
        %5726 = vmatprep.mubr.bf16.mxu0 0
        %5727 = vmatmul.mubr.bf16.gmra.mrb[0].mxu0 %v5572
        %v5728 = vpop.f32.mrb[0].mxu0
        %v5729 = vadd.f32 0.0, %v5728
        %v5730 = vpop.f32.mrb[0].mxu0
        %v5731 = vpop.f32.mrb[0].mxu0
        %v5732 = vadd.f32 0.0, %v5731
        %v5733 = vpop.f32.mrb[0].mxu0
        %5734 = vdwg.mxu0
        %v5735 = vadd.f32 %v5453, %v5665
        %v5736 = vadd.f32 %v5454, %v5668
        %v5737 = vadd.f32 %v5455, %v5673
        %v5738 = vadd.f32 %v5456, %v5676
        %v5739 = vadd.f32 %v5457, %v5681
        %v5740 = vadd.f32 %v5458, %v5684
        %v5741 = vadd.f32 %v5459, %v5689
        %v5742 = vadd.f32 %v5460, %v5692
        %v5743 = vadd.f32 %v5461, %v5697
        %v5744 = vadd.f32 %v5462, %v5700
        %v5745 = vadd.f32 %v5463, %v5705
        %v5746 = vadd.f32 %v5464, %v5708
        %v5747 = vadd.f32 %v5465, %v5713
        %v5748 = vadd.f32 %v5466, %v5716
        %v5749 = vadd.f32 %v5467, %v5721
        %v5750 = vadd.f32 %v5468, %v5724
        %v5751 = vadd.f32 %v5469, %v5729
        %v5752 = vadd.f32 %v5470, %v5732
        %v5753 = vld [vmem:[#allocation2 + $0xa0] sm:$0x7]
        %v5754 = vld [vmem:[%s3117] sm:$0xf]
        %v5755 = vld [vmem:[%s3117 + $0x4] sm:$0xf]
        %v5756 = vld [vmem:[%s3117 + $0x8] sm:$0xf]
        %v5757 = vld [vmem:[%s3117 + $0xc] sm:$0xf]
        %v5758 = vld [vmem:[%s3117 + $0x10] sm:$0xf]
        %v5759 = vld [vmem:[%s3117 + $0x14] sm:$0xf]
        %v5760 = vld [vmem:[%s3117 + $0x18] sm:$0xf]
        %v5761 = vld [vmem:[%s3117 + $0x1c] sm:$0xf]
        %v5762 = vld [vmem:[%s3117 + $0x20] sm:$0xf]
        %v5763 = vld [vmem:[%s3117 + $0x24] sm:$0xf]
        %v5764 = vld [vmem:[%s3117 + $0x28] sm:$0xf]
        %v5765 = vld [vmem:[%s3117 + $0x2c] sm:$0xf]
        %v5766 = vld [vmem:[%s3117 + $0x30] sm:$0xf]
        %v5767 = vld [vmem:[%s3117 + $0x34] sm:$0xf]
        %v5768 = vld [vmem:[%s3117 + $0x38] sm:$0xf]
        %v5769 = vld [vmem:[%s3117 + $0x3c] sm:$0xf]
        %v5771 = vunpack.c.l.b16 %v5753
        %v5772 = vpack.c.b16 %v5771, %v5771
        %v5774 = vshrl.u32 %v5544, 16
        %v5776 = vrot.slane %v5774, 2
        %v5777 = vshll.u32 %v5544, 16
        %v5779 = vrot.slane %v5777, 3
        %v5780 = vor.u32 %v5776, %v5779
        %v5782 = vshrl.u32 %v5545, 16
        %v5784 = vrot.slane %v5782, 2
        %v5785 = vshll.u32 %v5545, 16
        %v5787 = vrot.slane %v5785, 3
        %v5788 = vor.u32 %v5784, %v5787
        %v5789 = vsel %vm3137, %v5780, %v5788
        %v5791 = vshrl.u32 %v5546, 16
        %v5793 = vrot.slane %v5791, 2
        %v5794 = vshll.u32 %v5546, 16
        %v5796 = vrot.slane %v5794, 3
        %v5797 = vor.u32 %v5793, %v5796
        %v5798 = vsel %vm3137, %v5788, %v5797
        %v5800 = vshrl.u32 %v5547, 16
        %v5802 = vrot.slane %v5800, 2
        %v5803 = vshll.u32 %v5547, 16
        %v5805 = vrot.slane %v5803, 3
        %v5806 = vor.u32 %v5802, %v5805
        %v5807 = vsel %vm3137, %v5797, %v5806
        %v5809 = vshrl.u32 %v5548, 16
        %v5811 = vrot.slane %v5809, 2
        %v5812 = vshll.u32 %v5548, 16
        %v5814 = vrot.slane %v5812, 3
        %v5815 = vor.u32 %v5811, %v5814
        %v5816 = vsel %vm3137, %v5806, %v5815
        %v5818 = vshrl.u32 %v5549, 16
        %v5820 = vrot.slane %v5818, 2
        %v5821 = vshll.u32 %v5549, 16
        %v5823 = vrot.slane %v5821, 3
        %v5824 = vor.u32 %v5820, %v5823
        %v5825 = vsel %vm3137, %v5815, %v5824
        %v5827 = vshrl.u32 %v5550, 16
        %v5829 = vrot.slane %v5827, 2
        %v5830 = vshll.u32 %v5550, 16
        %v5832 = vrot.slane %v5830, 3
        %v5833 = vor.u32 %v5829, %v5832
        %v5834 = vsel %vm3137, %v5824, %v5833
        %v5836 = vshrl.u32 %v5551, 16
        %v5838 = vrot.slane %v5836, 2
        %v5839 = vshll.u32 %v5551, 16
        %v5841 = vrot.slane %v5839, 3
        %v5842 = vor.u32 %v5838, %v5841
        %v5843 = vsel %vm3137, %v5833, %v5842
        %v5845 = vshrl.u32 %v5552, 16
        %v5847 = vrot.slane %v5845, 2
        %v5848 = vshll.u32 %v5552, 16
        %v5850 = vrot.slane %v5848, 3
        %v5851 = vor.u32 %v5847, %v5850
        %v5852 = vsel %vm3137, %v5842, %v5851
        %v5854 = vshrl.u32 %v5772, 16
        %v5856 = vrot.slane %v5854, 2
        %v5857 = vshll.u32 %v5772, 16
        %v5859 = vrot.slane %v5857, 3
        %v5860 = vor.u32 %v5856, %v5859
        %v5861 = vsel %vm3137, %v5851, %v5860
        %v5887 = vunpack.c.l.b16 %v5754
        %v5888 = vunpack.c.l.b16 %v5755
        %v5889 = vunpack.c.l.b16 %v5756
        %v5890 = vunpack.c.l.b16 %v5757
        %v5891 = vunpack.c.l.b16 %v5758
        %v5892 = vunpack.c.l.b16 %v5759
        %v5893 = vunpack.c.l.b16 %v5760
        %v5894 = vunpack.c.l.b16 %v5761
        %v5895 = vunpack.c.l.b16 %v5762
        %v5896 = vunpack.c.l.b16 %v5763
        %v5897 = vunpack.c.l.b16 %v5764
        %v5898 = vunpack.c.l.b16 %v5765
        %v5899 = vunpack.c.l.b16 %v5766
        %v5900 = vunpack.c.l.b16 %v5767
        %v5901 = vunpack.c.l.b16 %v5768
        %v5902 = vunpack.c.l.b16 %v5769
        %v5903 = vpack.c.b16 %v5888, %v5887
        %v5904 = vpack.c.b16 %v5890, %v5889
        %v5905 = vpack.c.b16 %v5892, %v5891
        %v5906 = vpack.c.b16 %v5894, %v5893
        %v5907 = vpack.c.b16 %v5896, %v5895
        %v5908 = vpack.c.b16 %v5898, %v5897
        %v5909 = vpack.c.b16 %v5900, %v5899
        %v5910 = vpack.c.b16 %v5902, %v5901
        %5919 = vmatprep.subr.bf16.mxu0 0
        %5920 = vmatpush1.bf16.msra.mxu0 %v5903
        %5921 = vmatprep.subr.bf16.mxu0 0
        %5922 = vmatpush1.bf16.msra.mxu0 %v5904
        %5923 = vmatprep.subr.bf16.mxu0 0
        %5924 = vmatpush1.bf16.msra.mxu0 %v5905
        %5925 = vmatprep.subr.bf16.mxu0 0
        %5926 = vmatpush1.bf16.msra.mxu0 %v5906
        %5927 = vmatprep.subr.bf16.mxu0 0
        %5928 = vmatpush1.bf16.msra.mxu0 %v5907
        %5929 = vmatprep.subr.bf16.mxu0 0
        %5930 = vmatpush1.bf16.msra.mxu0 %v5908
        %5931 = vmatprep.subr.bf16.mxu0 0
        %5932 = vmatpush1.bf16.msra.mxu0 %v5909
        %5933 = vmatprep.subr.bf16.mxu0 0
        %5934 = vmatpush1.bf16.msra.mxu0 %v5910
        %5935 = vmatprep.subr.bf16.mxu0 0
        %5936 = vmatpush1.bf16.msra.mxu0 0
        %5937 = vmatprep.subr.bf16.mxu0 0
        %5938 = vmatpush1.bf16.msra.mxu0 0
        %5939 = vmatprep.subr.bf16.mxu0 0
        %5940 = vmatpush1.bf16.msra.mxu0 0
        %5941 = vmatprep.subr.bf16.mxu0 0
        %5942 = vmatpush1.bf16.msra.mxu0 0
        %5943 = vmatprep.subr.bf16.mxu0 0
        %5944 = vmatpush1.bf16.msra.mxu0 0
        %5945 = vmatprep.subr.bf16.mxu0 0
        %5946 = vmatpush1.bf16.msra.mxu0 0
        %5947 = vmatprep.subr.bf16.mxu0 0
        %5948 = vmatpush1.bf16.msra.mxu0 0
        %5949 = vmatprep.subr.bf16.mxu0 0
        %5950 = vmatpush1.bf16.msra.mxu0 0
        %5951 = vmatprep.mubr.bf16.mxu0 0
        %5952 = vmatmul.mubr.bf16.gmra.mrb[0].mxu0 %v5789
        %v5953 = vpop.f32.mrb[0].mxu0
        %v5954 = vadd.f32 0.0, %v5953
        %v5955 = vpop.f32.mrb[0].mxu0
        %v5956 = vpop.f32.mrb[0].mxu0
        %v5957 = vadd.f32 0.0, %v5956
        %v5958 = vpop.f32.mrb[0].mxu0
        %5959 = vmatprep.mubr.bf16.mxu0 0
        %5960 = vmatmul.mubr.bf16.gmra.mrb[0].mxu0 %v5798
        %v5961 = vpop.f32.mrb[0].mxu0
        %v5962 = vadd.f32 0.0, %v5961
        %v5963 = vpop.f32.mrb[0].mxu0
        %v5964 = vpop.f32.mrb[0].mxu0
        %v5965 = vadd.f32 0.0, %v5964
        %v5966 = vpop.f32.mrb[0].mxu0
        %5967 = vmatprep.mubr.bf16.mxu0 0
        %5968 = vmatmul.mubr.bf16.gmra.mrb[0].mxu0 %v5807
        %v5969 = vpop.f32.mrb[0].mxu0
        %v5970 = vadd.f32 0.0, %v5969
        %v5971 = vpop.f32.mrb[0].mxu0
        %v5972 = vpop.f32.mrb[0].mxu0
        %v5973 = vadd.f32 0.0, %v5972
        %v5974 = vpop.f32.mrb[0].mxu0
        %5975 = vmatprep.mubr.bf16.mxu0 0
        %5976 = vmatmul.mubr.bf16.gmra.mrb[0].mxu0 %v5816
        %v5977 = vpop.f32.mrb[0].mxu0
        %v5978 = vadd.f32 0.0, %v5977
        %v5979 = vpop.f32.mrb[0].mxu0
        %v5980 = vpop.f32.mrb[0].mxu0
        %v5981 = vadd.f32 0.0, %v5980
        %v5982 = vpop.f32.mrb[0].mxu0
        %5983 = vmatprep.mubr.bf16.mxu0 0
        %5984 = vmatmul.mubr.bf16.gmra.mrb[0].mxu0 %v5825
        %v5985 = vpop.f32.mrb[0].mxu0
        %v5986 = vadd.f32 0.0, %v5985
        %v5987 = vpop.f32.mrb[0].mxu0
        %v5988 = vpop.f32.mrb[0].mxu0
        %v5989 = vadd.f32 0.0, %v5988
        %v5990 = vpop.f32.mrb[0].mxu0
        %5991 = vmatprep.mubr.bf16.mxu0 0
        %5992 = vmatmul.mubr.bf16.gmra.mrb[0].mxu0 %v5834
        %v5993 = vpop.f32.mrb[0].mxu0
        %v5994 = vadd.f32 0.0, %v5993
        %v5995 = vpop.f32.mrb[0].mxu0
        %v5996 = vpop.f32.mrb[0].mxu0
        %v5997 = vadd.f32 0.0, %v5996
        %v5998 = vpop.f32.mrb[0].mxu0
        %5999 = vmatprep.mubr.bf16.mxu0 0
        %6000 = vmatmul.mubr.bf16.gmra.mrb[0].mxu0 %v5843
        %v6001 = vpop.f32.mrb[0].mxu0
        %v6002 = vadd.f32 0.0, %v6001
        %v6003 = vpop.f32.mrb[0].mxu0
        %v6004 = vpop.f32.mrb[0].mxu0
        %v6005 = vadd.f32 0.0, %v6004
        %v6006 = vpop.f32.mrb[0].mxu0
        %6007 = vmatprep.mubr.bf16.mxu0 0
        %6008 = vmatmul.mubr.bf16.gmra.mrb[0].mxu0 %v5852
        %v6009 = vpop.f32.mrb[0].mxu0
        %v6010 = vadd.f32 0.0, %v6009
        %v6011 = vpop.f32.mrb[0].mxu0
        %v6012 = vpop.f32.mrb[0].mxu0
        %v6013 = vadd.f32 0.0, %v6012
        %v6014 = vpop.f32.mrb[0].mxu0
        %6015 = vmatprep.mubr.bf16.mxu0 0
        %6016 = vmatmul.mubr.bf16.gmra.mrb[0].mxu0 %v5861
        %v6017 = vpop.f32.mrb[0].mxu0
        %v6018 = vadd.f32 0.0, %v6017
        %v6019 = vpop.f32.mrb[0].mxu0
        %v6020 = vpop.f32.mrb[0].mxu0
        %v6021 = vadd.f32 0.0, %v6020
        %v6022 = vpop.f32.mrb[0].mxu0
        %6023 = vdwg.mxu0
        %v6024 = vadd.f32 %v5735, %v5954
        %v6025 = vadd.f32 %v5736, %v5957
        %v6026 = vadd.f32 %v5737, %v5962
        %v6027 = vadd.f32 %v5738, %v5965
        %v6028 = vadd.f32 %v5739, %v5970
        %v6029 = vadd.f32 %v5740, %v5973
        %v6030 = vadd.f32 %v5741, %v5978
        %v6031 = vadd.f32 %v5742, %v5981
        %v6032 = vadd.f32 %v5743, %v5986
        %v6033 = vadd.f32 %v5744, %v5989
        %v6034 = vadd.f32 %v5745, %v5994
        %v6035 = vadd.f32 %v5746, %v5997
        %v6036 = vadd.f32 %v5747, %v6002
        %v6037 = vadd.f32 %v5748, %v6005
        %v6038 = vadd.f32 %v5749, %v6010
        %v6039 = vadd.f32 %v5750, %v6013
        %v6040 = vadd.f32 %v5751, %v6018
        %v6041 = vadd.f32 %v5752, %v6021
        %v6042 = vld [vmem:[#allocation2 + $0x58] sm:$0x8]
        %v6043 = vld [vmem:[%s3408] sm:$0xf]
        %v6044 = vld [vmem:[%s3408 + $0x4] sm:$0xf]
        %v6045 = vld [vmem:[%s3408 + $0x8] sm:$0xf]
        %v6046 = vld [vmem:[%s3408 + $0xc] sm:$0xf]
        %v6047 = vld [vmem:[%s3408 + $0x10] sm:$0xf]
        %v6048 = vld [vmem:[%s3408 + $0x14] sm:$0xf]
        %v6049 = vld [vmem:[%s3408 + $0x18] sm:$0xf]
        %v6050 = vld [vmem:[%s3408 + $0x1c] sm:$0xf]
        %v6051 = vld [vmem:[%s3408 + $0x20] sm:$0xf]
        %v6052 = vld [vmem:[%s3408 + $0x24] sm:$0xf]
        %v6053 = vld [vmem:[%s3408 + $0x28] sm:$0xf]
        %v6054 = vld [vmem:[%s3408 + $0x2c] sm:$0xf]
        %v6055 = vld [vmem:[%s3408 + $0x30] sm:$0xf]
        %v6056 = vld [vmem:[%s3408 + $0x34] sm:$0xf]
        %v6057 = vld [vmem:[%s3408 + $0x38] sm:$0xf]
        %v6058 = vld [vmem:[%s3408 + $0x3c] sm:$0xf]
        %v6060 = vunpack.c.l.b16 %v6042
        %v6061 = vpack.c.b16 %v5526, %v6060
        %v6062 = vrot.slane %v6061, 3
        %v6063 = vrot.slane %v5545, 3
        %v6064 = vsel %vm3428, %v6062, %v6063
        %v6065 = vrot.slane %v5546, 3
        %v6066 = vsel %vm3428, %v6063, %v6065
        %v6067 = vrot.slane %v5547, 3
        %v6068 = vsel %vm3428, %v6065, %v6067
        %v6069 = vrot.slane %v5548, 3
        %v6070 = vsel %vm3428, %v6067, %v6069
        %v6071 = vrot.slane %v5549, 3
        %v6072 = vsel %vm3428, %v6069, %v6071
        %v6073 = vrot.slane %v5550, 3
        %v6074 = vsel %vm3428, %v6071, %v6073
        %v6075 = vrot.slane %v5551, 3
        %v6076 = vsel %vm3428, %v6073, %v6075
        %v6077 = vrot.slane %v5552, 3
        %v6078 = vsel %vm3428, %v6075, %v6077
        %v6079 = vrot.slane %v5772, 3
        %v6080 = vsel %vm3428, %v6077, %v6079
        %v6106 = vunpack.c.l.b16 %v6043
        %v6107 = vunpack.c.l.b16 %v6044
        %v6108 = vunpack.c.l.b16 %v6045
        %v6109 = vunpack.c.l.b16 %v6046
        %v6110 = vunpack.c.l.b16 %v6047
        %v6111 = vunpack.c.l.b16 %v6048
        %v6112 = vunpack.c.l.b16 %v6049
        %v6113 = vunpack.c.l.b16 %v6050
        %v6114 = vunpack.c.l.b16 %v6051
        %v6115 = vunpack.c.l.b16 %v6052
        %v6116 = vunpack.c.l.b16 %v6053
        %v6117 = vunpack.c.l.b16 %v6054
        %v6118 = vunpack.c.l.b16 %v6055
        %v6119 = vunpack.c.l.b16 %v6056
        %v6120 = vunpack.c.l.b16 %v6057
        %v6121 = vunpack.c.l.b16 %v6058
        %v6122 = vpack.c.b16 %v6107, %v6106
        %v6123 = vpack.c.b16 %v6109, %v6108
        %v6124 = vpack.c.b16 %v6111, %v6110
        %v6125 = vpack.c.b16 %v6113, %v6112
        %v6126 = vpack.c.b16 %v6115, %v6114
        %v6127 = vpack.c.b16 %v6117, %v6116
        %v6128 = vpack.c.b16 %v6119, %v6118
        %v6129 = vpack.c.b16 %v6121, %v6120
        %6138 = vmatprep.subr.bf16.mxu0 0
        %6139 = vmatpush1.bf16.msra.mxu0 %v6122
        %6140 = vmatprep.subr.bf16.mxu0 0
        %6141 = vmatpush1.bf16.msra.mxu0 %v6123
        %6142 = vmatprep.subr.bf16.mxu0 0
        %6143 = vmatpush1.bf16.msra.mxu0 %v6124
        %6144 = vmatprep.subr.bf16.mxu0 0
        %6145 = vmatpush1.bf16.msra.mxu0 %v6125
        %6146 = vmatprep.subr.bf16.mxu0 0
        %6147 = vmatpush1.bf16.msra.mxu0 %v6126
        %6148 = vmatprep.subr.bf16.mxu0 0
        %6149 = vmatpush1.bf16.msra.mxu0 %v6127
        %6150 = vmatprep.subr.bf16.mxu0 0
        %6151 = vmatpush1.bf16.msra.mxu0 %v6128
        %6152 = vmatprep.subr.bf16.mxu0 0
        %6153 = vmatpush1.bf16.msra.mxu0 %v6129
        %6154 = vmatprep.subr.bf16.mxu0 0
        %6155 = vmatpush1.bf16.msra.mxu0 0
        %6156 = vmatprep.subr.bf16.mxu0 0
        %6157 = vmatpush1.bf16.msra.mxu0 0
        %6158 = vmatprep.subr.bf16.mxu0 0
        %6159 = vmatpush1.bf16.msra.mxu0 0
        %6160 = vmatprep.subr.bf16.mxu0 0
        %6161 = vmatpush1.bf16.msra.mxu0 0
        %6162 = vmatprep.subr.bf16.mxu0 0
        %6163 = vmatpush1.bf16.msra.mxu0 0
        %6164 = vmatprep.subr.bf16.mxu0 0
        %6165 = vmatpush1.bf16.msra.mxu0 0
        %6166 = vmatprep.subr.bf16.mxu0 0
        %6167 = vmatpush1.bf16.msra.mxu0 0
        %6168 = vmatprep.subr.bf16.mxu0 0
        %6169 = vmatpush1.bf16.msra.mxu0 0
        %6170 = vmatprep.mubr.bf16.mxu0 0
        %6171 = vmatmul.mubr.bf16.gmra.mrb[0].mxu0 %v6064
        %v6172 = vpop.f32.mrb[0].mxu0
        %v6173 = vadd.f32 0.0, %v6172
        %v6174 = vpop.f32.mrb[0].mxu0
        %v6175 = vpop.f32.mrb[0].mxu0
        %v6176 = vadd.f32 0.0, %v6175
        %v6177 = vpop.f32.mrb[0].mxu0
        %6178 = vmatprep.mubr.bf16.mxu0 0
        %6179 = vmatmul.mubr.bf16.gmra.mrb[0].mxu0 %v6066
        %v6180 = vpop.f32.mrb[0].mxu0
        %v6181 = vadd.f32 0.0, %v6180
        %v6182 = vpop.f32.mrb[0].mxu0
        %v6183 = vpop.f32.mrb[0].mxu0
        %v6184 = vadd.f32 0.0, %v6183
        %v6185 = vpop.f32.mrb[0].mxu0
        %6186 = vmatprep.mubr.bf16.mxu0 0
        %6187 = vmatmul.mubr.bf16.gmra.mrb[0].mxu0 %v6068
        %v6188 = vpop.f32.mrb[0].mxu0
        %v6189 = vadd.f32 0.0, %v6188
        %v6190 = vpop.f32.mrb[0].mxu0
        %v6191 = vpop.f32.mrb[0].mxu0
        %v6192 = vadd.f32 0.0, %v6191
        %v6193 = vpop.f32.mrb[0].mxu0
        %6194 = vmatprep.mubr.bf16.mxu0 0
        %6195 = vmatmul.mubr.bf16.gmra.mrb[0].mxu0 %v6070
        %v6196 = vpop.f32.mrb[0].mxu0
        %v6197 = vadd.f32 0.0, %v6196
        %v6198 = vpop.f32.mrb[0].mxu0
        %v6199 = vpop.f32.mrb[0].mxu0
        %v6200 = vadd.f32 0.0, %v6199
        %v6201 = vpop.f32.mrb[0].mxu0
        %6202 = vmatprep.mubr.bf16.mxu0 0
        %6203 = vmatmul.mubr.bf16.gmra.mrb[0].mxu0 %v6072
        %v6204 = vpop.f32.mrb[0].mxu0
        %v6205 = vadd.f32 0.0, %v6204
        %v6206 = vpop.f32.mrb[0].mxu0
        %v6207 = vpop.f32.mrb[0].mxu0
        %v6208 = vadd.f32 0.0, %v6207
        %v6209 = vpop.f32.mrb[0].mxu0
        %6210 = vmatprep.mubr.bf16.mxu0 0
        %6211 = vmatmul.mubr.bf16.gmra.mrb[0].mxu0 %v6074
        %v6212 = vpop.f32.mrb[0].mxu0
        %v6213 = vadd.f32 0.0, %v6212
        %v6214 = vpop.f32.mrb[0].mxu0
        %v6215 = vpop.f32.mrb[0].mxu0
        %v6216 = vadd.f32 0.0, %v6215
        %v6217 = vpop.f32.mrb[0].mxu0
        %6218 = vmatprep.mubr.bf16.mxu0 0
        %6219 = vmatmul.mubr.bf16.gmra.mrb[0].mxu0 %v6076
        %v6220 = vpop.f32.mrb[0].mxu0
        %v6221 = vadd.f32 0.0, %v6220
        %v6222 = vpop.f32.mrb[0].mxu0
        %v6223 = vpop.f32.mrb[0].mxu0
        %v6224 = vadd.f32 0.0, %v6223
        %v6225 = vpop.f32.mrb[0].mxu0
        %6226 = vmatprep.mubr.bf16.mxu0 0
        %6227 = vmatmul.mubr.bf16.gmra.mrb[0].mxu0 %v6078
        %v6228 = vpop.f32.mrb[0].mxu0
        %v6229 = vadd.f32 0.0, %v6228
        %v6230 = vpop.f32.mrb[0].mxu0
        %v6231 = vpop.f32.mrb[0].mxu0
        %v6232 = vadd.f32 0.0, %v6231
        %v6233 = vpop.f32.mrb[0].mxu0
        %6234 = vmatprep.mubr.bf16.mxu0 0
        %6235 = vmatmul.mubr.bf16.gmra.mrb[0].mxu0 %v6080
        %v6236 = vpop.f32.mrb[0].mxu0
        %v6237 = vadd.f32 0.0, %v6236
        %v6238 = vpop.f32.mrb[0].mxu0
        %v6239 = vpop.f32.mrb[0].mxu0
        %v6240 = vadd.f32 0.0, %v6239
        %v6241 = vpop.f32.mrb[0].mxu0
        %6242 = vdwg.mxu0
        %v6243 = vadd.f32 %v6024, %v6173
        %v6244 = vadd.f32 %v6025, %v6176
        %v6245 = vadd.f32 %v6026, %v6181
        %v6246 = vadd.f32 %v6027, %v6184
        %v6247 = vadd.f32 %v6028, %v6189
        %v6248 = vadd.f32 %v6029, %v6192
        %v6249 = vadd.f32 %v6030, %v6197
        %v6250 = vadd.f32 %v6031, %v6200
        %v6251 = vadd.f32 %v6032, %v6205
        %v6252 = vadd.f32 %v6033, %v6208
        %v6253 = vadd.f32 %v6034, %v6213
        %v6254 = vadd.f32 %v6035, %v6216
        %v6255 = vadd.f32 %v6036, %v6221
        %v6256 = vadd.f32 %v6037, %v6224
        %v6257 = vadd.f32 %v6038, %v6229
        %v6258 = vadd.f32 %v6039, %v6232
        %v6259 = vadd.f32 %v6040, %v6237
        %v6260 = vadd.f32 %v6041, %v6240
        %v6261 = vadd.f32 %v6243, %v3632
        %v6262 = vadd.f32 %v6244, %v3632
        %v6263 = vadd.f32 %v6245, %v3632
        %v6264 = vadd.f32 %v6246, %v3632
        %v6265 = vadd.f32 %v6247, %v3632
        %v6266 = vadd.f32 %v6248, %v3632
        %v6267 = vadd.f32 %v6249, %v3632
        %v6268 = vadd.f32 %v6250, %v3632
        %v6269 = vadd.f32 %v6251, %v3632
        %v6270 = vadd.f32 %v6252, %v3632
        %v6271 = vadd.f32 %v6253, %v3632
        %v6272 = vadd.f32 %v6254, %v3632
        %v6273 = vadd.f32 %v6255, %v3632
        %v6274 = vadd.f32 %v6256, %v3632
        %v6275 = vadd.f32 %v6257, %v3632
        %v6276 = vadd.f32 %v6258, %v3632
        %v6277 = vadd.f32 %v6259, %v3632
        %v6278 = vadd.f32 %v6260, %v3632
        %v6279 = vmax.f32 %v6261, 0.0
        %v6280 = vmax.f32 %v6262, 0.0
        %v6281 = vmax.f32 %v6263, 0.0
        %v6282 = vmax.f32 %v6264, 0.0
        %v6283 = vmax.f32 %v6265, 0.0
        %v6284 = vmax.f32 %v6266, 0.0
        %v6285 = vmax.f32 %v6267, 0.0
        %v6286 = vmax.f32 %v6268, 0.0
        %v6287 = vmax.f32 %v6269, 0.0
        %v6288 = vmax.f32 %v6270, 0.0
        %v6289 = vmax.f32 %v6271, 0.0
        %v6290 = vmax.f32 %v6272, 0.0
        %v6291 = vmax.f32 %v6273, 0.0
        %v6292 = vmax.f32 %v6274, 0.0
        %v6293 = vmax.f32 %v6275, 0.0
        %v6294 = vmax.f32 %v6276, 0.0
        %v6295 = vmax.f32 %v6277, 0.0
        %v6296 = vmax.f32 %v6278, 0.0
        %v6297 = vsel %vm1296, %v6279, 0.0
        %v6298 = vsel %vm1297, %v6280, 0.0
        %v6299 = vsel %vm1298, %v6281, 0.0
        %v6300 = vsel %vm1299, %v6282, 0.0
        %v6301 = vsel %vm1300, %v6283, 0.0
        %v6302 = vsel %vm1301, %v6284, 0.0
        %v6303 = vsel %vm1302, %v6285, 0.0
        %v6304 = vsel %vm1303, %v6286, 0.0
        %v6305 = vsel %vm1304, %v6287, 0.0
        %v6306 = vsel %vm1305, %v6288, 0.0
        %v6307 = vsel %vm1306, %v6289, 0.0
        %v6308 = vsel %vm1307, %v6290, 0.0
        %v6309 = vsel %vm1308, %v6291, 0.0
        %v6310 = vsel %vm1309, %v6292, 0.0
        %v6311 = vsel %vm1310, %v6293, 0.0
        %v6312 = vsel %vm1311, %v6294, 0.0
        %v6313 = vsel %vm1312, %v6295, 0.0
        %v6314 = vsel %vm1313, %v6296, 0.0
        %v6315 = vpack.c.bf16 %v6298, %v6297
        %v6316 = vpack.c.bf16 %v6300, %v6299
        %v6317 = vpack.c.bf16 %v6302, %v6301
        %v6318 = vpack.c.bf16 %v6304, %v6303
        %v6319 = vpack.c.bf16 %v6306, %v6305
        %v6320 = vpack.c.bf16 %v6308, %v6307
        %v6321 = vpack.c.bf16 %v6310, %v6309
        %v6322 = vpack.c.bf16 %v6312, %v6311
        %v6323 = vpack.c.bf16 %v6314, %v6313
        %v6333 = vunpack.c.l.b16 %v6315
        %v6334 = vunpack.c.h.b16 %v6315
        %v6335 = vunpack.c.l.b16 %v6316
        %v6336 = vunpack.c.h.b16 %v6316
        %v6337 = vunpack.c.l.b16 %v6317
        %v6338 = vunpack.c.h.b16 %v6317
        %v6339 = vunpack.c.l.b16 %v6318
        %v6340 = vunpack.c.h.b16 %v6318
        %v6341 = vunpack.c.l.b16 %v6319
        %v6342 = vunpack.c.h.b16 %v6319
        %v6343 = vunpack.c.l.b16 %v6320
        %v6344 = vunpack.c.h.b16 %v6320
        %v6345 = vunpack.c.l.b16 %v6321
        %v6346 = vunpack.c.h.b16 %v6321
        %v6347 = vunpack.c.l.b16 %v6322
        %v6348 = vunpack.c.h.b16 %v6322
        %v6349 = vunpack.c.l.b16 %v6323
        %v6350 = vunpack.c.h.b16 %v6323
        %v6351 = vpack.c.b16 %v6333, %v6333
        %v6352 = vpack.c.b16 %v6334, %v6334
        %v6353 = vpack.c.b16 %v6335, %v6335
        %v6354 = vpack.c.b16 %v6336, %v6336
        %v6355 = vpack.c.b16 %v6337, %v6337
        %v6356 = vpack.c.b16 %v6338, %v6338
        %v6357 = vpack.c.b16 %v6339, %v6339
        %v6358 = vpack.c.b16 %v6340, %v6340
        %v6359 = vpack.c.b16 %v6341, %v6341
        %v6360 = vpack.c.b16 %v6342, %v6342
        %v6361 = vpack.c.b16 %v6343, %v6343
        %v6362 = vpack.c.b16 %v6344, %v6344
        %v6363 = vpack.c.b16 %v6345, %v6345
        %v6364 = vpack.c.b16 %v6346, %v6346
        %v6365 = vpack.c.b16 %v6347, %v6347
        %v6366 = vpack.c.b16 %v6348, %v6348
        %v6367 = vpack.c.b16 %v6349, %v6349
        %v6368 = vpack.c.b16 %v6350, %v6350
        %v6370 = vshrl.u32 %v6351, 16
        %v6372 = vrot.slane %v6370, 6
        %v6373 = vshll.u32 %v6351, 16
        %v6375 = vrot.slane %v6373, 7
        %v6376 = vor.u32 %v6372, %v6375
        %v6377 = vrot.slane %v6376, 4
        %v6379 = vshrl.u32 %v6352, 16
        %v6381 = vrot.slane %v6379, 6
        %v6382 = vshll.u32 %v6352, 16
        %v6384 = vrot.slane %v6382, 7
        %v6385 = vor.u32 %v6381, %v6384
        %v6386 = vsel %vm369, %v6377, %v6385
        %v6387 = vrot.slane %v6385, 4
        %v6389 = vshrl.u32 %v6353, 16
        %v6391 = vrot.slane %v6389, 6
        %v6392 = vshll.u32 %v6353, 16
        %v6394 = vrot.slane %v6392, 7
        %v6395 = vor.u32 %v6391, %v6394
        %v6396 = vsel %vm369, %v6387, %v6395
        %v6397 = vrot.slane %v6395, 4
        %v6399 = vshrl.u32 %v6354, 16
        %v6401 = vrot.slane %v6399, 6
        %v6402 = vshll.u32 %v6354, 16
        %v6404 = vrot.slane %v6402, 7
        %v6405 = vor.u32 %v6401, %v6404
        %v6406 = vsel %vm369, %v6397, %v6405
        %v6407 = vrot.slane %v6405, 4
        %v6409 = vshrl.u32 %v6355, 16
        %v6411 = vrot.slane %v6409, 6
        %v6412 = vshll.u32 %v6355, 16
        %v6414 = vrot.slane %v6412, 7
        %v6415 = vor.u32 %v6411, %v6414
        %v6416 = vsel %vm369, %v6407, %v6415
        %v6417 = vrot.slane %v6415, 4
        %v6419 = vshrl.u32 %v6356, 16
        %v6421 = vrot.slane %v6419, 6
        %v6422 = vshll.u32 %v6356, 16
        %v6424 = vrot.slane %v6422, 7
        %v6425 = vor.u32 %v6421, %v6424
        %v6426 = vsel %vm369, %v6417, %v6425
        %v6427 = vrot.slane %v6425, 4
        %v6429 = vshrl.u32 %v6357, 16
        %v6431 = vrot.slane %v6429, 6
        %v6432 = vshll.u32 %v6357, 16
        %v6434 = vrot.slane %v6432, 7
        %v6435 = vor.u32 %v6431, %v6434
        %v6436 = vsel %vm369, %v6427, %v6435
        %v6437 = vrot.slane %v6435, 4
        %v6439 = vshrl.u32 %v6358, 16
        %v6441 = vrot.slane %v6439, 6
        %v6442 = vshll.u32 %v6358, 16
        %v6444 = vrot.slane %v6442, 7
        %v6445 = vor.u32 %v6441, %v6444
        %v6446 = vsel %vm369, %v6437, %v6445
        %v6447 = vrot.slane %v6445, 4
        %v6449 = vshrl.u32 %v6359, 16
        %v6451 = vrot.slane %v6449, 6
        %v6452 = vshll.u32 %v6359, 16
        %v6454 = vrot.slane %v6452, 7
        %v6455 = vor.u32 %v6451, %v6454
        %v6456 = vsel %vm369, %v6447, %v6455
        %v6457 = vrot.slane %v6455, 4
        %v6459 = vshrl.u32 %v6360, 16
        %v6461 = vrot.slane %v6459, 6
        %v6462 = vshll.u32 %v6360, 16
        %v6464 = vrot.slane %v6462, 7
        %v6465 = vor.u32 %v6461, %v6464
        %v6466 = vsel %vm369, %v6457, %v6465
        %v6467 = vrot.slane %v6465, 4
        %v6469 = vshrl.u32 %v6361, 16
        %v6471 = vrot.slane %v6469, 6
        %v6472 = vshll.u32 %v6361, 16
        %v6474 = vrot.slane %v6472, 7
        %v6475 = vor.u32 %v6471, %v6474
        %v6476 = vsel %vm369, %v6467, %v6475
        %v6477 = vrot.slane %v6475, 4
        %v6479 = vshrl.u32 %v6362, 16
        %v6481 = vrot.slane %v6479, 6
        %v6482 = vshll.u32 %v6362, 16
        %v6484 = vrot.slane %v6482, 7
        %v6485 = vor.u32 %v6481, %v6484
        %v6486 = vsel %vm369, %v6477, %v6485
        %v6487 = vrot.slane %v6485, 4
        %v6489 = vshrl.u32 %v6363, 16
        %v6491 = vrot.slane %v6489, 6
        %v6492 = vshll.u32 %v6363, 16
        %v6494 = vrot.slane %v6492, 7
        %v6495 = vor.u32 %v6491, %v6494
        %v6496 = vsel %vm369, %v6487, %v6495
        %v6497 = vrot.slane %v6495, 4
        %v6499 = vshrl.u32 %v6364, 16
        %v6501 = vrot.slane %v6499, 6
        %v6502 = vshll.u32 %v6364, 16
        %v6504 = vrot.slane %v6502, 7
        %v6505 = vor.u32 %v6501, %v6504
        %v6506 = vsel %vm369, %v6497, %v6505
        %v6507 = vrot.slane %v6505, 4
        %v6509 = vshrl.u32 %v6365, 16
        %v6511 = vrot.slane %v6509, 6
        %v6512 = vshll.u32 %v6365, 16
        %v6514 = vrot.slane %v6512, 7
        %v6515 = vor.u32 %v6511, %v6514
        %v6516 = vsel %vm369, %v6507, %v6515
        %v6517 = vrot.slane %v6515, 4
        %v6519 = vshrl.u32 %v6366, 16
        %v6521 = vrot.slane %v6519, 6
        %v6522 = vshll.u32 %v6366, 16
        %v6524 = vrot.slane %v6522, 7
        %v6525 = vor.u32 %v6521, %v6524
        %v6526 = vsel %vm369, %v6517, %v6525
        %v6527 = vrot.slane %v6525, 4
        %v6529 = vshrl.u32 %v6367, 16
        %v6531 = vrot.slane %v6529, 6
        %v6532 = vshll.u32 %v6367, 16
        %v6534 = vrot.slane %v6532, 7
        %v6535 = vor.u32 %v6531, %v6534
        %v6536 = vsel %vm369, %v6527, %v6535
        %v6537 = vrot.slane %v6535, 4
        %v6539 = vshrl.u32 %v6368, 16
        %v6541 = vrot.slane %v6539, 6
        %v6542 = vshll.u32 %v6368, 16
        %v6544 = vrot.slane %v6542, 7
        %v6545 = vor.u32 %v6541, %v6544
        %v6546 = vsel %vm369, %v6537, %v6545
        %v6547 = vrot.slane %v6545, 4
        %v6567 = vld [vmem:[#allocation3 + $0x50] sm:$0xe]
        %v6568 = vsel %vm394, %v6376, %v6567
        %6569 = vst [vmem:[#allocation3 + $0x50] sm:$0xe] %v6568
        %6570 = vst [vmem:[#allocation3 + $0x54] sm:$0xf] %v6386
        %6571 = vst [vmem:[#allocation3 + $0x58] sm:$0xf] %v6396
        %6572 = vst [vmem:[#allocation3 + $0x5c] sm:$0xf] %v6406
        %6573 = vst [vmem:[#allocation3 + $0x60] sm:$0xf] %v6416
        %6574 = vst [vmem:[#allocation3 + $0x64] sm:$0xf] %v6426
        %6575 = vst [vmem:[#allocation3 + $0x68] sm:$0xf] %v6436
        %6576 = vst [vmem:[#allocation3 + $0x6c] sm:$0xf] %v6446
        %6577 = vst [vmem:[#allocation3 + $0x70] sm:$0xf] %v6456
        %6578 = vst [vmem:[#allocation3 + $0x74] sm:$0xf] %v6466
        %6579 = vst [vmem:[#allocation3 + $0x78] sm:$0xf] %v6476
        %6580 = vst [vmem:[#allocation3 + $0x7c] sm:$0xf] %v6486
        %6581 = vst [vmem:[#allocation3 + $0x80] sm:$0xf] %v6496
        %6582 = vst [vmem:[#allocation3 + $0x84] sm:$0xf] %v6506
        %6583 = vst [vmem:[#allocation3 + $0x88] sm:$0xf] %v6516
        %6584 = vst [vmem:[#allocation3 + $0x8c] sm:$0xf] %v6526
        %6585 = vst [vmem:[#allocation3 + $0x90] sm:$0xf] %v6536
        %6586 = vst [vmem:[#allocation3 + $0x94] sm:$0xf] %v6546
        %v6587 = vld [vmem:[#allocation3 + $0x98] sm:$0x3]
        %v6588 = vsel %vm400, %v6547, %v6587
        %6589 = vst [vmem:[#allocation3 + $0x98] sm:$0x3] %v6588
        %v6590 = vld [vmem:[#allocation3] sm:$0xf]
        %v6591 = vld [vmem:[#allocation3 + $0x4] sm:$0xf]
        %v6592 = vld [vmem:[#allocation3 + $0x8] sm:$0xf]
        %v6593 = vld [vmem:[#allocation3 + $0xc] sm:$0xf]
        %v6594 = vld [vmem:[#allocation3 + $0x10] sm:$0xf]
        %v6595 = vld [vmem:[#allocation3 + $0x14] sm:$0xf]
        %v6596 = vld [vmem:[#allocation3 + $0x18] sm:$0xf]
        %v6597 = vld [vmem:[#allocation3 + $0x1c] sm:$0xf]
        %v6598 = vld [vmem:[#allocation3 + $0x20] sm:$0xf]
        %v6599 = vld [vmem:[#allocation3 + $0x24] sm:$0xf]
        %v6600 = vld [vmem:[#allocation3 + $0x28] sm:$0xf]
        %v6601 = vld [vmem:[#allocation3 + $0x2c] sm:$0xf]
        %v6602 = vld [vmem:[#allocation3 + $0x30] sm:$0xf]
        %v6603 = vld [vmem:[#allocation3 + $0x34] sm:$0xf]
        %v6604 = vld [vmem:[#allocation3 + $0x38] sm:$0xf]
        %v6605 = vld [vmem:[#allocation3 + $0x3c] sm:$0xf]
        %v6606 = vld [vmem:[#allocation3 + $0x40] sm:$0xf]
        %v6607 = vld [vmem:[#allocation3 + $0x44] sm:$0xf]
        %v6608 = vld [vmem:[#allocation9] sm:$0xf]
        %v6609 = vld [vmem:[#allocation9 + $0x4] sm:$0xf]
        %v6610 = vld [vmem:[#allocation9 + $0x8] sm:$0xf]
        %v6611 = vld [vmem:[#allocation9 + $0xc] sm:$0xf]
        %v6612 = vld [vmem:[#allocation9 + $0x10] sm:$0xf]
        %v6613 = vld [vmem:[#allocation9 + $0x14] sm:$0xf]
        %v6614 = vld [vmem:[#allocation9 + $0x18] sm:$0xf]
        %v6615 = vld [vmem:[#allocation9 + $0x1c] sm:$0xf]
        %v6616 = vld [vmem:[#allocation9 + $0x20] sm:$0xf]
        %v6617 = vld [vmem:[#allocation9 + $0x24] sm:$0xf]
        %v6618 = vld [vmem:[#allocation9 + $0x28] sm:$0xf]
        %v6619 = vld [vmem:[#allocation9 + $0x2c] sm:$0xf]
        %v6620 = vld [vmem:[#allocation9 + $0x30] sm:$0xf]
        %v6621 = vld [vmem:[#allocation9 + $0x34] sm:$0xf]
        %v6622 = vld [vmem:[#allocation9 + $0x38] sm:$0xf]
        %v6623 = vld [vmem:[#allocation9 + $0x3c] sm:$0xf]
        %v6624 = vld [vmem:[#allocation3 + $0x48] sm:$0x1]
        %s6625 = scalar_lea.vmem [#allocation9], 64
        %v6626 = vld [vmem:[%s6625] sm:$0xf]
        %v6627 = vld [vmem:[%s6625 + $0x4] sm:$0xf]
        %v6628 = vld [vmem:[%s6625 + $0x8] sm:$0xf]
        %v6629 = vld [vmem:[%s6625 + $0xc] sm:$0xf]
        %v6630 = vld [vmem:[%s6625 + $0x10] sm:$0xf]
        %v6631 = vld [vmem:[%s6625 + $0x14] sm:$0xf]
        %v6632 = vld [vmem:[%s6625 + $0x18] sm:$0xf]
        %v6633 = vld [vmem:[%s6625 + $0x1c] sm:$0xf]
        %v6634 = vld [vmem:[%s6625 + $0x20] sm:$0xf]
        %v6635 = vld [vmem:[%s6625 + $0x24] sm:$0xf]
        %v6636 = vld [vmem:[%s6625 + $0x28] sm:$0xf]
        %v6637 = vld [vmem:[%s6625 + $0x2c] sm:$0xf]
        %v6638 = vld [vmem:[%s6625 + $0x30] sm:$0xf]
        %v6639 = vld [vmem:[%s6625 + $0x34] sm:$0xf]
        %v6640 = vld [vmem:[%s6625 + $0x38] sm:$0xf]
        %v6641 = vld [vmem:[%s6625 + $0x3c] sm:$0xf]
        %v6661 = vunpack.c.l.b16 %v6590
        %v6662 = vunpack.c.l.b16 %v6591
        %v6663 = vunpack.c.l.b16 %v6592
        %v6664 = vunpack.c.l.b16 %v6593
        %v6665 = vunpack.c.l.b16 %v6594
        %v6666 = vunpack.c.l.b16 %v6595
        %v6667 = vunpack.c.l.b16 %v6596
        %v6668 = vunpack.c.l.b16 %v6597
        %v6669 = vunpack.c.l.b16 %v6598
        %v6670 = vunpack.c.l.b16 %v6599
        %v6671 = vunpack.c.l.b16 %v6600
        %v6672 = vunpack.c.l.b16 %v6601
        %v6673 = vunpack.c.l.b16 %v6602
        %v6674 = vunpack.c.l.b16 %v6603
        %v6675 = vunpack.c.l.b16 %v6604
        %v6676 = vunpack.c.l.b16 %v6605
        %v6677 = vunpack.c.l.b16 %v6606
        %v6678 = vunpack.c.l.b16 %v6607
        %v6679 = vunpack.c.l.b16 %v6624
        %v6680 = vpack.c.b16 %v6662, %v6661
        %v6681 = vpack.c.b16 %v6664, %v6663
        %v6682 = vpack.c.b16 %v6666, %v6665
        %v6683 = vpack.c.b16 %v6668, %v6667
        %v6684 = vpack.c.b16 %v6670, %v6669
        %v6685 = vpack.c.b16 %v6672, %v6671
        %v6686 = vpack.c.b16 %v6674, %v6673
        %v6687 = vpack.c.b16 %v6676, %v6675
        %v6688 = vpack.c.b16 %v6678, %v6677
        %v6689 = vpack.c.b16 %v6679, %v6679
        %v6691 = vshrl.u32 %v6680, 16
        %v6693 = vshll.u32 %v6680, 16
        %v6695 = vrot.slane %v6693, 1
        %v6696 = vor.u32 %v6691, %v6695
        %v6698 = vshll.u32 %v6681, 16
        %v6700 = vrot.slane %v6698, 1
        %v6701 = vsel %vm1416, %v6696, %v6700
        %v6702 = vshrl.u32 %v6681, 16
        %v6704 = vor.u32 %v6702, %v6700
        %v6706 = vshll.u32 %v6682, 16
        %v6708 = vrot.slane %v6706, 1
        %v6709 = vsel %vm1416, %v6704, %v6708
        %v6710 = vshrl.u32 %v6682, 16
        %v6712 = vor.u32 %v6710, %v6708
        %v6714 = vshll.u32 %v6683, 16
        %v6716 = vrot.slane %v6714, 1
        %v6717 = vsel %vm1416, %v6712, %v6716
        %v6718 = vshrl.u32 %v6683, 16
        %v6720 = vor.u32 %v6718, %v6716
        %v6722 = vshll.u32 %v6684, 16
        %v6724 = vrot.slane %v6722, 1
        %v6725 = vsel %vm1416, %v6720, %v6724
        %v6726 = vshrl.u32 %v6684, 16
        %v6728 = vor.u32 %v6726, %v6724
        %v6730 = vshll.u32 %v6685, 16
        %v6732 = vrot.slane %v6730, 1
        %v6733 = vsel %vm1416, %v6728, %v6732
        %v6734 = vshrl.u32 %v6685, 16
        %v6736 = vor.u32 %v6734, %v6732
        %v6738 = vshll.u32 %v6686, 16
        %v6740 = vrot.slane %v6738, 1
        %v6741 = vsel %vm1416, %v6736, %v6740
        %v6742 = vshrl.u32 %v6686, 16
        %v6744 = vor.u32 %v6742, %v6740
        %v6746 = vshll.u32 %v6687, 16
        %v6748 = vrot.slane %v6746, 1
        %v6749 = vsel %vm1416, %v6744, %v6748
        %v6750 = vshrl.u32 %v6687, 16
        %v6752 = vor.u32 %v6750, %v6748
        %v6754 = vshll.u32 %v6688, 16
        %v6756 = vrot.slane %v6754, 1
        %v6757 = vsel %vm1416, %v6752, %v6756
        %v6758 = vshrl.u32 %v6688, 16
        %v6760 = vor.u32 %v6758, %v6756
        %v6762 = vshll.u32 %v6689, 16
        %v6764 = vrot.slane %v6762, 1
        %v6765 = vsel %vm1416, %v6760, %v6764
        %v6791 = vunpack.c.l.b16 %v6626
        %v6792 = vunpack.c.l.b16 %v6627
        %v6793 = vunpack.c.l.b16 %v6628
        %v6794 = vunpack.c.l.b16 %v6629
        %v6795 = vunpack.c.l.b16 %v6630
        %v6796 = vunpack.c.l.b16 %v6631
        %v6797 = vunpack.c.l.b16 %v6632
        %v6798 = vunpack.c.l.b16 %v6633
        %v6799 = vunpack.c.l.b16 %v6634
        %v6800 = vunpack.c.l.b16 %v6635
        %v6801 = vunpack.c.l.b16 %v6636
        %v6802 = vunpack.c.l.b16 %v6637
        %v6803 = vunpack.c.l.b16 %v6638
        %v6804 = vunpack.c.l.b16 %v6639
        %v6805 = vunpack.c.l.b16 %v6640
        %v6806 = vunpack.c.l.b16 %v6641
        %v6807 = vpack.c.b16 %v6792, %v6791
        %v6808 = vpack.c.b16 %v6794, %v6793
        %v6809 = vpack.c.b16 %v6796, %v6795
        %v6810 = vpack.c.b16 %v6798, %v6797
        %v6811 = vpack.c.b16 %v6800, %v6799
        %v6812 = vpack.c.b16 %v6802, %v6801
        %v6813 = vpack.c.b16 %v6804, %v6803
        %v6814 = vpack.c.b16 %v6806, %v6805
        %6823 = vmatprep.subr.bf16.mxu0 0
        %6824 = vmatpush1.bf16.msra.mxu0 %v6807
        %6825 = vmatprep.subr.bf16.mxu0 0
        %6826 = vmatpush1.bf16.msra.mxu0 %v6808
        %6827 = vmatprep.subr.bf16.mxu0 0
        %6828 = vmatpush1.bf16.msra.mxu0 %v6809
        %6829 = vmatprep.subr.bf16.mxu0 0
        %6830 = vmatpush1.bf16.msra.mxu0 %v6810
        %6831 = vmatprep.subr.bf16.mxu0 0
        %6832 = vmatpush1.bf16.msra.mxu0 %v6811
        %6833 = vmatprep.subr.bf16.mxu0 0
        %6834 = vmatpush1.bf16.msra.mxu0 %v6812
        %6835 = vmatprep.subr.bf16.mxu0 0
        %6836 = vmatpush1.bf16.msra.mxu0 %v6813
        %6837 = vmatprep.subr.bf16.mxu0 0
        %6838 = vmatpush1.bf16.msra.mxu0 %v6814
        %6839 = vmatprep.subr.bf16.mxu0 0
        %6840 = vmatpush1.bf16.msra.mxu0 0
        %6841 = vmatprep.subr.bf16.mxu0 0
        %6842 = vmatpush1.bf16.msra.mxu0 0
        %6843 = vmatprep.subr.bf16.mxu0 0
        %6844 = vmatpush1.bf16.msra.mxu0 0
        %6845 = vmatprep.subr.bf16.mxu0 0
        %6846 = vmatpush1.bf16.msra.mxu0 0
        %6847 = vmatprep.subr.bf16.mxu0 0
        %6848 = vmatpush1.bf16.msra.mxu0 0
        %6849 = vmatprep.subr.bf16.mxu0 0
        %6850 = vmatpush1.bf16.msra.mxu0 0
        %6851 = vmatprep.subr.bf16.mxu0 0
        %6852 = vmatpush1.bf16.msra.mxu0 0
        %6853 = vmatprep.subr.bf16.mxu0 0
        %6854 = vmatpush1.bf16.msra.mxu0 0
        %6855 = vmatprep.mubr.bf16.mxu0 0
        %6856 = vmatmul.mubr.bf16.gmra.mrb[0].mxu0 %v6701
        %v6857 = vpop.f32.mrb[0].mxu0
        %v6858 = vadd.f32 0.0, %v6857
        %v6859 = vpop.f32.mrb[0].mxu0
        %v6860 = vpop.f32.mrb[0].mxu0
        %v6861 = vadd.f32 0.0, %v6860
        %v6862 = vpop.f32.mrb[0].mxu0
        %6863 = vmatprep.mubr.bf16.mxu0 0
        %6864 = vmatmul.mubr.bf16.gmra.mrb[0].mxu0 %v6709
        %v6865 = vpop.f32.mrb[0].mxu0
        %v6866 = vadd.f32 0.0, %v6865
        %v6867 = vpop.f32.mrb[0].mxu0
        %v6868 = vpop.f32.mrb[0].mxu0
        %v6869 = vadd.f32 0.0, %v6868
        %v6870 = vpop.f32.mrb[0].mxu0
        %6871 = vmatprep.mubr.bf16.mxu0 0
        %6872 = vmatmul.mubr.bf16.gmra.mrb[0].mxu0 %v6717
        %v6873 = vpop.f32.mrb[0].mxu0
        %v6874 = vadd.f32 0.0, %v6873
        %v6875 = vpop.f32.mrb[0].mxu0
        %v6876 = vpop.f32.mrb[0].mxu0
        %v6877 = vadd.f32 0.0, %v6876
        %v6878 = vpop.f32.mrb[0].mxu0
        %6879 = vmatprep.mubr.bf16.mxu0 0
        %6880 = vmatmul.mubr.bf16.gmra.mrb[0].mxu0 %v6725
        %v6881 = vpop.f32.mrb[0].mxu0
        %v6882 = vadd.f32 0.0, %v6881
        %v6883 = vpop.f32.mrb[0].mxu0
        %v6884 = vpop.f32.mrb[0].mxu0
        %v6885 = vadd.f32 0.0, %v6884
        %v6886 = vpop.f32.mrb[0].mxu0
        %6887 = vmatprep.mubr.bf16.mxu0 0
        %6888 = vmatmul.mubr.bf16.gmra.mrb[0].mxu0 %v6733
        %v6889 = vpop.f32.mrb[0].mxu0
        %v6890 = vadd.f32 0.0, %v6889
        %v6891 = vpop.f32.mrb[0].mxu0
        %v6892 = vpop.f32.mrb[0].mxu0
        %v6893 = vadd.f32 0.0, %v6892
        %v6894 = vpop.f32.mrb[0].mxu0
        %6895 = vmatprep.mubr.bf16.mxu0 0
        %6896 = vmatmul.mubr.bf16.gmra.mrb[0].mxu0 %v6741
        %v6897 = vpop.f32.mrb[0].mxu0
        %v6898 = vadd.f32 0.0, %v6897
        %v6899 = vpop.f32.mrb[0].mxu0
        %v6900 = vpop.f32.mrb[0].mxu0
        %v6901 = vadd.f32 0.0, %v6900
        %v6902 = vpop.f32.mrb[0].mxu0
        %6903 = vmatprep.mubr.bf16.mxu0 0
        %6904 = vmatmul.mubr.bf16.gmra.mrb[0].mxu0 %v6749
        %v6905 = vpop.f32.mrb[0].mxu0
        %v6906 = vadd.f32 0.0, %v6905
        %v6907 = vpop.f32.mrb[0].mxu0
        %v6908 = vpop.f32.mrb[0].mxu0
        %v6909 = vadd.f32 0.0, %v6908
        %v6910 = vpop.f32.mrb[0].mxu0
        %6911 = vmatprep.mubr.bf16.mxu0 0
        %6912 = vmatmul.mubr.bf16.gmra.mrb[0].mxu0 %v6757
        %v6913 = vpop.f32.mrb[0].mxu0
        %v6914 = vadd.f32 0.0, %v6913
        %v6915 = vpop.f32.mrb[0].mxu0
        %v6916 = vpop.f32.mrb[0].mxu0
        %v6917 = vadd.f32 0.0, %v6916
        %v6918 = vpop.f32.mrb[0].mxu0
        %6919 = vmatprep.mubr.bf16.mxu0 0
        %6920 = vmatmul.mubr.bf16.gmra.mrb[0].mxu0 %v6765
        %v6921 = vpop.f32.mrb[0].mxu0
        %v6922 = vadd.f32 0.0, %v6921
        %v6923 = vpop.f32.mrb[0].mxu0
        %v6924 = vpop.f32.mrb[0].mxu0
        %v6925 = vadd.f32 0.0, %v6924
        %v6926 = vpop.f32.mrb[0].mxu0
        %6927 = vdwg.mxu0
        %v6953 = vunpack.c.l.b16 %v6608
        %v6954 = vunpack.c.l.b16 %v6609
        %v6955 = vunpack.c.l.b16 %v6610
        %v6956 = vunpack.c.l.b16 %v6611
        %v6957 = vunpack.c.l.b16 %v6612
        %v6958 = vunpack.c.l.b16 %v6613
        %v6959 = vunpack.c.l.b16 %v6614
        %v6960 = vunpack.c.l.b16 %v6615
        %v6961 = vunpack.c.l.b16 %v6616
        %v6962 = vunpack.c.l.b16 %v6617
        %v6963 = vunpack.c.l.b16 %v6618
        %v6964 = vunpack.c.l.b16 %v6619
        %v6965 = vunpack.c.l.b16 %v6620
        %v6966 = vunpack.c.l.b16 %v6621
        %v6967 = vunpack.c.l.b16 %v6622
        %v6968 = vunpack.c.l.b16 %v6623
        %v6969 = vpack.c.b16 %v6954, %v6953
        %v6970 = vpack.c.b16 %v6956, %v6955
        %v6971 = vpack.c.b16 %v6958, %v6957
        %v6972 = vpack.c.b16 %v6960, %v6959
        %v6973 = vpack.c.b16 %v6962, %v6961
        %v6974 = vpack.c.b16 %v6964, %v6963
        %v6975 = vpack.c.b16 %v6966, %v6965
        %v6976 = vpack.c.b16 %v6968, %v6967
        %6985 = vmatprep.subr.bf16.mxu0 0
        %6986 = vmatpush1.bf16.msra.mxu0 %v6969
        %6987 = vmatprep.subr.bf16.mxu0 0
        %6988 = vmatpush1.bf16.msra.mxu0 %v6970
        %6989 = vmatprep.subr.bf16.mxu0 0
        %6990 = vmatpush1.bf16.msra.mxu0 %v6971
        %6991 = vmatprep.subr.bf16.mxu0 0
        %6992 = vmatpush1.bf16.msra.mxu0 %v6972
        %6993 = vmatprep.subr.bf16.mxu0 0
        %6994 = vmatpush1.bf16.msra.mxu0 %v6973
        %6995 = vmatprep.subr.bf16.mxu0 0
        %6996 = vmatpush1.bf16.msra.mxu0 %v6974
        %6997 = vmatprep.subr.bf16.mxu0 0
        %6998 = vmatpush1.bf16.msra.mxu0 %v6975
        %6999 = vmatprep.subr.bf16.mxu0 0
        %7000 = vmatpush1.bf16.msra.mxu0 %v6976
        %7001 = vmatprep.subr.bf16.mxu0 0
        %7002 = vmatpush1.bf16.msra.mxu0 0
        %7003 = vmatprep.subr.bf16.mxu0 0
        %7004 = vmatpush1.bf16.msra.mxu0 0
        %7005 = vmatprep.subr.bf16.mxu0 0
        %7006 = vmatpush1.bf16.msra.mxu0 0
        %7007 = vmatprep.subr.bf16.mxu0 0
        %7008 = vmatpush1.bf16.msra.mxu0 0
        %7009 = vmatprep.subr.bf16.mxu0 0
        %7010 = vmatpush1.bf16.msra.mxu0 0
        %7011 = vmatprep.subr.bf16.mxu0 0
        %7012 = vmatpush1.bf16.msra.mxu0 0
        %7013 = vmatprep.subr.bf16.mxu0 0
        %7014 = vmatpush1.bf16.msra.mxu0 0
        %7015 = vmatprep.subr.bf16.mxu0 0
        %7016 = vmatpush1.bf16.msra.mxu0 0
        %7017 = vmatprep.mubr.bf16.mxu0 0
        %7018 = vmatmul.mubr.bf16.gmra.mrb[0].mxu0 %v6680
        %v7019 = vpop.f32.mrb[0].mxu0
        %v7020 = vadd.f32 %v6858, %v7019
        %v7021 = vpop.f32.mrb[0].mxu0
        %v7022 = vpop.f32.mrb[0].mxu0
        %v7023 = vadd.f32 %v6861, %v7022
        %v7024 = vpop.f32.mrb[0].mxu0
        %7025 = vmatprep.mubr.bf16.mxu0 0
        %7026 = vmatmul.mubr.bf16.gmra.mrb[0].mxu0 %v6681
        %v7027 = vpop.f32.mrb[0].mxu0
        %v7028 = vadd.f32 %v6866, %v7027
        %v7029 = vpop.f32.mrb[0].mxu0
        %v7030 = vpop.f32.mrb[0].mxu0
        %v7031 = vadd.f32 %v6869, %v7030
        %v7032 = vpop.f32.mrb[0].mxu0
        %7033 = vmatprep.mubr.bf16.mxu0 0
        %7034 = vmatmul.mubr.bf16.gmra.mrb[0].mxu0 %v6682
        %v7035 = vpop.f32.mrb[0].mxu0
        %v7036 = vadd.f32 %v6874, %v7035
        %v7037 = vpop.f32.mrb[0].mxu0
        %v7038 = vpop.f32.mrb[0].mxu0
        %v7039 = vadd.f32 %v6877, %v7038
        %v7040 = vpop.f32.mrb[0].mxu0
        %7041 = vmatprep.mubr.bf16.mxu0 0
        %7042 = vmatmul.mubr.bf16.gmra.mrb[0].mxu0 %v6683
        %v7043 = vpop.f32.mrb[0].mxu0
        %v7044 = vadd.f32 %v6882, %v7043
        %v7045 = vpop.f32.mrb[0].mxu0
        %v7046 = vpop.f32.mrb[0].mxu0
        %v7047 = vadd.f32 %v6885, %v7046
        %v7048 = vpop.f32.mrb[0].mxu0
        %7049 = vmatprep.mubr.bf16.mxu0 0
        %7050 = vmatmul.mubr.bf16.gmra.mrb[0].mxu0 %v6684
        %v7051 = vpop.f32.mrb[0].mxu0
        %v7052 = vadd.f32 %v6890, %v7051
        %v7053 = vpop.f32.mrb[0].mxu0
        %v7054 = vpop.f32.mrb[0].mxu0
        %v7055 = vadd.f32 %v6893, %v7054
        %v7056 = vpop.f32.mrb[0].mxu0
        %7057 = vmatprep.mubr.bf16.mxu0 0
        %7058 = vmatmul.mubr.bf16.gmra.mrb[0].mxu0 %v6685
        %v7059 = vpop.f32.mrb[0].mxu0
        %v7060 = vadd.f32 %v6898, %v7059
        %v7061 = vpop.f32.mrb[0].mxu0
        %v7062 = vpop.f32.mrb[0].mxu0
        %v7063 = vadd.f32 %v6901, %v7062
        %v7064 = vpop.f32.mrb[0].mxu0
        %7065 = vmatprep.mubr.bf16.mxu0 0
        %7066 = vmatmul.mubr.bf16.gmra.mrb[0].mxu0 %v6686
        %v7067 = vpop.f32.mrb[0].mxu0
        %v7068 = vadd.f32 %v6906, %v7067
        %v7069 = vpop.f32.mrb[0].mxu0
        %v7070 = vpop.f32.mrb[0].mxu0
        %v7071 = vadd.f32 %v6909, %v7070
        %v7072 = vpop.f32.mrb[0].mxu0
        %7073 = vmatprep.mubr.bf16.mxu0 0
        %7074 = vmatmul.mubr.bf16.gmra.mrb[0].mxu0 %v6687
        %v7075 = vpop.f32.mrb[0].mxu0
        %v7076 = vadd.f32 %v6914, %v7075
        %v7077 = vpop.f32.mrb[0].mxu0
        %v7078 = vpop.f32.mrb[0].mxu0
        %v7079 = vadd.f32 %v6917, %v7078
        %v7080 = vpop.f32.mrb[0].mxu0
        %7081 = vmatprep.mubr.bf16.mxu0 0
        %7082 = vmatmul.mubr.bf16.gmra.mrb[0].mxu0 %v6688
        %v7083 = vpop.f32.mrb[0].mxu0
        %v7084 = vadd.f32 %v6922, %v7083
        %v7085 = vpop.f32.mrb[0].mxu0
        %v7086 = vpop.f32.mrb[0].mxu0
        %v7087 = vadd.f32 %v6925, %v7086
        %v7088 = vpop.f32.mrb[0].mxu0
        %7089 = vdwg.mxu0
        %v7090 = vld [vmem:[#allocation3] sm:$0xe]
        %s7091 = scalar_lea.vmem [#allocation9], 128
        %v7092 = vld [vmem:[%s7091] sm:$0xf]
        %v7093 = vld [vmem:[%s7091 + $0x4] sm:$0xf]
        %v7094 = vld [vmem:[%s7091 + $0x8] sm:$0xf]
        %v7095 = vld [vmem:[%s7091 + $0xc] sm:$0xf]
        %v7096 = vld [vmem:[%s7091 + $0x10] sm:$0xf]
        %v7097 = vld [vmem:[%s7091 + $0x14] sm:$0xf]
        %v7098 = vld [vmem:[%s7091 + $0x18] sm:$0xf]
        %v7099 = vld [vmem:[%s7091 + $0x1c] sm:$0xf]
        %v7100 = vld [vmem:[%s7091 + $0x20] sm:$0xf]
        %v7101 = vld [vmem:[%s7091 + $0x24] sm:$0xf]
        %v7102 = vld [vmem:[%s7091 + $0x28] sm:$0xf]
        %v7103 = vld [vmem:[%s7091 + $0x2c] sm:$0xf]
        %v7104 = vld [vmem:[%s7091 + $0x30] sm:$0xf]
        %v7105 = vld [vmem:[%s7091 + $0x34] sm:$0xf]
        %v7106 = vld [vmem:[%s7091 + $0x38] sm:$0xf]
        %v7107 = vld [vmem:[%s7091 + $0x3c] sm:$0xf]
        %v7109 = vunpack.c.l.b16 %v7090
        %v7110 = vpack.c.b16 %v6662, %v7109
        %v7111 = vrot.slane %v7110, 1
        %v7112 = vrot.slane %v6681, 1
        %v7113 = vsel %vm1838, %v7111, %v7112
        %v7114 = vrot.slane %v6682, 1
        %v7115 = vsel %vm1838, %v7112, %v7114
        %v7116 = vrot.slane %v6683, 1
        %v7117 = vsel %vm1838, %v7114, %v7116
        %v7118 = vrot.slane %v6684, 1
        %v7119 = vsel %vm1838, %v7116, %v7118
        %v7120 = vrot.slane %v6685, 1
        %v7121 = vsel %vm1838, %v7118, %v7120
        %v7122 = vrot.slane %v6686, 1
        %v7123 = vsel %vm1838, %v7120, %v7122
        %v7124 = vrot.slane %v6687, 1
        %v7125 = vsel %vm1838, %v7122, %v7124
        %v7126 = vrot.slane %v6688, 1
        %v7127 = vsel %vm1838, %v7124, %v7126
        %v7128 = vrot.slane %v6689, 1
        %v7129 = vsel %vm1838, %v7126, %v7128
        %v7155 = vunpack.c.l.b16 %v7092
        %v7156 = vunpack.c.l.b16 %v7093
        %v7157 = vunpack.c.l.b16 %v7094
        %v7158 = vunpack.c.l.b16 %v7095
        %v7159 = vunpack.c.l.b16 %v7096
        %v7160 = vunpack.c.l.b16 %v7097
        %v7161 = vunpack.c.l.b16 %v7098
        %v7162 = vunpack.c.l.b16 %v7099
        %v7163 = vunpack.c.l.b16 %v7100
        %v7164 = vunpack.c.l.b16 %v7101
        %v7165 = vunpack.c.l.b16 %v7102
        %v7166 = vunpack.c.l.b16 %v7103
        %v7167 = vunpack.c.l.b16 %v7104
        %v7168 = vunpack.c.l.b16 %v7105
        %v7169 = vunpack.c.l.b16 %v7106
        %v7170 = vunpack.c.l.b16 %v7107
        %v7171 = vpack.c.b16 %v7156, %v7155
        %v7172 = vpack.c.b16 %v7158, %v7157
        %v7173 = vpack.c.b16 %v7160, %v7159
        %v7174 = vpack.c.b16 %v7162, %v7161
        %v7175 = vpack.c.b16 %v7164, %v7163
        %v7176 = vpack.c.b16 %v7166, %v7165
        %v7177 = vpack.c.b16 %v7168, %v7167
        %v7178 = vpack.c.b16 %v7170, %v7169
        %7187 = vmatprep.subr.bf16.mxu0 0
        %7188 = vmatpush1.bf16.msra.mxu0 %v7171
        %7189 = vmatprep.subr.bf16.mxu0 0
        %7190 = vmatpush1.bf16.msra.mxu0 %v7172
        %7191 = vmatprep.subr.bf16.mxu0 0
        %7192 = vmatpush1.bf16.msra.mxu0 %v7173
        %7193 = vmatprep.subr.bf16.mxu0 0
        %7194 = vmatpush1.bf16.msra.mxu0 %v7174
        %7195 = vmatprep.subr.bf16.mxu0 0
        %7196 = vmatpush1.bf16.msra.mxu0 %v7175
        %7197 = vmatprep.subr.bf16.mxu0 0
        %7198 = vmatpush1.bf16.msra.mxu0 %v7176
        %7199 = vmatprep.subr.bf16.mxu0 0
        %7200 = vmatpush1.bf16.msra.mxu0 %v7177
        %7201 = vmatprep.subr.bf16.mxu0 0
        %7202 = vmatpush1.bf16.msra.mxu0 %v7178
        %7203 = vmatprep.subr.bf16.mxu0 0
        %7204 = vmatpush1.bf16.msra.mxu0 0
        %7205 = vmatprep.subr.bf16.mxu0 0
        %7206 = vmatpush1.bf16.msra.mxu0 0
        %7207 = vmatprep.subr.bf16.mxu0 0
        %7208 = vmatpush1.bf16.msra.mxu0 0
        %7209 = vmatprep.subr.bf16.mxu0 0
        %7210 = vmatpush1.bf16.msra.mxu0 0
        %7211 = vmatprep.subr.bf16.mxu0 0
        %7212 = vmatpush1.bf16.msra.mxu0 0
        %7213 = vmatprep.subr.bf16.mxu0 0
        %7214 = vmatpush1.bf16.msra.mxu0 0
        %7215 = vmatprep.subr.bf16.mxu0 0
        %7216 = vmatpush1.bf16.msra.mxu0 0
        %7217 = vmatprep.subr.bf16.mxu0 0
        %7218 = vmatpush1.bf16.msra.mxu0 0
        %7219 = vmatprep.mubr.bf16.mxu0 0
        %7220 = vmatmul.mubr.bf16.gmra.mrb[0].mxu0 %v7113
        %v7221 = vpop.f32.mrb[0].mxu0
        %v7222 = vadd.f32 0.0, %v7221
        %v7223 = vpop.f32.mrb[0].mxu0
        %v7224 = vpop.f32.mrb[0].mxu0
        %v7225 = vadd.f32 0.0, %v7224
        %v7226 = vpop.f32.mrb[0].mxu0
        %7227 = vmatprep.mubr.bf16.mxu0 0
        %7228 = vmatmul.mubr.bf16.gmra.mrb[0].mxu0 %v7115
        %v7229 = vpop.f32.mrb[0].mxu0
        %v7230 = vadd.f32 0.0, %v7229
        %v7231 = vpop.f32.mrb[0].mxu0
        %v7232 = vpop.f32.mrb[0].mxu0
        %v7233 = vadd.f32 0.0, %v7232
        %v7234 = vpop.f32.mrb[0].mxu0
        %7235 = vmatprep.mubr.bf16.mxu0 0
        %7236 = vmatmul.mubr.bf16.gmra.mrb[0].mxu0 %v7117
        %v7237 = vpop.f32.mrb[0].mxu0
        %v7238 = vadd.f32 0.0, %v7237
        %v7239 = vpop.f32.mrb[0].mxu0
        %v7240 = vpop.f32.mrb[0].mxu0
        %v7241 = vadd.f32 0.0, %v7240
        %v7242 = vpop.f32.mrb[0].mxu0
        %7243 = vmatprep.mubr.bf16.mxu0 0
        %7244 = vmatmul.mubr.bf16.gmra.mrb[0].mxu0 %v7119
        %v7245 = vpop.f32.mrb[0].mxu0
        %v7246 = vadd.f32 0.0, %v7245
        %v7247 = vpop.f32.mrb[0].mxu0
        %v7248 = vpop.f32.mrb[0].mxu0
        %v7249 = vadd.f32 0.0, %v7248
        %v7250 = vpop.f32.mrb[0].mxu0
        %7251 = vmatprep.mubr.bf16.mxu0 0
        %7252 = vmatmul.mubr.bf16.gmra.mrb[0].mxu0 %v7121
        %v7253 = vpop.f32.mrb[0].mxu0
        %v7254 = vadd.f32 0.0, %v7253
        %v7255 = vpop.f32.mrb[0].mxu0
        %v7256 = vpop.f32.mrb[0].mxu0
        %v7257 = vadd.f32 0.0, %v7256
        %v7258 = vpop.f32.mrb[0].mxu0
        %7259 = vmatprep.mubr.bf16.mxu0 0
        %7260 = vmatmul.mubr.bf16.gmra.mrb[0].mxu0 %v7123
        %v7261 = vpop.f32.mrb[0].mxu0
        %v7262 = vadd.f32 0.0, %v7261
        %v7263 = vpop.f32.mrb[0].mxu0
        %v7264 = vpop.f32.mrb[0].mxu0
        %v7265 = vadd.f32 0.0, %v7264
        %v7266 = vpop.f32.mrb[0].mxu0
        %7267 = vmatprep.mubr.bf16.mxu0 0
        %7268 = vmatmul.mubr.bf16.gmra.mrb[0].mxu0 %v7125
        %v7269 = vpop.f32.mrb[0].mxu0
        %v7270 = vadd.f32 0.0, %v7269
        %v7271 = vpop.f32.mrb[0].mxu0
        %v7272 = vpop.f32.mrb[0].mxu0
        %v7273 = vadd.f32 0.0, %v7272
        %v7274 = vpop.f32.mrb[0].mxu0
        %7275 = vmatprep.mubr.bf16.mxu0 0
        %7276 = vmatmul.mubr.bf16.gmra.mrb[0].mxu0 %v7127
        %v7277 = vpop.f32.mrb[0].mxu0
        %v7278 = vadd.f32 0.0, %v7277
        %v7279 = vpop.f32.mrb[0].mxu0
        %v7280 = vpop.f32.mrb[0].mxu0
        %v7281 = vadd.f32 0.0, %v7280
        %v7282 = vpop.f32.mrb[0].mxu0
        %7283 = vmatprep.mubr.bf16.mxu0 0
        %7284 = vmatmul.mubr.bf16.gmra.mrb[0].mxu0 %v7129
        %v7285 = vpop.f32.mrb[0].mxu0
        %v7286 = vadd.f32 0.0, %v7285
        %v7287 = vpop.f32.mrb[0].mxu0
        %v7288 = vpop.f32.mrb[0].mxu0
        %v7289 = vadd.f32 0.0, %v7288
        %v7290 = vpop.f32.mrb[0].mxu0
        %7291 = vdwg.mxu0
        %v7292 = vadd.f32 %v7020, %v7222
        %v7293 = vadd.f32 %v7023, %v7225
        %v7294 = vadd.f32 %v7028, %v7230
        %v7295 = vadd.f32 %v7031, %v7233
        %v7296 = vadd.f32 %v7036, %v7238
        %v7297 = vadd.f32 %v7039, %v7241
        %v7298 = vadd.f32 %v7044, %v7246
        %v7299 = vadd.f32 %v7047, %v7249
        %v7300 = vadd.f32 %v7052, %v7254
        %v7301 = vadd.f32 %v7055, %v7257
        %v7302 = vadd.f32 %v7060, %v7262
        %v7303 = vadd.f32 %v7063, %v7265
        %v7304 = vadd.f32 %v7068, %v7270
        %v7305 = vadd.f32 %v7071, %v7273
        %v7306 = vadd.f32 %v7076, %v7278
        %v7307 = vadd.f32 %v7079, %v7281
        %v7308 = vadd.f32 %v7084, %v7286
        %v7309 = vadd.f32 %v7087, %v7289
        %v7310 = vld [vmem:[#allocation3 + $0x8] sm:$0xe]
        %v7311 = vld [vmem:[#allocation3 + $0xc] sm:$0xf]
        %v7312 = vld [vmem:[#allocation3 + $0x10] sm:$0xf]
        %v7313 = vld [vmem:[#allocation3 + $0x14] sm:$0xf]
        %v7314 = vld [vmem:[#allocation3 + $0x18] sm:$0xf]
        %v7315 = vld [vmem:[#allocation3 + $0x1c] sm:$0xf]
        %v7316 = vld [vmem:[#allocation3 + $0x20] sm:$0xf]
        %v7317 = vld [vmem:[#allocation3 + $0x24] sm:$0xf]
        %v7318 = vld [vmem:[#allocation3 + $0x28] sm:$0xf]
        %v7319 = vld [vmem:[#allocation3 + $0x2c] sm:$0xf]
        %v7320 = vld [vmem:[#allocation3 + $0x30] sm:$0xf]
        %v7321 = vld [vmem:[#allocation3 + $0x34] sm:$0xf]
        %v7322 = vld [vmem:[#allocation3 + $0x38] sm:$0xf]
        %v7323 = vld [vmem:[#allocation3 + $0x3c] sm:$0xf]
        %v7324 = vld [vmem:[#allocation3 + $0x40] sm:$0xf]
        %v7325 = vld [vmem:[#allocation3 + $0x44] sm:$0xf]
        %v7326 = vld [vmem:[#allocation3 + $0x48] sm:$0xf]
        %v7327 = vld [vmem:[#allocation3 + $0x4c] sm:$0xf]
        %v7328 = vld [vmem:[#allocation3 + $0x50] sm:$0x1]
        %s7329 = scalar_lea.vmem [#allocation9], 192
        %v7330 = vld [vmem:[%s7329] sm:$0xf]
        %v7331 = vld [vmem:[%s7329 + $0x4] sm:$0xf]
        %v7332 = vld [vmem:[%s7329 + $0x8] sm:$0xf]
        %v7333 = vld [vmem:[%s7329 + $0xc] sm:$0xf]
        %v7334 = vld [vmem:[%s7329 + $0x10] sm:$0xf]
        %v7335 = vld [vmem:[%s7329 + $0x14] sm:$0xf]
        %v7336 = vld [vmem:[%s7329 + $0x18] sm:$0xf]
        %v7337 = vld [vmem:[%s7329 + $0x1c] sm:$0xf]
        %v7338 = vld [vmem:[%s7329 + $0x20] sm:$0xf]
        %v7339 = vld [vmem:[%s7329 + $0x24] sm:$0xf]
        %v7340 = vld [vmem:[%s7329 + $0x28] sm:$0xf]
        %v7341 = vld [vmem:[%s7329 + $0x2c] sm:$0xf]
        %v7342 = vld [vmem:[%s7329 + $0x30] sm:$0xf]
        %v7343 = vld [vmem:[%s7329 + $0x34] sm:$0xf]
        %v7344 = vld [vmem:[%s7329 + $0x38] sm:$0xf]
        %v7345 = vld [vmem:[%s7329 + $0x3c] sm:$0xf]
        %v7365 = vunpack.c.l.b16 %v7310
        %v7366 = vunpack.c.l.b16 %v7311
        %v7367 = vunpack.c.l.b16 %v7312
        %v7368 = vunpack.c.l.b16 %v7313
        %v7369 = vunpack.c.l.b16 %v7314
        %v7370 = vunpack.c.l.b16 %v7315
        %v7371 = vunpack.c.l.b16 %v7316
        %v7372 = vunpack.c.l.b16 %v7317
        %v7373 = vunpack.c.l.b16 %v7318
        %v7374 = vunpack.c.l.b16 %v7319
        %v7375 = vunpack.c.l.b16 %v7320
        %v7376 = vunpack.c.l.b16 %v7321
        %v7377 = vunpack.c.l.b16 %v7322
        %v7378 = vunpack.c.l.b16 %v7323
        %v7379 = vunpack.c.l.b16 %v7324
        %v7380 = vunpack.c.l.b16 %v7325
        %v7381 = vunpack.c.l.b16 %v7326
        %v7382 = vunpack.c.l.b16 %v7327
        %v7383 = vunpack.c.l.b16 %v7328
        %v7384 = vpack.c.b16 %v7366, %v7365
        %v7385 = vpack.c.b16 %v7368, %v7367
        %v7386 = vpack.c.b16 %v7370, %v7369
        %v7387 = vpack.c.b16 %v7372, %v7371
        %v7388 = vpack.c.b16 %v7374, %v7373
        %v7389 = vpack.c.b16 %v7376, %v7375
        %v7390 = vpack.c.b16 %v7378, %v7377
        %v7391 = vpack.c.b16 %v7380, %v7379
        %v7392 = vpack.c.b16 %v7382, %v7381
        %v7393 = vpack.c.b16 %v7383, %v7383
        %v7394 = vrot.slane %v7384, 1
        %v7395 = vrot.slane %v7385, 1
        %v7396 = vsel %vm1838, %v7394, %v7395
        %v7397 = vrot.slane %v7386, 1
        %v7398 = vsel %vm1838, %v7395, %v7397
        %v7399 = vrot.slane %v7387, 1
        %v7400 = vsel %vm1838, %v7397, %v7399
        %v7401 = vrot.slane %v7388, 1
        %v7402 = vsel %vm1838, %v7399, %v7401
        %v7403 = vrot.slane %v7389, 1
        %v7404 = vsel %vm1838, %v7401, %v7403
        %v7405 = vrot.slane %v7390, 1
        %v7406 = vsel %vm1838, %v7403, %v7405
        %v7407 = vrot.slane %v7391, 1
        %v7408 = vsel %vm1838, %v7405, %v7407
        %v7409 = vrot.slane %v7392, 1
        %v7410 = vsel %vm1838, %v7407, %v7409
        %v7411 = vrot.slane %v7393, 1
        %v7412 = vsel %vm1838, %v7409, %v7411
        %v7438 = vunpack.c.l.b16 %v7330
        %v7439 = vunpack.c.l.b16 %v7331
        %v7440 = vunpack.c.l.b16 %v7332
        %v7441 = vunpack.c.l.b16 %v7333
        %v7442 = vunpack.c.l.b16 %v7334
        %v7443 = vunpack.c.l.b16 %v7335
        %v7444 = vunpack.c.l.b16 %v7336
        %v7445 = vunpack.c.l.b16 %v7337
        %v7446 = vunpack.c.l.b16 %v7338
        %v7447 = vunpack.c.l.b16 %v7339
        %v7448 = vunpack.c.l.b16 %v7340
        %v7449 = vunpack.c.l.b16 %v7341
        %v7450 = vunpack.c.l.b16 %v7342
        %v7451 = vunpack.c.l.b16 %v7343
        %v7452 = vunpack.c.l.b16 %v7344
        %v7453 = vunpack.c.l.b16 %v7345
        %v7454 = vpack.c.b16 %v7439, %v7438
        %v7455 = vpack.c.b16 %v7441, %v7440
        %v7456 = vpack.c.b16 %v7443, %v7442
        %v7457 = vpack.c.b16 %v7445, %v7444
        %v7458 = vpack.c.b16 %v7447, %v7446
        %v7459 = vpack.c.b16 %v7449, %v7448
        %v7460 = vpack.c.b16 %v7451, %v7450
        %v7461 = vpack.c.b16 %v7453, %v7452
        %7470 = vmatprep.subr.bf16.mxu0 0
        %7471 = vmatpush1.bf16.msra.mxu0 %v7454
        %7472 = vmatprep.subr.bf16.mxu0 0
        %7473 = vmatpush1.bf16.msra.mxu0 %v7455
        %7474 = vmatprep.subr.bf16.mxu0 0
        %7475 = vmatpush1.bf16.msra.mxu0 %v7456
        %7476 = vmatprep.subr.bf16.mxu0 0
        %7477 = vmatpush1.bf16.msra.mxu0 %v7457
        %7478 = vmatprep.subr.bf16.mxu0 0
        %7479 = vmatpush1.bf16.msra.mxu0 %v7458
        %7480 = vmatprep.subr.bf16.mxu0 0
        %7481 = vmatpush1.bf16.msra.mxu0 %v7459
        %7482 = vmatprep.subr.bf16.mxu0 0
        %7483 = vmatpush1.bf16.msra.mxu0 %v7460
        %7484 = vmatprep.subr.bf16.mxu0 0
        %7485 = vmatpush1.bf16.msra.mxu0 %v7461
        %7486 = vmatprep.subr.bf16.mxu0 0
        %7487 = vmatpush1.bf16.msra.mxu0 0
        %7488 = vmatprep.subr.bf16.mxu0 0
        %7489 = vmatpush1.bf16.msra.mxu0 0
        %7490 = vmatprep.subr.bf16.mxu0 0
        %7491 = vmatpush1.bf16.msra.mxu0 0
        %7492 = vmatprep.subr.bf16.mxu0 0
        %7493 = vmatpush1.bf16.msra.mxu0 0
        %7494 = vmatprep.subr.bf16.mxu0 0
        %7495 = vmatpush1.bf16.msra.mxu0 0
        %7496 = vmatprep.subr.bf16.mxu0 0
        %7497 = vmatpush1.bf16.msra.mxu0 0
        %7498 = vmatprep.subr.bf16.mxu0 0
        %7499 = vmatpush1.bf16.msra.mxu0 0
        %7500 = vmatprep.subr.bf16.mxu0 0
        %7501 = vmatpush1.bf16.msra.mxu0 0
        %7502 = vmatprep.mubr.bf16.mxu0 0
        %7503 = vmatmul.mubr.bf16.gmra.mrb[0].mxu0 %v7396
        %v7504 = vpop.f32.mrb[0].mxu0
        %v7505 = vadd.f32 0.0, %v7504
        %v7506 = vpop.f32.mrb[0].mxu0
        %v7507 = vpop.f32.mrb[0].mxu0
        %v7508 = vadd.f32 0.0, %v7507
        %v7509 = vpop.f32.mrb[0].mxu0
        %7510 = vmatprep.mubr.bf16.mxu0 0
        %7511 = vmatmul.mubr.bf16.gmra.mrb[0].mxu0 %v7398
        %v7512 = vpop.f32.mrb[0].mxu0
        %v7513 = vadd.f32 0.0, %v7512
        %v7514 = vpop.f32.mrb[0].mxu0
        %v7515 = vpop.f32.mrb[0].mxu0
        %v7516 = vadd.f32 0.0, %v7515
        %v7517 = vpop.f32.mrb[0].mxu0
        %7518 = vmatprep.mubr.bf16.mxu0 0
        %7519 = vmatmul.mubr.bf16.gmra.mrb[0].mxu0 %v7400
        %v7520 = vpop.f32.mrb[0].mxu0
        %v7521 = vadd.f32 0.0, %v7520
        %v7522 = vpop.f32.mrb[0].mxu0
        %v7523 = vpop.f32.mrb[0].mxu0
        %v7524 = vadd.f32 0.0, %v7523
        %v7525 = vpop.f32.mrb[0].mxu0
        %7526 = vmatprep.mubr.bf16.mxu0 0
        %7527 = vmatmul.mubr.bf16.gmra.mrb[0].mxu0 %v7402
        %v7528 = vpop.f32.mrb[0].mxu0
        %v7529 = vadd.f32 0.0, %v7528
        %v7530 = vpop.f32.mrb[0].mxu0
        %v7531 = vpop.f32.mrb[0].mxu0
        %v7532 = vadd.f32 0.0, %v7531
        %v7533 = vpop.f32.mrb[0].mxu0
        %7534 = vmatprep.mubr.bf16.mxu0 0
        %7535 = vmatmul.mubr.bf16.gmra.mrb[0].mxu0 %v7404
        %v7536 = vpop.f32.mrb[0].mxu0
        %v7537 = vadd.f32 0.0, %v7536
        %v7538 = vpop.f32.mrb[0].mxu0
        %v7539 = vpop.f32.mrb[0].mxu0
        %v7540 = vadd.f32 0.0, %v7539
        %v7541 = vpop.f32.mrb[0].mxu0
        %7542 = vmatprep.mubr.bf16.mxu0 0
        %7543 = vmatmul.mubr.bf16.gmra.mrb[0].mxu0 %v7406
        %v7544 = vpop.f32.mrb[0].mxu0
        %v7545 = vadd.f32 0.0, %v7544
        %v7546 = vpop.f32.mrb[0].mxu0
        %v7547 = vpop.f32.mrb[0].mxu0
        %v7548 = vadd.f32 0.0, %v7547
        %v7549 = vpop.f32.mrb[0].mxu0
        %7550 = vmatprep.mubr.bf16.mxu0 0
        %7551 = vmatmul.mubr.bf16.gmra.mrb[0].mxu0 %v7408
        %v7552 = vpop.f32.mrb[0].mxu0
        %v7553 = vadd.f32 0.0, %v7552
        %v7554 = vpop.f32.mrb[0].mxu0
        %v7555 = vpop.f32.mrb[0].mxu0
        %v7556 = vadd.f32 0.0, %v7555
        %v7557 = vpop.f32.mrb[0].mxu0
        %7558 = vmatprep.mubr.bf16.mxu0 0
        %7559 = vmatmul.mubr.bf16.gmra.mrb[0].mxu0 %v7410
        %v7560 = vpop.f32.mrb[0].mxu0
        %v7561 = vadd.f32 0.0, %v7560
        %v7562 = vpop.f32.mrb[0].mxu0
        %v7563 = vpop.f32.mrb[0].mxu0
        %v7564 = vadd.f32 0.0, %v7563
        %v7565 = vpop.f32.mrb[0].mxu0
        %7566 = vmatprep.mubr.bf16.mxu0 0
        %7567 = vmatmul.mubr.bf16.gmra.mrb[0].mxu0 %v7412
        %v7568 = vpop.f32.mrb[0].mxu0
        %v7569 = vadd.f32 0.0, %v7568
        %v7570 = vpop.f32.mrb[0].mxu0
        %v7571 = vpop.f32.mrb[0].mxu0
        %v7572 = vadd.f32 0.0, %v7571
        %v7573 = vpop.f32.mrb[0].mxu0
        %7574 = vdwg.mxu0
        %v7575 = vadd.f32 %v7292, %v7505
        %v7576 = vadd.f32 %v7293, %v7508
        %v7577 = vadd.f32 %v7294, %v7513
        %v7578 = vadd.f32 %v7295, %v7516
        %v7579 = vadd.f32 %v7296, %v7521
        %v7580 = vadd.f32 %v7297, %v7524
        %v7581 = vadd.f32 %v7298, %v7529
        %v7582 = vadd.f32 %v7299, %v7532
        %v7583 = vadd.f32 %v7300, %v7537
        %v7584 = vadd.f32 %v7301, %v7540
        %v7585 = vadd.f32 %v7302, %v7545
        %v7586 = vadd.f32 %v7303, %v7548
        %v7587 = vadd.f32 %v7304, %v7553
        %v7588 = vadd.f32 %v7305, %v7556
        %v7589 = vadd.f32 %v7306, %v7561
        %v7590 = vadd.f32 %v7307, %v7564
        %v7591 = vadd.f32 %v7308, %v7569
        %v7592 = vadd.f32 %v7309, %v7572
        %v7593 = vld [vmem:[#allocation3 + $0x50] sm:$0x3]
        %s7594 = scalar_lea.vmem [#allocation9], 256
        %v7595 = vld [vmem:[%s7594] sm:$0xf]
        %v7596 = vld [vmem:[%s7594 + $0x4] sm:$0xf]
        %v7597 = vld [vmem:[%s7594 + $0x8] sm:$0xf]
        %v7598 = vld [vmem:[%s7594 + $0xc] sm:$0xf]
        %v7599 = vld [vmem:[%s7594 + $0x10] sm:$0xf]
        %v7600 = vld [vmem:[%s7594 + $0x14] sm:$0xf]
        %v7601 = vld [vmem:[%s7594 + $0x18] sm:$0xf]
        %v7602 = vld [vmem:[%s7594 + $0x1c] sm:$0xf]
        %v7603 = vld [vmem:[%s7594 + $0x20] sm:$0xf]
        %v7604 = vld [vmem:[%s7594 + $0x24] sm:$0xf]
        %v7605 = vld [vmem:[%s7594 + $0x28] sm:$0xf]
        %v7606 = vld [vmem:[%s7594 + $0x2c] sm:$0xf]
        %v7607 = vld [vmem:[%s7594 + $0x30] sm:$0xf]
        %v7608 = vld [vmem:[%s7594 + $0x34] sm:$0xf]
        %v7609 = vld [vmem:[%s7594 + $0x38] sm:$0xf]
        %v7610 = vld [vmem:[%s7594 + $0x3c] sm:$0xf]
        %v7612 = vunpack.c.l.b16 %v7593
        %v7613 = vpack.c.b16 %v7612, %v7612
        %v7615 = vshrl.u32 %v7384, 16
        %v7617 = vrot.slane %v7615, 1
        %v7618 = vshll.u32 %v7384, 16
        %v7620 = vrot.slane %v7618, 2
        %v7621 = vor.u32 %v7617, %v7620
        %v7623 = vshrl.u32 %v7385, 16
        %v7625 = vrot.slane %v7623, 1
        %v7626 = vshll.u32 %v7385, 16
        %v7628 = vrot.slane %v7626, 2
        %v7629 = vor.u32 %v7625, %v7628
        %v7630 = vsel %vm2342, %v7621, %v7629
        %v7632 = vshrl.u32 %v7386, 16
        %v7634 = vrot.slane %v7632, 1
        %v7635 = vshll.u32 %v7386, 16
        %v7637 = vrot.slane %v7635, 2
        %v7638 = vor.u32 %v7634, %v7637
        %v7639 = vsel %vm2342, %v7629, %v7638
        %v7641 = vshrl.u32 %v7387, 16
        %v7643 = vrot.slane %v7641, 1
        %v7644 = vshll.u32 %v7387, 16
        %v7646 = vrot.slane %v7644, 2
        %v7647 = vor.u32 %v7643, %v7646
        %v7648 = vsel %vm2342, %v7638, %v7647
        %v7650 = vshrl.u32 %v7388, 16
        %v7652 = vrot.slane %v7650, 1
        %v7653 = vshll.u32 %v7388, 16
        %v7655 = vrot.slane %v7653, 2
        %v7656 = vor.u32 %v7652, %v7655
        %v7657 = vsel %vm2342, %v7647, %v7656
        %v7659 = vshrl.u32 %v7389, 16
        %v7661 = vrot.slane %v7659, 1
        %v7662 = vshll.u32 %v7389, 16
        %v7664 = vrot.slane %v7662, 2
        %v7665 = vor.u32 %v7661, %v7664
        %v7666 = vsel %vm2342, %v7656, %v7665
        %v7668 = vshrl.u32 %v7390, 16
        %v7670 = vrot.slane %v7668, 1
        %v7671 = vshll.u32 %v7390, 16
        %v7673 = vrot.slane %v7671, 2
        %v7674 = vor.u32 %v7670, %v7673
        %v7675 = vsel %vm2342, %v7665, %v7674
        %v7677 = vshrl.u32 %v7391, 16
        %v7679 = vrot.slane %v7677, 1
        %v7680 = vshll.u32 %v7391, 16
        %v7682 = vrot.slane %v7680, 2
        %v7683 = vor.u32 %v7679, %v7682
        %v7684 = vsel %vm2342, %v7674, %v7683
        %v7686 = vshrl.u32 %v7392, 16
        %v7688 = vrot.slane %v7686, 1
        %v7689 = vshll.u32 %v7392, 16
        %v7691 = vrot.slane %v7689, 2
        %v7692 = vor.u32 %v7688, %v7691
        %v7693 = vsel %vm2342, %v7683, %v7692
        %v7695 = vshrl.u32 %v7613, 16
        %v7697 = vrot.slane %v7695, 1
        %v7698 = vshll.u32 %v7613, 16
        %v7700 = vrot.slane %v7698, 2
        %v7701 = vor.u32 %v7697, %v7700
        %v7702 = vsel %vm2342, %v7692, %v7701
        %v7728 = vunpack.c.l.b16 %v7595
        %v7729 = vunpack.c.l.b16 %v7596
        %v7730 = vunpack.c.l.b16 %v7597
        %v7731 = vunpack.c.l.b16 %v7598
        %v7732 = vunpack.c.l.b16 %v7599
        %v7733 = vunpack.c.l.b16 %v7600
        %v7734 = vunpack.c.l.b16 %v7601
        %v7735 = vunpack.c.l.b16 %v7602
        %v7736 = vunpack.c.l.b16 %v7603
        %v7737 = vunpack.c.l.b16 %v7604
        %v7738 = vunpack.c.l.b16 %v7605
        %v7739 = vunpack.c.l.b16 %v7606
        %v7740 = vunpack.c.l.b16 %v7607
        %v7741 = vunpack.c.l.b16 %v7608
        %v7742 = vunpack.c.l.b16 %v7609
        %v7743 = vunpack.c.l.b16 %v7610
        %v7744 = vpack.c.b16 %v7729, %v7728
        %v7745 = vpack.c.b16 %v7731, %v7730
        %v7746 = vpack.c.b16 %v7733, %v7732
        %v7747 = vpack.c.b16 %v7735, %v7734
        %v7748 = vpack.c.b16 %v7737, %v7736
        %v7749 = vpack.c.b16 %v7739, %v7738
        %v7750 = vpack.c.b16 %v7741, %v7740
        %v7751 = vpack.c.b16 %v7743, %v7742
        %7760 = vmatprep.subr.bf16.mxu0 0
        %7761 = vmatpush1.bf16.msra.mxu0 %v7744
        %7762 = vmatprep.subr.bf16.mxu0 0
        %7763 = vmatpush1.bf16.msra.mxu0 %v7745
        %7764 = vmatprep.subr.bf16.mxu0 0
        %7765 = vmatpush1.bf16.msra.mxu0 %v7746
        %7766 = vmatprep.subr.bf16.mxu0 0
        %7767 = vmatpush1.bf16.msra.mxu0 %v7747
        %7768 = vmatprep.subr.bf16.mxu0 0
        %7769 = vmatpush1.bf16.msra.mxu0 %v7748
        %7770 = vmatprep.subr.bf16.mxu0 0
        %7771 = vmatpush1.bf16.msra.mxu0 %v7749
        %7772 = vmatprep.subr.bf16.mxu0 0
        %7773 = vmatpush1.bf16.msra.mxu0 %v7750
        %7774 = vmatprep.subr.bf16.mxu0 0
        %7775 = vmatpush1.bf16.msra.mxu0 %v7751
        %7776 = vmatprep.subr.bf16.mxu0 0
        %7777 = vmatpush1.bf16.msra.mxu0 0
        %7778 = vmatprep.subr.bf16.mxu0 0
        %7779 = vmatpush1.bf16.msra.mxu0 0
        %7780 = vmatprep.subr.bf16.mxu0 0
        %7781 = vmatpush1.bf16.msra.mxu0 0
        %7782 = vmatprep.subr.bf16.mxu0 0
        %7783 = vmatpush1.bf16.msra.mxu0 0
        %7784 = vmatprep.subr.bf16.mxu0 0
        %7785 = vmatpush1.bf16.msra.mxu0 0
        %7786 = vmatprep.subr.bf16.mxu0 0
        %7787 = vmatpush1.bf16.msra.mxu0 0
        %7788 = vmatprep.subr.bf16.mxu0 0
        %7789 = vmatpush1.bf16.msra.mxu0 0
        %7790 = vmatprep.subr.bf16.mxu0 0
        %7791 = vmatpush1.bf16.msra.mxu0 0
        %7792 = vmatprep.mubr.bf16.mxu0 0
        %7793 = vmatmul.mubr.bf16.gmra.mrb[0].mxu0 %v7630
        %v7794 = vpop.f32.mrb[0].mxu0
        %v7795 = vadd.f32 0.0, %v7794
        %v7796 = vpop.f32.mrb[0].mxu0
        %v7797 = vpop.f32.mrb[0].mxu0
        %v7798 = vadd.f32 0.0, %v7797
        %v7799 = vpop.f32.mrb[0].mxu0
        %7800 = vmatprep.mubr.bf16.mxu0 0
        %7801 = vmatmul.mubr.bf16.gmra.mrb[0].mxu0 %v7639
        %v7802 = vpop.f32.mrb[0].mxu0
        %v7803 = vadd.f32 0.0, %v7802
        %v7804 = vpop.f32.mrb[0].mxu0
        %v7805 = vpop.f32.mrb[0].mxu0
        %v7806 = vadd.f32 0.0, %v7805
        %v7807 = vpop.f32.mrb[0].mxu0
        %7808 = vmatprep.mubr.bf16.mxu0 0
        %7809 = vmatmul.mubr.bf16.gmra.mrb[0].mxu0 %v7648
        %v7810 = vpop.f32.mrb[0].mxu0
        %v7811 = vadd.f32 0.0, %v7810
        %v7812 = vpop.f32.mrb[0].mxu0
        %v7813 = vpop.f32.mrb[0].mxu0
        %v7814 = vadd.f32 0.0, %v7813
        %v7815 = vpop.f32.mrb[0].mxu0
        %7816 = vmatprep.mubr.bf16.mxu0 0
        %7817 = vmatmul.mubr.bf16.gmra.mrb[0].mxu0 %v7657
        %v7818 = vpop.f32.mrb[0].mxu0
        %v7819 = vadd.f32 0.0, %v7818
        %v7820 = vpop.f32.mrb[0].mxu0
        %v7821 = vpop.f32.mrb[0].mxu0
        %v7822 = vadd.f32 0.0, %v7821
        %v7823 = vpop.f32.mrb[0].mxu0
        %7824 = vmatprep.mubr.bf16.mxu0 0
        %7825 = vmatmul.mubr.bf16.gmra.mrb[0].mxu0 %v7666
        %v7826 = vpop.f32.mrb[0].mxu0
        %v7827 = vadd.f32 0.0, %v7826
        %v7828 = vpop.f32.mrb[0].mxu0
        %v7829 = vpop.f32.mrb[0].mxu0
        %v7830 = vadd.f32 0.0, %v7829
        %v7831 = vpop.f32.mrb[0].mxu0
        %7832 = vmatprep.mubr.bf16.mxu0 0
        %7833 = vmatmul.mubr.bf16.gmra.mrb[0].mxu0 %v7675
        %v7834 = vpop.f32.mrb[0].mxu0
        %v7835 = vadd.f32 0.0, %v7834
        %v7836 = vpop.f32.mrb[0].mxu0
        %v7837 = vpop.f32.mrb[0].mxu0
        %v7838 = vadd.f32 0.0, %v7837
        %v7839 = vpop.f32.mrb[0].mxu0
        %7840 = vmatprep.mubr.bf16.mxu0 0
        %7841 = vmatmul.mubr.bf16.gmra.mrb[0].mxu0 %v7684
        %v7842 = vpop.f32.mrb[0].mxu0
        %v7843 = vadd.f32 0.0, %v7842
        %v7844 = vpop.f32.mrb[0].mxu0
        %v7845 = vpop.f32.mrb[0].mxu0
        %v7846 = vadd.f32 0.0, %v7845
        %v7847 = vpop.f32.mrb[0].mxu0
        %7848 = vmatprep.mubr.bf16.mxu0 0
        %7849 = vmatmul.mubr.bf16.gmra.mrb[0].mxu0 %v7693
        %v7850 = vpop.f32.mrb[0].mxu0
        %v7851 = vadd.f32 0.0, %v7850
        %v7852 = vpop.f32.mrb[0].mxu0
        %v7853 = vpop.f32.mrb[0].mxu0
        %v7854 = vadd.f32 0.0, %v7853
        %v7855 = vpop.f32.mrb[0].mxu0
        %7856 = vmatprep.mubr.bf16.mxu0 0
        %7857 = vmatmul.mubr.bf16.gmra.mrb[0].mxu0 %v7702
        %v7858 = vpop.f32.mrb[0].mxu0
        %v7859 = vadd.f32 0.0, %v7858
        %v7860 = vpop.f32.mrb[0].mxu0
        %v7861 = vpop.f32.mrb[0].mxu0
        %v7862 = vadd.f32 0.0, %v7861
        %v7863 = vpop.f32.mrb[0].mxu0
        %7864 = vdwg.mxu0
        %v7865 = vadd.f32 %v7575, %v7795
        %v7866 = vadd.f32 %v7576, %v7798
        %v7867 = vadd.f32 %v7577, %v7803
        %v7868 = vadd.f32 %v7578, %v7806
        %v7869 = vadd.f32 %v7579, %v7811
        %v7870 = vadd.f32 %v7580, %v7814
        %v7871 = vadd.f32 %v7581, %v7819
        %v7872 = vadd.f32 %v7582, %v7822
        %v7873 = vadd.f32 %v7583, %v7827
        %v7874 = vadd.f32 %v7584, %v7830
        %v7875 = vadd.f32 %v7585, %v7835
        %v7876 = vadd.f32 %v7586, %v7838
        %v7877 = vadd.f32 %v7587, %v7843
        %v7878 = vadd.f32 %v7588, %v7846
        %v7879 = vadd.f32 %v7589, %v7851
        %v7880 = vadd.f32 %v7590, %v7854
        %v7881 = vadd.f32 %v7591, %v7859
        %v7882 = vadd.f32 %v7592, %v7862
        %v7883 = vld [vmem:[#allocation3 + $0x8] sm:$0xc]
        %s7884 = scalar_lea.vmem [#allocation9], 320
        %v7885 = vld [vmem:[%s7884] sm:$0xf]
        %v7886 = vld [vmem:[%s7884 + $0x4] sm:$0xf]
        %v7887 = vld [vmem:[%s7884 + $0x8] sm:$0xf]
        %v7888 = vld [vmem:[%s7884 + $0xc] sm:$0xf]
        %v7889 = vld [vmem:[%s7884 + $0x10] sm:$0xf]
        %v7890 = vld [vmem:[%s7884 + $0x14] sm:$0xf]
        %v7891 = vld [vmem:[%s7884 + $0x18] sm:$0xf]
        %v7892 = vld [vmem:[%s7884 + $0x1c] sm:$0xf]
        %v7893 = vld [vmem:[%s7884 + $0x20] sm:$0xf]
        %v7894 = vld [vmem:[%s7884 + $0x24] sm:$0xf]
        %v7895 = vld [vmem:[%s7884 + $0x28] sm:$0xf]
        %v7896 = vld [vmem:[%s7884 + $0x2c] sm:$0xf]
        %v7897 = vld [vmem:[%s7884 + $0x30] sm:$0xf]
        %v7898 = vld [vmem:[%s7884 + $0x34] sm:$0xf]
        %v7899 = vld [vmem:[%s7884 + $0x38] sm:$0xf]
        %v7900 = vld [vmem:[%s7884 + $0x3c] sm:$0xf]
        %v7902 = vunpack.c.l.b16 %v7883
        %v7903 = vpack.c.b16 %v7366, %v7902
        %v7904 = vrot.slane %v7903, 2
        %v7905 = vrot.slane %v7385, 2
        %v7906 = vsel %vm2633, %v7904, %v7905
        %v7907 = vrot.slane %v7386, 2
        %v7908 = vsel %vm2633, %v7905, %v7907
        %v7909 = vrot.slane %v7387, 2
        %v7910 = vsel %vm2633, %v7907, %v7909
        %v7911 = vrot.slane %v7388, 2
        %v7912 = vsel %vm2633, %v7909, %v7911
        %v7913 = vrot.slane %v7389, 2
        %v7914 = vsel %vm2633, %v7911, %v7913
        %v7915 = vrot.slane %v7390, 2
        %v7916 = vsel %vm2633, %v7913, %v7915
        %v7917 = vrot.slane %v7391, 2
        %v7918 = vsel %vm2633, %v7915, %v7917
        %v7919 = vrot.slane %v7392, 2
        %v7920 = vsel %vm2633, %v7917, %v7919
        %v7921 = vrot.slane %v7613, 2
        %v7922 = vsel %vm2633, %v7919, %v7921
        %v7948 = vunpack.c.l.b16 %v7885
        %v7949 = vunpack.c.l.b16 %v7886
        %v7950 = vunpack.c.l.b16 %v7887
        %v7951 = vunpack.c.l.b16 %v7888
        %v7952 = vunpack.c.l.b16 %v7889
        %v7953 = vunpack.c.l.b16 %v7890
        %v7954 = vunpack.c.l.b16 %v7891
        %v7955 = vunpack.c.l.b16 %v7892
        %v7956 = vunpack.c.l.b16 %v7893
        %v7957 = vunpack.c.l.b16 %v7894
        %v7958 = vunpack.c.l.b16 %v7895
        %v7959 = vunpack.c.l.b16 %v7896
        %v7960 = vunpack.c.l.b16 %v7897
        %v7961 = vunpack.c.l.b16 %v7898
        %v7962 = vunpack.c.l.b16 %v7899
        %v7963 = vunpack.c.l.b16 %v7900
        %v7964 = vpack.c.b16 %v7949, %v7948
        %v7965 = vpack.c.b16 %v7951, %v7950
        %v7966 = vpack.c.b16 %v7953, %v7952
        %v7967 = vpack.c.b16 %v7955, %v7954
        %v7968 = vpack.c.b16 %v7957, %v7956
        %v7969 = vpack.c.b16 %v7959, %v7958
        %v7970 = vpack.c.b16 %v7961, %v7960
        %v7971 = vpack.c.b16 %v7963, %v7962
        %7980 = vmatprep.subr.bf16.mxu0 0
        %7981 = vmatpush1.bf16.msra.mxu0 %v7964
        %7982 = vmatprep.subr.bf16.mxu0 0
        %7983 = vmatpush1.bf16.msra.mxu0 %v7965
        %7984 = vmatprep.subr.bf16.mxu0 0
        %7985 = vmatpush1.bf16.msra.mxu0 %v7966
        %7986 = vmatprep.subr.bf16.mxu0 0
        %7987 = vmatpush1.bf16.msra.mxu0 %v7967
        %7988 = vmatprep.subr.bf16.mxu0 0
        %7989 = vmatpush1.bf16.msra.mxu0 %v7968
        %7990 = vmatprep.subr.bf16.mxu0 0
        %7991 = vmatpush1.bf16.msra.mxu0 %v7969
        %7992 = vmatprep.subr.bf16.mxu0 0
        %7993 = vmatpush1.bf16.msra.mxu0 %v7970
        %7994 = vmatprep.subr.bf16.mxu0 0
        %7995 = vmatpush1.bf16.msra.mxu0 %v7971
        %7996 = vmatprep.subr.bf16.mxu0 0
        %7997 = vmatpush1.bf16.msra.mxu0 0
        %7998 = vmatprep.subr.bf16.mxu0 0
        %7999 = vmatpush1.bf16.msra.mxu0 0
        %8000 = vmatprep.subr.bf16.mxu0 0
        %8001 = vmatpush1.bf16.msra.mxu0 0
        %8002 = vmatprep.subr.bf16.mxu0 0
        %8003 = vmatpush1.bf16.msra.mxu0 0
        %8004 = vmatprep.subr.bf16.mxu0 0
        %8005 = vmatpush1.bf16.msra.mxu0 0
        %8006 = vmatprep.subr.bf16.mxu0 0
        %8007 = vmatpush1.bf16.msra.mxu0 0
        %8008 = vmatprep.subr.bf16.mxu0 0
        %8009 = vmatpush1.bf16.msra.mxu0 0
        %8010 = vmatprep.subr.bf16.mxu0 0
        %8011 = vmatpush1.bf16.msra.mxu0 0
        %8012 = vmatprep.mubr.bf16.mxu0 0
        %8013 = vmatmul.mubr.bf16.gmra.mrb[0].mxu0 %v7906
        %v8014 = vpop.f32.mrb[0].mxu0
        %v8015 = vadd.f32 0.0, %v8014
        %v8016 = vpop.f32.mrb[0].mxu0
        %v8017 = vpop.f32.mrb[0].mxu0
        %v8018 = vadd.f32 0.0, %v8017
        %v8019 = vpop.f32.mrb[0].mxu0
        %8020 = vmatprep.mubr.bf16.mxu0 0
        %8021 = vmatmul.mubr.bf16.gmra.mrb[0].mxu0 %v7908
        %v8022 = vpop.f32.mrb[0].mxu0
        %v8023 = vadd.f32 0.0, %v8022
        %v8024 = vpop.f32.mrb[0].mxu0
        %v8025 = vpop.f32.mrb[0].mxu0
        %v8026 = vadd.f32 0.0, %v8025
        %v8027 = vpop.f32.mrb[0].mxu0
        %8028 = vmatprep.mubr.bf16.mxu0 0
        %8029 = vmatmul.mubr.bf16.gmra.mrb[0].mxu0 %v7910
        %v8030 = vpop.f32.mrb[0].mxu0
        %v8031 = vadd.f32 0.0, %v8030
        %v8032 = vpop.f32.mrb[0].mxu0
        %v8033 = vpop.f32.mrb[0].mxu0
        %v8034 = vadd.f32 0.0, %v8033
        %v8035 = vpop.f32.mrb[0].mxu0
        %8036 = vmatprep.mubr.bf16.mxu0 0
        %8037 = vmatmul.mubr.bf16.gmra.mrb[0].mxu0 %v7912
        %v8038 = vpop.f32.mrb[0].mxu0
        %v8039 = vadd.f32 0.0, %v8038
        %v8040 = vpop.f32.mrb[0].mxu0
        %v8041 = vpop.f32.mrb[0].mxu0
        %v8042 = vadd.f32 0.0, %v8041
        %v8043 = vpop.f32.mrb[0].mxu0
        %8044 = vmatprep.mubr.bf16.mxu0 0
        %8045 = vmatmul.mubr.bf16.gmra.mrb[0].mxu0 %v7914
        %v8046 = vpop.f32.mrb[0].mxu0
        %v8047 = vadd.f32 0.0, %v8046
        %v8048 = vpop.f32.mrb[0].mxu0
        %v8049 = vpop.f32.mrb[0].mxu0
        %v8050 = vadd.f32 0.0, %v8049
        %v8051 = vpop.f32.mrb[0].mxu0
        %8052 = vmatprep.mubr.bf16.mxu0 0
        %8053 = vmatmul.mubr.bf16.gmra.mrb[0].mxu0 %v7916
        %v8054 = vpop.f32.mrb[0].mxu0
        %v8055 = vadd.f32 0.0, %v8054
        %v8056 = vpop.f32.mrb[0].mxu0
        %v8057 = vpop.f32.mrb[0].mxu0
        %v8058 = vadd.f32 0.0, %v8057
        %v8059 = vpop.f32.mrb[0].mxu0
        %8060 = vmatprep.mubr.bf16.mxu0 0
        %8061 = vmatmul.mubr.bf16.gmra.mrb[0].mxu0 %v7918
        %v8062 = vpop.f32.mrb[0].mxu0
        %v8063 = vadd.f32 0.0, %v8062
        %v8064 = vpop.f32.mrb[0].mxu0
        %v8065 = vpop.f32.mrb[0].mxu0
        %v8066 = vadd.f32 0.0, %v8065
        %v8067 = vpop.f32.mrb[0].mxu0
        %8068 = vmatprep.mubr.bf16.mxu0 0
        %8069 = vmatmul.mubr.bf16.gmra.mrb[0].mxu0 %v7920
        %v8070 = vpop.f32.mrb[0].mxu0
        %v8071 = vadd.f32 0.0, %v8070
        %v8072 = vpop.f32.mrb[0].mxu0
        %v8073 = vpop.f32.mrb[0].mxu0
        %v8074 = vadd.f32 0.0, %v8073
        %v8075 = vpop.f32.mrb[0].mxu0
        %8076 = vmatprep.mubr.bf16.mxu0 0
        %8077 = vmatmul.mubr.bf16.gmra.mrb[0].mxu0 %v7922
        %v8078 = vpop.f32.mrb[0].mxu0
        %v8079 = vadd.f32 0.0, %v8078
        %v8080 = vpop.f32.mrb[0].mxu0
        %v8081 = vpop.f32.mrb[0].mxu0
        %v8082 = vadd.f32 0.0, %v8081
        %v8083 = vpop.f32.mrb[0].mxu0
        %8084 = vdwg.mxu0
        %v8085 = vadd.f32 %v7865, %v8015
        %v8086 = vadd.f32 %v7866, %v8018
        %v8087 = vadd.f32 %v7867, %v8023
        %v8088 = vadd.f32 %v7868, %v8026
        %v8089 = vadd.f32 %v7869, %v8031
        %v8090 = vadd.f32 %v7870, %v8034
        %v8091 = vadd.f32 %v7871, %v8039
        %v8092 = vadd.f32 %v7872, %v8042
        %v8093 = vadd.f32 %v7873, %v8047
        %v8094 = vadd.f32 %v7874, %v8050
        %v8095 = vadd.f32 %v7875, %v8055
        %v8096 = vadd.f32 %v7876, %v8058
        %v8097 = vadd.f32 %v7877, %v8063
        %v8098 = vadd.f32 %v7878, %v8066
        %v8099 = vadd.f32 %v7879, %v8071
        %v8100 = vadd.f32 %v7880, %v8074
        %v8101 = vadd.f32 %v7881, %v8079
        %v8102 = vadd.f32 %v7882, %v8082
        %v8103 = vld [vmem:[#allocation3 + $0x10] sm:$0xc]
        %v8104 = vld [vmem:[#allocation3 + $0x14] sm:$0xf]
        %v8105 = vld [vmem:[#allocation3 + $0x18] sm:$0xf]
        %v8106 = vld [vmem:[#allocation3 + $0x1c] sm:$0xf]
        %v8107 = vld [vmem:[#allocation3 + $0x20] sm:$0xf]
        %v8108 = vld [vmem:[#allocation3 + $0x24] sm:$0xf]
        %v8109 = vld [vmem:[#allocation3 + $0x28] sm:$0xf]
        %v8110 = vld [vmem:[#allocation3 + $0x2c] sm:$0xf]
        %v8111 = vld [vmem:[#allocation3 + $0x30] sm:$0xf]
        %v8112 = vld [vmem:[#allocation3 + $0x34] sm:$0xf]
        %v8113 = vld [vmem:[#allocation3 + $0x38] sm:$0xf]
        %v8114 = vld [vmem:[#allocation3 + $0x3c] sm:$0xf]
        %v8115 = vld [vmem:[#allocation3 + $0x40] sm:$0xf]
        %v8116 = vld [vmem:[#allocation3 + $0x44] sm:$0xf]
        %v8117 = vld [vmem:[#allocation3 + $0x48] sm:$0xf]
        %v8118 = vld [vmem:[#allocation3 + $0x4c] sm:$0xf]
        %v8119 = vld [vmem:[#allocation3 + $0x50] sm:$0xf]
        %v8120 = vld [vmem:[#allocation3 + $0x54] sm:$0xf]
        %v8121 = vld [vmem:[#allocation3 + $0x58] sm:$0x3]
        %s8122 = scalar_lea.vmem [#allocation9], 384
        %v8123 = vld [vmem:[%s8122] sm:$0xf]
        %v8124 = vld [vmem:[%s8122 + $0x4] sm:$0xf]
        %v8125 = vld [vmem:[%s8122 + $0x8] sm:$0xf]
        %v8126 = vld [vmem:[%s8122 + $0xc] sm:$0xf]
        %v8127 = vld [vmem:[%s8122 + $0x10] sm:$0xf]
        %v8128 = vld [vmem:[%s8122 + $0x14] sm:$0xf]
        %v8129 = vld [vmem:[%s8122 + $0x18] sm:$0xf]
        %v8130 = vld [vmem:[%s8122 + $0x1c] sm:$0xf]
        %v8131 = vld [vmem:[%s8122 + $0x20] sm:$0xf]
        %v8132 = vld [vmem:[%s8122 + $0x24] sm:$0xf]
        %v8133 = vld [vmem:[%s8122 + $0x28] sm:$0xf]
        %v8134 = vld [vmem:[%s8122 + $0x2c] sm:$0xf]
        %v8135 = vld [vmem:[%s8122 + $0x30] sm:$0xf]
        %v8136 = vld [vmem:[%s8122 + $0x34] sm:$0xf]
        %v8137 = vld [vmem:[%s8122 + $0x38] sm:$0xf]
        %v8138 = vld [vmem:[%s8122 + $0x3c] sm:$0xf]
        %v8158 = vunpack.c.l.b16 %v8103
        %v8159 = vunpack.c.l.b16 %v8104
        %v8160 = vunpack.c.l.b16 %v8105
        %v8161 = vunpack.c.l.b16 %v8106
        %v8162 = vunpack.c.l.b16 %v8107
        %v8163 = vunpack.c.l.b16 %v8108
        %v8164 = vunpack.c.l.b16 %v8109
        %v8165 = vunpack.c.l.b16 %v8110
        %v8166 = vunpack.c.l.b16 %v8111
        %v8167 = vunpack.c.l.b16 %v8112
        %v8168 = vunpack.c.l.b16 %v8113
        %v8169 = vunpack.c.l.b16 %v8114
        %v8170 = vunpack.c.l.b16 %v8115
        %v8171 = vunpack.c.l.b16 %v8116
        %v8172 = vunpack.c.l.b16 %v8117
        %v8173 = vunpack.c.l.b16 %v8118
        %v8174 = vunpack.c.l.b16 %v8119
        %v8175 = vunpack.c.l.b16 %v8120
        %v8176 = vunpack.c.l.b16 %v8121
        %v8177 = vpack.c.b16 %v8159, %v8158
        %v8178 = vpack.c.b16 %v8161, %v8160
        %v8179 = vpack.c.b16 %v8163, %v8162
        %v8180 = vpack.c.b16 %v8165, %v8164
        %v8181 = vpack.c.b16 %v8167, %v8166
        %v8182 = vpack.c.b16 %v8169, %v8168
        %v8183 = vpack.c.b16 %v8171, %v8170
        %v8184 = vpack.c.b16 %v8173, %v8172
        %v8185 = vpack.c.b16 %v8175, %v8174
        %v8186 = vpack.c.b16 %v8176, %v8176
        %v8187 = vrot.slane %v8177, 2
        %v8188 = vrot.slane %v8178, 2
        %v8189 = vsel %vm2633, %v8187, %v8188
        %v8190 = vrot.slane %v8179, 2
        %v8191 = vsel %vm2633, %v8188, %v8190
        %v8192 = vrot.slane %v8180, 2
        %v8193 = vsel %vm2633, %v8190, %v8192
        %v8194 = vrot.slane %v8181, 2
        %v8195 = vsel %vm2633, %v8192, %v8194
        %v8196 = vrot.slane %v8182, 2
        %v8197 = vsel %vm2633, %v8194, %v8196
        %v8198 = vrot.slane %v8183, 2
        %v8199 = vsel %vm2633, %v8196, %v8198
        %v8200 = vrot.slane %v8184, 2
        %v8201 = vsel %vm2633, %v8198, %v8200
        %v8202 = vrot.slane %v8185, 2
        %v8203 = vsel %vm2633, %v8200, %v8202
        %v8204 = vrot.slane %v8186, 2
        %v8205 = vsel %vm2633, %v8202, %v8204
        %v8231 = vunpack.c.l.b16 %v8123
        %v8232 = vunpack.c.l.b16 %v8124
        %v8233 = vunpack.c.l.b16 %v8125
        %v8234 = vunpack.c.l.b16 %v8126
        %v8235 = vunpack.c.l.b16 %v8127
        %v8236 = vunpack.c.l.b16 %v8128
        %v8237 = vunpack.c.l.b16 %v8129
        %v8238 = vunpack.c.l.b16 %v8130
        %v8239 = vunpack.c.l.b16 %v8131
        %v8240 = vunpack.c.l.b16 %v8132
        %v8241 = vunpack.c.l.b16 %v8133
        %v8242 = vunpack.c.l.b16 %v8134
        %v8243 = vunpack.c.l.b16 %v8135
        %v8244 = vunpack.c.l.b16 %v8136
        %v8245 = vunpack.c.l.b16 %v8137
        %v8246 = vunpack.c.l.b16 %v8138
        %v8247 = vpack.c.b16 %v8232, %v8231
        %v8248 = vpack.c.b16 %v8234, %v8233
        %v8249 = vpack.c.b16 %v8236, %v8235
        %v8250 = vpack.c.b16 %v8238, %v8237
        %v8251 = vpack.c.b16 %v8240, %v8239
        %v8252 = vpack.c.b16 %v8242, %v8241
        %v8253 = vpack.c.b16 %v8244, %v8243
        %v8254 = vpack.c.b16 %v8246, %v8245
        %8263 = vmatprep.subr.bf16.mxu0 0
        %8264 = vmatpush1.bf16.msra.mxu0 %v8247
        %8265 = vmatprep.subr.bf16.mxu0 0
        %8266 = vmatpush1.bf16.msra.mxu0 %v8248
        %8267 = vmatprep.subr.bf16.mxu0 0
        %8268 = vmatpush1.bf16.msra.mxu0 %v8249
        %8269 = vmatprep.subr.bf16.mxu0 0
        %8270 = vmatpush1.bf16.msra.mxu0 %v8250
        %8271 = vmatprep.subr.bf16.mxu0 0
        %8272 = vmatpush1.bf16.msra.mxu0 %v8251
        %8273 = vmatprep.subr.bf16.mxu0 0
        %8274 = vmatpush1.bf16.msra.mxu0 %v8252
        %8275 = vmatprep.subr.bf16.mxu0 0
        %8276 = vmatpush1.bf16.msra.mxu0 %v8253
        %8277 = vmatprep.subr.bf16.mxu0 0
        %8278 = vmatpush1.bf16.msra.mxu0 %v8254
        %8279 = vmatprep.subr.bf16.mxu0 0
        %8280 = vmatpush1.bf16.msra.mxu0 0
        %8281 = vmatprep.subr.bf16.mxu0 0
        %8282 = vmatpush1.bf16.msra.mxu0 0
        %8283 = vmatprep.subr.bf16.mxu0 0
        %8284 = vmatpush1.bf16.msra.mxu0 0
        %8285 = vmatprep.subr.bf16.mxu0 0
        %8286 = vmatpush1.bf16.msra.mxu0 0
        %8287 = vmatprep.subr.bf16.mxu0 0
        %8288 = vmatpush1.bf16.msra.mxu0 0
        %8289 = vmatprep.subr.bf16.mxu0 0
        %8290 = vmatpush1.bf16.msra.mxu0 0
        %8291 = vmatprep.subr.bf16.mxu0 0
        %8292 = vmatpush1.bf16.msra.mxu0 0
        %8293 = vmatprep.subr.bf16.mxu0 0
        %8294 = vmatpush1.bf16.msra.mxu0 0
        %8295 = vmatprep.mubr.bf16.mxu0 0
        %8296 = vmatmul.mubr.bf16.gmra.mrb[0].mxu0 %v8189
        %v8297 = vpop.f32.mrb[0].mxu0
        %v8298 = vadd.f32 0.0, %v8297
        %v8299 = vpop.f32.mrb[0].mxu0
        %v8300 = vpop.f32.mrb[0].mxu0
        %v8301 = vadd.f32 0.0, %v8300
        %v8302 = vpop.f32.mrb[0].mxu0
        %8303 = vmatprep.mubr.bf16.mxu0 0
        %8304 = vmatmul.mubr.bf16.gmra.mrb[0].mxu0 %v8191
        %v8305 = vpop.f32.mrb[0].mxu0
        %v8306 = vadd.f32 0.0, %v8305
        %v8307 = vpop.f32.mrb[0].mxu0
        %v8308 = vpop.f32.mrb[0].mxu0
        %v8309 = vadd.f32 0.0, %v8308
        %v8310 = vpop.f32.mrb[0].mxu0
        %8311 = vmatprep.mubr.bf16.mxu0 0
        %8312 = vmatmul.mubr.bf16.gmra.mrb[0].mxu0 %v8193
        %v8313 = vpop.f32.mrb[0].mxu0
        %v8314 = vadd.f32 0.0, %v8313
        %v8315 = vpop.f32.mrb[0].mxu0
        %v8316 = vpop.f32.mrb[0].mxu0
        %v8317 = vadd.f32 0.0, %v8316
        %v8318 = vpop.f32.mrb[0].mxu0
        %8319 = vmatprep.mubr.bf16.mxu0 0
        %8320 = vmatmul.mubr.bf16.gmra.mrb[0].mxu0 %v8195
        %v8321 = vpop.f32.mrb[0].mxu0
        %v8322 = vadd.f32 0.0, %v8321
        %v8323 = vpop.f32.mrb[0].mxu0
        %v8324 = vpop.f32.mrb[0].mxu0
        %v8325 = vadd.f32 0.0, %v8324
        %v8326 = vpop.f32.mrb[0].mxu0
        %8327 = vmatprep.mubr.bf16.mxu0 0
        %8328 = vmatmul.mubr.bf16.gmra.mrb[0].mxu0 %v8197
        %v8329 = vpop.f32.mrb[0].mxu0
        %v8330 = vadd.f32 0.0, %v8329
        %v8331 = vpop.f32.mrb[0].mxu0
        %v8332 = vpop.f32.mrb[0].mxu0
        %v8333 = vadd.f32 0.0, %v8332
        %v8334 = vpop.f32.mrb[0].mxu0
        %8335 = vmatprep.mubr.bf16.mxu0 0
        %8336 = vmatmul.mubr.bf16.gmra.mrb[0].mxu0 %v8199
        %v8337 = vpop.f32.mrb[0].mxu0
        %v8338 = vadd.f32 0.0, %v8337
        %v8339 = vpop.f32.mrb[0].mxu0
        %v8340 = vpop.f32.mrb[0].mxu0
        %v8341 = vadd.f32 0.0, %v8340
        %v8342 = vpop.f32.mrb[0].mxu0
        %8343 = vmatprep.mubr.bf16.mxu0 0
        %8344 = vmatmul.mubr.bf16.gmra.mrb[0].mxu0 %v8201
        %v8345 = vpop.f32.mrb[0].mxu0
        %v8346 = vadd.f32 0.0, %v8345
        %v8347 = vpop.f32.mrb[0].mxu0
        %v8348 = vpop.f32.mrb[0].mxu0
        %v8349 = vadd.f32 0.0, %v8348
        %v8350 = vpop.f32.mrb[0].mxu0
        %8351 = vmatprep.mubr.bf16.mxu0 0
        %8352 = vmatmul.mubr.bf16.gmra.mrb[0].mxu0 %v8203
        %v8353 = vpop.f32.mrb[0].mxu0
        %v8354 = vadd.f32 0.0, %v8353
        %v8355 = vpop.f32.mrb[0].mxu0
        %v8356 = vpop.f32.mrb[0].mxu0
        %v8357 = vadd.f32 0.0, %v8356
        %v8358 = vpop.f32.mrb[0].mxu0
        %8359 = vmatprep.mubr.bf16.mxu0 0
        %8360 = vmatmul.mubr.bf16.gmra.mrb[0].mxu0 %v8205
        %v8361 = vpop.f32.mrb[0].mxu0
        %v8362 = vadd.f32 0.0, %v8361
        %v8363 = vpop.f32.mrb[0].mxu0
        %v8364 = vpop.f32.mrb[0].mxu0
        %v8365 = vadd.f32 0.0, %v8364
        %v8366 = vpop.f32.mrb[0].mxu0
        %8367 = vdwg.mxu0
        %v8368 = vadd.f32 %v8085, %v8298
        %v8369 = vadd.f32 %v8086, %v8301
        %v8370 = vadd.f32 %v8087, %v8306
        %v8371 = vadd.f32 %v8088, %v8309
        %v8372 = vadd.f32 %v8089, %v8314
        %v8373 = vadd.f32 %v8090, %v8317
        %v8374 = vadd.f32 %v8091, %v8322
        %v8375 = vadd.f32 %v8092, %v8325
        %v8376 = vadd.f32 %v8093, %v8330
        %v8377 = vadd.f32 %v8094, %v8333
        %v8378 = vadd.f32 %v8095, %v8338
        %v8379 = vadd.f32 %v8096, %v8341
        %v8380 = vadd.f32 %v8097, %v8346
        %v8381 = vadd.f32 %v8098, %v8349
        %v8382 = vadd.f32 %v8099, %v8354
        %v8383 = vadd.f32 %v8100, %v8357
        %v8384 = vadd.f32 %v8101, %v8362
        %v8385 = vadd.f32 %v8102, %v8365
        %v8386 = vld [vmem:[#allocation3 + $0x58] sm:$0x7]
        %s8387 = scalar_lea.vmem [#allocation9], 448
        %v8388 = vld [vmem:[%s8387] sm:$0xf]
        %v8389 = vld [vmem:[%s8387 + $0x4] sm:$0xf]
        %v8390 = vld [vmem:[%s8387 + $0x8] sm:$0xf]
        %v8391 = vld [vmem:[%s8387 + $0xc] sm:$0xf]
        %v8392 = vld [vmem:[%s8387 + $0x10] sm:$0xf]
        %v8393 = vld [vmem:[%s8387 + $0x14] sm:$0xf]
        %v8394 = vld [vmem:[%s8387 + $0x18] sm:$0xf]
        %v8395 = vld [vmem:[%s8387 + $0x1c] sm:$0xf]
        %v8396 = vld [vmem:[%s8387 + $0x20] sm:$0xf]
        %v8397 = vld [vmem:[%s8387 + $0x24] sm:$0xf]
        %v8398 = vld [vmem:[%s8387 + $0x28] sm:$0xf]
        %v8399 = vld [vmem:[%s8387 + $0x2c] sm:$0xf]
        %v8400 = vld [vmem:[%s8387 + $0x30] sm:$0xf]
        %v8401 = vld [vmem:[%s8387 + $0x34] sm:$0xf]
        %v8402 = vld [vmem:[%s8387 + $0x38] sm:$0xf]
        %v8403 = vld [vmem:[%s8387 + $0x3c] sm:$0xf]
        %v8405 = vunpack.c.l.b16 %v8386
        %v8406 = vpack.c.b16 %v8405, %v8405
        %v8408 = vshrl.u32 %v8177, 16
        %v8410 = vrot.slane %v8408, 2
        %v8411 = vshll.u32 %v8177, 16
        %v8413 = vrot.slane %v8411, 3
        %v8414 = vor.u32 %v8410, %v8413
        %v8416 = vshrl.u32 %v8178, 16
        %v8418 = vrot.slane %v8416, 2
        %v8419 = vshll.u32 %v8178, 16
        %v8421 = vrot.slane %v8419, 3
        %v8422 = vor.u32 %v8418, %v8421
        %v8423 = vsel %vm3137, %v8414, %v8422
        %v8425 = vshrl.u32 %v8179, 16
        %v8427 = vrot.slane %v8425, 2
        %v8428 = vshll.u32 %v8179, 16
        %v8430 = vrot.slane %v8428, 3
        %v8431 = vor.u32 %v8427, %v8430
        %v8432 = vsel %vm3137, %v8422, %v8431
        %v8434 = vshrl.u32 %v8180, 16
        %v8436 = vrot.slane %v8434, 2
        %v8437 = vshll.u32 %v8180, 16
        %v8439 = vrot.slane %v8437, 3
        %v8440 = vor.u32 %v8436, %v8439
        %v8441 = vsel %vm3137, %v8431, %v8440
        %v8443 = vshrl.u32 %v8181, 16
        %v8445 = vrot.slane %v8443, 2
        %v8446 = vshll.u32 %v8181, 16
        %v8448 = vrot.slane %v8446, 3
        %v8449 = vor.u32 %v8445, %v8448
        %v8450 = vsel %vm3137, %v8440, %v8449
        %v8452 = vshrl.u32 %v8182, 16
        %v8454 = vrot.slane %v8452, 2
        %v8455 = vshll.u32 %v8182, 16
        %v8457 = vrot.slane %v8455, 3
        %v8458 = vor.u32 %v8454, %v8457
        %v8459 = vsel %vm3137, %v8449, %v8458
        %v8461 = vshrl.u32 %v8183, 16
        %v8463 = vrot.slane %v8461, 2
        %v8464 = vshll.u32 %v8183, 16
        %v8466 = vrot.slane %v8464, 3
        %v8467 = vor.u32 %v8463, %v8466
        %v8468 = vsel %vm3137, %v8458, %v8467
        %v8470 = vshrl.u32 %v8184, 16
        %v8472 = vrot.slane %v8470, 2
        %v8473 = vshll.u32 %v8184, 16
        %v8475 = vrot.slane %v8473, 3
        %v8476 = vor.u32 %v8472, %v8475
        %v8477 = vsel %vm3137, %v8467, %v8476
        %v8479 = vshrl.u32 %v8185, 16
        %v8481 = vrot.slane %v8479, 2
        %v8482 = vshll.u32 %v8185, 16
        %v8484 = vrot.slane %v8482, 3
        %v8485 = vor.u32 %v8481, %v8484
        %v8486 = vsel %vm3137, %v8476, %v8485
        %v8488 = vshrl.u32 %v8406, 16
        %v8490 = vrot.slane %v8488, 2
        %v8491 = vshll.u32 %v8406, 16
        %v8493 = vrot.slane %v8491, 3
        %v8494 = vor.u32 %v8490, %v8493
        %v8495 = vsel %vm3137, %v8485, %v8494
        %v8521 = vunpack.c.l.b16 %v8388
        %v8522 = vunpack.c.l.b16 %v8389
        %v8523 = vunpack.c.l.b16 %v8390
        %v8524 = vunpack.c.l.b16 %v8391
        %v8525 = vunpack.c.l.b16 %v8392
        %v8526 = vunpack.c.l.b16 %v8393
        %v8527 = vunpack.c.l.b16 %v8394
        %v8528 = vunpack.c.l.b16 %v8395
        %v8529 = vunpack.c.l.b16 %v8396
        %v8530 = vunpack.c.l.b16 %v8397
        %v8531 = vunpack.c.l.b16 %v8398
        %v8532 = vunpack.c.l.b16 %v8399
        %v8533 = vunpack.c.l.b16 %v8400
        %v8534 = vunpack.c.l.b16 %v8401
        %v8535 = vunpack.c.l.b16 %v8402
        %v8536 = vunpack.c.l.b16 %v8403
        %v8537 = vpack.c.b16 %v8522, %v8521
        %v8538 = vpack.c.b16 %v8524, %v8523
        %v8539 = vpack.c.b16 %v8526, %v8525
        %v8540 = vpack.c.b16 %v8528, %v8527
        %v8541 = vpack.c.b16 %v8530, %v8529
        %v8542 = vpack.c.b16 %v8532, %v8531
        %v8543 = vpack.c.b16 %v8534, %v8533
        %v8544 = vpack.c.b16 %v8536, %v8535
        %8553 = vmatprep.subr.bf16.mxu0 0
        %8554 = vmatpush1.bf16.msra.mxu0 %v8537
        %8555 = vmatprep.subr.bf16.mxu0 0
        %8556 = vmatpush1.bf16.msra.mxu0 %v8538
        %8557 = vmatprep.subr.bf16.mxu0 0
        %8558 = vmatpush1.bf16.msra.mxu0 %v8539
        %8559 = vmatprep.subr.bf16.mxu0 0
        %8560 = vmatpush1.bf16.msra.mxu0 %v8540
        %8561 = vmatprep.subr.bf16.mxu0 0
        %8562 = vmatpush1.bf16.msra.mxu0 %v8541
        %8563 = vmatprep.subr.bf16.mxu0 0
        %8564 = vmatpush1.bf16.msra.mxu0 %v8542
        %8565 = vmatprep.subr.bf16.mxu0 0
        %8566 = vmatpush1.bf16.msra.mxu0 %v8543
        %8567 = vmatprep.subr.bf16.mxu0 0
        %8568 = vmatpush1.bf16.msra.mxu0 %v8544
        %8569 = vmatprep.subr.bf16.mxu0 0
        %8570 = vmatpush1.bf16.msra.mxu0 0
        %8571 = vmatprep.subr.bf16.mxu0 0
        %8572 = vmatpush1.bf16.msra.mxu0 0
        %8573 = vmatprep.subr.bf16.mxu0 0
        %8574 = vmatpush1.bf16.msra.mxu0 0
        %8575 = vmatprep.subr.bf16.mxu0 0
        %8576 = vmatpush1.bf16.msra.mxu0 0
        %8577 = vmatprep.subr.bf16.mxu0 0
        %8578 = vmatpush1.bf16.msra.mxu0 0
        %8579 = vmatprep.subr.bf16.mxu0 0
        %8580 = vmatpush1.bf16.msra.mxu0 0
        %8581 = vmatprep.subr.bf16.mxu0 0
        %8582 = vmatpush1.bf16.msra.mxu0 0
        %8583 = vmatprep.subr.bf16.mxu0 0
        %8584 = vmatpush1.bf16.msra.mxu0 0
        %8585 = vmatprep.mubr.bf16.mxu0 0
        %8586 = vmatmul.mubr.bf16.gmra.mrb[0].mxu0 %v8423
        %v8587 = vpop.f32.mrb[0].mxu0
        %v8588 = vadd.f32 0.0, %v8587
        %v8589 = vpop.f32.mrb[0].mxu0
        %v8590 = vpop.f32.mrb[0].mxu0
        %v8591 = vadd.f32 0.0, %v8590
        %v8592 = vpop.f32.mrb[0].mxu0
        %8593 = vmatprep.mubr.bf16.mxu0 0
        %8594 = vmatmul.mubr.bf16.gmra.mrb[0].mxu0 %v8432
        %v8595 = vpop.f32.mrb[0].mxu0
        %v8596 = vadd.f32 0.0, %v8595
        %v8597 = vpop.f32.mrb[0].mxu0
        %v8598 = vpop.f32.mrb[0].mxu0
        %v8599 = vadd.f32 0.0, %v8598
        %v8600 = vpop.f32.mrb[0].mxu0
        %8601 = vmatprep.mubr.bf16.mxu0 0
        %8602 = vmatmul.mubr.bf16.gmra.mrb[0].mxu0 %v8441
        %v8603 = vpop.f32.mrb[0].mxu0
        %v8604 = vadd.f32 0.0, %v8603
        %v8605 = vpop.f32.mrb[0].mxu0
        %v8606 = vpop.f32.mrb[0].mxu0
        %v8607 = vadd.f32 0.0, %v8606
        %v8608 = vpop.f32.mrb[0].mxu0
        %8609 = vmatprep.mubr.bf16.mxu0 0
        %8610 = vmatmul.mubr.bf16.gmra.mrb[0].mxu0 %v8450
        %v8611 = vpop.f32.mrb[0].mxu0
        %v8612 = vadd.f32 0.0, %v8611
        %v8613 = vpop.f32.mrb[0].mxu0
        %v8614 = vpop.f32.mrb[0].mxu0
        %v8615 = vadd.f32 0.0, %v8614
        %v8616 = vpop.f32.mrb[0].mxu0
        %8617 = vmatprep.mubr.bf16.mxu0 0
        %8618 = vmatmul.mubr.bf16.gmra.mrb[0].mxu0 %v8459
        %v8619 = vpop.f32.mrb[0].mxu0
        %v8620 = vadd.f32 0.0, %v8619
        %v8621 = vpop.f32.mrb[0].mxu0
        %v8622 = vpop.f32.mrb[0].mxu0
        %v8623 = vadd.f32 0.0, %v8622
        %v8624 = vpop.f32.mrb[0].mxu0
        %8625 = vmatprep.mubr.bf16.mxu0 0
        %8626 = vmatmul.mubr.bf16.gmra.mrb[0].mxu0 %v8468
        %v8627 = vpop.f32.mrb[0].mxu0
        %v8628 = vadd.f32 0.0, %v8627
        %v8629 = vpop.f32.mrb[0].mxu0
        %v8630 = vpop.f32.mrb[0].mxu0
        %v8631 = vadd.f32 0.0, %v8630
        %v8632 = vpop.f32.mrb[0].mxu0
        %8633 = vmatprep.mubr.bf16.mxu0 0
        %8634 = vmatmul.mubr.bf16.gmra.mrb[0].mxu0 %v8477
        %v8635 = vpop.f32.mrb[0].mxu0
        %v8636 = vadd.f32 0.0, %v8635
        %v8637 = vpop.f32.mrb[0].mxu0
        %v8638 = vpop.f32.mrb[0].mxu0
        %v8639 = vadd.f32 0.0, %v8638
        %v8640 = vpop.f32.mrb[0].mxu0
        %8641 = vmatprep.mubr.bf16.mxu0 0
        %8642 = vmatmul.mubr.bf16.gmra.mrb[0].mxu0 %v8486
        %v8643 = vpop.f32.mrb[0].mxu0
        %v8644 = vadd.f32 0.0, %v8643
        %v8645 = vpop.f32.mrb[0].mxu0
        %v8646 = vpop.f32.mrb[0].mxu0
        %v8647 = vadd.f32 0.0, %v8646
        %v8648 = vpop.f32.mrb[0].mxu0
        %8649 = vmatprep.mubr.bf16.mxu0 0
        %8650 = vmatmul.mubr.bf16.gmra.mrb[0].mxu0 %v8495
        %v8651 = vpop.f32.mrb[0].mxu0
        %v8652 = vadd.f32 0.0, %v8651
        %v8653 = vpop.f32.mrb[0].mxu0
        %v8654 = vpop.f32.mrb[0].mxu0
        %v8655 = vadd.f32 0.0, %v8654
        %v8656 = vpop.f32.mrb[0].mxu0
        %8657 = vdwg.mxu0
        %v8658 = vadd.f32 %v8368, %v8588
        %v8659 = vadd.f32 %v8369, %v8591
        %v8660 = vadd.f32 %v8370, %v8596
        %v8661 = vadd.f32 %v8371, %v8599
        %v8662 = vadd.f32 %v8372, %v8604
        %v8663 = vadd.f32 %v8373, %v8607
        %v8664 = vadd.f32 %v8374, %v8612
        %v8665 = vadd.f32 %v8375, %v8615
        %v8666 = vadd.f32 %v8376, %v8620
        %v8667 = vadd.f32 %v8377, %v8623
        %v8668 = vadd.f32 %v8378, %v8628
        %v8669 = vadd.f32 %v8379, %v8631
        %v8670 = vadd.f32 %v8380, %v8636
        %v8671 = vadd.f32 %v8381, %v8639
        %v8672 = vadd.f32 %v8382, %v8644
        %v8673 = vadd.f32 %v8383, %v8647
        %v8674 = vadd.f32 %v8384, %v8652
        %v8675 = vadd.f32 %v8385, %v8655
        %v8676 = vld [vmem:[#allocation3 + $0x10] sm:$0x8]
        %s8677 = scalar_lea.vmem [#allocation9], 512
        %v8678 = vld [vmem:[%s8677] sm:$0xf]
        %v8679 = vld [vmem:[%s8677 + $0x4] sm:$0xf]
        %v8680 = vld [vmem:[%s8677 + $0x8] sm:$0xf]
        %v8681 = vld [vmem:[%s8677 + $0xc] sm:$0xf]
        %v8682 = vld [vmem:[%s8677 + $0x10] sm:$0xf]
        %v8683 = vld [vmem:[%s8677 + $0x14] sm:$0xf]
        %v8684 = vld [vmem:[%s8677 + $0x18] sm:$0xf]
        %v8685 = vld [vmem:[%s8677 + $0x1c] sm:$0xf]
        %v8686 = vld [vmem:[%s8677 + $0x20] sm:$0xf]
        %v8687 = vld [vmem:[%s8677 + $0x24] sm:$0xf]
        %v8688 = vld [vmem:[%s8677 + $0x28] sm:$0xf]
        %v8689 = vld [vmem:[%s8677 + $0x2c] sm:$0xf]
        %v8690 = vld [vmem:[%s8677 + $0x30] sm:$0xf]
        %v8691 = vld [vmem:[%s8677 + $0x34] sm:$0xf]
        %v8692 = vld [vmem:[%s8677 + $0x38] sm:$0xf]
        %v8693 = vld [vmem:[%s8677 + $0x3c] sm:$0xf]
        %v8695 = vunpack.c.l.b16 %v8676
        %v8696 = vpack.c.b16 %v8159, %v8695
        %v8697 = vrot.slane %v8696, 3
        %v8698 = vrot.slane %v8178, 3
        %v8699 = vsel %vm3428, %v8697, %v8698
        %v8700 = vrot.slane %v8179, 3
        %v8701 = vsel %vm3428, %v8698, %v8700
        %v8702 = vrot.slane %v8180, 3
        %v8703 = vsel %vm3428, %v8700, %v8702
        %v8704 = vrot.slane %v8181, 3
        %v8705 = vsel %vm3428, %v8702, %v8704
        %v8706 = vrot.slane %v8182, 3
        %v8707 = vsel %vm3428, %v8704, %v8706
        %v8708 = vrot.slane %v8183, 3
        %v8709 = vsel %vm3428, %v8706, %v8708
        %v8710 = vrot.slane %v8184, 3
        %v8711 = vsel %vm3428, %v8708, %v8710
        %v8712 = vrot.slane %v8185, 3
        %v8713 = vsel %vm3428, %v8710, %v8712
        %v8714 = vrot.slane %v8406, 3
        %v8715 = vsel %vm3428, %v8712, %v8714
        %v8741 = vunpack.c.l.b16 %v8678
        %v8742 = vunpack.c.l.b16 %v8679
        %v8743 = vunpack.c.l.b16 %v8680
        %v8744 = vunpack.c.l.b16 %v8681
        %v8745 = vunpack.c.l.b16 %v8682
        %v8746 = vunpack.c.l.b16 %v8683
        %v8747 = vunpack.c.l.b16 %v8684
        %v8748 = vunpack.c.l.b16 %v8685
        %v8749 = vunpack.c.l.b16 %v8686
        %v8750 = vunpack.c.l.b16 %v8687
        %v8751 = vunpack.c.l.b16 %v8688
        %v8752 = vunpack.c.l.b16 %v8689
        %v8753 = vunpack.c.l.b16 %v8690
        %v8754 = vunpack.c.l.b16 %v8691
        %v8755 = vunpack.c.l.b16 %v8692
        %v8756 = vunpack.c.l.b16 %v8693
        %v8757 = vpack.c.b16 %v8742, %v8741
        %v8758 = vpack.c.b16 %v8744, %v8743
        %v8759 = vpack.c.b16 %v8746, %v8745
        %v8760 = vpack.c.b16 %v8748, %v8747
        %v8761 = vpack.c.b16 %v8750, %v8749
        %v8762 = vpack.c.b16 %v8752, %v8751
        %v8763 = vpack.c.b16 %v8754, %v8753
        %v8764 = vpack.c.b16 %v8756, %v8755
        %8773 = vmatprep.subr.bf16.mxu0 0
        %8774 = vmatpush1.bf16.msra.mxu0 %v8757
        %8775 = vmatprep.subr.bf16.mxu0 0
        %8776 = vmatpush1.bf16.msra.mxu0 %v8758
        %8777 = vmatprep.subr.bf16.mxu0 0
        %8778 = vmatpush1.bf16.msra.mxu0 %v8759
        %8779 = vmatprep.subr.bf16.mxu0 0
        %8780 = vmatpush1.bf16.msra.mxu0 %v8760
        %8781 = vmatprep.subr.bf16.mxu0 0
        %8782 = vmatpush1.bf16.msra.mxu0 %v8761
        %8783 = vmatprep.subr.bf16.mxu0 0
        %8784 = vmatpush1.bf16.msra.mxu0 %v8762
        %8785 = vmatprep.subr.bf16.mxu0 0
        %8786 = vmatpush1.bf16.msra.mxu0 %v8763
        %8787 = vmatprep.subr.bf16.mxu0 0
        %8788 = vmatpush1.bf16.msra.mxu0 %v8764
        %8789 = vmatprep.subr.bf16.mxu0 0
        %8790 = vmatpush1.bf16.msra.mxu0 0
        %8791 = vmatprep.subr.bf16.mxu0 0
        %8792 = vmatpush1.bf16.msra.mxu0 0
        %8793 = vmatprep.subr.bf16.mxu0 0
        %8794 = vmatpush1.bf16.msra.mxu0 0
        %8795 = vmatprep.subr.bf16.mxu0 0
        %8796 = vmatpush1.bf16.msra.mxu0 0
        %8797 = vmatprep.subr.bf16.mxu0 0
        %8798 = vmatpush1.bf16.msra.mxu0 0
        %8799 = vmatprep.subr.bf16.mxu0 0
        %8800 = vmatpush1.bf16.msra.mxu0 0
        %8801 = vmatprep.subr.bf16.mxu0 0
        %8802 = vmatpush1.bf16.msra.mxu0 0
        %8803 = vmatprep.subr.bf16.mxu0 0
        %8804 = vmatpush1.bf16.msra.mxu0 0
        %8805 = vmatprep.mubr.bf16.mxu0 0
        %8806 = vmatmul.mubr.bf16.gmra.mrb[0].mxu0 %v8699
        %v8807 = vpop.f32.mrb[0].mxu0
        %v8808 = vadd.f32 0.0, %v8807
        %v8809 = vpop.f32.mrb[0].mxu0
        %v8810 = vpop.f32.mrb[0].mxu0
        %v8811 = vadd.f32 0.0, %v8810
        %v8812 = vpop.f32.mrb[0].mxu0
        %8813 = vmatprep.mubr.bf16.mxu0 0
        %8814 = vmatmul.mubr.bf16.gmra.mrb[0].mxu0 %v8701
        %v8815 = vpop.f32.mrb[0].mxu0
        %v8816 = vadd.f32 0.0, %v8815
        %v8817 = vpop.f32.mrb[0].mxu0
        %v8818 = vpop.f32.mrb[0].mxu0
        %v8819 = vadd.f32 0.0, %v8818
        %v8820 = vpop.f32.mrb[0].mxu0
        %8821 = vmatprep.mubr.bf16.mxu0 0
        %8822 = vmatmul.mubr.bf16.gmra.mrb[0].mxu0 %v8703
        %v8823 = vpop.f32.mrb[0].mxu0
        %v8824 = vadd.f32 0.0, %v8823
        %v8825 = vpop.f32.mrb[0].mxu0
        %v8826 = vpop.f32.mrb[0].mxu0
        %v8827 = vadd.f32 0.0, %v8826
        %v8828 = vpop.f32.mrb[0].mxu0
        %8829 = vmatprep.mubr.bf16.mxu0 0
        %8830 = vmatmul.mubr.bf16.gmra.mrb[0].mxu0 %v8705
        %v8831 = vpop.f32.mrb[0].mxu0
        %v8832 = vadd.f32 0.0, %v8831
        %v8833 = vpop.f32.mrb[0].mxu0
        %v8834 = vpop.f32.mrb[0].mxu0
        %v8835 = vadd.f32 0.0, %v8834
        %v8836 = vpop.f32.mrb[0].mxu0
        %8837 = vmatprep.mubr.bf16.mxu0 0
        %8838 = vmatmul.mubr.bf16.gmra.mrb[0].mxu0 %v8707
        %v8839 = vpop.f32.mrb[0].mxu0
        %v8840 = vadd.f32 0.0, %v8839
        %v8841 = vpop.f32.mrb[0].mxu0
        %v8842 = vpop.f32.mrb[0].mxu0
        %v8843 = vadd.f32 0.0, %v8842
        %v8844 = vpop.f32.mrb[0].mxu0
        %8845 = vmatprep.mubr.bf16.mxu0 0
        %8846 = vmatmul.mubr.bf16.gmra.mrb[0].mxu0 %v8709
        %v8847 = vpop.f32.mrb[0].mxu0
        %v8848 = vadd.f32 0.0, %v8847
        %v8849 = vpop.f32.mrb[0].mxu0
        %v8850 = vpop.f32.mrb[0].mxu0
        %v8851 = vadd.f32 0.0, %v8850
        %v8852 = vpop.f32.mrb[0].mxu0
        %8853 = vmatprep.mubr.bf16.mxu0 0
        %8854 = vmatmul.mubr.bf16.gmra.mrb[0].mxu0 %v8711
        %v8855 = vpop.f32.mrb[0].mxu0
        %v8856 = vadd.f32 0.0, %v8855
        %v8857 = vpop.f32.mrb[0].mxu0
        %v8858 = vpop.f32.mrb[0].mxu0
        %v8859 = vadd.f32 0.0, %v8858
        %v8860 = vpop.f32.mrb[0].mxu0
        %8861 = vmatprep.mubr.bf16.mxu0 0
        %8862 = vmatmul.mubr.bf16.gmra.mrb[0].mxu0 %v8713
        %v8863 = vpop.f32.mrb[0].mxu0
        %v8864 = vadd.f32 0.0, %v8863
        %v8865 = vpop.f32.mrb[0].mxu0
        %v8866 = vpop.f32.mrb[0].mxu0
        %v8867 = vadd.f32 0.0, %v8866
        %v8868 = vpop.f32.mrb[0].mxu0
        %8869 = vmatprep.mubr.bf16.mxu0 0
        %8870 = vmatmul.mubr.bf16.gmra.mrb[0].mxu0 %v8715
        %v8871 = vpop.f32.mrb[0].mxu0
        %v8872 = vadd.f32 0.0, %v8871
        %v8873 = vpop.f32.mrb[0].mxu0
        %v8874 = vpop.f32.mrb[0].mxu0
        %v8875 = vadd.f32 0.0, %v8874
        %v8876 = vpop.f32.mrb[0].mxu0
        %8877 = vdwg.mxu0
        %v8878 = vadd.f32 %v8658, %v8808
        %v8879 = vadd.f32 %v8659, %v8811
        %v8880 = vadd.f32 %v8660, %v8816
        %v8881 = vadd.f32 %v8661, %v8819
        %v8882 = vadd.f32 %v8662, %v8824
        %v8883 = vadd.f32 %v8663, %v8827
        %v8884 = vadd.f32 %v8664, %v8832
        %v8885 = vadd.f32 %v8665, %v8835
        %v8886 = vadd.f32 %v8666, %v8840
        %v8887 = vadd.f32 %v8667, %v8843
        %v8888 = vadd.f32 %v8668, %v8848
        %v8889 = vadd.f32 %v8669, %v8851
        %v8890 = vadd.f32 %v8670, %v8856
        %v8891 = vadd.f32 %v8671, %v8859
        %v8892 = vadd.f32 %v8672, %v8864
        %v8893 = vadd.f32 %v8673, %v8867
        %v8894 = vadd.f32 %v8674, %v8872
        %v8895 = vadd.f32 %v8675, %v8875
        %v8897 = vlaneseq
        %v8898 = vshrl.u32 %v8897, 7
        %v8899 = vsub.s32 0, %v8898
        %v8900 = vrot.slane %v1315, %v8899
        %v8902 = vadd.f32 %v8878, %v8900
        %v8903 = vadd.f32 %v8879, %v8900
        %v8904 = vadd.f32 %v8880, %v8900
        %v8905 = vadd.f32 %v8881, %v8900
        %v8906 = vadd.f32 %v8882, %v8900
        %v8907 = vadd.f32 %v8883, %v8900
        %v8908 = vadd.f32 %v8884, %v8900
        %v8909 = vadd.f32 %v8885, %v8900
        %v8910 = vadd.f32 %v8886, %v8900
        %v8911 = vadd.f32 %v8887, %v8900
        %v8912 = vadd.f32 %v8888, %v8900
        %v8913 = vadd.f32 %v8889, %v8900
        %v8914 = vadd.f32 %v8890, %v8900
        %v8915 = vadd.f32 %v8891, %v8900
        %v8916 = vadd.f32 %v8892, %v8900
        %v8917 = vadd.f32 %v8893, %v8900
        %v8918 = vadd.f32 %v8894, %v8900
        %v8919 = vadd.f32 %v8895, %v8900
        %v8920 = vld [vmem:[%s237] sm:$0xff]
        %v8921 = vld [vmem:[%s237 + $0x8] sm:$0xff]
        %v8922 = vadd.f32 %v8902, %v8920
        %v8923 = vadd.f32 %v8903, %v8921
        %v8924 = vmax.f32 %v8922, 0.0
        %v8925 = vmax.f32 %v8923, 0.0
        %8926 = vst [vmem:[%s271] sm:$0xff] %v8924
        %8927 = vst [vmem:[%s271 + $0x8] sm:$0xff] %v8925
        %v8928 = vld [vmem:[%s404] sm:$0xff]
        %v8929 = vld [vmem:[%s404 + $0x8] sm:$0xff]
        %vm8932 = vcmask 1041408
        %v8933 = vrot.slane %v8928, 6
        %v8934 = vrot.slane %v8929, 6
        %v8935 = vsel %vm8932, %v8933, %v8934
        %v8939 = vadd.f32 %v8904, %v8933
        %v8940 = vadd.f32 %v8905, %v8935
        %v8941 = vadd.f32 %v8906, %v8934
        %v8942 = vmax.f32 %v8939, 0.0
        %v8943 = vmax.f32 %v8940, 0.0
        %v8944 = vmax.f32 %v8941, 0.0
        %s8945 = scalar_lea.vmem %s271, 16 [#allocation10]
        %8946 = vst [vmem:[%s8945 - $0x2] sm:$0xfc] %v8942
        %8947 = vst [vmem:[%s8945 + $0x6] sm:$0xff] %v8943
        %8948 = vst [vmem:[%s8945 + $0xe] sm:$0x3] %v8944
        %v8949 = vld [vmem:[%s450] sm:$0xff]
        %v8950 = vld [vmem:[%s450 + $0x8] sm:$0xff]
        %vm8953 = vcmask 1043456
        %v8954 = vrot.slane %v8949, 4
        %v8955 = vrot.slane %v8950, 4
        %v8956 = vsel %vm8953, %v8954, %v8955
        %v8960 = vadd.f32 %v8906, %v8954
        %v8961 = vadd.f32 %v8907, %v8956
        %v8962 = vadd.f32 %v8908, %v8955
        %v8963 = vmax.f32 %v8960, 0.0
        %v8964 = vmax.f32 %v8961, 0.0
        %v8965 = vmax.f32 %v8962, 0.0
        %s8966 = scalar_lea.vmem %s271, 32 [#allocation10]
        %8967 = vst [vmem:[%s8966 - $0x4] sm:$0xf0] %v8963
        %8968 = vst [vmem:[%s8966 + $0x4] sm:$0xff] %v8964
        %8969 = vst [vmem:[%s8966 + $0xc] sm:$0xf] %v8965
        %v8970 = vld [vmem:[%s496] sm:$0xff]
        %v8971 = vld [vmem:[%s496 + $0x8] sm:$0xff]
        %vm8974 = vcmask 1045504
        %v8975 = vrot.slane %v8970, 2
        %v8976 = vrot.slane %v8971, 2
        %v8977 = vsel %vm8974, %v8975, %v8976
        %v8981 = vadd.f32 %v8908, %v8975
        %v8982 = vadd.f32 %v8909, %v8977
        %v8983 = vadd.f32 %v8910, %v8976
        %v8984 = vmax.f32 %v8981, 0.0
        %v8985 = vmax.f32 %v8982, 0.0
        %v8986 = vmax.f32 %v8983, 0.0
        %s8987 = scalar_lea.vmem %s271, 48 [#allocation10]
        %8988 = vst [vmem:[%s8987 - $0x6] sm:$0xc0] %v8984
        %8989 = vst [vmem:[%s8987 + $0x2] sm:$0xff] %v8985
        %8990 = vst [vmem:[%s8987 + $0xa] sm:$0x3f] %v8986
        %v8991 = vld [vmem:[%s539] sm:$0xff]
        %v8992 = vld [vmem:[%s539 + $0x8] sm:$0xff]
        %v8993 = vadd.f32 %v8911, %v8991
        %v8994 = vadd.f32 %v8912, %v8992
        %v8995 = vmax.f32 %v8993, 0.0
        %v8996 = vmax.f32 %v8994, 0.0
        %s8997 = scalar_lea.vmem %s271, 64 [#allocation10]
        %8998 = vst [vmem:[%s8997] sm:$0xff] %v8995
        %8999 = vst [vmem:[%s8997 + $0x8] sm:$0xff] %v8996
        %v9000 = vld [vmem:[%s577] sm:$0xff]
        %v9001 = vld [vmem:[%s577 + $0x8] sm:$0xff]
        %v9004 = vrot.slane %v9000, 6
        %v9005 = vrot.slane %v9001, 6
        %v9006 = vsel %vm8932, %v9004, %v9005
        %v9010 = vadd.f32 %v8913, %v9004
        %v9011 = vadd.f32 %v8914, %v9006
        %v9012 = vadd.f32 %v8915, %v9005
        %v9013 = vmax.f32 %v9010, 0.0
        %v9014 = vmax.f32 %v9011, 0.0
        %v9015 = vmax.f32 %v9012, 0.0
        %s9016 = scalar_lea.vmem %s271, 80 [#allocation10]
        %9017 = vst [vmem:[%s9016 - $0x2] sm:$0xfc] %v9013
        %9018 = vst [vmem:[%s9016 + $0x6] sm:$0xff] %v9014
        %9019 = vst [vmem:[%s9016 + $0xe] sm:$0x3] %v9015
        %v9020 = vld [vmem:[%s615] sm:$0xff]
        %v9021 = vld [vmem:[%s615 + $0x8] sm:$0xff]
        %v9024 = vrot.slane %v9020, 4
        %v9025 = vrot.slane %v9021, 4
        %v9026 = vsel %vm8953, %v9024, %v9025
        %v9030 = vadd.f32 %v8915, %v9024
        %v9031 = vadd.f32 %v8916, %v9026
        %v9032 = vadd.f32 %v8917, %v9025
        %v9033 = vmax.f32 %v9030, 0.0
        %v9034 = vmax.f32 %v9031, 0.0
        %v9035 = vmax.f32 %v9032, 0.0
        %s9036 = scalar_lea.vmem %s271, 96 [#allocation10]
        %9037 = vst [vmem:[%s9036 - $0x4] sm:$0xf0] %v9033
        %9038 = vst [vmem:[%s9036 + $0x4] sm:$0xff] %v9034
        %9039 = vst [vmem:[%s9036 + $0xc] sm:$0xf] %v9035
        %v9040 = vld [vmem:[%s653] sm:$0xff]
        %v9041 = vld [vmem:[%s653 + $0x8] sm:$0xff]
        %v9044 = vrot.slane %v9040, 2
        %v9045 = vrot.slane %v9041, 2
        %v9046 = vsel %vm8974, %v9044, %v9045
        %v9050 = vadd.f32 %v8917, %v9044
        %v9051 = vadd.f32 %v8918, %v9046
        %v9052 = vadd.f32 %v8919, %v9045
        %v9053 = vmax.f32 %v9050, 0.0
        %v9054 = vmax.f32 %v9051, 0.0
        %v9055 = vmax.f32 %v9052, 0.0
        %s9056 = scalar_lea.vmem %s271, 112 [#allocation10]
        %9057 = vst [vmem:[%s9056 - $0x6] sm:$0xc0] %v9053
        %9058 = vst [vmem:[%s9056 + $0x2] sm:$0xff] %v9054
        %9059 = vst [vmem:[%s9056 + $0xa] sm:$0x3f] %v9055
        %v9060 = vld [vmem:[#allocation3 + $0x48] sm:$0xf]
        %v9061 = vld [vmem:[#allocation3 + $0x4c] sm:$0xf]
        %v9062 = vld [vmem:[#allocation3 + $0x50] sm:$0xf]
        %v9063 = vld [vmem:[#allocation3 + $0x54] sm:$0xf]
        %v9064 = vld [vmem:[#allocation3 + $0x58] sm:$0xf]
        %v9065 = vld [vmem:[#allocation3 + $0x5c] sm:$0xf]
        %v9066 = vld [vmem:[#allocation3 + $0x60] sm:$0xf]
        %v9067 = vld [vmem:[#allocation3 + $0x64] sm:$0xf]
        %v9068 = vld [vmem:[#allocation3 + $0x68] sm:$0xf]
        %v9069 = vld [vmem:[#allocation3 + $0x6c] sm:$0xf]
        %v9070 = vld [vmem:[#allocation3 + $0x70] sm:$0xf]
        %v9071 = vld [vmem:[#allocation3 + $0x74] sm:$0xf]
        %v9072 = vld [vmem:[#allocation3 + $0x78] sm:$0xf]
        %v9073 = vld [vmem:[#allocation3 + $0x7c] sm:$0xf]
        %v9074 = vld [vmem:[#allocation3 + $0x80] sm:$0xf]
        %v9075 = vld [vmem:[#allocation3 + $0x84] sm:$0xf]
        %v9076 = vld [vmem:[#allocation3 + $0x88] sm:$0xf]
        %v9077 = vld [vmem:[#allocation3 + $0x8c] sm:$0xf]
        %v9078 = vld [vmem:[#allocation9] sm:$0xf]
        %v9079 = vld [vmem:[#allocation9 + $0x4] sm:$0xf]
        %v9080 = vld [vmem:[#allocation9 + $0x8] sm:$0xf]
        %v9081 = vld [vmem:[#allocation9 + $0xc] sm:$0xf]
        %v9082 = vld [vmem:[#allocation9 + $0x10] sm:$0xf]
        %v9083 = vld [vmem:[#allocation9 + $0x14] sm:$0xf]
        %v9084 = vld [vmem:[#allocation9 + $0x18] sm:$0xf]
        %v9085 = vld [vmem:[#allocation9 + $0x1c] sm:$0xf]
        %v9086 = vld [vmem:[#allocation9 + $0x20] sm:$0xf]
        %v9087 = vld [vmem:[#allocation9 + $0x24] sm:$0xf]
        %v9088 = vld [vmem:[#allocation9 + $0x28] sm:$0xf]
        %v9089 = vld [vmem:[#allocation9 + $0x2c] sm:$0xf]
        %v9090 = vld [vmem:[#allocation9 + $0x30] sm:$0xf]
        %v9091 = vld [vmem:[#allocation9 + $0x34] sm:$0xf]
        %v9092 = vld [vmem:[#allocation9 + $0x38] sm:$0xf]
        %v9093 = vld [vmem:[#allocation9 + $0x3c] sm:$0xf]
        %v9094 = vld [vmem:[#allocation3 + $0x90] sm:$0x1]
        %v9095 = vld [vmem:[%s6625] sm:$0xf]
        %v9096 = vld [vmem:[%s6625 + $0x4] sm:$0xf]
        %v9097 = vld [vmem:[%s6625 + $0x8] sm:$0xf]
        %v9098 = vld [vmem:[%s6625 + $0xc] sm:$0xf]
        %v9099 = vld [vmem:[%s6625 + $0x10] sm:$0xf]
        %v9100 = vld [vmem:[%s6625 + $0x14] sm:$0xf]
        %v9101 = vld [vmem:[%s6625 + $0x18] sm:$0xf]
        %v9102 = vld [vmem:[%s6625 + $0x1c] sm:$0xf]
        %v9103 = vld [vmem:[%s6625 + $0x20] sm:$0xf]
        %v9104 = vld [vmem:[%s6625 + $0x24] sm:$0xf]
        %v9105 = vld [vmem:[%s6625 + $0x28] sm:$0xf]
        %v9106 = vld [vmem:[%s6625 + $0x2c] sm:$0xf]
        %v9107 = vld [vmem:[%s6625 + $0x30] sm:$0xf]
        %v9108 = vld [vmem:[%s6625 + $0x34] sm:$0xf]
        %v9109 = vld [vmem:[%s6625 + $0x38] sm:$0xf]
        %v9110 = vld [vmem:[%s6625 + $0x3c] sm:$0xf]
        %v9130 = vunpack.c.l.b16 %v9060
        %v9131 = vunpack.c.l.b16 %v9061
        %v9132 = vunpack.c.l.b16 %v9062
        %v9133 = vunpack.c.l.b16 %v9063
        %v9134 = vunpack.c.l.b16 %v9064
        %v9135 = vunpack.c.l.b16 %v9065
        %v9136 = vunpack.c.l.b16 %v9066
        %v9137 = vunpack.c.l.b16 %v9067
        %v9138 = vunpack.c.l.b16 %v9068
        %v9139 = vunpack.c.l.b16 %v9069
        %v9140 = vunpack.c.l.b16 %v9070
        %v9141 = vunpack.c.l.b16 %v9071
        %v9142 = vunpack.c.l.b16 %v9072
        %v9143 = vunpack.c.l.b16 %v9073
        %v9144 = vunpack.c.l.b16 %v9074
        %v9145 = vunpack.c.l.b16 %v9075
        %v9146 = vunpack.c.l.b16 %v9076
        %v9147 = vunpack.c.l.b16 %v9077
        %v9148 = vunpack.c.l.b16 %v9094
        %v9149 = vpack.c.b16 %v9131, %v9130
        %v9150 = vpack.c.b16 %v9133, %v9132
        %v9151 = vpack.c.b16 %v9135, %v9134
        %v9152 = vpack.c.b16 %v9137, %v9136
        %v9153 = vpack.c.b16 %v9139, %v9138
        %v9154 = vpack.c.b16 %v9141, %v9140
        %v9155 = vpack.c.b16 %v9143, %v9142
        %v9156 = vpack.c.b16 %v9145, %v9144
        %v9157 = vpack.c.b16 %v9147, %v9146
        %v9158 = vpack.c.b16 %v9148, %v9148
        %v9160 = vshrl.u32 %v9149, 16
        %v9162 = vshll.u32 %v9149, 16
        %v9164 = vrot.slane %v9162, 1
        %v9165 = vor.u32 %v9160, %v9164
        %v9167 = vshll.u32 %v9150, 16
        %v9169 = vrot.slane %v9167, 1
        %v9170 = vsel %vm1416, %v9165, %v9169
        %v9171 = vshrl.u32 %v9150, 16
        %v9173 = vor.u32 %v9171, %v9169
        %v9175 = vshll.u32 %v9151, 16
        %v9177 = vrot.slane %v9175, 1
        %v9178 = vsel %vm1416, %v9173, %v9177
        %v9179 = vshrl.u32 %v9151, 16
        %v9181 = vor.u32 %v9179, %v9177
        %v9183 = vshll.u32 %v9152, 16
        %v9185 = vrot.slane %v9183, 1
        %v9186 = vsel %vm1416, %v9181, %v9185
        %v9187 = vshrl.u32 %v9152, 16
        %v9189 = vor.u32 %v9187, %v9185
        %v9191 = vshll.u32 %v9153, 16
        %v9193 = vrot.slane %v9191, 1
        %v9194 = vsel %vm1416, %v9189, %v9193
        %v9195 = vshrl.u32 %v9153, 16
        %v9197 = vor.u32 %v9195, %v9193
        %v9199 = vshll.u32 %v9154, 16
        %v9201 = vrot.slane %v9199, 1
        %v9202 = vsel %vm1416, %v9197, %v9201
        %v9203 = vshrl.u32 %v9154, 16
        %v9205 = vor.u32 %v9203, %v9201
        %v9207 = vshll.u32 %v9155, 16
        %v9209 = vrot.slane %v9207, 1
        %v9210 = vsel %vm1416, %v9205, %v9209
        %v9211 = vshrl.u32 %v9155, 16
        %v9213 = vor.u32 %v9211, %v9209
        %v9215 = vshll.u32 %v9156, 16
        %v9217 = vrot.slane %v9215, 1
        %v9218 = vsel %vm1416, %v9213, %v9217
        %v9219 = vshrl.u32 %v9156, 16
        %v9221 = vor.u32 %v9219, %v9217
        %v9223 = vshll.u32 %v9157, 16
        %v9225 = vrot.slane %v9223, 1
        %v9226 = vsel %vm1416, %v9221, %v9225
        %v9227 = vshrl.u32 %v9157, 16
        %v9229 = vor.u32 %v9227, %v9225
        %v9231 = vshll.u32 %v9158, 16
        %v9233 = vrot.slane %v9231, 1
        %v9234 = vsel %vm1416, %v9229, %v9233
        %v9260 = vunpack.c.l.b16 %v9095
        %v9261 = vunpack.c.l.b16 %v9096
        %v9262 = vunpack.c.l.b16 %v9097
        %v9263 = vunpack.c.l.b16 %v9098
        %v9264 = vunpack.c.l.b16 %v9099
        %v9265 = vunpack.c.l.b16 %v9100
        %v9266 = vunpack.c.l.b16 %v9101
        %v9267 = vunpack.c.l.b16 %v9102
        %v9268 = vunpack.c.l.b16 %v9103
        %v9269 = vunpack.c.l.b16 %v9104
        %v9270 = vunpack.c.l.b16 %v9105
        %v9271 = vunpack.c.l.b16 %v9106
        %v9272 = vunpack.c.l.b16 %v9107
        %v9273 = vunpack.c.l.b16 %v9108
        %v9274 = vunpack.c.l.b16 %v9109
        %v9275 = vunpack.c.l.b16 %v9110
        %v9276 = vpack.c.b16 %v9261, %v9260
        %v9277 = vpack.c.b16 %v9263, %v9262
        %v9278 = vpack.c.b16 %v9265, %v9264
        %v9279 = vpack.c.b16 %v9267, %v9266
        %v9280 = vpack.c.b16 %v9269, %v9268
        %v9281 = vpack.c.b16 %v9271, %v9270
        %v9282 = vpack.c.b16 %v9273, %v9272
        %v9283 = vpack.c.b16 %v9275, %v9274
        %9292 = vmatprep.subr.bf16.mxu0 0
        %9293 = vmatpush1.bf16.msra.mxu0 %v9276
        %9294 = vmatprep.subr.bf16.mxu0 0
        %9295 = vmatpush1.bf16.msra.mxu0 %v9277
        %9296 = vmatprep.subr.bf16.mxu0 0
        %9297 = vmatpush1.bf16.msra.mxu0 %v9278
        %9298 = vmatprep.subr.bf16.mxu0 0
        %9299 = vmatpush1.bf16.msra.mxu0 %v9279
        %9300 = vmatprep.subr.bf16.mxu0 0
        %9301 = vmatpush1.bf16.msra.mxu0 %v9280
        %9302 = vmatprep.subr.bf16.mxu0 0
        %9303 = vmatpush1.bf16.msra.mxu0 %v9281
        %9304 = vmatprep.subr.bf16.mxu0 0
        %9305 = vmatpush1.bf16.msra.mxu0 %v9282
        %9306 = vmatprep.subr.bf16.mxu0 0
        %9307 = vmatpush1.bf16.msra.mxu0 %v9283
        %9308 = vmatprep.subr.bf16.mxu0 0
        %9309 = vmatpush1.bf16.msra.mxu0 0
        %9310 = vmatprep.subr.bf16.mxu0 0
        %9311 = vmatpush1.bf16.msra.mxu0 0
        %9312 = vmatprep.subr.bf16.mxu0 0
        %9313 = vmatpush1.bf16.msra.mxu0 0
        %9314 = vmatprep.subr.bf16.mxu0 0
        %9315 = vmatpush1.bf16.msra.mxu0 0
        %9316 = vmatprep.subr.bf16.mxu0 0
        %9317 = vmatpush1.bf16.msra.mxu0 0
        %9318 = vmatprep.subr.bf16.mxu0 0
        %9319 = vmatpush1.bf16.msra.mxu0 0
        %9320 = vmatprep.subr.bf16.mxu0 0
        %9321 = vmatpush1.bf16.msra.mxu0 0
        %9322 = vmatprep.subr.bf16.mxu0 0
        %9323 = vmatpush1.bf16.msra.mxu0 0
        %9324 = vmatprep.mubr.bf16.mxu0 0
        %9325 = vmatmul.mubr.bf16.gmra.mrb[0].mxu0 %v9170
        %v9326 = vpop.f32.mrb[0].mxu0
        %v9327 = vadd.f32 0.0, %v9326
        %v9328 = vpop.f32.mrb[0].mxu0
        %v9329 = vpop.f32.mrb[0].mxu0
        %v9330 = vadd.f32 0.0, %v9329
        %v9331 = vpop.f32.mrb[0].mxu0
        %9332 = vmatprep.mubr.bf16.mxu0 0
        %9333 = vmatmul.mubr.bf16.gmra.mrb[0].mxu0 %v9178
        %v9334 = vpop.f32.mrb[0].mxu0
        %v9335 = vadd.f32 0.0, %v9334
        %v9336 = vpop.f32.mrb[0].mxu0
        %v9337 = vpop.f32.mrb[0].mxu0
        %v9338 = vadd.f32 0.0, %v9337
        %v9339 = vpop.f32.mrb[0].mxu0
        %9340 = vmatprep.mubr.bf16.mxu0 0
        %9341 = vmatmul.mubr.bf16.gmra.mrb[0].mxu0 %v9186
        %v9342 = vpop.f32.mrb[0].mxu0
        %v9343 = vadd.f32 0.0, %v9342
        %v9344 = vpop.f32.mrb[0].mxu0
        %v9345 = vpop.f32.mrb[0].mxu0
        %v9346 = vadd.f32 0.0, %v9345
        %v9347 = vpop.f32.mrb[0].mxu0
        %9348 = vmatprep.mubr.bf16.mxu0 0
        %9349 = vmatmul.mubr.bf16.gmra.mrb[0].mxu0 %v9194
        %v9350 = vpop.f32.mrb[0].mxu0
        %v9351 = vadd.f32 0.0, %v9350
        %v9352 = vpop.f32.mrb[0].mxu0
        %v9353 = vpop.f32.mrb[0].mxu0
        %v9354 = vadd.f32 0.0, %v9353
        %v9355 = vpop.f32.mrb[0].mxu0
        %9356 = vmatprep.mubr.bf16.mxu0 0
        %9357 = vmatmul.mubr.bf16.gmra.mrb[0].mxu0 %v9202
        %v9358 = vpop.f32.mrb[0].mxu0
        %v9359 = vadd.f32 0.0, %v9358
        %v9360 = vpop.f32.mrb[0].mxu0
        %v9361 = vpop.f32.mrb[0].mxu0
        %v9362 = vadd.f32 0.0, %v9361
        %v9363 = vpop.f32.mrb[0].mxu0
        %9364 = vmatprep.mubr.bf16.mxu0 0
        %9365 = vmatmul.mubr.bf16.gmra.mrb[0].mxu0 %v9210
        %v9366 = vpop.f32.mrb[0].mxu0
        %v9367 = vadd.f32 0.0, %v9366
        %v9368 = vpop.f32.mrb[0].mxu0
        %v9369 = vpop.f32.mrb[0].mxu0
        %v9370 = vadd.f32 0.0, %v9369
        %v9371 = vpop.f32.mrb[0].mxu0
        %9372 = vmatprep.mubr.bf16.mxu0 0
        %9373 = vmatmul.mubr.bf16.gmra.mrb[0].mxu0 %v9218
        %v9374 = vpop.f32.mrb[0].mxu0
        %v9375 = vadd.f32 0.0, %v9374
        %v9376 = vpop.f32.mrb[0].mxu0
        %v9377 = vpop.f32.mrb[0].mxu0
        %v9378 = vadd.f32 0.0, %v9377
        %v9379 = vpop.f32.mrb[0].mxu0
        %9380 = vmatprep.mubr.bf16.mxu0 0
        %9381 = vmatmul.mubr.bf16.gmra.mrb[0].mxu0 %v9226
        %v9382 = vpop.f32.mrb[0].mxu0
        %v9383 = vadd.f32 0.0, %v9382
        %v9384 = vpop.f32.mrb[0].mxu0
        %v9385 = vpop.f32.mrb[0].mxu0
        %v9386 = vadd.f32 0.0, %v9385
        %v9387 = vpop.f32.mrb[0].mxu0
        %9388 = vmatprep.mubr.bf16.mxu0 0
        %9389 = vmatmul.mubr.bf16.gmra.mrb[0].mxu0 %v9234
        %v9390 = vpop.f32.mrb[0].mxu0
        %v9391 = vadd.f32 0.0, %v9390
        %v9392 = vpop.f32.mrb[0].mxu0
        %v9393 = vpop.f32.mrb[0].mxu0
        %v9394 = vadd.f32 0.0, %v9393
        %v9395 = vpop.f32.mrb[0].mxu0
        %9396 = vdwg.mxu0
        %v9422 = vunpack.c.l.b16 %v9078
        %v9423 = vunpack.c.l.b16 %v9079
        %v9424 = vunpack.c.l.b16 %v9080
        %v9425 = vunpack.c.l.b16 %v9081
        %v9426 = vunpack.c.l.b16 %v9082
        %v9427 = vunpack.c.l.b16 %v9083
        %v9428 = vunpack.c.l.b16 %v9084
        %v9429 = vunpack.c.l.b16 %v9085
        %v9430 = vunpack.c.l.b16 %v9086
        %v9431 = vunpack.c.l.b16 %v9087
        %v9432 = vunpack.c.l.b16 %v9088
        %v9433 = vunpack.c.l.b16 %v9089
        %v9434 = vunpack.c.l.b16 %v9090
        %v9435 = vunpack.c.l.b16 %v9091
        %v9436 = vunpack.c.l.b16 %v9092
        %v9437 = vunpack.c.l.b16 %v9093
        %v9438 = vpack.c.b16 %v9423, %v9422
        %v9439 = vpack.c.b16 %v9425, %v9424
        %v9440 = vpack.c.b16 %v9427, %v9426
        %v9441 = vpack.c.b16 %v9429, %v9428
        %v9442 = vpack.c.b16 %v9431, %v9430
        %v9443 = vpack.c.b16 %v9433, %v9432
        %v9444 = vpack.c.b16 %v9435, %v9434
        %v9445 = vpack.c.b16 %v9437, %v9436
        %9454 = vmatprep.subr.bf16.mxu0 0
        %9455 = vmatpush1.bf16.msra.mxu0 %v9438
        %9456 = vmatprep.subr.bf16.mxu0 0
        %9457 = vmatpush1.bf16.msra.mxu0 %v9439
        %9458 = vmatprep.subr.bf16.mxu0 0
        %9459 = vmatpush1.bf16.msra.mxu0 %v9440
        %9460 = vmatprep.subr.bf16.mxu0 0
        %9461 = vmatpush1.bf16.msra.mxu0 %v9441
        %9462 = vmatprep.subr.bf16.mxu0 0
        %9463 = vmatpush1.bf16.msra.mxu0 %v9442
        %9464 = vmatprep.subr.bf16.mxu0 0
        %9465 = vmatpush1.bf16.msra.mxu0 %v9443
        %9466 = vmatprep.subr.bf16.mxu0 0
        %9467 = vmatpush1.bf16.msra.mxu0 %v9444
        %9468 = vmatprep.subr.bf16.mxu0 0
        %9469 = vmatpush1.bf16.msra.mxu0 %v9445
        %9470 = vmatprep.subr.bf16.mxu0 0
        %9471 = vmatpush1.bf16.msra.mxu0 0
        %9472 = vmatprep.subr.bf16.mxu0 0
        %9473 = vmatpush1.bf16.msra.mxu0 0
        %9474 = vmatprep.subr.bf16.mxu0 0
        %9475 = vmatpush1.bf16.msra.mxu0 0
        %9476 = vmatprep.subr.bf16.mxu0 0
        %9477 = vmatpush1.bf16.msra.mxu0 0
        %9478 = vmatprep.subr.bf16.mxu0 0
        %9479 = vmatpush1.bf16.msra.mxu0 0
        %9480 = vmatprep.subr.bf16.mxu0 0
        %9481 = vmatpush1.bf16.msra.mxu0 0
        %9482 = vmatprep.subr.bf16.mxu0 0
        %9483 = vmatpush1.bf16.msra.mxu0 0
        %9484 = vmatprep.subr.bf16.mxu0 0
        %9485 = vmatpush1.bf16.msra.mxu0 0
        %9486 = vmatprep.mubr.bf16.mxu0 0
        %9487 = vmatmul.mubr.bf16.gmra.mrb[0].mxu0 %v9149
        %v9488 = vpop.f32.mrb[0].mxu0
        %v9489 = vadd.f32 %v9327, %v9488
        %v9490 = vpop.f32.mrb[0].mxu0
        %v9491 = vpop.f32.mrb[0].mxu0
        %v9492 = vadd.f32 %v9330, %v9491
        %v9493 = vpop.f32.mrb[0].mxu0
        %9494 = vmatprep.mubr.bf16.mxu0 0
        %9495 = vmatmul.mubr.bf16.gmra.mrb[0].mxu0 %v9150
        %v9496 = vpop.f32.mrb[0].mxu0
        %v9497 = vadd.f32 %v9335, %v9496
        %v9498 = vpop.f32.mrb[0].mxu0
        %v9499 = vpop.f32.mrb[0].mxu0
        %v9500 = vadd.f32 %v9338, %v9499
        %v9501 = vpop.f32.mrb[0].mxu0
        %9502 = vmatprep.mubr.bf16.mxu0 0
        %9503 = vmatmul.mubr.bf16.gmra.mrb[0].mxu0 %v9151
        %v9504 = vpop.f32.mrb[0].mxu0
        %v9505 = vadd.f32 %v9343, %v9504
        %v9506 = vpop.f32.mrb[0].mxu0
        %v9507 = vpop.f32.mrb[0].mxu0
        %v9508 = vadd.f32 %v9346, %v9507
        %v9509 = vpop.f32.mrb[0].mxu0
        %9510 = vmatprep.mubr.bf16.mxu0 0
        %9511 = vmatmul.mubr.bf16.gmra.mrb[0].mxu0 %v9152
        %v9512 = vpop.f32.mrb[0].mxu0
        %v9513 = vadd.f32 %v9351, %v9512
        %v9514 = vpop.f32.mrb[0].mxu0
        %v9515 = vpop.f32.mrb[0].mxu0
        %v9516 = vadd.f32 %v9354, %v9515
        %v9517 = vpop.f32.mrb[0].mxu0
        %9518 = vmatprep.mubr.bf16.mxu0 0
        %9519 = vmatmul.mubr.bf16.gmra.mrb[0].mxu0 %v9153
        %v9520 = vpop.f32.mrb[0].mxu0
        %v9521 = vadd.f32 %v9359, %v9520
        %v9522 = vpop.f32.mrb[0].mxu0
        %v9523 = vpop.f32.mrb[0].mxu0
        %v9524 = vadd.f32 %v9362, %v9523
        %v9525 = vpop.f32.mrb[0].mxu0
        %9526 = vmatprep.mubr.bf16.mxu0 0
        %9527 = vmatmul.mubr.bf16.gmra.mrb[0].mxu0 %v9154
        %v9528 = vpop.f32.mrb[0].mxu0
        %v9529 = vadd.f32 %v9367, %v9528
        %v9530 = vpop.f32.mrb[0].mxu0
        %v9531 = vpop.f32.mrb[0].mxu0
        %v9532 = vadd.f32 %v9370, %v9531
        %v9533 = vpop.f32.mrb[0].mxu0
        %9534 = vmatprep.mubr.bf16.mxu0 0
        %9535 = vmatmul.mubr.bf16.gmra.mrb[0].mxu0 %v9155
        %v9536 = vpop.f32.mrb[0].mxu0
        %v9537 = vadd.f32 %v9375, %v9536
        %v9538 = vpop.f32.mrb[0].mxu0
        %v9539 = vpop.f32.mrb[0].mxu0
        %v9540 = vadd.f32 %v9378, %v9539
        %v9541 = vpop.f32.mrb[0].mxu0
        %9542 = vmatprep.mubr.bf16.mxu0 0
        %9543 = vmatmul.mubr.bf16.gmra.mrb[0].mxu0 %v9156
        %v9544 = vpop.f32.mrb[0].mxu0
        %v9545 = vadd.f32 %v9383, %v9544
        %v9546 = vpop.f32.mrb[0].mxu0
        %v9547 = vpop.f32.mrb[0].mxu0
        %v9548 = vadd.f32 %v9386, %v9547
        %v9549 = vpop.f32.mrb[0].mxu0
        %9550 = vmatprep.mubr.bf16.mxu0 0
        %9551 = vmatmul.mubr.bf16.gmra.mrb[0].mxu0 %v9157
        %v9552 = vpop.f32.mrb[0].mxu0
        %v9553 = vadd.f32 %v9391, %v9552
        %v9554 = vpop.f32.mrb[0].mxu0
        %v9555 = vpop.f32.mrb[0].mxu0
        %v9556 = vadd.f32 %v9394, %v9555
        %v9557 = vpop.f32.mrb[0].mxu0
        %9558 = vdwg.mxu0
        %v9559 = vld [vmem:[#allocation3 + $0x48] sm:$0xe]
        %v9560 = vld [vmem:[%s7091] sm:$0xf]
        %v9561 = vld [vmem:[%s7091 + $0x4] sm:$0xf]
        %v9562 = vld [vmem:[%s7091 + $0x8] sm:$0xf]
        %v9563 = vld [vmem:[%s7091 + $0xc] sm:$0xf]
        %v9564 = vld [vmem:[%s7091 + $0x10] sm:$0xf]
        %v9565 = vld [vmem:[%s7091 + $0x14] sm:$0xf]
        %v9566 = vld [vmem:[%s7091 + $0x18] sm:$0xf]
        %v9567 = vld [vmem:[%s7091 + $0x1c] sm:$0xf]
        %v9568 = vld [vmem:[%s7091 + $0x20] sm:$0xf]
        %v9569 = vld [vmem:[%s7091 + $0x24] sm:$0xf]
        %v9570 = vld [vmem:[%s7091 + $0x28] sm:$0xf]
        %v9571 = vld [vmem:[%s7091 + $0x2c] sm:$0xf]
        %v9572 = vld [vmem:[%s7091 + $0x30] sm:$0xf]
        %v9573 = vld [vmem:[%s7091 + $0x34] sm:$0xf]
        %v9574 = vld [vmem:[%s7091 + $0x38] sm:$0xf]
        %v9575 = vld [vmem:[%s7091 + $0x3c] sm:$0xf]
        %v9577 = vunpack.c.l.b16 %v9559
        %v9578 = vpack.c.b16 %v9131, %v9577
        %v9579 = vrot.slane %v9578, 1
        %v9580 = vrot.slane %v9150, 1
        %v9581 = vsel %vm1838, %v9579, %v9580
        %v9582 = vrot.slane %v9151, 1
        %v9583 = vsel %vm1838, %v9580, %v9582
        %v9584 = vrot.slane %v9152, 1
        %v9585 = vsel %vm1838, %v9582, %v9584
        %v9586 = vrot.slane %v9153, 1
        %v9587 = vsel %vm1838, %v9584, %v9586
        %v9588 = vrot.slane %v9154, 1
        %v9589 = vsel %vm1838, %v9586, %v9588
        %v9590 = vrot.slane %v9155, 1
        %v9591 = vsel %vm1838, %v9588, %v9590
        %v9592 = vrot.slane %v9156, 1
        %v9593 = vsel %vm1838, %v9590, %v9592
        %v9594 = vrot.slane %v9157, 1
        %v9595 = vsel %vm1838, %v9592, %v9594
        %v9596 = vrot.slane %v9158, 1
        %v9597 = vsel %vm1838, %v9594, %v9596
        %v9623 = vunpack.c.l.b16 %v9560
        %v9624 = vunpack.c.l.b16 %v9561
        %v9625 = vunpack.c.l.b16 %v9562
        %v9626 = vunpack.c.l.b16 %v9563
        %v9627 = vunpack.c.l.b16 %v9564
        %v9628 = vunpack.c.l.b16 %v9565
        %v9629 = vunpack.c.l.b16 %v9566
        %v9630 = vunpack.c.l.b16 %v9567
        %v9631 = vunpack.c.l.b16 %v9568
        %v9632 = vunpack.c.l.b16 %v9569
        %v9633 = vunpack.c.l.b16 %v9570
        %v9634 = vunpack.c.l.b16 %v9571
        %v9635 = vunpack.c.l.b16 %v9572
        %v9636 = vunpack.c.l.b16 %v9573
        %v9637 = vunpack.c.l.b16 %v9574
        %v9638 = vunpack.c.l.b16 %v9575
        %v9639 = vpack.c.b16 %v9624, %v9623
        %v9640 = vpack.c.b16 %v9626, %v9625
        %v9641 = vpack.c.b16 %v9628, %v9627
        %v9642 = vpack.c.b16 %v9630, %v9629
        %v9643 = vpack.c.b16 %v9632, %v9631
        %v9644 = vpack.c.b16 %v9634, %v9633
        %v9645 = vpack.c.b16 %v9636, %v9635
        %v9646 = vpack.c.b16 %v9638, %v9637
        %9655 = vmatprep.subr.bf16.mxu0 0
        %9656 = vmatpush1.bf16.msra.mxu0 %v9639
        %9657 = vmatprep.subr.bf16.mxu0 0
        %9658 = vmatpush1.bf16.msra.mxu0 %v9640
        %9659 = vmatprep.subr.bf16.mxu0 0
        %9660 = vmatpush1.bf16.msra.mxu0 %v9641
        %9661 = vmatprep.subr.bf16.mxu0 0
        %9662 = vmatpush1.bf16.msra.mxu0 %v9642
        %9663 = vmatprep.subr.bf16.mxu0 0
        %9664 = vmatpush1.bf16.msra.mxu0 %v9643
        %9665 = vmatprep.subr.bf16.mxu0 0
        %9666 = vmatpush1.bf16.msra.mxu0 %v9644
        %9667 = vmatprep.subr.bf16.mxu0 0
        %9668 = vmatpush1.bf16.msra.mxu0 %v9645
        %9669 = vmatprep.subr.bf16.mxu0 0
        %9670 = vmatpush1.bf16.msra.mxu0 %v9646
        %9671 = vmatprep.subr.bf16.mxu0 0
        %9672 = vmatpush1.bf16.msra.mxu0 0
        %9673 = vmatprep.subr.bf16.mxu0 0
        %9674 = vmatpush1.bf16.msra.mxu0 0
        %9675 = vmatprep.subr.bf16.mxu0 0
        %9676 = vmatpush1.bf16.msra.mxu0 0
        %9677 = vmatprep.subr.bf16.mxu0 0
        %9678 = vmatpush1.bf16.msra.mxu0 0
        %9679 = vmatprep.subr.bf16.mxu0 0
        %9680 = vmatpush1.bf16.msra.mxu0 0
        %9681 = vmatprep.subr.bf16.mxu0 0
        %9682 = vmatpush1.bf16.msra.mxu0 0
        %9683 = vmatprep.subr.bf16.mxu0 0
        %9684 = vmatpush1.bf16.msra.mxu0 0
        %9685 = vmatprep.subr.bf16.mxu0 0
        %9686 = vmatpush1.bf16.msra.mxu0 0
        %9687 = vmatprep.mubr.bf16.mxu0 0
        %9688 = vmatmul.mubr.bf16.gmra.mrb[0].mxu0 %v9581
        %v9689 = vpop.f32.mrb[0].mxu0
        %v9690 = vadd.f32 0.0, %v9689
        %v9691 = vpop.f32.mrb[0].mxu0
        %v9692 = vpop.f32.mrb[0].mxu0
        %v9693 = vadd.f32 0.0, %v9692
        %v9694 = vpop.f32.mrb[0].mxu0
        %9695 = vmatprep.mubr.bf16.mxu0 0
        %9696 = vmatmul.mubr.bf16.gmra.mrb[0].mxu0 %v9583
        %v9697 = vpop.f32.mrb[0].mxu0
        %v9698 = vadd.f32 0.0, %v9697
        %v9699 = vpop.f32.mrb[0].mxu0
        %v9700 = vpop.f32.mrb[0].mxu0
        %v9701 = vadd.f32 0.0, %v9700
        %v9702 = vpop.f32.mrb[0].mxu0
        %9703 = vmatprep.mubr.bf16.mxu0 0
        %9704 = vmatmul.mubr.bf16.gmra.mrb[0].mxu0 %v9585
        %v9705 = vpop.f32.mrb[0].mxu0
        %v9706 = vadd.f32 0.0, %v9705
        %v9707 = vpop.f32.mrb[0].mxu0
        %v9708 = vpop.f32.mrb[0].mxu0
        %v9709 = vadd.f32 0.0, %v9708
        %v9710 = vpop.f32.mrb[0].mxu0
        %9711 = vmatprep.mubr.bf16.mxu0 0
        %9712 = vmatmul.mubr.bf16.gmra.mrb[0].mxu0 %v9587
        %v9713 = vpop.f32.mrb[0].mxu0
        %v9714 = vadd.f32 0.0, %v9713
        %v9715 = vpop.f32.mrb[0].mxu0
        %v9716 = vpop.f32.mrb[0].mxu0
        %v9717 = vadd.f32 0.0, %v9716
        %v9718 = vpop.f32.mrb[0].mxu0
        %9719 = vmatprep.mubr.bf16.mxu0 0
        %9720 = vmatmul.mubr.bf16.gmra.mrb[0].mxu0 %v9589
        %v9721 = vpop.f32.mrb[0].mxu0
        %v9722 = vadd.f32 0.0, %v9721
        %v9723 = vpop.f32.mrb[0].mxu0
        %v9724 = vpop.f32.mrb[0].mxu0
        %v9725 = vadd.f32 0.0, %v9724
        %v9726 = vpop.f32.mrb[0].mxu0
        %9727 = vmatprep.mubr.bf16.mxu0 0
        %9728 = vmatmul.mubr.bf16.gmra.mrb[0].mxu0 %v9591
        %v9729 = vpop.f32.mrb[0].mxu0
        %v9730 = vadd.f32 0.0, %v9729
        %v9731 = vpop.f32.mrb[0].mxu0
        %v9732 = vpop.f32.mrb[0].mxu0
        %v9733 = vadd.f32 0.0, %v9732
        %v9734 = vpop.f32.mrb[0].mxu0
        %9735 = vmatprep.mubr.bf16.mxu0 0
        %9736 = vmatmul.mubr.bf16.gmra.mrb[0].mxu0 %v9593
        %v9737 = vpop.f32.mrb[0].mxu0
        %v9738 = vadd.f32 0.0, %v9737
        %v9739 = vpop.f32.mrb[0].mxu0
        %v9740 = vpop.f32.mrb[0].mxu0
        %v9741 = vadd.f32 0.0, %v9740
        %v9742 = vpop.f32.mrb[0].mxu0
        %9743 = vmatprep.mubr.bf16.mxu0 0
        %9744 = vmatmul.mubr.bf16.gmra.mrb[0].mxu0 %v9595
        %v9745 = vpop.f32.mrb[0].mxu0
        %v9746 = vadd.f32 0.0, %v9745
        %v9747 = vpop.f32.mrb[0].mxu0
        %v9748 = vpop.f32.mrb[0].mxu0
        %v9749 = vadd.f32 0.0, %v9748
        %v9750 = vpop.f32.mrb[0].mxu0
        %9751 = vmatprep.mubr.bf16.mxu0 0
        %9752 = vmatmul.mubr.bf16.gmra.mrb[0].mxu0 %v9597
        %v9753 = vpop.f32.mrb[0].mxu0
        %v9754 = vadd.f32 0.0, %v9753
        %v9755 = vpop.f32.mrb[0].mxu0
        %v9756 = vpop.f32.mrb[0].mxu0
        %v9757 = vadd.f32 0.0, %v9756
        %v9758 = vpop.f32.mrb[0].mxu0
        %9759 = vdwg.mxu0
        %v9760 = vadd.f32 %v9489, %v9690
        %v9761 = vadd.f32 %v9492, %v9693
        %v9762 = vadd.f32 %v9497, %v9698
        %v9763 = vadd.f32 %v9500, %v9701
        %v9764 = vadd.f32 %v9505, %v9706
        %v9765 = vadd.f32 %v9508, %v9709
        %v9766 = vadd.f32 %v9513, %v9714
        %v9767 = vadd.f32 %v9516, %v9717
        %v9768 = vadd.f32 %v9521, %v9722
        %v9769 = vadd.f32 %v9524, %v9725
        %v9770 = vadd.f32 %v9529, %v9730
        %v9771 = vadd.f32 %v9532, %v9733
        %v9772 = vadd.f32 %v9537, %v9738
        %v9773 = vadd.f32 %v9540, %v9741
        %v9774 = vadd.f32 %v9545, %v9746
        %v9775 = vadd.f32 %v9548, %v9749
        %v9776 = vadd.f32 %v9553, %v9754
        %v9777 = vadd.f32 %v9556, %v9757
        %v9778 = vld [vmem:[#allocation3 + $0x50] sm:$0xe]
        %v9779 = vld [vmem:[#allocation3 + $0x54] sm:$0xf]
        %v9780 = vld [vmem:[#allocation3 + $0x58] sm:$0xf]
        %v9781 = vld [vmem:[#allocation3 + $0x5c] sm:$0xf]
        %v9782 = vld [vmem:[#allocation3 + $0x60] sm:$0xf]
        %v9783 = vld [vmem:[#allocation3 + $0x64] sm:$0xf]
        %v9784 = vld [vmem:[#allocation3 + $0x68] sm:$0xf]
        %v9785 = vld [vmem:[#allocation3 + $0x6c] sm:$0xf]
        %v9786 = vld [vmem:[#allocation3 + $0x70] sm:$0xf]
        %v9787 = vld [vmem:[#allocation3 + $0x74] sm:$0xf]
        %v9788 = vld [vmem:[#allocation3 + $0x78] sm:$0xf]
        %v9789 = vld [vmem:[#allocation3 + $0x7c] sm:$0xf]
        %v9790 = vld [vmem:[#allocation3 + $0x80] sm:$0xf]
        %v9791 = vld [vmem:[#allocation3 + $0x84] sm:$0xf]
        %v9792 = vld [vmem:[#allocation3 + $0x88] sm:$0xf]
        %v9793 = vld [vmem:[#allocation3 + $0x8c] sm:$0xf]
        %v9794 = vld [vmem:[#allocation3 + $0x90] sm:$0xf]
        %v9795 = vld [vmem:[#allocation3 + $0x94] sm:$0xf]
        %v9796 = vld [vmem:[#allocation3 + $0x98] sm:$0x1]
        %v9797 = vld [vmem:[%s7329] sm:$0xf]
        %v9798 = vld [vmem:[%s7329 + $0x4] sm:$0xf]
        %v9799 = vld [vmem:[%s7329 + $0x8] sm:$0xf]
        %v9800 = vld [vmem:[%s7329 + $0xc] sm:$0xf]
        %v9801 = vld [vmem:[%s7329 + $0x10] sm:$0xf]
        %v9802 = vld [vmem:[%s7329 + $0x14] sm:$0xf]
        %v9803 = vld [vmem:[%s7329 + $0x18] sm:$0xf]
        %v9804 = vld [vmem:[%s7329 + $0x1c] sm:$0xf]
        %v9805 = vld [vmem:[%s7329 + $0x20] sm:$0xf]
        %v9806 = vld [vmem:[%s7329 + $0x24] sm:$0xf]
        %v9807 = vld [vmem:[%s7329 + $0x28] sm:$0xf]
        %v9808 = vld [vmem:[%s7329 + $0x2c] sm:$0xf]
        %v9809 = vld [vmem:[%s7329 + $0x30] sm:$0xf]
        %v9810 = vld [vmem:[%s7329 + $0x34] sm:$0xf]
        %v9811 = vld [vmem:[%s7329 + $0x38] sm:$0xf]
        %v9812 = vld [vmem:[%s7329 + $0x3c] sm:$0xf]
        %v9832 = vunpack.c.l.b16 %v9778
        %v9833 = vunpack.c.l.b16 %v9779
        %v9834 = vunpack.c.l.b16 %v9780
        %v9835 = vunpack.c.l.b16 %v9781
        %v9836 = vunpack.c.l.b16 %v9782
        %v9837 = vunpack.c.l.b16 %v9783
        %v9838 = vunpack.c.l.b16 %v9784
        %v9839 = vunpack.c.l.b16 %v9785
        %v9840 = vunpack.c.l.b16 %v9786
        %v9841 = vunpack.c.l.b16 %v9787
        %v9842 = vunpack.c.l.b16 %v9788
        %v9843 = vunpack.c.l.b16 %v9789
        %v9844 = vunpack.c.l.b16 %v9790
        %v9845 = vunpack.c.l.b16 %v9791
        %v9846 = vunpack.c.l.b16 %v9792
        %v9847 = vunpack.c.l.b16 %v9793
        %v9848 = vunpack.c.l.b16 %v9794
        %v9849 = vunpack.c.l.b16 %v9795
        %v9850 = vunpack.c.l.b16 %v9796
        %v9851 = vpack.c.b16 %v9833, %v9832
        %v9852 = vpack.c.b16 %v9835, %v9834
        %v9853 = vpack.c.b16 %v9837, %v9836
        %v9854 = vpack.c.b16 %v9839, %v9838
        %v9855 = vpack.c.b16 %v9841, %v9840
        %v9856 = vpack.c.b16 %v9843, %v9842
        %v9857 = vpack.c.b16 %v9845, %v9844
        %v9858 = vpack.c.b16 %v9847, %v9846
        %v9859 = vpack.c.b16 %v9849, %v9848
        %v9860 = vpack.c.b16 %v9850, %v9850
        %v9861 = vrot.slane %v9851, 1
        %v9862 = vrot.slane %v9852, 1
        %v9863 = vsel %vm1838, %v9861, %v9862
        %v9864 = vrot.slane %v9853, 1
        %v9865 = vsel %vm1838, %v9862, %v9864
        %v9866 = vrot.slane %v9854, 1
        %v9867 = vsel %vm1838, %v9864, %v9866
        %v9868 = vrot.slane %v9855, 1
        %v9869 = vsel %vm1838, %v9866, %v9868
        %v9870 = vrot.slane %v9856, 1
        %v9871 = vsel %vm1838, %v9868, %v9870
        %v9872 = vrot.slane %v9857, 1
        %v9873 = vsel %vm1838, %v9870, %v9872
        %v9874 = vrot.slane %v9858, 1
        %v9875 = vsel %vm1838, %v9872, %v9874
        %v9876 = vrot.slane %v9859, 1
        %v9877 = vsel %vm1838, %v9874, %v9876
        %v9878 = vrot.slane %v9860, 1
        %v9879 = vsel %vm1838, %v9876, %v9878
        %v9905 = vunpack.c.l.b16 %v9797
        %v9906 = vunpack.c.l.b16 %v9798
        %v9907 = vunpack.c.l.b16 %v9799
        %v9908 = vunpack.c.l.b16 %v9800
        %v9909 = vunpack.c.l.b16 %v9801
        %v9910 = vunpack.c.l.b16 %v9802
        %v9911 = vunpack.c.l.b16 %v9803
        %v9912 = vunpack.c.l.b16 %v9804
        %v9913 = vunpack.c.l.b16 %v9805
        %v9914 = vunpack.c.l.b16 %v9806
        %v9915 = vunpack.c.l.b16 %v9807
        %v9916 = vunpack.c.l.b16 %v9808
        %v9917 = vunpack.c.l.b16 %v9809
        %v9918 = vunpack.c.l.b16 %v9810
        %v9919 = vunpack.c.l.b16 %v9811
        %v9920 = vunpack.c.l.b16 %v9812
        %v9921 = vpack.c.b16 %v9906, %v9905
        %v9922 = vpack.c.b16 %v9908, %v9907
        %v9923 = vpack.c.b16 %v9910, %v9909
        %v9924 = vpack.c.b16 %v9912, %v9911
        %v9925 = vpack.c.b16 %v9914, %v9913
        %v9926 = vpack.c.b16 %v9916, %v9915
        %v9927 = vpack.c.b16 %v9918, %v9917
        %v9928 = vpack.c.b16 %v9920, %v9919
        %9937 = vmatprep.subr.bf16.mxu0 0
        %9938 = vmatpush1.bf16.msra.mxu0 %v9921
        %9939 = vmatprep.subr.bf16.mxu0 0
        %9940 = vmatpush1.bf16.msra.mxu0 %v9922
        %9941 = vmatprep.subr.bf16.mxu0 0
        %9942 = vmatpush1.bf16.msra.mxu0 %v9923
        %9943 = vmatprep.subr.bf16.mxu0 0
        %9944 = vmatpush1.bf16.msra.mxu0 %v9924
        %9945 = vmatprep.subr.bf16.mxu0 0
        %9946 = vmatpush1.bf16.msra.mxu0 %v9925
        %9947 = vmatprep.subr.bf16.mxu0 0
        %9948 = vmatpush1.bf16.msra.mxu0 %v9926
        %9949 = vmatprep.subr.bf16.mxu0 0
        %9950 = vmatpush1.bf16.msra.mxu0 %v9927
        %9951 = vmatprep.subr.bf16.mxu0 0
        %9952 = vmatpush1.bf16.msra.mxu0 %v9928
        %9953 = vmatprep.subr.bf16.mxu0 0
        %9954 = vmatpush1.bf16.msra.mxu0 0
        %9955 = vmatprep.subr.bf16.mxu0 0
        %9956 = vmatpush1.bf16.msra.mxu0 0
        %9957 = vmatprep.subr.bf16.mxu0 0
        %9958 = vmatpush1.bf16.msra.mxu0 0
        %9959 = vmatprep.subr.bf16.mxu0 0
        %9960 = vmatpush1.bf16.msra.mxu0 0
        %9961 = vmatprep.subr.bf16.mxu0 0
        %9962 = vmatpush1.bf16.msra.mxu0 0
        %9963 = vmatprep.subr.bf16.mxu0 0
        %9964 = vmatpush1.bf16.msra.mxu0 0
        %9965 = vmatprep.subr.bf16.mxu0 0
        %9966 = vmatpush1.bf16.msra.mxu0 0
        %9967 = vmatprep.subr.bf16.mxu0 0
        %9968 = vmatpush1.bf16.msra.mxu0 0
        %9969 = vmatprep.mubr.bf16.mxu0 0
        %9970 = vmatmul.mubr.bf16.gmra.mrb[0].mxu0 %v9863
        %v9971 = vpop.f32.mrb[0].mxu0
        %v9972 = vadd.f32 0.0, %v9971
        %v9973 = vpop.f32.mrb[0].mxu0
        %v9974 = vpop.f32.mrb[0].mxu0
        %v9975 = vadd.f32 0.0, %v9974
        %v9976 = vpop.f32.mrb[0].mxu0
        %9977 = vmatprep.mubr.bf16.mxu0 0
        %9978 = vmatmul.mubr.bf16.gmra.mrb[0].mxu0 %v9865
        %v9979 = vpop.f32.mrb[0].mxu0
        %v9980 = vadd.f32 0.0, %v9979
        %v9981 = vpop.f32.mrb[0].mxu0
        %v9982 = vpop.f32.mrb[0].mxu0
        %v9983 = vadd.f32 0.0, %v9982
        %v9984 = vpop.f32.mrb[0].mxu0
        %9985 = vmatprep.mubr.bf16.mxu0 0
        %9986 = vmatmul.mubr.bf16.gmra.mrb[0].mxu0 %v9867
        %v9987 = vpop.f32.mrb[0].mxu0
        %v9988 = vadd.f32 0.0, %v9987
        %v9989 = vpop.f32.mrb[0].mxu0
        %v9990 = vpop.f32.mrb[0].mxu0
        %v9991 = vadd.f32 0.0, %v9990
        %v9992 = vpop.f32.mrb[0].mxu0
        %9993 = vmatprep.mubr.bf16.mxu0 0
        %9994 = vmatmul.mubr.bf16.gmra.mrb[0].mxu0 %v9869
        %v9995 = vpop.f32.mrb[0].mxu0
        %v9996 = vadd.f32 0.0, %v9995
        %v9997 = vpop.f32.mrb[0].mxu0
        %v9998 = vpop.f32.mrb[0].mxu0
        %v9999 = vadd.f32 0.0, %v9998
        %v10000 = vpop.f32.mrb[0].mxu0
        %10001 = vmatprep.mubr.bf16.mxu0 0
        %10002 = vmatmul.mubr.bf16.gmra.mrb[0].mxu0 %v9871
        %v10003 = vpop.f32.mrb[0].mxu0
        %v10004 = vadd.f32 0.0, %v10003
        %v10005 = vpop.f32.mrb[0].mxu0
        %v10006 = vpop.f32.mrb[0].mxu0
        %v10007 = vadd.f32 0.0, %v10006
        %v10008 = vpop.f32.mrb[0].mxu0
        %10009 = vmatprep.mubr.bf16.mxu0 0
        %10010 = vmatmul.mubr.bf16.gmra.mrb[0].mxu0 %v9873
        %v10011 = vpop.f32.mrb[0].mxu0
        %v10012 = vadd.f32 0.0, %v10011
        %v10013 = vpop.f32.mrb[0].mxu0
        %v10014 = vpop.f32.mrb[0].mxu0
        %v10015 = vadd.f32 0.0, %v10014
        %v10016 = vpop.f32.mrb[0].mxu0
        %10017 = vmatprep.mubr.bf16.mxu0 0
        %10018 = vmatmul.mubr.bf16.gmra.mrb[0].mxu0 %v9875
        %v10019 = vpop.f32.mrb[0].mxu0
        %v10020 = vadd.f32 0.0, %v10019
        %v10021 = vpop.f32.mrb[0].mxu0
        %v10022 = vpop.f32.mrb[0].mxu0
        %v10023 = vadd.f32 0.0, %v10022
        %v10024 = vpop.f32.mrb[0].mxu0
        %10025 = vmatprep.mubr.bf16.mxu0 0
        %10026 = vmatmul.mubr.bf16.gmra.mrb[0].mxu0 %v9877
        %v10027 = vpop.f32.mrb[0].mxu0
        %v10028 = vadd.f32 0.0, %v10027
        %v10029 = vpop.f32.mrb[0].mxu0
        %v10030 = vpop.f32.mrb[0].mxu0
        %v10031 = vadd.f32 0.0, %v10030
        %v10032 = vpop.f32.mrb[0].mxu0
        %10033 = vmatprep.mubr.bf16.mxu0 0
        %10034 = vmatmul.mubr.bf16.gmra.mrb[0].mxu0 %v9879
        %v10035 = vpop.f32.mrb[0].mxu0
        %v10036 = vadd.f32 0.0, %v10035
        %v10037 = vpop.f32.mrb[0].mxu0
        %v10038 = vpop.f32.mrb[0].mxu0
        %v10039 = vadd.f32 0.0, %v10038
        %v10040 = vpop.f32.mrb[0].mxu0
        %10041 = vdwg.mxu0
        %v10042 = vadd.f32 %v9760, %v9972
        %v10043 = vadd.f32 %v9761, %v9975
        %v10044 = vadd.f32 %v9762, %v9980
        %v10045 = vadd.f32 %v9763, %v9983
        %v10046 = vadd.f32 %v9764, %v9988
        %v10047 = vadd.f32 %v9765, %v9991
        %v10048 = vadd.f32 %v9766, %v9996
        %v10049 = vadd.f32 %v9767, %v9999
        %v10050 = vadd.f32 %v9768, %v10004
        %v10051 = vadd.f32 %v9769, %v10007
        %v10052 = vadd.f32 %v9770, %v10012
        %v10053 = vadd.f32 %v9771, %v10015
        %v10054 = vadd.f32 %v9772, %v10020
        %v10055 = vadd.f32 %v9773, %v10023
        %v10056 = vadd.f32 %v9774, %v10028
        %v10057 = vadd.f32 %v9775, %v10031
        %v10058 = vadd.f32 %v9776, %v10036
        %v10059 = vadd.f32 %v9777, %v10039
        %v10060 = vld [vmem:[#allocation3 + $0x98] sm:$0x3]
        %v10061 = vld [vmem:[%s7594] sm:$0xf]
        %v10062 = vld [vmem:[%s7594 + $0x4] sm:$0xf]
        %v10063 = vld [vmem:[%s7594 + $0x8] sm:$0xf]
        %v10064 = vld [vmem:[%s7594 + $0xc] sm:$0xf]
        %v10065 = vld [vmem:[%s7594 + $0x10] sm:$0xf]
        %v10066 = vld [vmem:[%s7594 + $0x14] sm:$0xf]
        %v10067 = vld [vmem:[%s7594 + $0x18] sm:$0xf]
        %v10068 = vld [vmem:[%s7594 + $0x1c] sm:$0xf]
        %v10069 = vld [vmem:[%s7594 + $0x20] sm:$0xf]
        %v10070 = vld [vmem:[%s7594 + $0x24] sm:$0xf]
        %v10071 = vld [vmem:[%s7594 + $0x28] sm:$0xf]
        %v10072 = vld [vmem:[%s7594 + $0x2c] sm:$0xf]
        %v10073 = vld [vmem:[%s7594 + $0x30] sm:$0xf]
        %v10074 = vld [vmem:[%s7594 + $0x34] sm:$0xf]
        %v10075 = vld [vmem:[%s7594 + $0x38] sm:$0xf]
        %v10076 = vld [vmem:[%s7594 + $0x3c] sm:$0xf]
        %v10078 = vunpack.c.l.b16 %v10060
        %v10079 = vpack.c.b16 %v10078, %v10078
        %v10081 = vshrl.u32 %v9851, 16
        %v10083 = vrot.slane %v10081, 1
        %v10084 = vshll.u32 %v9851, 16
        %v10086 = vrot.slane %v10084, 2
        %v10087 = vor.u32 %v10083, %v10086
        %v10089 = vshrl.u32 %v9852, 16
        %v10091 = vrot.slane %v10089, 1
        %v10092 = vshll.u32 %v9852, 16
        %v10094 = vrot.slane %v10092, 2
        %v10095 = vor.u32 %v10091, %v10094
        %v10096 = vsel %vm2342, %v10087, %v10095
        %v10098 = vshrl.u32 %v9853, 16
        %v10100 = vrot.slane %v10098, 1
        %v10101 = vshll.u32 %v9853, 16
        %v10103 = vrot.slane %v10101, 2
        %v10104 = vor.u32 %v10100, %v10103
        %v10105 = vsel %vm2342, %v10095, %v10104
        %v10107 = vshrl.u32 %v9854, 16
        %v10109 = vrot.slane %v10107, 1
        %v10110 = vshll.u32 %v9854, 16
        %v10112 = vrot.slane %v10110, 2
        %v10113 = vor.u32 %v10109, %v10112
        %v10114 = vsel %vm2342, %v10104, %v10113
        %v10116 = vshrl.u32 %v9855, 16
        %v10118 = vrot.slane %v10116, 1
        %v10119 = vshll.u32 %v9855, 16
        %v10121 = vrot.slane %v10119, 2
        %v10122 = vor.u32 %v10118, %v10121
        %v10123 = vsel %vm2342, %v10113, %v10122
        %v10125 = vshrl.u32 %v9856, 16
        %v10127 = vrot.slane %v10125, 1
        %v10128 = vshll.u32 %v9856, 16
        %v10130 = vrot.slane %v10128, 2
        %v10131 = vor.u32 %v10127, %v10130
        %v10132 = vsel %vm2342, %v10122, %v10131
        %v10134 = vshrl.u32 %v9857, 16
        %v10136 = vrot.slane %v10134, 1
        %v10137 = vshll.u32 %v9857, 16
        %v10139 = vrot.slane %v10137, 2
        %v10140 = vor.u32 %v10136, %v10139
        %v10141 = vsel %vm2342, %v10131, %v10140
        %v10143 = vshrl.u32 %v9858, 16
        %v10145 = vrot.slane %v10143, 1
        %v10146 = vshll.u32 %v9858, 16
        %v10148 = vrot.slane %v10146, 2
        %v10149 = vor.u32 %v10145, %v10148
        %v10150 = vsel %vm2342, %v10140, %v10149
        %v10152 = vshrl.u32 %v9859, 16
        %v10154 = vrot.slane %v10152, 1
        %v10155 = vshll.u32 %v9859, 16
        %v10157 = vrot.slane %v10155, 2
        %v10158 = vor.u32 %v10154, %v10157
        %v10159 = vsel %vm2342, %v10149, %v10158
        %v10161 = vshrl.u32 %v10079, 16
        %v10163 = vrot.slane %v10161, 1
        %v10164 = vshll.u32 %v10079, 16
        %v10166 = vrot.slane %v10164, 2
        %v10167 = vor.u32 %v10163, %v10166
        %v10168 = vsel %vm2342, %v10158, %v10167
        %v10194 = vunpack.c.l.b16 %v10061
        %v10195 = vunpack.c.l.b16 %v10062
        %v10196 = vunpack.c.l.b16 %v10063
        %v10197 = vunpack.c.l.b16 %v10064
        %v10198 = vunpack.c.l.b16 %v10065
        %v10199 = vunpack.c.l.b16 %v10066
        %v10200 = vunpack.c.l.b16 %v10067
        %v10201 = vunpack.c.l.b16 %v10068
        %v10202 = vunpack.c.l.b16 %v10069
        %v10203 = vunpack.c.l.b16 %v10070
        %v10204 = vunpack.c.l.b16 %v10071
        %v10205 = vunpack.c.l.b16 %v10072
        %v10206 = vunpack.c.l.b16 %v10073
        %v10207 = vunpack.c.l.b16 %v10074
        %v10208 = vunpack.c.l.b16 %v10075
        %v10209 = vunpack.c.l.b16 %v10076
        %v10210 = vpack.c.b16 %v10195, %v10194
        %v10211 = vpack.c.b16 %v10197, %v10196
        %v10212 = vpack.c.b16 %v10199, %v10198
        %v10213 = vpack.c.b16 %v10201, %v10200
        %v10214 = vpack.c.b16 %v10203, %v10202
        %v10215 = vpack.c.b16 %v10205, %v10204
        %v10216 = vpack.c.b16 %v10207, %v10206
        %v10217 = vpack.c.b16 %v10209, %v10208
        %10226 = vmatprep.subr.bf16.mxu0 0
        %10227 = vmatpush1.bf16.msra.mxu0 %v10210
        %10228 = vmatprep.subr.bf16.mxu0 0
        %10229 = vmatpush1.bf16.msra.mxu0 %v10211
        %10230 = vmatprep.subr.bf16.mxu0 0
        %10231 = vmatpush1.bf16.msra.mxu0 %v10212
        %10232 = vmatprep.subr.bf16.mxu0 0
        %10233 = vmatpush1.bf16.msra.mxu0 %v10213
        %10234 = vmatprep.subr.bf16.mxu0 0
        %10235 = vmatpush1.bf16.msra.mxu0 %v10214
        %10236 = vmatprep.subr.bf16.mxu0 0
        %10237 = vmatpush1.bf16.msra.mxu0 %v10215
        %10238 = vmatprep.subr.bf16.mxu0 0
        %10239 = vmatpush1.bf16.msra.mxu0 %v10216
        %10240 = vmatprep.subr.bf16.mxu0 0
        %10241 = vmatpush1.bf16.msra.mxu0 %v10217
        %10242 = vmatprep.subr.bf16.mxu0 0
        %10243 = vmatpush1.bf16.msra.mxu0 0
        %10244 = vmatprep.subr.bf16.mxu0 0
        %10245 = vmatpush1.bf16.msra.mxu0 0
        %10246 = vmatprep.subr.bf16.mxu0 0
        %10247 = vmatpush1.bf16.msra.mxu0 0
        %10248 = vmatprep.subr.bf16.mxu0 0
        %10249 = vmatpush1.bf16.msra.mxu0 0
        %10250 = vmatprep.subr.bf16.mxu0 0
        %10251 = vmatpush1.bf16.msra.mxu0 0
        %10252 = vmatprep.subr.bf16.mxu0 0
        %10253 = vmatpush1.bf16.msra.mxu0 0
        %10254 = vmatprep.subr.bf16.mxu0 0
        %10255 = vmatpush1.bf16.msra.mxu0 0
        %10256 = vmatprep.subr.bf16.mxu0 0
        %10257 = vmatpush1.bf16.msra.mxu0 0
        %10258 = vmatprep.mubr.bf16.mxu0 0
        %10259 = vmatmul.mubr.bf16.gmra.mrb[0].mxu0 %v10096
        %v10260 = vpop.f32.mrb[0].mxu0
        %v10261 = vadd.f32 0.0, %v10260
        %v10262 = vpop.f32.mrb[0].mxu0
        %v10263 = vpop.f32.mrb[0].mxu0
        %v10264 = vadd.f32 0.0, %v10263
        %v10265 = vpop.f32.mrb[0].mxu0
        %10266 = vmatprep.mubr.bf16.mxu0 0
        %10267 = vmatmul.mubr.bf16.gmra.mrb[0].mxu0 %v10105
        %v10268 = vpop.f32.mrb[0].mxu0
        %v10269 = vadd.f32 0.0, %v10268
        %v10270 = vpop.f32.mrb[0].mxu0
        %v10271 = vpop.f32.mrb[0].mxu0
        %v10272 = vadd.f32 0.0, %v10271
        %v10273 = vpop.f32.mrb[0].mxu0
        %10274 = vmatprep.mubr.bf16.mxu0 0
        %10275 = vmatmul.mubr.bf16.gmra.mrb[0].mxu0 %v10114
        %v10276 = vpop.f32.mrb[0].mxu0
        %v10277 = vadd.f32 0.0, %v10276
        %v10278 = vpop.f32.mrb[0].mxu0
        %v10279 = vpop.f32.mrb[0].mxu0
        %v10280 = vadd.f32 0.0, %v10279
        %v10281 = vpop.f32.mrb[0].mxu0
        %10282 = vmatprep.mubr.bf16.mxu0 0
        %10283 = vmatmul.mubr.bf16.gmra.mrb[0].mxu0 %v10123
        %v10284 = vpop.f32.mrb[0].mxu0
        %v10285 = vadd.f32 0.0, %v10284
        %v10286 = vpop.f32.mrb[0].mxu0
        %v10287 = vpop.f32.mrb[0].mxu0
        %v10288 = vadd.f32 0.0, %v10287
        %v10289 = vpop.f32.mrb[0].mxu0
        %10290 = vmatprep.mubr.bf16.mxu0 0
        %10291 = vmatmul.mubr.bf16.gmra.mrb[0].mxu0 %v10132
        %v10292 = vpop.f32.mrb[0].mxu0
        %v10293 = vadd.f32 0.0, %v10292
        %v10294 = vpop.f32.mrb[0].mxu0
        %v10295 = vpop.f32.mrb[0].mxu0
        %v10296 = vadd.f32 0.0, %v10295
        %v10297 = vpop.f32.mrb[0].mxu0
        %10298 = vmatprep.mubr.bf16.mxu0 0
        %10299 = vmatmul.mubr.bf16.gmra.mrb[0].mxu0 %v10141
        %v10300 = vpop.f32.mrb[0].mxu0
        %v10301 = vadd.f32 0.0, %v10300
        %v10302 = vpop.f32.mrb[0].mxu0
        %v10303 = vpop.f32.mrb[0].mxu0
        %v10304 = vadd.f32 0.0, %v10303
        %v10305 = vpop.f32.mrb[0].mxu0
        %10306 = vmatprep.mubr.bf16.mxu0 0
        %10307 = vmatmul.mubr.bf16.gmra.mrb[0].mxu0 %v10150
        %v10308 = vpop.f32.mrb[0].mxu0
        %v10309 = vadd.f32 0.0, %v10308
        %v10310 = vpop.f32.mrb[0].mxu0
        %v10311 = vpop.f32.mrb[0].mxu0
        %v10312 = vadd.f32 0.0, %v10311
        %v10313 = vpop.f32.mrb[0].mxu0
        %10314 = vmatprep.mubr.bf16.mxu0 0
        %10315 = vmatmul.mubr.bf16.gmra.mrb[0].mxu0 %v10159
        %v10316 = vpop.f32.mrb[0].mxu0
        %v10317 = vadd.f32 0.0, %v10316
        %v10318 = vpop.f32.mrb[0].mxu0
        %v10319 = vpop.f32.mrb[0].mxu0
        %v10320 = vadd.f32 0.0, %v10319
        %v10321 = vpop.f32.mrb[0].mxu0
        %10322 = vmatprep.mubr.bf16.mxu0 0
        %10323 = vmatmul.mubr.bf16.gmra.mrb[0].mxu0 %v10168
        %v10324 = vpop.f32.mrb[0].mxu0
        %v10325 = vadd.f32 0.0, %v10324
        %v10326 = vpop.f32.mrb[0].mxu0
        %v10327 = vpop.f32.mrb[0].mxu0
        %v10328 = vadd.f32 0.0, %v10327
        %v10329 = vpop.f32.mrb[0].mxu0
        %10330 = vdwg.mxu0
        %v10331 = vadd.f32 %v10042, %v10261
        %v10332 = vadd.f32 %v10043, %v10264
        %v10333 = vadd.f32 %v10044, %v10269
        %v10334 = vadd.f32 %v10045, %v10272
        %v10335 = vadd.f32 %v10046, %v10277
        %v10336 = vadd.f32 %v10047, %v10280
        %v10337 = vadd.f32 %v10048, %v10285
        %v10338 = vadd.f32 %v10049, %v10288
        %v10339 = vadd.f32 %v10050, %v10293
        %v10340 = vadd.f32 %v10051, %v10296
        %v10341 = vadd.f32 %v10052, %v10301
        %v10342 = vadd.f32 %v10053, %v10304
        %v10343 = vadd.f32 %v10054, %v10309
        %v10344 = vadd.f32 %v10055, %v10312
        %v10345 = vadd.f32 %v10056, %v10317
        %v10346 = vadd.f32 %v10057, %v10320
        %v10347 = vadd.f32 %v10058, %v10325
        %v10348 = vadd.f32 %v10059, %v10328
        %v10349 = vld [vmem:[#allocation3 + $0x50] sm:$0xc]
        %v10350 = vld [vmem:[%s7884] sm:$0xf]
        %v10351 = vld [vmem:[%s7884 + $0x4] sm:$0xf]
        %v10352 = vld [vmem:[%s7884 + $0x8] sm:$0xf]
        %v10353 = vld [vmem:[%s7884 + $0xc] sm:$0xf]
        %v10354 = vld [vmem:[%s7884 + $0x10] sm:$0xf]
        %v10355 = vld [vmem:[%s7884 + $0x14] sm:$0xf]
        %v10356 = vld [vmem:[%s7884 + $0x18] sm:$0xf]
        %v10357 = vld [vmem:[%s7884 + $0x1c] sm:$0xf]
        %v10358 = vld [vmem:[%s7884 + $0x20] sm:$0xf]
        %v10359 = vld [vmem:[%s7884 + $0x24] sm:$0xf]
        %v10360 = vld [vmem:[%s7884 + $0x28] sm:$0xf]
        %v10361 = vld [vmem:[%s7884 + $0x2c] sm:$0xf]
        %v10362 = vld [vmem:[%s7884 + $0x30] sm:$0xf]
        %v10363 = vld [vmem:[%s7884 + $0x34] sm:$0xf]
        %v10364 = vld [vmem:[%s7884 + $0x38] sm:$0xf]
        %v10365 = vld [vmem:[%s7884 + $0x3c] sm:$0xf]
        %v10367 = vunpack.c.l.b16 %v10349
        %v10368 = vpack.c.b16 %v9833, %v10367
        %v10369 = vrot.slane %v10368, 2
        %v10370 = vrot.slane %v9852, 2
        %v10371 = vsel %vm2633, %v10369, %v10370
        %v10372 = vrot.slane %v9853, 2
        %v10373 = vsel %vm2633, %v10370, %v10372
        %v10374 = vrot.slane %v9854, 2
        %v10375 = vsel %vm2633, %v10372, %v10374
        %v10376 = vrot.slane %v9855, 2
        %v10377 = vsel %vm2633, %v10374, %v10376
        %v10378 = vrot.slane %v9856, 2
        %v10379 = vsel %vm2633, %v10376, %v10378
        %v10380 = vrot.slane %v9857, 2
        %v10381 = vsel %vm2633, %v10378, %v10380
        %v10382 = vrot.slane %v9858, 2
        %v10383 = vsel %vm2633, %v10380, %v10382
        %v10384 = vrot.slane %v9859, 2
        %v10385 = vsel %vm2633, %v10382, %v10384
        %v10386 = vrot.slane %v10079, 2
        %v10387 = vsel %vm2633, %v10384, %v10386
        %v10413 = vunpack.c.l.b16 %v10350
        %v10414 = vunpack.c.l.b16 %v10351
        %v10415 = vunpack.c.l.b16 %v10352
        %v10416 = vunpack.c.l.b16 %v10353
        %v10417 = vunpack.c.l.b16 %v10354
        %v10418 = vunpack.c.l.b16 %v10355
        %v10419 = vunpack.c.l.b16 %v10356
        %v10420 = vunpack.c.l.b16 %v10357
        %v10421 = vunpack.c.l.b16 %v10358
        %v10422 = vunpack.c.l.b16 %v10359
        %v10423 = vunpack.c.l.b16 %v10360
        %v10424 = vunpack.c.l.b16 %v10361
        %v10425 = vunpack.c.l.b16 %v10362
        %v10426 = vunpack.c.l.b16 %v10363
        %v10427 = vunpack.c.l.b16 %v10364
        %v10428 = vunpack.c.l.b16 %v10365
        %v10429 = vpack.c.b16 %v10414, %v10413
        %v10430 = vpack.c.b16 %v10416, %v10415
        %v10431 = vpack.c.b16 %v10418, %v10417
        %v10432 = vpack.c.b16 %v10420, %v10419
        %v10433 = vpack.c.b16 %v10422, %v10421
        %v10434 = vpack.c.b16 %v10424, %v10423
        %v10435 = vpack.c.b16 %v10426, %v10425
        %v10436 = vpack.c.b16 %v10428, %v10427
        %10445 = vmatprep.subr.bf16.mxu0 0
        %10446 = vmatpush1.bf16.msra.mxu0 %v10429
        %10447 = vmatprep.subr.bf16.mxu0 0
        %10448 = vmatpush1.bf16.msra.mxu0 %v10430
        %10449 = vmatprep.subr.bf16.mxu0 0
        %10450 = vmatpush1.bf16.msra.mxu0 %v10431
        %10451 = vmatprep.subr.bf16.mxu0 0
        %10452 = vmatpush1.bf16.msra.mxu0 %v10432
        %10453 = vmatprep.subr.bf16.mxu0 0
        %10454 = vmatpush1.bf16.msra.mxu0 %v10433
        %10455 = vmatprep.subr.bf16.mxu0 0
        %10456 = vmatpush1.bf16.msra.mxu0 %v10434
        %10457 = vmatprep.subr.bf16.mxu0 0
        %10458 = vmatpush1.bf16.msra.mxu0 %v10435
        %10459 = vmatprep.subr.bf16.mxu0 0
        %10460 = vmatpush1.bf16.msra.mxu0 %v10436
        %10461 = vmatprep.subr.bf16.mxu0 0
        %10462 = vmatpush1.bf16.msra.mxu0 0
        %10463 = vmatprep.subr.bf16.mxu0 0
        %10464 = vmatpush1.bf16.msra.mxu0 0
        %10465 = vmatprep.subr.bf16.mxu0 0
        %10466 = vmatpush1.bf16.msra.mxu0 0
        %10467 = vmatprep.subr.bf16.mxu0 0
        %10468 = vmatpush1.bf16.msra.mxu0 0
        %10469 = vmatprep.subr.bf16.mxu0 0
        %10470 = vmatpush1.bf16.msra.mxu0 0
        %10471 = vmatprep.subr.bf16.mxu0 0
        %10472 = vmatpush1.bf16.msra.mxu0 0
        %10473 = vmatprep.subr.bf16.mxu0 0
        %10474 = vmatpush1.bf16.msra.mxu0 0
        %10475 = vmatprep.subr.bf16.mxu0 0
        %10476 = vmatpush1.bf16.msra.mxu0 0
        %10477 = vmatprep.mubr.bf16.mxu0 0
        %10478 = vmatmul.mubr.bf16.gmra.mrb[0].mxu0 %v10371
        %v10479 = vpop.f32.mrb[0].mxu0
        %v10480 = vadd.f32 0.0, %v10479
        %v10481 = vpop.f32.mrb[0].mxu0
        %v10482 = vpop.f32.mrb[0].mxu0
        %v10483 = vadd.f32 0.0, %v10482
        %v10484 = vpop.f32.mrb[0].mxu0
        %10485 = vmatprep.mubr.bf16.mxu0 0
        %10486 = vmatmul.mubr.bf16.gmra.mrb[0].mxu0 %v10373
        %v10487 = vpop.f32.mrb[0].mxu0
        %v10488 = vadd.f32 0.0, %v10487
        %v10489 = vpop.f32.mrb[0].mxu0
        %v10490 = vpop.f32.mrb[0].mxu0
        %v10491 = vadd.f32 0.0, %v10490
        %v10492 = vpop.f32.mrb[0].mxu0
        %10493 = vmatprep.mubr.bf16.mxu0 0
        %10494 = vmatmul.mubr.bf16.gmra.mrb[0].mxu0 %v10375
        %v10495 = vpop.f32.mrb[0].mxu0
        %v10496 = vadd.f32 0.0, %v10495
        %v10497 = vpop.f32.mrb[0].mxu0
        %v10498 = vpop.f32.mrb[0].mxu0
        %v10499 = vadd.f32 0.0, %v10498
        %v10500 = vpop.f32.mrb[0].mxu0
        %10501 = vmatprep.mubr.bf16.mxu0 0
        %10502 = vmatmul.mubr.bf16.gmra.mrb[0].mxu0 %v10377
        %v10503 = vpop.f32.mrb[0].mxu0
        %v10504 = vadd.f32 0.0, %v10503
        %v10505 = vpop.f32.mrb[0].mxu0
        %v10506 = vpop.f32.mrb[0].mxu0
        %v10507 = vadd.f32 0.0, %v10506
        %v10508 = vpop.f32.mrb[0].mxu0
        %10509 = vmatprep.mubr.bf16.mxu0 0
        %10510 = vmatmul.mubr.bf16.gmra.mrb[0].mxu0 %v10379
        %v10511 = vpop.f32.mrb[0].mxu0
        %v10512 = vadd.f32 0.0, %v10511
        %v10513 = vpop.f32.mrb[0].mxu0
        %v10514 = vpop.f32.mrb[0].mxu0
        %v10515 = vadd.f32 0.0, %v10514
        %v10516 = vpop.f32.mrb[0].mxu0
        %10517 = vmatprep.mubr.bf16.mxu0 0
        %10518 = vmatmul.mubr.bf16.gmra.mrb[0].mxu0 %v10381
        %v10519 = vpop.f32.mrb[0].mxu0
        %v10520 = vadd.f32 0.0, %v10519
        %v10521 = vpop.f32.mrb[0].mxu0
        %v10522 = vpop.f32.mrb[0].mxu0
        %v10523 = vadd.f32 0.0, %v10522
        %v10524 = vpop.f32.mrb[0].mxu0
        %10525 = vmatprep.mubr.bf16.mxu0 0
        %10526 = vmatmul.mubr.bf16.gmra.mrb[0].mxu0 %v10383
        %v10527 = vpop.f32.mrb[0].mxu0
        %v10528 = vadd.f32 0.0, %v10527
        %v10529 = vpop.f32.mrb[0].mxu0
        %v10530 = vpop.f32.mrb[0].mxu0
        %v10531 = vadd.f32 0.0, %v10530
        %v10532 = vpop.f32.mrb[0].mxu0
        %10533 = vmatprep.mubr.bf16.mxu0 0
        %10534 = vmatmul.mubr.bf16.gmra.mrb[0].mxu0 %v10385
        %v10535 = vpop.f32.mrb[0].mxu0
        %v10536 = vadd.f32 0.0, %v10535
        %v10537 = vpop.f32.mrb[0].mxu0
        %v10538 = vpop.f32.mrb[0].mxu0
        %v10539 = vadd.f32 0.0, %v10538
        %v10540 = vpop.f32.mrb[0].mxu0
        %10541 = vmatprep.mubr.bf16.mxu0 0
        %10542 = vmatmul.mubr.bf16.gmra.mrb[0].mxu0 %v10387
        %v10543 = vpop.f32.mrb[0].mxu0
        %v10544 = vadd.f32 0.0, %v10543
        %v10545 = vpop.f32.mrb[0].mxu0
        %v10546 = vpop.f32.mrb[0].mxu0
        %v10547 = vadd.f32 0.0, %v10546
        %v10548 = vpop.f32.mrb[0].mxu0
        %10549 = vdwg.mxu0
        %v10550 = vadd.f32 %v10331, %v10480
        %v10551 = vadd.f32 %v10332, %v10483
        %v10552 = vadd.f32 %v10333, %v10488
        %v10553 = vadd.f32 %v10334, %v10491
        %v10554 = vadd.f32 %v10335, %v10496
        %v10555 = vadd.f32 %v10336, %v10499
        %v10556 = vadd.f32 %v10337, %v10504
        %v10557 = vadd.f32 %v10338, %v10507
        %v10558 = vadd.f32 %v10339, %v10512
        %v10559 = vadd.f32 %v10340, %v10515
        %v10560 = vadd.f32 %v10341, %v10520
        %v10561 = vadd.f32 %v10342, %v10523
        %v10562 = vadd.f32 %v10343, %v10528
        %v10563 = vadd.f32 %v10344, %v10531
        %v10564 = vadd.f32 %v10345, %v10536
        %v10565 = vadd.f32 %v10346, %v10539
        %v10566 = vadd.f32 %v10347, %v10544
        %v10567 = vadd.f32 %v10348, %v10547
        %v10568 = vld [vmem:[#allocation3 + $0x58] sm:$0xc]
        %v10569 = vld [vmem:[#allocation3 + $0x5c] sm:$0xf]
        %v10570 = vld [vmem:[#allocation3 + $0x60] sm:$0xf]
        %v10571 = vld [vmem:[#allocation3 + $0x64] sm:$0xf]
        %v10572 = vld [vmem:[#allocation3 + $0x68] sm:$0xf]
        %v10573 = vld [vmem:[#allocation3 + $0x6c] sm:$0xf]
        %v10574 = vld [vmem:[#allocation3 + $0x70] sm:$0xf]
        %v10575 = vld [vmem:[#allocation3 + $0x74] sm:$0xf]
        %v10576 = vld [vmem:[#allocation3 + $0x78] sm:$0xf]
        %v10577 = vld [vmem:[#allocation3 + $0x7c] sm:$0xf]
        %v10578 = vld [vmem:[#allocation3 + $0x80] sm:$0xf]
        %v10579 = vld [vmem:[#allocation3 + $0x84] sm:$0xf]
        %v10580 = vld [vmem:[#allocation3 + $0x88] sm:$0xf]
        %v10581 = vld [vmem:[#allocation3 + $0x8c] sm:$0xf]
        %v10582 = vld [vmem:[#allocation3 + $0x90] sm:$0xf]
        %v10583 = vld [vmem:[#allocation3 + $0x94] sm:$0xf]
        %v10584 = vld [vmem:[#allocation3 + $0x98] sm:$0xf]
        %v10585 = vld [vmem:[#allocation3 + $0x9c] sm:$0xf]
        %v10586 = vld [vmem:[#allocation3 + $0xa0] sm:$0x3]
        %v10587 = vld [vmem:[%s8122] sm:$0xf]
        %v10588 = vld [vmem:[%s8122 + $0x4] sm:$0xf]
        %v10589 = vld [vmem:[%s8122 + $0x8] sm:$0xf]
        %v10590 = vld [vmem:[%s8122 + $0xc] sm:$0xf]
        %v10591 = vld [vmem:[%s8122 + $0x10] sm:$0xf]
        %v10592 = vld [vmem:[%s8122 + $0x14] sm:$0xf]
        %v10593 = vld [vmem:[%s8122 + $0x18] sm:$0xf]
        %v10594 = vld [vmem:[%s8122 + $0x1c] sm:$0xf]
        %v10595 = vld [vmem:[%s8122 + $0x20] sm:$0xf]
        %v10596 = vld [vmem:[%s8122 + $0x24] sm:$0xf]
        %v10597 = vld [vmem:[%s8122 + $0x28] sm:$0xf]
        %v10598 = vld [vmem:[%s8122 + $0x2c] sm:$0xf]
        %v10599 = vld [vmem:[%s8122 + $0x30] sm:$0xf]
        %v10600 = vld [vmem:[%s8122 + $0x34] sm:$0xf]
        %v10601 = vld [vmem:[%s8122 + $0x38] sm:$0xf]
        %v10602 = vld [vmem:[%s8122 + $0x3c] sm:$0xf]
        %v10622 = vunpack.c.l.b16 %v10568
        %v10623 = vunpack.c.l.b16 %v10569
        %v10624 = vunpack.c.l.b16 %v10570
        %v10625 = vunpack.c.l.b16 %v10571
        %v10626 = vunpack.c.l.b16 %v10572
        %v10627 = vunpack.c.l.b16 %v10573
        %v10628 = vunpack.c.l.b16 %v10574
        %v10629 = vunpack.c.l.b16 %v10575
        %v10630 = vunpack.c.l.b16 %v10576
        %v10631 = vunpack.c.l.b16 %v10577
        %v10632 = vunpack.c.l.b16 %v10578
        %v10633 = vunpack.c.l.b16 %v10579
        %v10634 = vunpack.c.l.b16 %v10580
        %v10635 = vunpack.c.l.b16 %v10581
        %v10636 = vunpack.c.l.b16 %v10582
        %v10637 = vunpack.c.l.b16 %v10583
        %v10638 = vunpack.c.l.b16 %v10584
        %v10639 = vunpack.c.l.b16 %v10585
        %v10640 = vunpack.c.l.b16 %v10586
        %v10641 = vpack.c.b16 %v10623, %v10622
        %v10642 = vpack.c.b16 %v10625, %v10624
        %v10643 = vpack.c.b16 %v10627, %v10626
        %v10644 = vpack.c.b16 %v10629, %v10628
        %v10645 = vpack.c.b16 %v10631, %v10630
        %v10646 = vpack.c.b16 %v10633, %v10632
        %v10647 = vpack.c.b16 %v10635, %v10634
        %v10648 = vpack.c.b16 %v10637, %v10636
        %v10649 = vpack.c.b16 %v10639, %v10638
        %v10650 = vpack.c.b16 %v10640, %v10640
        %v10651 = vrot.slane %v10641, 2
        %v10652 = vrot.slane %v10642, 2
        %v10653 = vsel %vm2633, %v10651, %v10652
        %v10654 = vrot.slane %v10643, 2
        %v10655 = vsel %vm2633, %v10652, %v10654
        %v10656 = vrot.slane %v10644, 2
        %v10657 = vsel %vm2633, %v10654, %v10656
        %v10658 = vrot.slane %v10645, 2
        %v10659 = vsel %vm2633, %v10656, %v10658
        %v10660 = vrot.slane %v10646, 2
        %v10661 = vsel %vm2633, %v10658, %v10660
        %v10662 = vrot.slane %v10647, 2
        %v10663 = vsel %vm2633, %v10660, %v10662
        %v10664 = vrot.slane %v10648, 2
        %v10665 = vsel %vm2633, %v10662, %v10664
        %v10666 = vrot.slane %v10649, 2
        %v10667 = vsel %vm2633, %v10664, %v10666
        %v10668 = vrot.slane %v10650, 2
        %v10669 = vsel %vm2633, %v10666, %v10668
        %v10695 = vunpack.c.l.b16 %v10587
        %v10696 = vunpack.c.l.b16 %v10588
        %v10697 = vunpack.c.l.b16 %v10589
        %v10698 = vunpack.c.l.b16 %v10590
        %v10699 = vunpack.c.l.b16 %v10591
        %v10700 = vunpack.c.l.b16 %v10592
        %v10701 = vunpack.c.l.b16 %v10593
        %v10702 = vunpack.c.l.b16 %v10594
        %v10703 = vunpack.c.l.b16 %v10595
        %v10704 = vunpack.c.l.b16 %v10596
        %v10705 = vunpack.c.l.b16 %v10597
        %v10706 = vunpack.c.l.b16 %v10598
        %v10707 = vunpack.c.l.b16 %v10599
        %v10708 = vunpack.c.l.b16 %v10600
        %v10709 = vunpack.c.l.b16 %v10601
        %v10710 = vunpack.c.l.b16 %v10602
        %v10711 = vpack.c.b16 %v10696, %v10695
        %v10712 = vpack.c.b16 %v10698, %v10697
        %v10713 = vpack.c.b16 %v10700, %v10699
        %v10714 = vpack.c.b16 %v10702, %v10701
        %v10715 = vpack.c.b16 %v10704, %v10703
        %v10716 = vpack.c.b16 %v10706, %v10705
        %v10717 = vpack.c.b16 %v10708, %v10707
        %v10718 = vpack.c.b16 %v10710, %v10709
        %10727 = vmatprep.subr.bf16.mxu0 0
        %10728 = vmatpush1.bf16.msra.mxu0 %v10711
        %10729 = vmatprep.subr.bf16.mxu0 0
        %10730 = vmatpush1.bf16.msra.mxu0 %v10712
        %10731 = vmatprep.subr.bf16.mxu0 0
        %10732 = vmatpush1.bf16.msra.mxu0 %v10713
        %10733 = vmatprep.subr.bf16.mxu0 0
        %10734 = vmatpush1.bf16.msra.mxu0 %v10714
        %10735 = vmatprep.subr.bf16.mxu0 0
        %10736 = vmatpush1.bf16.msra.mxu0 %v10715
        %10737 = vmatprep.subr.bf16.mxu0 0
        %10738 = vmatpush1.bf16.msra.mxu0 %v10716
        %10739 = vmatprep.subr.bf16.mxu0 0
        %10740 = vmatpush1.bf16.msra.mxu0 %v10717
        %10741 = vmatprep.subr.bf16.mxu0 0
        %10742 = vmatpush1.bf16.msra.mxu0 %v10718
        %10743 = vmatprep.subr.bf16.mxu0 0
        %10744 = vmatpush1.bf16.msra.mxu0 0
        %10745 = vmatprep.subr.bf16.mxu0 0
        %10746 = vmatpush1.bf16.msra.mxu0 0
        %10747 = vmatprep.subr.bf16.mxu0 0
        %10748 = vmatpush1.bf16.msra.mxu0 0
        %10749 = vmatprep.subr.bf16.mxu0 0
        %10750 = vmatpush1.bf16.msra.mxu0 0
        %10751 = vmatprep.subr.bf16.mxu0 0
        %10752 = vmatpush1.bf16.msra.mxu0 0
        %10753 = vmatprep.subr.bf16.mxu0 0
        %10754 = vmatpush1.bf16.msra.mxu0 0
        %10755 = vmatprep.subr.bf16.mxu0 0
        %10756 = vmatpush1.bf16.msra.mxu0 0
        %10757 = vmatprep.subr.bf16.mxu0 0
        %10758 = vmatpush1.bf16.msra.mxu0 0
        %10759 = vmatprep.mubr.bf16.mxu0 0
        %10760 = vmatmul.mubr.bf16.gmra.mrb[0].mxu0 %v10653
        %v10761 = vpop.f32.mrb[0].mxu0
        %v10762 = vadd.f32 0.0, %v10761
        %v10763 = vpop.f32.mrb[0].mxu0
        %v10764 = vpop.f32.mrb[0].mxu0
        %v10765 = vadd.f32 0.0, %v10764
        %v10766 = vpop.f32.mrb[0].mxu0
        %10767 = vmatprep.mubr.bf16.mxu0 0
        %10768 = vmatmul.mubr.bf16.gmra.mrb[0].mxu0 %v10655
        %v10769 = vpop.f32.mrb[0].mxu0
        %v10770 = vadd.f32 0.0, %v10769
        %v10771 = vpop.f32.mrb[0].mxu0
        %v10772 = vpop.f32.mrb[0].mxu0
        %v10773 = vadd.f32 0.0, %v10772
        %v10774 = vpop.f32.mrb[0].mxu0
        %10775 = vmatprep.mubr.bf16.mxu0 0
        %10776 = vmatmul.mubr.bf16.gmra.mrb[0].mxu0 %v10657
        %v10777 = vpop.f32.mrb[0].mxu0
        %v10778 = vadd.f32 0.0, %v10777
        %v10779 = vpop.f32.mrb[0].mxu0
        %v10780 = vpop.f32.mrb[0].mxu0
        %v10781 = vadd.f32 0.0, %v10780
        %v10782 = vpop.f32.mrb[0].mxu0
        %10783 = vmatprep.mubr.bf16.mxu0 0
        %10784 = vmatmul.mubr.bf16.gmra.mrb[0].mxu0 %v10659
        %v10785 = vpop.f32.mrb[0].mxu0
        %v10786 = vadd.f32 0.0, %v10785
        %v10787 = vpop.f32.mrb[0].mxu0
        %v10788 = vpop.f32.mrb[0].mxu0
        %v10789 = vadd.f32 0.0, %v10788
        %v10790 = vpop.f32.mrb[0].mxu0
        %10791 = vmatprep.mubr.bf16.mxu0 0
        %10792 = vmatmul.mubr.bf16.gmra.mrb[0].mxu0 %v10661
        %v10793 = vpop.f32.mrb[0].mxu0
        %v10794 = vadd.f32 0.0, %v10793
        %v10795 = vpop.f32.mrb[0].mxu0
        %v10796 = vpop.f32.mrb[0].mxu0
        %v10797 = vadd.f32 0.0, %v10796
        %v10798 = vpop.f32.mrb[0].mxu0
        %10799 = vmatprep.mubr.bf16.mxu0 0
        %10800 = vmatmul.mubr.bf16.gmra.mrb[0].mxu0 %v10663
        %v10801 = vpop.f32.mrb[0].mxu0
        %v10802 = vadd.f32 0.0, %v10801
        %v10803 = vpop.f32.mrb[0].mxu0
        %v10804 = vpop.f32.mrb[0].mxu0
        %v10805 = vadd.f32 0.0, %v10804
        %v10806 = vpop.f32.mrb[0].mxu0
        %10807 = vmatprep.mubr.bf16.mxu0 0
        %10808 = vmatmul.mubr.bf16.gmra.mrb[0].mxu0 %v10665
        %v10809 = vpop.f32.mrb[0].mxu0
        %v10810 = vadd.f32 0.0, %v10809
        %v10811 = vpop.f32.mrb[0].mxu0
        %v10812 = vpop.f32.mrb[0].mxu0
        %v10813 = vadd.f32 0.0, %v10812
        %v10814 = vpop.f32.mrb[0].mxu0
        %10815 = vmatprep.mubr.bf16.mxu0 0
        %10816 = vmatmul.mubr.bf16.gmra.mrb[0].mxu0 %v10667
        %v10817 = vpop.f32.mrb[0].mxu0
        %v10818 = vadd.f32 0.0, %v10817
        %v10819 = vpop.f32.mrb[0].mxu0
        %v10820 = vpop.f32.mrb[0].mxu0
        %v10821 = vadd.f32 0.0, %v10820
        %v10822 = vpop.f32.mrb[0].mxu0
        %10823 = vmatprep.mubr.bf16.mxu0 0
        %10824 = vmatmul.mubr.bf16.gmra.mrb[0].mxu0 %v10669
        %v10825 = vpop.f32.mrb[0].mxu0
        %v10826 = vadd.f32 0.0, %v10825
        %v10827 = vpop.f32.mrb[0].mxu0
        %v10828 = vpop.f32.mrb[0].mxu0
        %v10829 = vadd.f32 0.0, %v10828
        %v10830 = vpop.f32.mrb[0].mxu0
        %10831 = vdwg.mxu0
        %v10832 = vadd.f32 %v10550, %v10762
        %v10833 = vadd.f32 %v10551, %v10765
        %v10834 = vadd.f32 %v10552, %v10770
        %v10835 = vadd.f32 %v10553, %v10773
        %v10836 = vadd.f32 %v10554, %v10778
        %v10837 = vadd.f32 %v10555, %v10781
        %v10838 = vadd.f32 %v10556, %v10786
        %v10839 = vadd.f32 %v10557, %v10789
        %v10840 = vadd.f32 %v10558, %v10794
        %v10841 = vadd.f32 %v10559, %v10797
        %v10842 = vadd.f32 %v10560, %v10802
        %v10843 = vadd.f32 %v10561, %v10805
        %v10844 = vadd.f32 %v10562, %v10810
        %v10845 = vadd.f32 %v10563, %v10813
        %v10846 = vadd.f32 %v10564, %v10818
        %v10847 = vadd.f32 %v10565, %v10821
        %v10848 = vadd.f32 %v10566, %v10826
        %v10849 = vadd.f32 %v10567, %v10829
        %v10850 = vld [vmem:[#allocation3 + $0xa0] sm:$0x7]
        %v10851 = vld [vmem:[%s8387] sm:$0xf]
        %v10852 = vld [vmem:[%s8387 + $0x4] sm:$0xf]
        %v10853 = vld [vmem:[%s8387 + $0x8] sm:$0xf]
        %v10854 = vld [vmem:[%s8387 + $0xc] sm:$0xf]
        %v10855 = vld [vmem:[%s8387 + $0x10] sm:$0xf]
        %v10856 = vld [vmem:[%s8387 + $0x14] sm:$0xf]
        %v10857 = vld [vmem:[%s8387 + $0x18] sm:$0xf]
        %v10858 = vld [vmem:[%s8387 + $0x1c] sm:$0xf]
        %v10859 = vld [vmem:[%s8387 + $0x20] sm:$0xf]
        %v10860 = vld [vmem:[%s8387 + $0x24] sm:$0xf]
        %v10861 = vld [vmem:[%s8387 + $0x28] sm:$0xf]
        %v10862 = vld [vmem:[%s8387 + $0x2c] sm:$0xf]
        %v10863 = vld [vmem:[%s8387 + $0x30] sm:$0xf]
        %v10864 = vld [vmem:[%s8387 + $0x34] sm:$0xf]
        %v10865 = vld [vmem:[%s8387 + $0x38] sm:$0xf]
        %v10866 = vld [vmem:[%s8387 + $0x3c] sm:$0xf]
        %v10868 = vunpack.c.l.b16 %v10850
        %v10869 = vpack.c.b16 %v10868, %v10868
        %v10871 = vshrl.u32 %v10641, 16
        %v10873 = vrot.slane %v10871, 2
        %v10874 = vshll.u32 %v10641, 16
        %v10876 = vrot.slane %v10874, 3
        %v10877 = vor.u32 %v10873, %v10876
        %v10879 = vshrl.u32 %v10642, 16
        %v10881 = vrot.slane %v10879, 2
        %v10882 = vshll.u32 %v10642, 16
        %v10884 = vrot.slane %v10882, 3
        %v10885 = vor.u32 %v10881, %v10884
        %v10886 = vsel %vm3137, %v10877, %v10885
        %v10888 = vshrl.u32 %v10643, 16
        %v10890 = vrot.slane %v10888, 2
        %v10891 = vshll.u32 %v10643, 16
        %v10893 = vrot.slane %v10891, 3
        %v10894 = vor.u32 %v10890, %v10893
        %v10895 = vsel %vm3137, %v10885, %v10894
        %v10897 = vshrl.u32 %v10644, 16
        %v10899 = vrot.slane %v10897, 2
        %v10900 = vshll.u32 %v10644, 16
        %v10902 = vrot.slane %v10900, 3
        %v10903 = vor.u32 %v10899, %v10902
        %v10904 = vsel %vm3137, %v10894, %v10903
        %v10906 = vshrl.u32 %v10645, 16
        %v10908 = vrot.slane %v10906, 2
        %v10909 = vshll.u32 %v10645, 16
        %v10911 = vrot.slane %v10909, 3
        %v10912 = vor.u32 %v10908, %v10911
        %v10913 = vsel %vm3137, %v10903, %v10912
        %v10915 = vshrl.u32 %v10646, 16
        %v10917 = vrot.slane %v10915, 2
        %v10918 = vshll.u32 %v10646, 16
        %v10920 = vrot.slane %v10918, 3
        %v10921 = vor.u32 %v10917, %v10920
        %v10922 = vsel %vm3137, %v10912, %v10921
        %v10924 = vshrl.u32 %v10647, 16
        %v10926 = vrot.slane %v10924, 2
        %v10927 = vshll.u32 %v10647, 16
        %v10929 = vrot.slane %v10927, 3
        %v10930 = vor.u32 %v10926, %v10929
        %v10931 = vsel %vm3137, %v10921, %v10930
        %v10933 = vshrl.u32 %v10648, 16
        %v10935 = vrot.slane %v10933, 2
        %v10936 = vshll.u32 %v10648, 16
        %v10938 = vrot.slane %v10936, 3
        %v10939 = vor.u32 %v10935, %v10938
        %v10940 = vsel %vm3137, %v10930, %v10939
        %v10942 = vshrl.u32 %v10649, 16
        %v10944 = vrot.slane %v10942, 2
        %v10945 = vshll.u32 %v10649, 16
        %v10947 = vrot.slane %v10945, 3
        %v10948 = vor.u32 %v10944, %v10947
        %v10949 = vsel %vm3137, %v10939, %v10948
        %v10951 = vshrl.u32 %v10869, 16
        %v10953 = vrot.slane %v10951, 2
        %v10954 = vshll.u32 %v10869, 16
        %v10956 = vrot.slane %v10954, 3
        %v10957 = vor.u32 %v10953, %v10956
        %v10958 = vsel %vm3137, %v10948, %v10957
        %v10984 = vunpack.c.l.b16 %v10851
        %v10985 = vunpack.c.l.b16 %v10852
        %v10986 = vunpack.c.l.b16 %v10853
        %v10987 = vunpack.c.l.b16 %v10854
        %v10988 = vunpack.c.l.b16 %v10855
        %v10989 = vunpack.c.l.b16 %v10856
        %v10990 = vunpack.c.l.b16 %v10857
        %v10991 = vunpack.c.l.b16 %v10858
        %v10992 = vunpack.c.l.b16 %v10859
        %v10993 = vunpack.c.l.b16 %v10860
        %v10994 = vunpack.c.l.b16 %v10861
        %v10995 = vunpack.c.l.b16 %v10862
        %v10996 = vunpack.c.l.b16 %v10863
        %v10997 = vunpack.c.l.b16 %v10864
        %v10998 = vunpack.c.l.b16 %v10865
        %v10999 = vunpack.c.l.b16 %v10866
        %v11000 = vpack.c.b16 %v10985, %v10984
        %v11001 = vpack.c.b16 %v10987, %v10986
        %v11002 = vpack.c.b16 %v10989, %v10988
        %v11003 = vpack.c.b16 %v10991, %v10990
        %v11004 = vpack.c.b16 %v10993, %v10992
        %v11005 = vpack.c.b16 %v10995, %v10994
        %v11006 = vpack.c.b16 %v10997, %v10996
        %v11007 = vpack.c.b16 %v10999, %v10998
        %11016 = vmatprep.subr.bf16.mxu0 0
        %11017 = vmatpush1.bf16.msra.mxu0 %v11000
        %11018 = vmatprep.subr.bf16.mxu0 0
        %11019 = vmatpush1.bf16.msra.mxu0 %v11001
        %11020 = vmatprep.subr.bf16.mxu0 0
        %11021 = vmatpush1.bf16.msra.mxu0 %v11002
        %11022 = vmatprep.subr.bf16.mxu0 0
        %11023 = vmatpush1.bf16.msra.mxu0 %v11003
        %11024 = vmatprep.subr.bf16.mxu0 0
        %11025 = vmatpush1.bf16.msra.mxu0 %v11004
        %11026 = vmatprep.subr.bf16.mxu0 0
        %11027 = vmatpush1.bf16.msra.mxu0 %v11005
        %11028 = vmatprep.subr.bf16.mxu0 0
        %11029 = vmatpush1.bf16.msra.mxu0 %v11006
        %11030 = vmatprep.subr.bf16.mxu0 0
        %11031 = vmatpush1.bf16.msra.mxu0 %v11007
        %11032 = vmatprep.subr.bf16.mxu0 0
        %11033 = vmatpush1.bf16.msra.mxu0 0
        %11034 = vmatprep.subr.bf16.mxu0 0
        %11035 = vmatpush1.bf16.msra.mxu0 0
        %11036 = vmatprep.subr.bf16.mxu0 0
        %11037 = vmatpush1.bf16.msra.mxu0 0
        %11038 = vmatprep.subr.bf16.mxu0 0
        %11039 = vmatpush1.bf16.msra.mxu0 0
        %11040 = vmatprep.subr.bf16.mxu0 0
        %11041 = vmatpush1.bf16.msra.mxu0 0
        %11042 = vmatprep.subr.bf16.mxu0 0
        %11043 = vmatpush1.bf16.msra.mxu0 0
        %11044 = vmatprep.subr.bf16.mxu0 0
        %11045 = vmatpush1.bf16.msra.mxu0 0
        %11046 = vmatprep.subr.bf16.mxu0 0
        %11047 = vmatpush1.bf16.msra.mxu0 0
        %11048 = vmatprep.mubr.bf16.mxu0 0
        %11049 = vmatmul.mubr.bf16.gmra.mrb[0].mxu0 %v10886
        %v11050 = vpop.f32.mrb[0].mxu0
        %v11051 = vadd.f32 0.0, %v11050
        %v11052 = vpop.f32.mrb[0].mxu0
        %v11053 = vpop.f32.mrb[0].mxu0
        %v11054 = vadd.f32 0.0, %v11053
        %v11055 = vpop.f32.mrb[0].mxu0
        %11056 = vmatprep.mubr.bf16.mxu0 0
        %11057 = vmatmul.mubr.bf16.gmra.mrb[0].mxu0 %v10895
        %v11058 = vpop.f32.mrb[0].mxu0
        %v11059 = vadd.f32 0.0, %v11058
        %v11060 = vpop.f32.mrb[0].mxu0
        %v11061 = vpop.f32.mrb[0].mxu0
        %v11062 = vadd.f32 0.0, %v11061
        %v11063 = vpop.f32.mrb[0].mxu0
        %11064 = vmatprep.mubr.bf16.mxu0 0
        %11065 = vmatmul.mubr.bf16.gmra.mrb[0].mxu0 %v10904
        %v11066 = vpop.f32.mrb[0].mxu0
        %v11067 = vadd.f32 0.0, %v11066
        %v11068 = vpop.f32.mrb[0].mxu0
        %v11069 = vpop.f32.mrb[0].mxu0
        %v11070 = vadd.f32 0.0, %v11069
        %v11071 = vpop.f32.mrb[0].mxu0
        %11072 = vmatprep.mubr.bf16.mxu0 0
        %11073 = vmatmul.mubr.bf16.gmra.mrb[0].mxu0 %v10913
        %v11074 = vpop.f32.mrb[0].mxu0
        %v11075 = vadd.f32 0.0, %v11074
        %v11076 = vpop.f32.mrb[0].mxu0
        %v11077 = vpop.f32.mrb[0].mxu0
        %v11078 = vadd.f32 0.0, %v11077
        %v11079 = vpop.f32.mrb[0].mxu0
        %11080 = vmatprep.mubr.bf16.mxu0 0
        %11081 = vmatmul.mubr.bf16.gmra.mrb[0].mxu0 %v10922
        %v11082 = vpop.f32.mrb[0].mxu0
        %v11083 = vadd.f32 0.0, %v11082
        %v11084 = vpop.f32.mrb[0].mxu0
        %v11085 = vpop.f32.mrb[0].mxu0
        %v11086 = vadd.f32 0.0, %v11085
        %v11087 = vpop.f32.mrb[0].mxu0
        %11088 = vmatprep.mubr.bf16.mxu0 0
        %11089 = vmatmul.mubr.bf16.gmra.mrb[0].mxu0 %v10931
        %v11090 = vpop.f32.mrb[0].mxu0
        %v11091 = vadd.f32 0.0, %v11090
        %v11092 = vpop.f32.mrb[0].mxu0
        %v11093 = vpop.f32.mrb[0].mxu0
        %v11094 = vadd.f32 0.0, %v11093
        %v11095 = vpop.f32.mrb[0].mxu0
        %11096 = vmatprep.mubr.bf16.mxu0 0
        %11097 = vmatmul.mubr.bf16.gmra.mrb[0].mxu0 %v10940
        %v11098 = vpop.f32.mrb[0].mxu0
        %v11099 = vadd.f32 0.0, %v11098
        %v11100 = vpop.f32.mrb[0].mxu0
        %v11101 = vpop.f32.mrb[0].mxu0
        %v11102 = vadd.f32 0.0, %v11101
        %v11103 = vpop.f32.mrb[0].mxu0
        %11104 = vmatprep.mubr.bf16.mxu0 0
        %11105 = vmatmul.mubr.bf16.gmra.mrb[0].mxu0 %v10949
        %v11106 = vpop.f32.mrb[0].mxu0
        %v11107 = vadd.f32 0.0, %v11106
        %v11108 = vpop.f32.mrb[0].mxu0
        %v11109 = vpop.f32.mrb[0].mxu0
        %v11110 = vadd.f32 0.0, %v11109
        %v11111 = vpop.f32.mrb[0].mxu0
        %11112 = vmatprep.mubr.bf16.mxu0 0
        %11113 = vmatmul.mubr.bf16.gmra.mrb[0].mxu0 %v10958
        %v11114 = vpop.f32.mrb[0].mxu0
        %v11115 = vadd.f32 0.0, %v11114
        %v11116 = vpop.f32.mrb[0].mxu0
        %v11117 = vpop.f32.mrb[0].mxu0
        %v11118 = vadd.f32 0.0, %v11117
        %v11119 = vpop.f32.mrb[0].mxu0
        %11120 = vdwg.mxu0
        %v11121 = vadd.f32 %v10832, %v11051
        %v11122 = vadd.f32 %v10833, %v11054
        %v11123 = vadd.f32 %v10834, %v11059
        %v11124 = vadd.f32 %v10835, %v11062
        %v11125 = vadd.f32 %v10836, %v11067
        %v11126 = vadd.f32 %v10837, %v11070
        %v11127 = vadd.f32 %v10838, %v11075
        %v11128 = vadd.f32 %v10839, %v11078
        %v11129 = vadd.f32 %v10840, %v11083
        %v11130 = vadd.f32 %v10841, %v11086
        %v11131 = vadd.f32 %v10842, %v11091
        %v11132 = vadd.f32 %v10843, %v11094
        %v11133 = vadd.f32 %v10844, %v11099
        %v11134 = vadd.f32 %v10845, %v11102
        %v11135 = vadd.f32 %v10846, %v11107
        %v11136 = vadd.f32 %v10847, %v11110
        %v11137 = vadd.f32 %v10848, %v11115
        %v11138 = vadd.f32 %v10849, %v11118
        %v11139 = vld [vmem:[#allocation3 + $0x58] sm:$0x8]
        %v11140 = vld [vmem:[%s8677] sm:$0xf]
        %v11141 = vld [vmem:[%s8677 + $0x4] sm:$0xf]
        %v11142 = vld [vmem:[%s8677 + $0x8] sm:$0xf]
        %v11143 = vld [vmem:[%s8677 + $0xc] sm:$0xf]
        %v11144 = vld [vmem:[%s8677 + $0x10] sm:$0xf]
        %v11145 = vld [vmem:[%s8677 + $0x14] sm:$0xf]
        %v11146 = vld [vmem:[%s8677 + $0x18] sm:$0xf]
        %v11147 = vld [vmem:[%s8677 + $0x1c] sm:$0xf]
        %v11148 = vld [vmem:[%s8677 + $0x20] sm:$0xf]
        %v11149 = vld [vmem:[%s8677 + $0x24] sm:$0xf]
        %v11150 = vld [vmem:[%s8677 + $0x28] sm:$0xf]
        %v11151 = vld [vmem:[%s8677 + $0x2c] sm:$0xf]
        %v11152 = vld [vmem:[%s8677 + $0x30] sm:$0xf]
        %v11153 = vld [vmem:[%s8677 + $0x34] sm:$0xf]
        %v11154 = vld [vmem:[%s8677 + $0x38] sm:$0xf]
        %v11155 = vld [vmem:[%s8677 + $0x3c] sm:$0xf]
        %v11157 = vunpack.c.l.b16 %v11139
        %v11158 = vpack.c.b16 %v10623, %v11157
        %v11159 = vrot.slane %v11158, 3
        %v11160 = vrot.slane %v10642, 3
        %v11161 = vsel %vm3428, %v11159, %v11160
        %v11162 = vrot.slane %v10643, 3
        %v11163 = vsel %vm3428, %v11160, %v11162
        %v11164 = vrot.slane %v10644, 3
        %v11165 = vsel %vm3428, %v11162, %v11164
        %v11166 = vrot.slane %v10645, 3
        %v11167 = vsel %vm3428, %v11164, %v11166
        %v11168 = vrot.slane %v10646, 3
        %v11169 = vsel %vm3428, %v11166, %v11168
        %v11170 = vrot.slane %v10647, 3
        %v11171 = vsel %vm3428, %v11168, %v11170
        %v11172 = vrot.slane %v10648, 3
        %v11173 = vsel %vm3428, %v11170, %v11172
        %v11174 = vrot.slane %v10649, 3
        %v11175 = vsel %vm3428, %v11172, %v11174
        %v11176 = vrot.slane %v10869, 3
        %v11177 = vsel %vm3428, %v11174, %v11176
        %v11203 = vunpack.c.l.b16 %v11140
        %v11204 = vunpack.c.l.b16 %v11141
        %v11205 = vunpack.c.l.b16 %v11142
        %v11206 = vunpack.c.l.b16 %v11143
        %v11207 = vunpack.c.l.b16 %v11144
        %v11208 = vunpack.c.l.b16 %v11145
        %v11209 = vunpack.c.l.b16 %v11146
        %v11210 = vunpack.c.l.b16 %v11147
        %v11211 = vunpack.c.l.b16 %v11148
        %v11212 = vunpack.c.l.b16 %v11149
        %v11213 = vunpack.c.l.b16 %v11150
        %v11214 = vunpack.c.l.b16 %v11151
        %v11215 = vunpack.c.l.b16 %v11152
        %v11216 = vunpack.c.l.b16 %v11153
        %v11217 = vunpack.c.l.b16 %v11154
        %v11218 = vunpack.c.l.b16 %v11155
        %v11219 = vpack.c.b16 %v11204, %v11203
        %v11220 = vpack.c.b16 %v11206, %v11205
        %v11221 = vpack.c.b16 %v11208, %v11207
        %v11222 = vpack.c.b16 %v11210, %v11209
        %v11223 = vpack.c.b16 %v11212, %v11211
        %v11224 = vpack.c.b16 %v11214, %v11213
        %v11225 = vpack.c.b16 %v11216, %v11215
        %v11226 = vpack.c.b16 %v11218, %v11217
        %11235 = vmatprep.subr.bf16.mxu0 0
        %11236 = vmatpush1.bf16.msra.mxu0 %v11219
        %11237 = vmatprep.subr.bf16.mxu0 0
        %11238 = vmatpush1.bf16.msra.mxu0 %v11220
        %11239 = vmatprep.subr.bf16.mxu0 0
        %11240 = vmatpush1.bf16.msra.mxu0 %v11221
        %11241 = vmatprep.subr.bf16.mxu0 0
        %11242 = vmatpush1.bf16.msra.mxu0 %v11222
        %11243 = vmatprep.subr.bf16.mxu0 0
        %11244 = vmatpush1.bf16.msra.mxu0 %v11223
        %11245 = vmatprep.subr.bf16.mxu0 0
        %11246 = vmatpush1.bf16.msra.mxu0 %v11224
        %11247 = vmatprep.subr.bf16.mxu0 0
        %11248 = vmatpush1.bf16.msra.mxu0 %v11225
        %11249 = vmatprep.subr.bf16.mxu0 0
        %11250 = vmatpush1.bf16.msra.mxu0 %v11226
        %11251 = vmatprep.subr.bf16.mxu0 0
        %11252 = vmatpush1.bf16.msra.mxu0 0
        %11253 = vmatprep.subr.bf16.mxu0 0
        %11254 = vmatpush1.bf16.msra.mxu0 0
        %11255 = vmatprep.subr.bf16.mxu0 0
        %11256 = vmatpush1.bf16.msra.mxu0 0
        %11257 = vmatprep.subr.bf16.mxu0 0
        %11258 = vmatpush1.bf16.msra.mxu0 0
        %11259 = vmatprep.subr.bf16.mxu0 0
        %11260 = vmatpush1.bf16.msra.mxu0 0
        %11261 = vmatprep.subr.bf16.mxu0 0
        %11262 = vmatpush1.bf16.msra.mxu0 0
        %11263 = vmatprep.subr.bf16.mxu0 0
        %11264 = vmatpush1.bf16.msra.mxu0 0
        %11265 = vmatprep.subr.bf16.mxu0 0
        %11266 = vmatpush1.bf16.msra.mxu0 0
        %11267 = vmatprep.mubr.bf16.mxu0 0
        %11268 = vmatmul.mubr.bf16.gmra.mrb[0].mxu0 %v11161
        %v11269 = vpop.f32.mrb[0].mxu0
        %v11270 = vadd.f32 0.0, %v11269
        %v11271 = vpop.f32.mrb[0].mxu0
        %v11272 = vpop.f32.mrb[0].mxu0
        %v11273 = vadd.f32 0.0, %v11272
        %v11274 = vpop.f32.mrb[0].mxu0
        %11275 = vmatprep.mubr.bf16.mxu0 0
        %11276 = vmatmul.mubr.bf16.gmra.mrb[0].mxu0 %v11163
        %v11277 = vpop.f32.mrb[0].mxu0
        %v11278 = vadd.f32 0.0, %v11277
        %v11279 = vpop.f32.mrb[0].mxu0
        %v11280 = vpop.f32.mrb[0].mxu0
        %v11281 = vadd.f32 0.0, %v11280
        %v11282 = vpop.f32.mrb[0].mxu0
        %11283 = vmatprep.mubr.bf16.mxu0 0
        %11284 = vmatmul.mubr.bf16.gmra.mrb[0].mxu0 %v11165
        %v11285 = vpop.f32.mrb[0].mxu0
        %v11286 = vadd.f32 0.0, %v11285
        %v11287 = vpop.f32.mrb[0].mxu0
        %v11288 = vpop.f32.mrb[0].mxu0
        %v11289 = vadd.f32 0.0, %v11288
        %v11290 = vpop.f32.mrb[0].mxu0
        %11291 = vmatprep.mubr.bf16.mxu0 0
        %11292 = vmatmul.mubr.bf16.gmra.mrb[0].mxu0 %v11167
        %v11293 = vpop.f32.mrb[0].mxu0
        %v11294 = vadd.f32 0.0, %v11293
        %v11295 = vpop.f32.mrb[0].mxu0
        %v11296 = vpop.f32.mrb[0].mxu0
        %v11297 = vadd.f32 0.0, %v11296
        %v11298 = vpop.f32.mrb[0].mxu0
        %11299 = vmatprep.mubr.bf16.mxu0 0
        %11300 = vmatmul.mubr.bf16.gmra.mrb[0].mxu0 %v11169
        %v11301 = vpop.f32.mrb[0].mxu0
        %v11302 = vadd.f32 0.0, %v11301
        %v11303 = vpop.f32.mrb[0].mxu0
        %v11304 = vpop.f32.mrb[0].mxu0
        %v11305 = vadd.f32 0.0, %v11304
        %v11306 = vpop.f32.mrb[0].mxu0
        %11307 = vmatprep.mubr.bf16.mxu0 0
        %11308 = vmatmul.mubr.bf16.gmra.mrb[0].mxu0 %v11171
        %v11309 = vpop.f32.mrb[0].mxu0
        %v11310 = vadd.f32 0.0, %v11309
        %v11311 = vpop.f32.mrb[0].mxu0
        %v11312 = vpop.f32.mrb[0].mxu0
        %v11313 = vadd.f32 0.0, %v11312
        %v11314 = vpop.f32.mrb[0].mxu0
        %11315 = vmatprep.mubr.bf16.mxu0 0
        %11316 = vmatmul.mubr.bf16.gmra.mrb[0].mxu0 %v11173
        %v11317 = vpop.f32.mrb[0].mxu0
        %v11318 = vadd.f32 0.0, %v11317
        %v11319 = vpop.f32.mrb[0].mxu0
        %v11320 = vpop.f32.mrb[0].mxu0
        %v11321 = vadd.f32 0.0, %v11320
        %v11322 = vpop.f32.mrb[0].mxu0
        %11323 = vmatprep.mubr.bf16.mxu0 0
        %11324 = vmatmul.mubr.bf16.gmra.mrb[0].mxu0 %v11175
        %v11325 = vpop.f32.mrb[0].mxu0
        %v11326 = vadd.f32 0.0, %v11325
        %v11327 = vpop.f32.mrb[0].mxu0
        %v11328 = vpop.f32.mrb[0].mxu0
        %v11329 = vadd.f32 0.0, %v11328
        %v11330 = vpop.f32.mrb[0].mxu0
        %11331 = vmatprep.mubr.bf16.mxu0 0
        %11332 = vmatmul.mubr.bf16.gmra.mrb[0].mxu0 %v11177
        %v11333 = vpop.f32.mrb[0].mxu0
        %v11334 = vadd.f32 0.0, %v11333
        %v11335 = vpop.f32.mrb[0].mxu0
        %v11336 = vpop.f32.mrb[0].mxu0
        %v11337 = vadd.f32 0.0, %v11336
        %v11338 = vpop.f32.mrb[0].mxu0
        %11339 = vdwg.mxu0
        %v11340 = vadd.f32 %v11121, %v11270
        %v11341 = vadd.f32 %v11122, %v11273
        %v11342 = vadd.f32 %v11123, %v11278
        %v11343 = vadd.f32 %v11124, %v11281
        %v11344 = vadd.f32 %v11125, %v11286
        %v11345 = vadd.f32 %v11126, %v11289
        %v11346 = vadd.f32 %v11127, %v11294
        %v11347 = vadd.f32 %v11128, %v11297
        %v11348 = vadd.f32 %v11129, %v11302
        %v11349 = vadd.f32 %v11130, %v11305
        %v11350 = vadd.f32 %v11131, %v11310
        %v11351 = vadd.f32 %v11132, %v11313
        %v11352 = vadd.f32 %v11133, %v11318
        %v11353 = vadd.f32 %v11134, %v11321
        %v11354 = vadd.f32 %v11135, %v11326
        %v11355 = vadd.f32 %v11136, %v11329
        %v11356 = vadd.f32 %v11137, %v11334
        %v11357 = vadd.f32 %v11138, %v11337
        %v11358 = vadd.f32 %v11340, %v8900
        %v11359 = vadd.f32 %v11341, %v8900
        %v11360 = vadd.f32 %v11342, %v8900
        %v11361 = vadd.f32 %v11343, %v8900
        %v11362 = vadd.f32 %v11344, %v8900
        %v11363 = vadd.f32 %v11345, %v8900
        %v11364 = vadd.f32 %v11346, %v8900
        %v11365 = vadd.f32 %v11347, %v8900
        %v11366 = vadd.f32 %v11348, %v8900
        %v11367 = vadd.f32 %v11349, %v8900
        %v11368 = vadd.f32 %v11350, %v8900
        %v11369 = vadd.f32 %v11351, %v8900
        %v11370 = vadd.f32 %v11352, %v8900
        %v11371 = vadd.f32 %v11353, %v8900
        %v11372 = vadd.f32 %v11354, %v8900
        %v11373 = vadd.f32 %v11355, %v8900
        %v11374 = vadd.f32 %v11356, %v8900
        %v11375 = vadd.f32 %v11357, %v8900
        %v11376 = vld [vmem:[%s689] sm:$0xff]
        %v11377 = vld [vmem:[%s689 + $0x8] sm:$0xff]
        %v11378 = vadd.f32 %v11358, %v11376
        %v11379 = vadd.f32 %v11359, %v11377
        %v11380 = vmax.f32 %v11378, 0.0
        %v11381 = vmax.f32 %v11379, 0.0
        %s11382 = scalar_lea.vmem %s271, 128 [#allocation10]
        %11383 = vst [vmem:[%s11382] sm:$0xff] %v11380
        %11384 = vst [vmem:[%s11382 + $0x8] sm:$0xff] %v11381
        %v11385 = vld [vmem:[%s727] sm:$0xff]
        %v11386 = vld [vmem:[%s727 + $0x8] sm:$0xff]
        %v11389 = vrot.slane %v11385, 6
        %v11390 = vrot.slane %v11386, 6
        %v11391 = vsel %vm8932, %v11389, %v11390
        %v11395 = vadd.f32 %v11360, %v11389
        %v11396 = vadd.f32 %v11361, %v11391
        %v11397 = vadd.f32 %v11362, %v11390
        %v11398 = vmax.f32 %v11395, 0.0
        %v11399 = vmax.f32 %v11396, 0.0
        %v11400 = vmax.f32 %v11397, 0.0
        %s11401 = scalar_lea.vmem %s271, 144 [#allocation10]
        %11402 = vst [vmem:[%s11401 - $0x2] sm:$0xfc] %v11398
        %11403 = vst [vmem:[%s11401 + $0x6] sm:$0xff] %v11399
        %11404 = vst [vmem:[%s11401 + $0xe] sm:$0x3] %v11400
        %v11405 = vld [vmem:[%s765] sm:$0xff]
        %v11406 = vld [vmem:[%s765 + $0x8] sm:$0xff]
        %v11409 = vrot.slane %v11405, 4
        %v11410 = vrot.slane %v11406, 4
        %v11411 = vsel %vm8953, %v11409, %v11410
        %v11415 = vadd.f32 %v11362, %v11409
        %v11416 = vadd.f32 %v11363, %v11411
        %v11417 = vadd.f32 %v11364, %v11410
        %v11418 = vmax.f32 %v11415, 0.0
        %v11419 = vmax.f32 %v11416, 0.0
        %v11420 = vmax.f32 %v11417, 0.0
        %s11421 = scalar_lea.vmem %s271, 160 [#allocation10]
        %11422 = vst [vmem:[%s11421 - $0x4] sm:$0xf0] %v11418
        %11423 = vst [vmem:[%s11421 + $0x4] sm:$0xff] %v11419
        %11424 = vst [vmem:[%s11421 + $0xc] sm:$0xf] %v11420
        %v11425 = vld [vmem:[%s803] sm:$0xff]
        %v11426 = vld [vmem:[%s803 + $0x8] sm:$0xff]
        %v11429 = vrot.slane %v11425, 2
        %v11430 = vrot.slane %v11426, 2
        %v11431 = vsel %vm8974, %v11429, %v11430
        %v11435 = vadd.f32 %v11364, %v11429
        %v11436 = vadd.f32 %v11365, %v11431
        %v11437 = vadd.f32 %v11366, %v11430
        %v11438 = vmax.f32 %v11435, 0.0
        %v11439 = vmax.f32 %v11436, 0.0
        %v11440 = vmax.f32 %v11437, 0.0
        %s11441 = scalar_lea.vmem %s271, 176 [#allocation10]
        %11442 = vst [vmem:[%s11441 - $0x6] sm:$0xc0] %v11438
        %11443 = vst [vmem:[%s11441 + $0x2] sm:$0xff] %v11439
        %11444 = vst [vmem:[%s11441 + $0xa] sm:$0x3f] %v11440
        %v11445 = vld [vmem:[%s839] sm:$0xff]
        %v11446 = vld [vmem:[%s839 + $0x8] sm:$0xff]
        %v11447 = vadd.f32 %v11367, %v11445
        %v11448 = vadd.f32 %v11368, %v11446
        %v11449 = vmax.f32 %v11447, 0.0
        %v11450 = vmax.f32 %v11448, 0.0
        %s11451 = scalar_lea.vmem %s271, 192 [#allocation10]
        %11452 = vst [vmem:[%s11451] sm:$0xff] %v11449
        %11453 = vst [vmem:[%s11451 + $0x8] sm:$0xff] %v11450
        %v11454 = vld [vmem:[%s877] sm:$0xff]
        %v11455 = vld [vmem:[%s877 + $0x8] sm:$0xff]
        %v11458 = vrot.slane %v11454, 6
        %v11459 = vrot.slane %v11455, 6
        %v11460 = vsel %vm8932, %v11458, %v11459
        %v11464 = vadd.f32 %v11369, %v11458
        %v11465 = vadd.f32 %v11370, %v11460
        %v11466 = vadd.f32 %v11371, %v11459
        %v11467 = vmax.f32 %v11464, 0.0
        %v11468 = vmax.f32 %v11465, 0.0
        %v11469 = vmax.f32 %v11466, 0.0
        %s11470 = scalar_lea.vmem %s271, 208 [#allocation10]
        %11471 = vst [vmem:[%s11470 - $0x2] sm:$0xfc] %v11467
        %11472 = vst [vmem:[%s11470 + $0x6] sm:$0xff] %v11468
        %11473 = vst [vmem:[%s11470 + $0xe] sm:$0x3] %v11469
        %v11474 = vld [vmem:[%s915] sm:$0xff]
        %v11475 = vld [vmem:[%s915 + $0x8] sm:$0xff]
        %v11478 = vrot.slane %v11474, 4
        %v11479 = vrot.slane %v11475, 4
        %v11480 = vsel %vm8953, %v11478, %v11479
        %v11484 = vadd.f32 %v11371, %v11478
        %v11485 = vadd.f32 %v11372, %v11480
        %v11486 = vadd.f32 %v11373, %v11479
        %v11487 = vmax.f32 %v11484, 0.0
        %v11488 = vmax.f32 %v11485, 0.0
        %v11489 = vmax.f32 %v11486, 0.0
        %s11490 = scalar_lea.vmem %s271, 224 [#allocation10]
        %11491 = vst [vmem:[%s11490 - $0x4] sm:$0xf0] %v11487
        %11492 = vst [vmem:[%s11490 + $0x4] sm:$0xff] %v11488
        %11493 = vst [vmem:[%s11490 + $0xc] sm:$0xf] %v11489
        %v11494 = vld [vmem:[%s953] sm:$0xff]
        %v11495 = vld [vmem:[%s953 + $0x8] sm:$0xff]
        %v11498 = vrot.slane %v11494, 2
        %v11499 = vrot.slane %v11495, 2
        %v11500 = vsel %vm8974, %v11498, %v11499
        %v11504 = vadd.f32 %v11373, %v11498
        %v11505 = vadd.f32 %v11374, %v11500
        %v11506 = vadd.f32 %v11375, %v11499
        %v11507 = vmax.f32 %v11504, 0.0
        %v11508 = vmax.f32 %v11505, 0.0
        %v11509 = vmax.f32 %v11506, 0.0
        %s11510 = scalar_lea.vmem %s271, 240 [#allocation10]
        %11511 = vst [vmem:[%s11510 - $0x6] sm:$0xc0] %v11507
        %11512 = vst [vmem:[%s11510 + $0x2] sm:$0xff] %v11508
        %11513 = vst [vmem:[%s11510 + $0xa] sm:$0x3f] %v11509
        %s11514 = sand.u32 %s141, 1
        %s11515 = scalar_lea.sflag [#allocation6], %s11514
        %s11516 = sand.u32 %s141, 1
        %s11517 = smul.addr %s11516, 256
        %s11518 = scalar_lea.vmem [#allocation10], %s11517
        // Predicated region
        $region57: #{tpu_custom_call.1} parent=39 // pred_check
          %p11519 = pneg %p151
        $region58: #{tpu_custom_call.1} parent=39 // pred_check_branch
          %11521 = sbr.rel (%p11519) target = $region60
        $region59: #{tpu_custom_call.1} parent=39 // pred_region
          %s11523 = ssub.s32 4096, 4096
          %11524 = vsyncadd %s11515, %s11523
          %s11525 = smul.addr %s23, 32
          %s11526 = smul.addr %s11525, 128
          %s11527 = scalar_lea.hbm %s5, %s11526
          %s11528 = sshll.u32 %s11518, 4
          %s11529 = int_to_ptr.vmem [resolvable:$true] %s11528
          %11534 = dma.vmem_to_hbm [thread:$0]  %s11529, 4096, %s11527, %s11515, 128, 128, 8
        $region60: #{tpu_custom_call.1} parent=39 // pred_fallthru
          _
      $region40: #{tpu_custom_call.1} parent=5 // pred_fallthru
        _
      %p11535 = scmp.le.s32.totalorder 2, %s18
      // Predicated region
      $region61: #{tpu_custom_call.1} parent=5 // pred_check
        %p11536 = pneg %p11535
      $region62: #{tpu_custom_call.1} parent=5 // pred_check_branch
        %11538 = sbr.rel (%p11536) target = $region64
      $region63: #{tpu_custom_call.1} parent=5 // pred_region
        %s11539 = ssub.s32 %s18, 2
        // Predicated region
        $region65: #{tpu_custom_call.1} parent=63 // pred_check
          %p11540 = pneg %p157
        $region66: #{tpu_custom_call.1} parent=63 // pred_check_branch
          %11542 = sbr.rel (%p11540) target = $region68
        $region67: #{tpu_custom_call.1} parent=63 // pred_region
          %s11543 = sand.u32 %s142, 1
          %s11544 = scalar_lea.sflag [#allocation6], %s11543
          %s11545 = sand.u32 %s142, 1
          %s11546 = smul.addr %s11545, 256
          %s11547 = scalar_lea.vmem [#allocation10], %s11546
          %11548 = dma.done %s11544, 4096
        $region68: #{tpu_custom_call.1} parent=63 // pred_fallthru
          _
      $region64: #{tpu_custom_call.1} parent=5 // pred_fallthru
        _
    $region6: #{tpu_custom_call.1} parent=1 // loop_footer
      %s22 = sadd.s32 1, %s18
    $region7: #{tpu_custom_call.1} parent=1 // loop_footer_branch
      %17 = sbr.rel target = $region3
    $region8: #{tpu_custom_call.1} parent=1 // loop_exit
      _
    %11549 = vsyncpa [#allocation5], 1
    %s11550 = scalar_lea.sflag [#allocation5], 1
    %11551 = vsyncpa %s11550, 1
    %11552 = vsyncpa [#allocation8], 1
    %11553 = vsyncpa [#allocation6], 1
    %s11554 = scalar_lea.sflag [#allocation6], 1
    %11555 = vsyncpa %s11554, 1

</llo_original>
